<compile_context>
chip_gen: v6e
topology: v6e:2x2x1
jax: 0.10.0
libtpu: 0.0.40
codegen_flags: <defaults>
</compile_context>

<pallas_src>
import functools
import math

import numpy as np

import jax
import jax.numpy as jnp
from jax.experimental import pallas as pl
from jax.experimental.pallas import tpu as pltpu


def clip_encoder_layer_kernel(
    x_ref,
    g1_ref, be1_ref,
    wqkv_ref, bqkv_ref,      # pre-permuted to [Q | K | V] head-major, scale folded into Q
    wout_ref, bout_ref,
    g2_ref, be2_ref,
    w1_ref, b1_ref,
    w2_ref, b2_ref,
    o_ref,
    *, num_heads, head_dim, eps, block_b, seq_len,
):
    f32 = jnp.float32
    D = num_heads * head_dim
    M = block_b * seq_len
    mxu_dtype = wqkv_ref.dtype          # bf16 weights -> bf16 MXU inputs, f32 accumulate

    # Flatten the batch block so every dense matmul sees a large M.
    x = x_ref[...].astype(f32).reshape(M, D)

    # ---------------- LayerNorm 1 (f32 statistics) ----------------
    mu = jnp.mean(x, axis=-1, keepdims=True)
    var = jnp.mean(jnp.square(x - mu), axis=-1, keepdims=True)
    h = (x - mu) * jax.lax.rsqrt(var + eps)
    h = h * g1_ref[0].astype(f32) + be1_ref[0].astype(f32)

    # ---------------- QKV projection (single large MXU matmul) ----------------
    qkv = jnp.dot(h.astype(mxu_dtype), wqkv_ref[...],
                  preferred_element_type=f32) + bqkv_ref[0].astype(f32)
    qkv = qkv.reshape(block_b, seq_len, 3 * D)        # leading-dim split (free)

    # ---------------- Self-attention (per head, batched over block_b) ---------
    # concat_h(o_h) @ Wout  ==  sum_h  o_h @ Wout[h*hd:(h+1)*hd, :]
    wout = wout_ref[...]
    acc = x + bout_ref[0].astype(f32)                 # residual + out_proj bias
    for hidx in range(num_heads):
        c0 = hidx * head_dim
        q = qkv[:, :, c0:c0 + head_dim].astype(mxu_dtype)              # (Bb,S,hd)
        k = qkv[:, :, D + c0:D + c0 + head_dim].astype(mxu_dtype)      # (Bb,S,hd)
        v = qkv[:, :, 2 * D + c0:2 * D + c0 + head_dim].astype(mxu_dtype)

        # scores + softmax statistics in f32 (scale already folded into Q)
        s = jnp.einsum("bqd,bkd->bqk", q, k, preferred_element_type=f32)
        s = s - jnp.max(s, axis=-1, keepdims=True)
        p = jnp.exp(s)                                                 # unnormalized
        l = jnp.sum(p, axis=-1, keepdims=True)                         # (Bb,S,1)

        o_h = jnp.einsum("bqk,bkd->bqd", p.astype(mxu_dtype), v,
                         preferred_element_type=f32)                   # (Bb,S,hd)
        o_h = o_h * pl.reciprocal(l, approx=True)     # normalize after PV (EUP)

        # fold concat + out_proj: accumulate this head's contribution
        acc = acc + jnp.dot(o_h.reshape(M, head_dim).astype(mxu_dtype),
                            wout[c0:c0 + head_dim, :],
                            preferred_element_type=f32)
    x = acc

    # ---------------- LayerNorm 2 ----------------
    mu2 = jnp.mean(x, axis=-1, keepdims=True)
    var2 = jnp.mean(jnp.square(x - mu2), axis=-1, keepdims=True)
    h2 = (x - mu2) * jax.lax.rsqrt(var2 + eps)
    h2 = h2 * g2_ref[0].astype(f32) + be2_ref[0].astype(f32)

    # ---------------- MLP (quick_gelu) ----------------
    f = jnp.dot(h2.astype(mxu_dtype), w1_ref[...],
                preferred_element_type=f32) + b1_ref[0].astype(f32)
    f = f * jax.nn.sigmoid(1.702 * f)                 # quick_gelu in f32 (VPU/EUP)
    f = jnp.dot(f.astype(mxu_dtype), w2_ref[...],
                preferred_element_type=f32) + b2_ref[0].astype(f32)

    # residual 2 + store
    o_ref[...] = (x + f).reshape(block_b, seq_len, D).astype(o_ref.dtype)


def clip_encoder_layer(x, params, *, num_heads, eps=1e-5, block_b=None,
                       weight_dtype=jnp.bfloat16):
    B, S, D = x.shape
    head_dim = D // num_heads
    assert head_dim * num_heads == D
    I = params["w1"].shape[1]

    # --- VMEM limit with headroom (per-generation) ---------------------------
    try:
        vmem_cap = int(pltpu.get_tpu_info().vmem_capacity_bytes)
    except Exception:
        vmem_cap = 128 * 1024 * 1024
    vmem_limit = int(vmem_cap * 3 // 4)     # ~96 MiB on v5e/v6e, ~48 MiB on v7x

    # --- Batch block: M ~ 512-1024 rows but always >= 2 parallel grid steps ---
    if block_b is None:
        target_m = 1024 if vmem_cap >= (100 << 20) else 512
        block_b = 1
        for cand in range(1, B + 1):
            if B % cand != 0:
                continue
            if cand != 1 and cand * S > target_m:
                continue
            if B >= 2 and B // cand < 2:
                continue                     # keep both v7x TensorCores busy
            block_b = cand
    assert B % block_b == 0

    # --- Wrapper-side weight prep --------------------------------------------
    # Permute qkv columns: interleaved per-head [q_h|k_h|v_h] -> contiguous
    # head-major [Q | K | V]; fold the 1/sqrt(head_dim) attention scale into Q.
    hd3 = 3 * head_dim
    p_idx = np.arange(3)[:, None, None]
    h_idx = np.arange(num_heads)[None, :, None]
    d_idx = np.arange(head_dim)[None, None, :]
    perm = (h_idx * hd3 + p_idx * head_dim + d_idx).reshape(-1)

    scale = 1.0 / math.sqrt(head_dim)
    col_scale = jnp.concatenate(
        [jnp.full((D,), scale, jnp.float32), jnp.ones((2 * D,), jnp.float32)])
    wqkv = (params["wqkv"].astype(jnp.float32)[:, perm] * col_scale).astype(weight_dtype)
    bqkv = params["bqkv"].astype(jnp.float32)[:, perm] * col_scale   # stays f32
    wout = params["wout"].astype(weight_dtype)
    w1 = params["w1"].astype(weight_dtype)
    w2 = params["w2"].astype(weight_dtype)

    # --- Cost estimate so XLA schedules around this long fused call ----------
    flops = (2 * B * S * D * (3 * D)                  # qkv proj
             + 4 * B * num_heads * S * S * head_dim   # scores + PV
             + 2 * B * S * D * D                      # out_proj
             + 4 * B * S * D * I)                     # fc1 + fc2
    transcendentals = B * num_heads * S * S + B * S * I
    weight_bytes = sum(int(np.prod(a.shape)) * a.dtype.itemsize
                       for a in (wqkv, bqkv, wout, w1, w2))
    bytes_accessed = 2 * B * S * D * x.dtype.itemsize + weight_bytes

    kernel = functools.partial(
        clip_encoder_layer_kernel,
        num_heads=num_heads, head_dim=head_dim, eps=float(eps),
        block_b=block_b, seq_len=S,
    )

    def call(single_buffer_weights):
        def wspec(shape):
            if single_buffer_weights:
                # weights have a constant block index -> no double buffering
                return pl.BlockSpec(shape, lambda b: (0, 0),
                                    pipeline_mode=pl.Buffered(1))
            return pl.BlockSpec(shape, lambda b: (0, 0))

        return pl.pallas_call(
            kernel,
            out_shape=jax.ShapeDtypeStruct((B, S, D), x.dtype),
            grid=(B // block_b,),
            in_specs=[
                pl.BlockSpec((block_b, S, D), lambda b: (b, 0, 0)),  # hidden_states
                wspec((1, D)),                                       # ln1 gamma
                wspec((1, D)),                                       # ln1 beta
                wspec((D, 3 * D)),                                   # qkv weight
                wspec((1, 3 * D)),                                   # qkv bias
                wspec((D, D)),                                       # out_proj weight
                wspec((1, D)),                                       # out_proj bias
                wspec((1, D)),                                       # ln2 gamma
                wspec((1, D)),                                       # ln2 beta
                wspec((D, I)),                                       # fc1 weight
                wspec((1, I)),                                       # fc1 bias
                wspec((I, D)),                                       # fc2 weight
                wspec((1, D)),                                       # fc2 bias
            ],
            out_specs=pl.BlockSpec((block_b, S, D), lambda b: (b, 0, 0)),
            compiler_params=pltpu.CompilerParams(
                dimension_semantics=("parallel",),
                vmem_limit_bytes=vmem_limit,
            ),
            cost_estimate=pl.CostEstimate(
                flops=int(flops), transcendentals=int(transcendentals),
                bytes_accessed=int(bytes_accessed)),
        )(
            x,
            params["ln1_g"], params["ln1_b"],
            wqkv, bqkv,
            wout, params["bout"],
            params["ln2_g"], params["ln2_b"],
            w1, params["b1"],
            w2, params["b2"],
        )

    try:
        return call(single_buffer_weights=True)
    except Exception:
        # pl.Buffered(1) not accepted by this jax build -> default buffering.
        return call(single_buffer_weights=False)


# ------------------------- pure-JAX reference -------------------------
def reference(x, params, *, num_heads, eps=1e-5):
    B, S, D = x.shape
    hd = D // num_heads

    def ln(v, g, b):
        mu = jnp.mean(v, axis=-1, keepdims=True)
        var = jnp.mean((v - mu) ** 2, axis=-1, keepdims=True)
        return (v - mu) * jax.lax.rsqrt(var + eps) * g + b

    h = ln(x, params["ln1_g"][0], params["ln1_b"][0])
    qkv = h @ params["wqkv"] + params["bqkv"][0]
    qkv = qkv.reshape(B, S, num_heads, 3 * hd)
    q, k, v = qkv[..., :hd], qkv[..., hd:2 * hd], qkv[..., 2 * hd:]
    scale = 1.0 / math.sqrt(math.sqrt(hd))
    w = jnp.einsum("bthc,bshc->bhts", q * scale, k * scale)
    w = jax.nn.softmax(w.astype(jnp.float32), axis=-1).astype(w.dtype)
    o = jnp.einsum("bhts,bshc->bthc", w, v).reshape(B, S, D)
    o = o @ params["wout"] + params["bout"][0]
    x = x + o
    h = ln(x, params["ln2_g"][0], params["ln2_b"][0])
    f = h @ params["w1"] + params["b1"][0]
    f = f * jax.nn.sigmoid(1.702 * f)
    f = f @ params["w2"] + params["b2"][0]
    return x + f


if __name__ == "__main__":
    # Small but lane-dense synthetic config: D multiple of 128, S multiple of 8.
    B, S, D, H = 4, 32, 128, 4
    I = 2 * D  # intermediate_size

    key = jax.random.PRNGKey(0)
    keys = jax.random.split(key, 12)

    def init(k, shape, scale=0.05):
        w = scale * jax.random.normal(k, shape, jnp.float32)
        # Pre-round through bf16 so the f32 reference and the bf16-MXU kernel
        # use numerically identical parameter values.
        return w.astype(jnp.bfloat16).astype(jnp.float32)

    params = {
        "ln1_g": jnp.ones((1, D), jnp.float32),
        "ln1_b": jnp.zeros((1, D), jnp.float32),
        "wqkv": init(keys[0], (D, 3 * D)),
        "bqkv": init(keys[1], (1, 3 * D)),
        "wout": init(keys[2], (D, D)),
        "bout": init(keys[3], (1, D)),
        "ln2_g": jnp.ones((1, D), jnp.float32),
        "ln2_b": jnp.zeros((1, D), jnp.float32),
        "w1": init(keys[4], (D, I)),
        "b1": init(keys[5], (1, I)),
        "w2": init(keys[6], (I, D)),
        "b2": init(keys[7], (1, D)),
    }

    x = jax.random.normal(keys[8], (B, S, D), jnp.float32)

    # Auto block_b selection picks block_b=2 -> grid=(2,), exercising the
    # index maps across grid steps and keeping >=2 parallel steps.
    out = clip_encoder_layer(x, params, num_heads=H)
    out = jax.block_until_ready(out)

    ref = reference(x, params, num_heads=H)
    assert out.shape == (B, S, D)
    err = jnp.max(jnp.abs(out - ref))
    # bf16 MXU inputs + approx reciprocal vs f32 reference -> loosened tolerance.
    assert jnp.allclose(out, ref, atol=2e-2, rtol=2e-2), f"max abs err = {err}"

    print("KERNEL_OK")
</pallas_src>

<mosaic_0001>
module attributes {stable_mosaic.version = 11 : i64} {
  func.func @clip_encoder_layer_kernel(%arg0: i32, %arg1: memref<2x32x128xf32, #tpu.memory_space<vmem>>, %arg2: memref<1x128xf32, #tpu.memory_space<vmem>>, %arg3: memref<1x128xf32, #tpu.memory_space<vmem>>, %arg4: memref<128x384xbf16, #tpu.memory_space<vmem>>, %arg5: memref<1x384xf32, #tpu.memory_space<vmem>>, %arg6: memref<128x128xbf16, #tpu.memory_space<vmem>>, %arg7: memref<1x128xf32, #tpu.memory_space<vmem>>, %arg8: memref<1x128xf32, #tpu.memory_space<vmem>>, %arg9: memref<1x128xf32, #tpu.memory_space<vmem>>, %arg10: memref<128x256xbf16, #tpu.memory_space<vmem>>, %arg11: memref<1x256xf32, #tpu.memory_space<vmem>>, %arg12: memref<256x128xbf16, #tpu.memory_space<vmem>>, %arg13: memref<1x128xf32, #tpu.memory_space<vmem>>, %arg14: memref<2x32x128xf32, #tpu.memory_space<vmem>>) attributes {dimension_semantics = [#tpu.dimension_semantics<parallel>], iteration_bounds = array<i64: 2>, scalar_prefetch = 0 : i64, scratch_operands = 0 : i64, tpu.core_type = #tpu.core_type<tc>, window_params = [{transform_indices = @transform_0, window_bounds = array<i64: 2, 32, 128>}, {pipeline_mode = #tpu.pipeline_mode<synchronous>, transform_indices = @transform_1, window_bounds = array<i64: 1, 128>}, {pipeline_mode = #tpu.pipeline_mode<synchronous>, transform_indices = @transform_2, window_bounds = array<i64: 1, 128>}, {pipeline_mode = #tpu.pipeline_mode<synchronous>, transform_indices = @transform_3, window_bounds = array<i64: 128, 384>}, {pipeline_mode = #tpu.pipeline_mode<synchronous>, transform_indices = @transform_4, window_bounds = array<i64: 1, 384>}, {pipeline_mode = #tpu.pipeline_mode<synchronous>, transform_indices = @transform_5, window_bounds = array<i64: 128, 128>}, {pipeline_mode = #tpu.pipeline_mode<synchronous>, transform_indices = @transform_6, window_bounds = array<i64: 1, 128>}, {pipeline_mode = #tpu.pipeline_mode<synchronous>, transform_indices = @transform_7, window_bounds = array<i64: 1, 128>}, {pipeline_mode = #tpu.pipeline_mode<synchronous>, transform_indices = @transform_8, window_bounds = array<i64: 1, 128>}, {pipeline_mode = #tpu.pipeline_mode<synchronous>, transform_indices = @transform_9, window_bounds = array<i64: 128, 256>}, {pipeline_mode = #tpu.pipeline_mode<synchronous>, transform_indices = @transform_10, window_bounds = array<i64: 1, 256>}, {pipeline_mode = #tpu.pipeline_mode<synchronous>, transform_indices = @transform_11, window_bounds = array<i64: 256, 128>}, {pipeline_mode = #tpu.pipeline_mode<synchronous>, transform_indices = @transform_12, window_bounds = array<i64: 1, 128>}, {transform_indices = @transform_13, window_bounds = array<i64: 2, 32, 128>}]} {
    %c0 = arith.constant 0 : index
    %c0_0 = arith.constant 0 : index
    %c0_1 = arith.constant 0 : index
    %0 = vector.load %arg1[%c0, %c0_0, %c0_1] : memref<2x32x128xf32, #tpu.memory_space<vmem>>, vector<2x32x128xf32>
    %1 = vector.shape_cast %0 : vector<2x32x128xf32> to vector<64x128xf32>
    %cst = arith.constant dense<0.000000e+00> : vector<64xf32>
    %2 = vector.multi_reduction <add>, %1, %cst [1] : vector<64x128xf32> to vector<64xf32>
    %3 = vector.shape_cast %2 : vector<64xf32> to vector<64x1xf32>
    %cst_2 = arith.constant 1.280000e+02 : f32
    %4 = vector.broadcast %cst_2 : f32 to vector<64x1xf32>
    %5 = arith.divf %3, %4 : vector<64x1xf32>
    %6 = vector.broadcast %5 : vector<64x1xf32> to vector<64x128xf32>
    %7 = arith.subf %1, %6 : vector<64x128xf32>
    %8 = arith.mulf %7, %7 : vector<64x128xf32>
    %cst_3 = arith.constant dense<0.000000e+00> : vector<64xf32>
    %9 = vector.multi_reduction <add>, %8, %cst_3 [1] : vector<64x128xf32> to vector<64xf32>
    %10 = vector.shape_cast %9 : vector<64xf32> to vector<64x1xf32>
    %cst_4 = arith.constant 1.280000e+02 : f32
    %11 = vector.broadcast %cst_4 : f32 to vector<64x1xf32>
    %12 = arith.divf %10, %11 : vector<64x1xf32>
    %13 = vector.broadcast %5 : vector<64x1xf32> to vector<64x128xf32>
    %14 = arith.subf %1, %13 : vector<64x128xf32>
    %cst_5 = arith.constant 9.99999974E-6 : f32
    %15 = vector.broadcast %cst_5 : f32 to vector<64x1xf32>
    %16 = arith.addf %12, %15 : vector<64x1xf32>
    %17 = math.rsqrt %16 : vector<64x1xf32>
    %18 = vector.broadcast %17 : vector<64x1xf32> to vector<64x128xf32>
    %19 = arith.mulf %14, %18 : vector<64x128xf32>
    %c0_6 = arith.constant 0 : index
    %c0_7 = arith.constant 0 : index
    %20 = vector.load %arg2[%c0_6, %c0_7] : memref<1x128xf32, #tpu.memory_space<vmem>>, vector<1x128xf32>
    %21 = vector.shape_cast %20 : vector<1x128xf32> to vector<128xf32>
    %22 = vector.shape_cast %21 : vector<128xf32> to vector<1x128xf32>
    %23 = vector.broadcast %22 : vector<1x128xf32> to vector<64x128xf32>
    %24 = arith.mulf %19, %23 : vector<64x128xf32>
    %c0_8 = arith.constant 0 : index
    %c0_9 = arith.constant 0 : index
    %25 = vector.load %arg3[%c0_8, %c0_9] : memref<1x128xf32, #tpu.memory_space<vmem>>, vector<1x128xf32>
    %26 = vector.shape_cast %25 : vector<1x128xf32> to vector<128xf32>
    %27 = vector.shape_cast %26 : vector<128xf32> to vector<1x128xf32>
    %28 = vector.broadcast %27 : vector<1x128xf32> to vector<64x128xf32>
    %29 = arith.addf %24, %28 : vector<64x128xf32>
    %30 = arith.truncf %29 : vector<64x128xf32> to vector<64x128xbf16>
    %c0_10 = arith.constant 0 : index
    %c0_11 = arith.constant 0 : index
    %31 = vector.load %arg4[%c0_10, %c0_11] : memref<128x384xbf16, #tpu.memory_space<vmem>>, vector<128x384xbf16>
    %cst_12 = arith.constant dense<0.000000e+00> : vector<64x384xf32>
    %32 = tpu.matmul %30, %31, %cst_12 {dimension_numbers = #tpu.dot_dimension_numbers<[1], [0], [0], [1], [0, 0, 1, 1], [], []>} : vector<64x128xbf16>, vector<128x384xbf16>, vector<64x384xf32> -> vector<64x384xf32>
    %c0_13 = arith.constant 0 : index
    %c0_14 = arith.constant 0 : index
    %33 = vector.load %arg5[%c0_13, %c0_14] : memref<1x384xf32, #tpu.memory_space<vmem>>, vector<1x384xf32>
    %34 = vector.shape_cast %33 : vector<1x384xf32> to vector<384xf32>
    %35 = vector.shape_cast %34 : vector<384xf32> to vector<1x384xf32>
    %36 = vector.broadcast %35 : vector<1x384xf32> to vector<64x384xf32>
    %37 = arith.addf %32, %36 : vector<64x384xf32>
    %38 = vector.shape_cast %37 : vector<64x384xf32> to vector<2x32x384xf32>
    %c0_15 = arith.constant 0 : index
    %c0_16 = arith.constant 0 : index
    %39 = vector.load %arg6[%c0_15, %c0_16] : memref<128x128xbf16, #tpu.memory_space<vmem>>, vector<128x128xbf16>
    %c0_17 = arith.constant 0 : index
    %c0_18 = arith.constant 0 : index
    %40 = vector.load %arg7[%c0_17, %c0_18] : memref<1x128xf32, #tpu.memory_space<vmem>>, vector<1x128xf32>
    %41 = vector.shape_cast %40 : vector<1x128xf32> to vector<128xf32>
    %42 = vector.shape_cast %41 : vector<128xf32> to vector<1x128xf32>
    %43 = vector.broadcast %42 : vector<1x128xf32> to vector<64x128xf32>
    %44 = arith.addf %1, %43 : vector<64x128xf32>
    %45 = vector.extract_strided_slice %38 {offsets = [0, 0, 0], sizes = [2, 32, 32], strides = [1, 1, 1]} : vector<2x32x384xf32> to vector<2x32x32xf32>
    %46 = arith.truncf %45 : vector<2x32x32xf32> to vector<2x32x32xbf16>
    %47 = vector.extract_strided_slice %38 {offsets = [0, 0, 128], sizes = [2, 32, 32], strides = [1, 1, 1]} : vector<2x32x384xf32> to vector<2x32x32xf32>
    %48 = arith.truncf %47 : vector<2x32x32xf32> to vector<2x32x32xbf16>
    %49 = vector.extract_strided_slice %38 {offsets = [0, 0, 256], sizes = [2, 32, 32], strides = [1, 1, 1]} : vector<2x32x384xf32> to vector<2x32x32xf32>
    %50 = arith.truncf %49 : vector<2x32x32xf32> to vector<2x32x32xbf16>
    "tpu.trace_start"() <{level = 10 : i32, message = "bqd,bkd->bqk"}> : () -> ()
    %cst_19 = arith.constant dense<0.000000e+00> : vector<2x32x32xf32>
    %51 = tpu.matmul %46, %48, %cst_19 {dimension_numbers = #tpu.dot_dimension_numbers<[2], [2], [1], [1], [0, 0, 0, 1, 1, 1], [0], [0]>} : vector<2x32x32xbf16>, vector<2x32x32xbf16>, vector<2x32x32xf32> -> vector<2x32x32xf32>
    "tpu.trace_stop"() : () -> ()
    %cst_20 = arith.constant dense<0xFF800000> : vector<2x32xf32>
    %52 = vector.multi_reduction <maximumf>, %51, %cst_20 [2] : vector<2x32x32xf32> to vector<2x32xf32>
    %53 = vector.shape_cast %52 : vector<2x32xf32> to vector<2x32x1xf32>
    %54 = vector.broadcast %53 : vector<2x32x1xf32> to vector<2x32x32xf32>
    %55 = arith.subf %51, %54 : vector<2x32x32xf32>
    %56 = math.exp %55 : vector<2x32x32xf32>
    %cst_21 = arith.constant dense<0.000000e+00> : vector<2x32xf32>
    %57 = vector.multi_reduction <add>, %56, %cst_21 [2] : vector<2x32x32xf32> to vector<2x32xf32>
    %58 = vector.shape_cast %57 : vector<2x32xf32> to vector<2x32x1xf32>
    %59 = arith.truncf %56 : vector<2x32x32xf32> to vector<2x32x32xbf16>
    "tpu.trace_start"() <{level = 10 : i32, message = "bqk,bkd->bqd"}> : () -> ()
    %cst_22 = arith.constant dense<0.000000e+00> : vector<2x32x32xf32>
    %60 = tpu.matmul %59, %50, %cst_22 {dimension_numbers = #tpu.dot_dimension_numbers<[2], [1], [1], [2], [0, 0, 0, 1, 1, 2], [0], [0]>} : vector<2x32x32xbf16>, vector<2x32x32xbf16>, vector<2x32x32xf32> -> vector<2x32x32xf32>
    "tpu.trace_stop"() : () -> ()
    %61 = tpu.reciprocal %58 {approx = true} : vector<2x32x1xf32> -> vector<2x32x1xf32>
    %62 = vector.broadcast %61 : vector<2x32x1xf32> to vector<2x32x32xf32>
    %63 = arith.mulf %60, %62 : vector<2x32x32xf32>
    %64 = vector.shape_cast %63 : vector<2x32x32xf32> to vector<64x32xf32>
    %65 = arith.truncf %64 : vector<64x32xf32> to vector<64x32xbf16>
    %66 = vector.extract_strided_slice %39 {offsets = [0, 0], sizes = [32, 128], strides = [1, 1]} : vector<128x128xbf16> to vector<32x128xbf16>
    %cst_23 = arith.constant dense<0.000000e+00> : vector<64x128xf32>
    %67 = tpu.matmul %65, %66, %cst_23 {dimension_numbers = #tpu.dot_dimension_numbers<[1], [0], [0], [1], [0, 0, 1, 1], [], []>} : vector<64x32xbf16>, vector<32x128xbf16>, vector<64x128xf32> -> vector<64x128xf32>
    %68 = arith.addf %44, %67 : vector<64x128xf32>
    %69 = vector.extract_strided_slice %38 {offsets = [0, 0, 32], sizes = [2, 32, 32], strides = [1, 1, 1]} : vector<2x32x384xf32> to vector<2x32x32xf32>
    %70 = arith.truncf %69 : vector<2x32x32xf32> to vector<2x32x32xbf16>
    %71 = vector.extract_strided_slice %38 {offsets = [0, 0, 160], sizes = [2, 32, 32], strides = [1, 1, 1]} : vector<2x32x384xf32> to vector<2x32x32xf32>
    %72 = arith.truncf %71 : vector<2x32x32xf32> to vector<2x32x32xbf16>
    %73 = vector.extract_strided_slice %38 {offsets = [0, 0, 288], sizes = [2, 32, 32], strides = [1, 1, 1]} : vector<2x32x384xf32> to vector<2x32x32xf32>
    %74 = arith.truncf %73 : vector<2x32x32xf32> to vector<2x32x32xbf16>
    "tpu.trace_start"() <{level = 10 : i32, message = "bqd,bkd->bqk"}> : () -> ()
    %cst_24 = arith.constant dense<0.000000e+00> : vector<2x32x32xf32>
    %75 = tpu.matmul %70, %72, %cst_24 {dimension_numbers = #tpu.dot_dimension_numbers<[2], [2], [1], [1], [0, 0, 0, 1, 1, 1], [0], [0]>} : vector<2x32x32xbf16>, vector<2x32x32xbf16>, vector<2x32x32xf32> -> vector<2x32x32xf32>
    "tpu.trace_stop"() : () -> ()
    %cst_25 = arith.constant dense<0xFF800000> : vector<2x32xf32>
    %76 = vector.multi_reduction <maximumf>, %75, %cst_25 [2] : vector<2x32x32xf32> to vector<2x32xf32>
    %77 = vector.shape_cast %76 : vector<2x32xf32> to vector<2x32x1xf32>
    %78 = vector.broadcast %77 : vector<2x32x1xf32> to vector<2x32x32xf32>
    %79 = arith.subf %75, %78 : vector<2x32x32xf32>
    %80 = math.exp %79 : vector<2x32x32xf32>
    %cst_26 = arith.constant dense<0.000000e+00> : vector<2x32xf32>
    %81 = vector.multi_reduction <add>, %80, %cst_26 [2] : vector<2x32x32xf32> to vector<2x32xf32>
    %82 = vector.shape_cast %81 : vector<2x32xf32> to vector<2x32x1xf32>
    %83 = arith.truncf %80 : vector<2x32x32xf32> to vector<2x32x32xbf16>
    "tpu.trace_start"() <{level = 10 : i32, message = "bqk,bkd->bqd"}> : () -> ()
    %cst_27 = arith.constant dense<0.000000e+00> : vector<2x32x32xf32>
    %84 = tpu.matmul %83, %74, %cst_27 {dimension_numbers = #tpu.dot_dimension_numbers<[2], [1], [1], [2], [0, 0, 0, 1, 1, 2], [0], [0]>} : vector<2x32x32xbf16>, vector<2x32x32xbf16>, vector<2x32x32xf32> -> vector<2x32x32xf32>
    "tpu.trace_stop"() : () -> ()
    %85 = tpu.reciprocal %82 {approx = true} : vector<2x32x1xf32> -> vector<2x32x1xf32>
    %86 = vector.broadcast %85 : vector<2x32x1xf32> to vector<2x32x32xf32>
    %87 = arith.mulf %84, %86 : vector<2x32x32xf32>
    %88 = vector.shape_cast %87 : vector<2x32x32xf32> to vector<64x32xf32>
    %89 = arith.truncf %88 : vector<64x32xf32> to vector<64x32xbf16>
    %90 = vector.extract_strided_slice %39 {offsets = [32, 0], sizes = [32, 128], strides = [1, 1]} : vector<128x128xbf16> to vector<32x128xbf16>
    %cst_28 = arith.constant dense<0.000000e+00> : vector<64x128xf32>
    %91 = tpu.matmul %89, %90, %cst_28 {dimension_numbers = #tpu.dot_dimension_numbers<[1], [0], [0], [1], [0, 0, 1, 1], [], []>} : vector<64x32xbf16>, vector<32x128xbf16>, vector<64x128xf32> -> vector<64x128xf32>
    %92 = arith.addf %68, %91 : vector<64x128xf32>
    %93 = vector.extract_strided_slice %38 {offsets = [0, 0, 64], sizes = [2, 32, 32], strides = [1, 1, 1]} : vector<2x32x384xf32> to vector<2x32x32xf32>
    %94 = arith.truncf %93 : vector<2x32x32xf32> to vector<2x32x32xbf16>
    %95 = vector.extract_strided_slice %38 {offsets = [0, 0, 192], sizes = [2, 32, 32], strides = [1, 1, 1]} : vector<2x32x384xf32> to vector<2x32x32xf32>
    %96 = arith.truncf %95 : vector<2x32x32xf32> to vector<2x32x32xbf16>
    %97 = vector.extract_strided_slice %38 {offsets = [0, 0, 320], sizes = [2, 32, 32], strides = [1, 1, 1]} : vector<2x32x384xf32> to vector<2x32x32xf32>
    %98 = arith.truncf %97 : vector<2x32x32xf32> to vector<2x32x32xbf16>
    "tpu.trace_start"() <{level = 10 : i32, message = "bqd,bkd->bqk"}> : () -> ()
    %cst_29 = arith.constant dense<0.000000e+00> : vector<2x32x32xf32>
    %99 = tpu.matmul %94, %96, %cst_29 {dimension_numbers = #tpu.dot_dimension_numbers<[2], [2], [1], [1], [0, 0, 0, 1, 1, 1], [0], [0]>} : vector<2x32x32xbf16>, vector<2x32x32xbf16>, vector<2x32x32xf32> -> vector<2x32x32xf32>
    "tpu.trace_stop"() : () -> ()
    %cst_30 = arith.constant dense<0xFF800000> : vector<2x32xf32>
    %100 = vector.multi_reduction <maximumf>, %99, %cst_30 [2] : vector<2x32x32xf32> to vector<2x32xf32>
    %101 = vector.shape_cast %100 : vector<2x32xf32> to vector<2x32x1xf32>
    %102 = vector.broadcast %101 : vector<2x32x1xf32> to vector<2x32x32xf32>
    %103 = arith.subf %99, %102 : vector<2x32x32xf32>
    %104 = math.exp %103 : vector<2x32x32xf32>
    %cst_31 = arith.constant dense<0.000000e+00> : vector<2x32xf32>
    %105 = vector.multi_reduction <add>, %104, %cst_31 [2] : vector<2x32x32xf32> to vector<2x32xf32>
    %106 = vector.shape_cast %105 : vector<2x32xf32> to vector<2x32x1xf32>
    %107 = arith.truncf %104 : vector<2x32x32xf32> to vector<2x32x32xbf16>
    "tpu.trace_start"() <{level = 10 : i32, message = "bqk,bkd->bqd"}> : () -> ()
    %cst_32 = arith.constant dense<0.000000e+00> : vector<2x32x32xf32>
    %108 = tpu.matmul %107, %98, %cst_32 {dimension_numbers = #tpu.dot_dimension_numbers<[2], [1], [1], [2], [0, 0, 0, 1, 1, 2], [0], [0]>} : vector<2x32x32xbf16>, vector<2x32x32xbf16>, vector<2x32x32xf32> -> vector<2x32x32xf32>
    "tpu.trace_stop"() : () -> ()
    %109 = tpu.reciprocal %106 {approx = true} : vector<2x32x1xf32> -> vector<2x32x1xf32>
    %110 = vector.broadcast %109 : vector<2x32x1xf32> to vector<2x32x32xf32>
    %111 = arith.mulf %108, %110 : vector<2x32x32xf32>
    %112 = vector.shape_cast %111 : vector<2x32x32xf32> to vector<64x32xf32>
    %113 = arith.truncf %112 : vector<64x32xf32> to vector<64x32xbf16>
    %114 = vector.extract_strided_slice %39 {offsets = [64, 0], sizes = [32, 128], strides = [1, 1]} : vector<128x128xbf16> to vector<32x128xbf16>
    %cst_33 = arith.constant dense<0.000000e+00> : vector<64x128xf32>
    %115 = tpu.matmul %113, %114, %cst_33 {dimension_numbers = #tpu.dot_dimension_numbers<[1], [0], [0], [1], [0, 0, 1, 1], [], []>} : vector<64x32xbf16>, vector<32x128xbf16>, vector<64x128xf32> -> vector<64x128xf32>
    %116 = arith.addf %92, %115 : vector<64x128xf32>
    %117 = vector.extract_strided_slice %38 {offsets = [0, 0, 96], sizes = [2, 32, 32], strides = [1, 1, 1]} : vector<2x32x384xf32> to vector<2x32x32xf32>
    %118 = arith.truncf %117 : vector<2x32x32xf32> to vector<2x32x32xbf16>
    %119 = vector.extract_strided_slice %38 {offsets = [0, 0, 224], sizes = [2, 32, 32], strides = [1, 1, 1]} : vector<2x32x384xf32> to vector<2x32x32xf32>
    %120 = arith.truncf %119 : vector<2x32x32xf32> to vector<2x32x32xbf16>
    %121 = vector.extract_strided_slice %38 {offsets = [0, 0, 352], sizes = [2, 32, 32], strides = [1, 1, 1]} : vector<2x32x384xf32> to vector<2x32x32xf32>
    %122 = arith.truncf %121 : vector<2x32x32xf32> to vector<2x32x32xbf16>
    "tpu.trace_start"() <{level = 10 : i32, message = "bqd,bkd->bqk"}> : () -> ()
    %cst_34 = arith.constant dense<0.000000e+00> : vector<2x32x32xf32>
    %123 = tpu.matmul %118, %120, %cst_34 {dimension_numbers = #tpu.dot_dimension_numbers<[2], [2], [1], [1], [0, 0, 0, 1, 1, 1], [0], [0]>} : vector<2x32x32xbf16>, vector<2x32x32xbf16>, vector<2x32x32xf32> -> vector<2x32x32xf32>
    "tpu.trace_stop"() : () -> ()
    %cst_35 = arith.constant dense<0xFF800000> : vector<2x32xf32>
    %124 = vector.multi_reduction <maximumf>, %123, %cst_35 [2] : vector<2x32x32xf32> to vector<2x32xf32>
    %125 = vector.shape_cast %124 : vector<2x32xf32> to vector<2x32x1xf32>
    %126 = vector.broadcast %125 : vector<2x32x1xf32> to vector<2x32x32xf32>
    %127 = arith.subf %123, %126 : vector<2x32x32xf32>
    %128 = math.exp %127 : vector<2x32x32xf32>
    %cst_36 = arith.constant dense<0.000000e+00> : vector<2x32xf32>
    %129 = vector.multi_reduction <add>, %128, %cst_36 [2] : vector<2x32x32xf32> to vector<2x32xf32>
    %130 = vector.shape_cast %129 : vector<2x32xf32> to vector<2x32x1xf32>
    %131 = arith.truncf %128 : vector<2x32x32xf32> to vector<2x32x32xbf16>
    "tpu.trace_start"() <{level = 10 : i32, message = "bqk,bkd->bqd"}> : () -> ()
    %cst_37 = arith.constant dense<0.000000e+00> : vector<2x32x32xf32>
    %132 = tpu.matmul %131, %122, %cst_37 {dimension_numbers = #tpu.dot_dimension_numbers<[2], [1], [1], [2], [0, 0, 0, 1, 1, 2], [0], [0]>} : vector<2x32x32xbf16>, vector<2x32x32xbf16>, vector<2x32x32xf32> -> vector<2x32x32xf32>
    "tpu.trace_stop"() : () -> ()
    %133 = tpu.reciprocal %130 {approx = true} : vector<2x32x1xf32> -> vector<2x32x1xf32>
    %134 = vector.broadcast %133 : vector<2x32x1xf32> to vector<2x32x32xf32>
    %135 = arith.mulf %132, %134 : vector<2x32x32xf32>
    %136 = vector.shape_cast %135 : vector<2x32x32xf32> to vector<64x32xf32>
    %137 = arith.truncf %136 : vector<64x32xf32> to vector<64x32xbf16>
    %138 = vector.extract_strided_slice %39 {offsets = [96, 0], sizes = [32, 128], strides = [1, 1]} : vector<128x128xbf16> to vector<32x128xbf16>
    %cst_38 = arith.constant dense<0.000000e+00> : vector<64x128xf32>
    %139 = tpu.matmul %137, %138, %cst_38 {dimension_numbers = #tpu.dot_dimension_numbers<[1], [0], [0], [1], [0, 0, 1, 1], [], []>} : vector<64x32xbf16>, vector<32x128xbf16>, vector<64x128xf32> -> vector<64x128xf32>
    %140 = arith.addf %116, %139 : vector<64x128xf32>
    %cst_39 = arith.constant dense<0.000000e+00> : vector<64xf32>
    %141 = vector.multi_reduction <add>, %140, %cst_39 [1] : vector<64x128xf32> to vector<64xf32>
    %142 = vector.shape_cast %141 : vector<64xf32> to vector<64x1xf32>
    %cst_40 = arith.constant 1.280000e+02 : f32
    %143 = vector.broadcast %cst_40 : f32 to vector<64x1xf32>
    %144 = arith.divf %142, %143 : vector<64x1xf32>
    %145 = vector.broadcast %144 : vector<64x1xf32> to vector<64x128xf32>
    %146 = arith.subf %140, %145 : vector<64x128xf32>
    %147 = arith.mulf %146, %146 : vector<64x128xf32>
    %cst_41 = arith.constant dense<0.000000e+00> : vector<64xf32>
    %148 = vector.multi_reduction <add>, %147, %cst_41 [1] : vector<64x128xf32> to vector<64xf32>
    %149 = vector.shape_cast %148 : vector<64xf32> to vector<64x1xf32>
    %cst_42 = arith.constant 1.280000e+02 : f32
    %150 = vector.broadcast %cst_42 : f32 to vector<64x1xf32>
    %151 = arith.divf %149, %150 : vector<64x1xf32>
    %152 = vector.broadcast %144 : vector<64x1xf32> to vector<64x128xf32>
    %153 = arith.subf %140, %152 : vector<64x128xf32>
    %cst_43 = arith.constant 9.99999974E-6 : f32
    %154 = vector.broadcast %cst_43 : f32 to vector<64x1xf32>
    %155 = arith.addf %151, %154 : vector<64x1xf32>
    %156 = math.rsqrt %155 : vector<64x1xf32>
    %157 = vector.broadcast %156 : vector<64x1xf32> to vector<64x128xf32>
    %158 = arith.mulf %153, %157 : vector<64x128xf32>
    %c0_44 = arith.constant 0 : index
    %c0_45 = arith.constant 0 : index
    %159 = vector.load %arg8[%c0_44, %c0_45] : memref<1x128xf32, #tpu.memory_space<vmem>>, vector<1x128xf32>
    %160 = vector.shape_cast %159 : vector<1x128xf32> to vector<128xf32>
    %161 = vector.shape_cast %160 : vector<128xf32> to vector<1x128xf32>
    %162 = vector.broadcast %161 : vector<1x128xf32> to vector<64x128xf32>
    %163 = arith.mulf %158, %162 : vector<64x128xf32>
    %c0_46 = arith.constant 0 : index
    %c0_47 = arith.constant 0 : index
    %164 = vector.load %arg9[%c0_46, %c0_47] : memref<1x128xf32, #tpu.memory_space<vmem>>, vector<1x128xf32>
    %165 = vector.shape_cast %164 : vector<1x128xf32> to vector<128xf32>
    %166 = vector.shape_cast %165 : vector<128xf32> to vector<1x128xf32>
    %167 = vector.broadcast %166 : vector<1x128xf32> to vector<64x128xf32>
    %168 = arith.addf %163, %167 : vector<64x128xf32>
    %169 = arith.truncf %168 : vector<64x128xf32> to vector<64x128xbf16>
    %c0_48 = arith.constant 0 : index
    %c0_49 = arith.constant 0 : index
    %170 = vector.load %arg10[%c0_48, %c0_49] : memref<128x256xbf16, #tpu.memory_space<vmem>>, vector<128x256xbf16>
    %cst_50 = arith.constant dense<0.000000e+00> : vector<64x256xf32>
    %171 = tpu.matmul %169, %170, %cst_50 {dimension_numbers = #tpu.dot_dimension_numbers<[1], [0], [0], [1], [0, 0, 1, 1], [], []>} : vector<64x128xbf16>, vector<128x256xbf16>, vector<64x256xf32> -> vector<64x256xf32>
    %c0_51 = arith.constant 0 : index
    %c0_52 = arith.constant 0 : index
    %172 = vector.load %arg11[%c0_51, %c0_52] : memref<1x256xf32, #tpu.memory_space<vmem>>, vector<1x256xf32>
    %173 = vector.shape_cast %172 : vector<1x256xf32> to vector<256xf32>
    %174 = vector.shape_cast %173 : vector<256xf32> to vector<1x256xf32>
    %175 = vector.broadcast %174 : vector<1x256xf32> to vector<64x256xf32>
    %176 = arith.addf %171, %175 : vector<64x256xf32>
    %cst_53 = arith.constant 1.702000e+00 : f32
    %177 = vector.broadcast %cst_53 : f32 to vector<64x256xf32>
    %178 = arith.mulf %177, %176 : vector<64x256xf32>
    %179 = arith.negf %178 : vector<64x256xf32>
    %180 = math.exp %179 : vector<64x256xf32>
    %cst_54 = arith.constant 1.000000e+00 : f32
    %181 = vector.broadcast %cst_54 : f32 to vector<64x256xf32>
    %182 = arith.addf %181, %180 : vector<64x256xf32>
    %183 = arith.divf %181, %182 : vector<64x256xf32>
    %184 = arith.mulf %176, %183 : vector<64x256xf32>
    %185 = arith.truncf %184 : vector<64x256xf32> to vector<64x256xbf16>
    %c0_55 = arith.constant 0 : index
    %c0_56 = arith.constant 0 : index
    %186 = vector.load %arg12[%c0_55, %c0_56] : memref<256x128xbf16, #tpu.memory_space<vmem>>, vector<256x128xbf16>
    %cst_57 = arith.constant dense<0.000000e+00> : vector<64x128xf32>
    %187 = tpu.matmul %185, %186, %cst_57 {dimension_numbers = #tpu.dot_dimension_numbers<[1], [0], [0], [1], [0, 0, 1, 1], [], []>} : vector<64x256xbf16>, vector<256x128xbf16>, vector<64x128xf32> -> vector<64x128xf32>
    %c0_58 = arith.constant 0 : index
    %c0_59 = arith.constant 0 : index
    %188 = vector.load %arg13[%c0_58, %c0_59] : memref<1x128xf32, #tpu.memory_space<vmem>>, vector<1x128xf32>
    %189 = vector.shape_cast %188 : vector<1x128xf32> to vector<128xf32>
    %190 = vector.shape_cast %189 : vector<128xf32> to vector<1x128xf32>
    %191 = vector.broadcast %190 : vector<1x128xf32> to vector<64x128xf32>
    %192 = arith.addf %187, %191 : vector<64x128xf32>
    %193 = arith.addf %140, %192 : vector<64x128xf32>
    %194 = vector.shape_cast %193 : vector<64x128xf32> to vector<2x32x128xf32>
    %c0_60 = arith.constant 0 : index
    %c0_61 = arith.constant 0 : index
    %c0_62 = arith.constant 0 : index
    %195 = vector.load %arg14[%c0_60, %c0_61, %c0_62] : memref<2x32x128xf32, #tpu.memory_space<vmem>>, vector<2x32x128xf32>
    tpu.vector_store %arg14[%c0_60, %c0_61, %c0_62], %194 {strides = array<i32>} : memref<2x32x128xf32, #tpu.memory_space<vmem>>, vector<2x32x128xf32>,
    return
  }
  func.func @transform_0(%arg0: i32) -> (i32, i32, i32) {
    %c0_i32 = arith.constant 0 : i32
    %c0_i32_0 = arith.constant 0 : i32
    %c0_i32_1 = arith.constant 0 : i32
    return %arg0, %c0_i32, %c0_i32_0 : i32, i32, i32
  }
  func.func @transform_1(%arg0: i32) -> (i32, i32) {
    %c0_i32 = arith.constant 0 : i32
    %c0_i32_0 = arith.constant 0 : i32
    %c0_i32_1 = arith.constant 0 : i32
    return %c0_i32, %c0_i32_0 : i32, i32
  }
  func.func @transform_2(%arg0: i32) -> (i32, i32) {
    %c0_i32 = arith.constant 0 : i32
    %c0_i32_0 = arith.constant 0 : i32
    %c0_i32_1 = arith.constant 0 : i32
    return %c0_i32, %c0_i32_0 : i32, i32
  }
  func.func @transform_3(%arg0: i32) -> (i32, i32) {
    %c0_i32 = arith.constant 0 : i32
    %c0_i32_0 = arith.constant 0 : i32
    %c0_i32_1 = arith.constant 0 : i32
    return %c0_i32, %c0_i32_0 : i32, i32
  }
  func.func @transform_4(%arg0: i32) -> (i32, i32) {
    %c0_i32 = arith.constant 0 : i32
    %c0_i32_0 = arith.constant 0 : i32
    %c0_i32_1 = arith.constant 0 : i32
    return %c0_i32, %c0_i32_0 : i32, i32
  }
  func.func @transform_5(%arg0: i32) -> (i32, i32) {
    %c0_i32 = arith.constant 0 : i32
    %c0_i32_0 = arith.constant 0 : i32
    %c0_i32_1 = arith.constant 0 : i32
    return %c0_i32, %c0_i32_0 : i32, i32
  }
  func.func @transform_6(%arg0: i32) -> (i32, i32) {
    %c0_i32 = arith.constant 0 : i32
    %c0_i32_0 = arith.constant 0 : i32
    %c0_i32_1 = arith.constant 0 : i32
    return %c0_i32, %c0_i32_0 : i32, i32
  }
  func.func @transform_7(%arg0: i32) -> (i32, i32) {
    %c0_i32 = arith.constant 0 : i32
    %c0_i32_0 = arith.constant 0 : i32
    %c0_i32_1 = arith.constant 0 : i32
    return %c0_i32, %c0_i32_0 : i32, i32
  }
  func.func @transform_8(%arg0: i32) -> (i32, i32) {
    %c0_i32 = arith.constant 0 : i32
    %c0_i32_0 = arith.constant 0 : i32
    %c0_i32_1 = arith.constant 0 : i32
    return %c0_i32, %c0_i32_0 : i32, i32
  }
  func.func @transform_9(%arg0: i32) -> (i32, i32) {
    %c0_i32 = arith.constant 0 : i32
    %c0_i32_0 = arith.constant 0 : i32
    %c0_i32_1 = arith.constant 0 : i32
    return %c0_i32, %c0_i32_0 : i32, i32
  }
  func.func @transform_10(%arg0: i32) -> (i32, i32) {
    %c0_i32 = arith.constant 0 : i32
    %c0_i32_0 = arith.constant 0 : i32
    %c0_i32_1 = arith.constant 0 : i32
    return %c0_i32, %c0_i32_0 : i32, i32
  }
  func.func @transform_11(%arg0: i32) -> (i32, i32) {
    %c0_i32 = arith.constant 0 : i32
    %c0_i32_0 = arith.constant 0 : i32
    %c0_i32_1 = arith.constant 0 : i32
    return %c0_i32, %c0_i32_0 : i32, i32
  }
  func.func @transform_12(%arg0: i32) -> (i32, i32) {
    %c0_i32 = arith.constant 0 : i32
    %c0_i32_0 = arith.constant 0 : i32
    %c0_i32_1 = arith.constant 0 : i32
    return %c0_i32, %c0_i32_0 : i32, i32
  }
  func.func @transform_13(%arg0: i32) -> (i32, i32, i32) {
    %c0_i32 = arith.constant 0 : i32
    %c0_i32_0 = arith.constant 0 : i32
    %c0_i32_1 = arith.constant 0 : i32
    return %arg0, %c0_i32, %c0_i32_0 : i32, i32, i32
  }
}

module attributes {stable_mosaic.version = 11 : i64} {
  func.func @clip_encoder_layer_kernel(%arg0: i32, %arg1: memref<2x32x128xf32, #tpu.memory_space<vmem>>, %arg2: memref<1x128xf32, #tpu.memory_space<vmem>>, %arg3: memref<1x128xf32, #tpu.memory_space<vmem>>, %arg4: memref<128x384xbf16, #tpu.memory_space<vmem>>, %arg5: memref<1x384xf32, #tpu.memory_space<vmem>>, %arg6: memref<128x128xbf16, #tpu.memory_space<vmem>>, %arg7: memref<1x128xf32, #tpu.memory_space<vmem>>, %arg8: memref<1x128xf32, #tpu.memory_space<vmem>>, %arg9: memref<1x128xf32, #tpu.memory_space<vmem>>, %arg10: memref<128x256xbf16, #tpu.memory_space<vmem>>, %arg11: memref<1x256xf32, #tpu.memory_space<vmem>>, %arg12: memref<256x128xbf16, #tpu.memory_space<vmem>>, %arg13: memref<1x128xf32, #tpu.memory_space<vmem>>, %arg14: memref<2x32x128xf32, #tpu.memory_space<vmem>>) attributes {dimension_semantics = [#tpu.dimension_semantics<parallel>], iteration_bounds = array<i64: 2>, scalar_prefetch = 0 : i64, scratch_operands = 0 : i64, tpu.core_type = #tpu.core_type<tc>, window_params = [{transform_indices = @transform_0, window_bounds = array<i64: 2, 32, 128>}, {pipeline_mode = #tpu.pipeline_mode<synchronous>, transform_indices = @transform_1, window_bounds = array<i64: 1, 128>}, {pipeline_mode = #tpu.pipeline_mode<synchronous>, transform_indices = @transform_2, window_bounds = array<i64: 1, 128>}, {pipeline_mode = #tpu.pipeline_mode<synchronous>, transform_indices = @transform_3, window_bounds = array<i64: 128, 384>}, {pipeline_mode = #tpu.pipeline_mode<synchronous>, transform_indices = @transform_4, window_bounds = array<i64: 1, 384>}, {pipeline_mode = #tpu.pipeline_mode<synchronous>, transform_indices = @transform_5, window_bounds = array<i64: 128, 128>}, {pipeline_mode = #tpu.pipeline_mode<synchronous>, transform_indices = @transform_6, window_bounds = array<i64: 1, 128>}, {pipeline_mode = #tpu.pipeline_mode<synchronous>, transform_indices = @transform_7, window_bounds = array<i64: 1, 128>}, {pipeline_mode = #tpu.pipeline_mode<synchronous>, transform_indices = @transform_8, window_bounds = array<i64: 1, 128>}, {pipeline_mode = #tpu.pipeline_mode<synchronous>, transform_indices = @transform_9, window_bounds = array<i64: 128, 256>}, {pipeline_mode = #tpu.pipeline_mode<synchronous>, transform_indices = @transform_10, window_bounds = array<i64: 1, 256>}, {pipeline_mode = #tpu.pipeline_mode<synchronous>, transform_indices = @transform_11, window_bounds = array<i64: 256, 128>}, {pipeline_mode = #tpu.pipeline_mode<synchronous>, transform_indices = @transform_12, window_bounds = array<i64: 1, 128>}, {transform_indices = @transform_13, window_bounds = array<i64: 2, 32, 128>}]} {
    %c0 = arith.constant 0 : index
    %c0_0 = arith.constant 0 : index
    %c0_1 = arith.constant 0 : index
    %0 = vector.load %arg1[%c0, %c0_0, %c0_1] : memref<2x32x128xf32, #tpu.memory_space<vmem>>, vector<2x32x128xf32>
    %1 = vector.shape_cast %0 : vector<2x32x128xf32> to vector<64x128xf32>
    %cst = arith.constant dense<0.000000e+00> : vector<64xf32>
    %2 = vector.multi_reduction <add>, %1, %cst [1] : vector<64x128xf32> to vector<64xf32>
    %3 = vector.shape_cast %2 : vector<64xf32> to vector<64x1xf32>
    %cst_2 = arith.constant 1.280000e+02 : f32
    %4 = vector.broadcast %cst_2 : f32 to vector<64x1xf32>
    %5 = arith.divf %3, %4 : vector<64x1xf32>
    %6 = vector.broadcast %5 : vector<64x1xf32> to vector<64x128xf32>
    %7 = arith.subf %1, %6 : vector<64x128xf32>
    %8 = arith.mulf %7, %7 : vector<64x128xf32>
    %cst_3 = arith.constant dense<0.000000e+00> : vector<64xf32>
    %9 = vector.multi_reduction <add>, %8, %cst_3 [1] : vector<64x128xf32> to vector<64xf32>
    %10 = vector.shape_cast %9 : vector<64xf32> to vector<64x1xf32>
    %cst_4 = arith.constant 1.280000e+02 : f32
    %11 = vector.broadcast %cst_4 : f32 to vector<64x1xf32>
    %12 = arith.divf %10, %11 : vector<64x1xf32>
    %13 = vector.broadcast %5 : vector<64x1xf32> to vector<64x128xf32>
    %14 = arith.subf %1, %13 : vector<64x128xf32>
    %cst_5 = arith.constant 9.99999974E-6 : f32
    %15 = vector.broadcast %cst_5 : f32 to vector<64x1xf32>
    %16 = arith.addf %12, %15 : vector<64x1xf32>
    %17 = math.rsqrt %16 : vector<64x1xf32>
    %18 = vector.broadcast %17 : vector<64x1xf32> to vector<64x128xf32>
    %19 = arith.mulf %14, %18 : vector<64x128xf32>
    %c0_6 = arith.constant 0 : index
    %c0_7 = arith.constant 0 : index
    %20 = vector.load %arg2[%c0_6, %c0_7] : memref<1x128xf32, #tpu.memory_space<vmem>>, vector<1x128xf32>
    %21 = vector.shape_cast %20 : vector<1x128xf32> to vector<128xf32>
    %22 = vector.shape_cast %21 : vector<128xf32> to vector<1x128xf32>
    %23 = vector.broadcast %22 : vector<1x128xf32> to vector<64x128xf32>
    %24 = arith.mulf %19, %23 : vector<64x128xf32>
    %c0_8 = arith.constant 0 : index
    %c0_9 = arith.constant 0 : index
    %25 = vector.load %arg3[%c0_8, %c0_9] : memref<1x128xf32, #tpu.memory_space<vmem>>, vector<1x128xf32>
    %26 = vector.shape_cast %25 : vector<1x128xf32> to vector<128xf32>
    %27 = vector.shape_cast %26 : vector<128xf32> to vector<1x128xf32>
    %28 = vector.broadcast %27 : vector<1x128xf32> to vector<64x128xf32>
    %29 = arith.addf %24, %28 : vector<64x128xf32>
    %30 = arith.truncf %29 : vector<64x128xf32> to vector<64x128xbf16>
    %c0_10 = arith.constant 0 : index
    %c0_11 = arith.constant 0 : index
    %31 = vector.load %arg4[%c0_10, %c0_11] : memref<128x384xbf16, #tpu.memory_space<vmem>>, vector<128x384xbf16>
    %cst_12 = arith.constant dense<0.000000e+00> : vector<64x384xf32>
    %32 = tpu.matmul %30, %31, %cst_12 {dimension_numbers = #tpu.dot_dimension_numbers<[1], [0], [0], [1], [0, 0, 1, 1], [], []>} : vector<64x128xbf16>, vector<128x384xbf16>, vector<64x384xf32> -> vector<64x384xf32>
    %c0_13 = arith.constant 0 : index
    %c0_14 = arith.constant 0 : index
    %33 = vector.load %arg5[%c0_13, %c0_14] : memref<1x384xf32, #tpu.memory_space<vmem>>, vector<1x384xf32>
    %34 = vector.shape_cast %33 : vector<1x384xf32> to vector<384xf32>
    %35 = vector.shape_cast %34 : vector<384xf32> to vector<1x384xf32>
    %36 = vector.broadcast %35 : vector<1x384xf32> to vector<64x384xf32>
    %37 = arith.addf %32, %36 : vector<64x384xf32>
    %38 = vector.shape_cast %37 : vector<64x384xf32> to vector<2x32x384xf32>
    %c0_15 = arith.constant 0 : index
    %c0_16 = arith.constant 0 : index
    %39 = vector.load %arg6[%c0_15, %c0_16] : memref<128x128xbf16, #tpu.memory_space<vmem>>, vector<128x128xbf16>
    %c0_17 = arith.constant 0 : index
    %c0_18 = arith.constant 0 : index
    %40 = vector.load %arg7[%c0_17, %c0_18] : memref<1x128xf32, #tpu.memory_space<vmem>>, vector<1x128xf32>
    %41 = vector.shape_cast %40 : vector<1x128xf32> to vector<128xf32>
    %42 = vector.shape_cast %41 : vector<128xf32> to vector<1x128xf32>
    %43 = vector.broadcast %42 : vector<1x128xf32> to vector<64x128xf32>
    %44 = arith.addf %1, %43 : vector<64x128xf32>
    %45 = vector.extract_strided_slice %38 {offsets = [0, 0, 0], sizes = [2, 32, 32], strides = [1, 1, 1]} : vector<2x32x384xf32> to vector<2x32x32xf32>
    %46 = arith.truncf %45 : vector<2x32x32xf32> to vector<2x32x32xbf16>
    %47 = vector.extract_strided_slice %38 {offsets = [0, 0, 128], sizes = [2, 32, 32], strides = [1, 1, 1]} : vector<2x32x384xf32> to vector<2x32x32xf32>
    %48 = arith.truncf %47 : vector<2x32x32xf32> to vector<2x32x32xbf16>
    %49 = vector.extract_strided_slice %38 {offsets = [0, 0, 256], sizes = [2, 32, 32], strides = [1, 1, 1]} : vector<2x32x384xf32> to vector<2x32x32xf32>
    %50 = arith.truncf %49 : vector<2x32x32xf32> to vector<2x32x32xbf16>
    "tpu.trace_start"() <{level = 10 : i32, message = "bqd,bkd->bqk"}> : () -> ()
    %cst_19 = arith.constant dense<0.000000e+00> : vector<2x32x32xf32>
    %51 = tpu.matmul %46, %48, %cst_19 {dimension_numbers = #tpu.dot_dimension_numbers<[2], [2], [1], [1], [0, 0, 0, 1, 1, 1], [0], [0]>} : vector<2x32x32xbf16>, vector<2x32x32xbf16>, vector<2x32x32xf32> -> vector<2x32x32xf32>
    "tpu.trace_stop"() : () -> ()
    %cst_20 = arith.constant dense<0xFF800000> : vector<2x32xf32>
    %52 = vector.multi_reduction <maximumf>, %51, %cst_20 [2] : vector<2x32x32xf32> to vector<2x32xf32>
    %53 = vector.shape_cast %52 : vector<2x32xf32> to vector<2x32x1xf32>
    %54 = vector.broadcast %53 : vector<2x32x1xf32> to vector<2x32x32xf32>
    %55 = arith.subf %51, %54 : vector<2x32x32xf32>
    %56 = math.exp %55 : vector<2x32x32xf32>
    %cst_21 = arith.constant dense<0.000000e+00> : vector<2x32xf32>
    %57 = vector.multi_reduction <add>, %56, %cst_21 [2] : vector<2x32x32xf32> to vector<2x32xf32>
    %58 = vector.shape_cast %57 : vector<2x32xf32> to vector<2x32x1xf32>
    %59 = arith.truncf %56 : vector<2x32x32xf32> to vector<2x32x32xbf16>
    "tpu.trace_start"() <{level = 10 : i32, message = "bqk,bkd->bqd"}> : () -> ()
    %cst_22 = arith.constant dense<0.000000e+00> : vector<2x32x32xf32>
    %60 = tpu.matmul %59, %50, %cst_22 {dimension_numbers = #tpu.dot_dimension_numbers<[2], [1], [1], [2], [0, 0, 0, 1, 1, 2], [0], [0]>} : vector<2x32x32xbf16>, vector<2x32x32xbf16>, vector<2x32x32xf32> -> vector<2x32x32xf32>
    "tpu.trace_stop"() : () -> ()
    %61 = tpu.reciprocal %58 {approx = true} : vector<2x32x1xf32> -> vector<2x32x1xf32>
    %62 = vector.broadcast %61 : vector<2x32x1xf32> to vector<2x32x32xf32>
    %63 = arith.mulf %60, %62 : vector<2x32x32xf32>
    %64 = vector.shape_cast %63 : vector<2x32x32xf32> to vector<64x32xf32>
    %65 = arith.truncf %64 : vector<64x32xf32> to vector<64x32xbf16>
    %66 = vector.extract_strided_slice %39 {offsets = [0, 0], sizes = [32, 128], strides = [1, 1]} : vector<128x128xbf16> to vector<32x128xbf16>
    %cst_23 = arith.constant dense<0.000000e+00> : vector<64x128xf32>
    %67 = tpu.matmul %65, %66, %cst_23 {dimension_numbers = #tpu.dot_dimension_numbers<[1], [0], [0], [1], [0, 0, 1, 1], [], []>} : vector<64x32xbf16>, vector<32x128xbf16>, vector<64x128xf32> -> vector<64x128xf32>
    %68 = arith.addf %44, %67 : vector<64x128xf32>
    %69 = vector.extract_strided_slice %38 {offsets = [0, 0, 32], sizes = [2, 32, 32], strides = [1, 1, 1]} : vector<2x32x384xf32> to vector<2x32x32xf32>
    %70 = arith.truncf %69 : vector<2x32x32xf32> to vector<2x32x32xbf16>
    %71 = vector.extract_strided_slice %38 {offsets = [0, 0, 160], sizes = [2, 32, 32], strides = [1, 1, 1]} : vector<2x32x384xf32> to vector<2x32x32xf32>
    %72 = arith.truncf %71 : vector<2x32x32xf32> to vector<2x32x32xbf16>
    %73 = vector.extract_strided_slice %38 {offsets = [0, 0, 288], sizes = [2, 32, 32], strides = [1, 1, 1]} : vector<2x32x384xf32> to vector<2x32x32xf32>
    %74 = arith.truncf %73 : vector<2x32x32xf32> to vector<2x32x32xbf16>
    "tpu.trace_start"() <{level = 10 : i32, message = "bqd,bkd->bqk"}> : () -> ()
    %cst_24 = arith.constant dense<0.000000e+00> : vector<2x32x32xf32>
    %75 = tpu.matmul %70, %72, %cst_24 {dimension_numbers = #tpu.dot_dimension_numbers<[2], [2], [1], [1], [0, 0, 0, 1, 1, 1], [0], [0]>} : vector<2x32x32xbf16>, vector<2x32x32xbf16>, vector<2x32x32xf32> -> vector<2x32x32xf32>
    "tpu.trace_stop"() : () -> ()
    %cst_25 = arith.constant dense<0xFF800000> : vector<2x32xf32>
    %76 = vector.multi_reduction <maximumf>, %75, %cst_25 [2] : vector<2x32x32xf32> to vector<2x32xf32>
    %77 = vector.shape_cast %76 : vector<2x32xf32> to vector<2x32x1xf32>
    %78 = vector.broadcast %77 : vector<2x32x1xf32> to vector<2x32x32xf32>
    %79 = arith.subf %75, %78 : vector<2x32x32xf32>
    %80 = math.exp %79 : vector<2x32x32xf32>
    %cst_26 = arith.constant dense<0.000000e+00> : vector<2x32xf32>
    %81 = vector.multi_reduction <add>, %80, %cst_26 [2] : vector<2x32x32xf32> to vector<2x32xf32>
    %82 = vector.shape_cast %81 : vector<2x32xf32> to vector<2x32x1xf32>
    %83 = arith.truncf %80 : vector<2x32x32xf32> to vector<2x32x32xbf16>
    "tpu.trace_start"() <{level = 10 : i32, message = "bqk,bkd->bqd"}> : () -> ()
    %cst_27 = arith.constant dense<0.000000e+00> : vector<2x32x32xf32>
    %84 = tpu.matmul %83, %74, %cst_27 {dimension_numbers = #tpu.dot_dimension_numbers<[2], [1], [1], [2], [0, 0, 0, 1, 1, 2], [0], [0]>} : vector<2x32x32xbf16>, vector<2x32x32xbf16>, vector<2x32x32xf32> -> vector<2x32x32xf32>
    "tpu.trace_stop"() : () -> ()
    %85 = tpu.reciprocal %82 {approx = true} : vector<2x32x1xf32> -> vector<2x32x1xf32>
    %86 = vector.broadcast %85 : vector<2x32x1xf32> to vector<2x32x32xf32>
    %87 = arith.mulf %84, %86 : vector<2x32x32xf32>
    %88 = vector.shape_cast %87 : vector<2x32x32xf32> to vector<64x32xf32>
    %89 = arith.truncf %88 : vector<64x32xf32> to vector<64x32xbf16>
    %90 = vector.extract_strided_slice %39 {offsets = [32, 0], sizes = [32, 128], strides = [1, 1]} : vector<128x128xbf16> to vector<32x128xbf16>
    %cst_28 = arith.constant dense<0.000000e+00> : vector<64x128xf32>
    %91 = tpu.matmul %89, %90, %cst_28 {dimension_numbers = #tpu.dot_dimension_numbers<[1], [0], [0], [1], [0, 0, 1, 1], [], []>} : vector<64x32xbf16>, vector<32x128xbf16>, vector<64x128xf32> -> vector<64x128xf32>
    %92 = arith.addf %68, %91 : vector<64x128xf32>
    %93 = vector.extract_strided_slice %38 {offsets = [0, 0, 64], sizes = [2, 32, 32], strides = [1, 1, 1]} : vector<2x32x384xf32> to vector<2x32x32xf32>
    %94 = arith.truncf %93 : vector<2x32x32xf32> to vector<2x32x32xbf16>
    %95 = vector.extract_strided_slice %38 {offsets = [0, 0, 192], sizes = [2, 32, 32], strides = [1, 1, 1]} : vector<2x32x384xf32> to vector<2x32x32xf32>
    %96 = arith.truncf %95 : vector<2x32x32xf32> to vector<2x32x32xbf16>
    %97 = vector.extract_strided_slice %38 {offsets = [0, 0, 320], sizes = [2, 32, 32], strides = [1, 1, 1]} : vector<2x32x384xf32> to vector<2x32x32xf32>
    %98 = arith.truncf %97 : vector<2x32x32xf32> to vector<2x32x32xbf16>
    "tpu.trace_start"() <{level = 10 : i32, message = "bqd,bkd->bqk"}> : () -> ()
    %cst_29 = arith.constant dense<0.000000e+00> : vector<2x32x32xf32>
    %99 = tpu.matmul %94, %96, %cst_29 {dimension_numbers = #tpu.dot_dimension_numbers<[2], [2], [1], [1], [0, 0, 0, 1, 1, 1], [0], [0]>} : vector<2x32x32xbf16>, vector<2x32x32xbf16>, vector<2x32x32xf32> -> vector<2x32x32xf32>
    "tpu.trace_stop"() : () -> ()
    %cst_30 = arith.constant dense<0xFF800000> : vector<2x32xf32>
    %100 = vector.multi_reduction <maximumf>, %99, %cst_30 [2] : vector<2x32x32xf32> to vector<2x32xf32>
    %101 = vector.shape_cast %100 : vector<2x32xf32> to vector<2x32x1xf32>
    %102 = vector.broadcast %101 : vector<2x32x1xf32> to vector<2x32x32xf32>
    %103 = arith.subf %99, %102 : vector<2x32x32xf32>
    %104 = math.exp %103 : vector<2x32x32xf32>
    %cst_31 = arith.constant dense<0.000000e+00> : vector<2x32xf32>
    %105 = vector.multi_reduction <add>, %104, %cst_31 [2] : vector<2x32x32xf32> to vector<2x32xf32>
    %106 = vector.shape_cast %105 : vector<2x32xf32> to vector<2x32x1xf32>
    %107 = arith.truncf %104 : vector<2x32x32xf32> to vector<2x32x32xbf16>
    "tpu.trace_start"() <{level = 10 : i32, message = "bqk,bkd->bqd"}> : () -> ()
    %cst_32 = arith.constant dense<0.000000e+00> : vector<2x32x32xf32>
    %108 = tpu.matmul %107, %98, %cst_32 {dimension_numbers = #tpu.dot_dimension_numbers<[2], [1], [1], [2], [0, 0, 0, 1, 1, 2], [0], [0]>} : vector<2x32x32xbf16>, vector<2x32x32xbf16>, vector<2x32x32xf32> -> vector<2x32x32xf32>
    "tpu.trace_stop"() : () -> ()
    %109 = tpu.reciprocal %106 {approx = true} : vector<2x32x1xf32> -> vector<2x32x1xf32>
    %110 = vector.broadcast %109 : vector<2x32x1xf32> to vector<2x32x32xf32>
    %111 = arith.mulf %108, %110 : vector<2x32x32xf32>
    %112 = vector.shape_cast %111 : vector<2x32x32xf32> to vector<64x32xf32>
    %113 = arith.truncf %112 : vector<64x32xf32> to vector<64x32xbf16>
    %114 = vector.extract_strided_slice %39 {offsets = [64, 0], sizes = [32, 128], strides = [1, 1]} : vector<128x128xbf16> to vector<32x128xbf16>
    %cst_33 = arith.constant dense<0.000000e+00> : vector<64x128xf32>
    %115 = tpu.matmul %113, %114, %cst_33 {dimension_numbers = #tpu.dot_dimension_numbers<[1], [0], [0], [1], [0, 0, 1, 1], [], []>} : vector<64x32xbf16>, vector<32x128xbf16>, vector<64x128xf32> -> vector<64x128xf32>
    %116 = arith.addf %92, %115 : vector<64x128xf32>
    %117 = vector.extract_strided_slice %38 {offsets = [0, 0, 96], sizes = [2, 32, 32], strides = [1, 1, 1]} : vector<2x32x384xf32> to vector<2x32x32xf32>
    %118 = arith.truncf %117 : vector<2x32x32xf32> to vector<2x32x32xbf16>
    %119 = vector.extract_strided_slice %38 {offsets = [0, 0, 224], sizes = [2, 32, 32], strides = [1, 1, 1]} : vector<2x32x384xf32> to vector<2x32x32xf32>
    %120 = arith.truncf %119 : vector<2x32x32xf32> to vector<2x32x32xbf16>
    %121 = vector.extract_strided_slice %38 {offsets = [0, 0, 352], sizes = [2, 32, 32], strides = [1, 1, 1]} : vector<2x32x384xf32> to vector<2x32x32xf32>
    %122 = arith.truncf %121 : vector<2x32x32xf32> to vector<2x32x32xbf16>
    "tpu.trace_start"() <{level = 10 : i32, message = "bqd,bkd->bqk"}> : () -> ()
    %cst_34 = arith.constant dense<0.000000e+00> : vector<2x32x32xf32>
    %123 = tpu.matmul %118, %120, %cst_34 {dimension_numbers = #tpu.dot_dimension_numbers<[2], [2], [1], [1], [0, 0, 0, 1, 1, 1], [0], [0]>} : vector<2x32x32xbf16>, vector<2x32x32xbf16>, vector<2x32x32xf32> -> vector<2x32x32xf32>
    "tpu.trace_stop"() : () -> ()
    %cst_35 = arith.constant dense<0xFF800000> : vector<2x32xf32>
    %124 = vector.multi_reduction <maximumf>, %123, %cst_35 [2] : vector<2x32x32xf32> to vector<2x32xf32>
    %125 = vector.shape_cast %124 : vector<2x32xf32> to vector<2x32x1xf32>
    %126 = vector.broadcast %125 : vector<2x32x1xf32> to vector<2x32x32xf32>
    %127 = arith.subf %123, %126 : vector<2x32x32xf32>
    %128 = math.exp %127 : vector<2x32x32xf32>
    %cst_36 = arith.constant dense<0.000000e+00> : vector<2x32xf32>
    %129 = vector.multi_reduction <add>, %128, %cst_36 [2] : vector<2x32x32xf32> to vector<2x32xf32>
    %130 = vector.shape_cast %129 : vector<2x32xf32> to vector<2x32x1xf32>
    %131 = arith.truncf %128 : vector<2x32x32xf32> to vector<2x32x32xbf16>
    "tpu.trace_start"() <{level = 10 : i32, message = "bqk,bkd->bqd"}> : () -> ()
    %cst_37 = arith.constant dense<0.000000e+00> : vector<2x32x32xf32>
    %132 = tpu.matmul %131, %122, %cst_37 {dimension_numbers = #tpu.dot_dimension_numbers<[2], [1], [1], [2], [0, 0, 0, 1, 1, 2], [0], [0]>} : vector<2x32x32xbf16>, vector<2x32x32xbf16>, vector<2x32x32xf32> -> vector<2x32x32xf32>
    "tpu.trace_stop"() : () -> ()
    %133 = tpu.reciprocal %130 {approx = true} : vector<2x32x1xf32> -> vector<2x32x1xf32>
    %134 = vector.broadcast %133 : vector<2x32x1xf32> to vector<2x32x32xf32>
    %135 = arith.mulf %132, %134 : vector<2x32x32xf32>
    %136 = vector.shape_cast %135 : vector<2x32x32xf32> to vector<64x32xf32>
    %137 = arith.truncf %136 : vector<64x32xf32> to vector<64x32xbf16>
    %138 = vector.extract_strided_slice %39 {offsets = [96, 0], sizes = [32, 128], strides = [1, 1]} : vector<128x128xbf16> to vector<32x128xbf16>
    %cst_38 = arith.constant dense<0.000000e+00> : vector<64x128xf32>
    %139 = tpu.matmul %137, %138, %cst_38 {dimension_numbers = #tpu.dot_dimension_numbers<[1], [0], [0], [1], [0, 0, 1, 1], [], []>} : vector<64x32xbf16>, vector<32x128xbf16>, vector<64x128xf32> -> vector<64x128xf32>
    %140 = arith.addf %116, %139 : vector<64x128xf32>
    %cst_39 = arith.constant dense<0.000000e+00> : vector<64xf32>
    %141 = vector.multi_reduction <add>, %140, %cst_39 [1] : vector<64x128xf32> to vector<64xf32>
    %142 = vector.shape_cast %141 : vector<64xf32> to vector<64x1xf32>
    %cst_40 = arith.constant 1.280000e+02 : f32
    %143 = vector.broadcast %cst_40 : f32 to vector<64x1xf32>
    %144 = arith.divf %142, %143 : vector<64x1xf32>
    %145 = vector.broadcast %144 : vector<64x1xf32> to vector<64x128xf32>
    %146 = arith.subf %140, %145 : vector<64x128xf32>
    %147 = arith.mulf %146, %146 : vector<64x128xf32>
    %cst_41 = arith.constant dense<0.000000e+00> : vector<64xf32>
    %148 = vector.multi_reduction <add>, %147, %cst_41 [1] : vector<64x128xf32> to vector<64xf32>
    %149 = vector.shape_cast %148 : vector<64xf32> to vector<64x1xf32>
    %cst_42 = arith.constant 1.280000e+02 : f32
    %150 = vector.broadcast %cst_42 : f32 to vector<64x1xf32>
    %151 = arith.divf %149, %150 : vector<64x1xf32>
    %152 = vector.broadcast %144 : vector<64x1xf32> to vector<64x128xf32>
    %153 = arith.subf %140, %152 : vector<64x128xf32>
    %cst_43 = arith.constant 9.99999974E-6 : f32
    %154 = vector.broadcast %cst_43 : f32 to vector<64x1xf32>
    %155 = arith.addf %151, %154 : vector<64x1xf32>
    %156 = math.rsqrt %155 : vector<64x1xf32>
    %157 = vector.broadcast %156 : vector<64x1xf32> to vector<64x128xf32>
    %158 = arith.mulf %153, %157 : vector<64x128xf32>
    %c0_44 = arith.constant 0 : index
    %c0_45 = arith.constant 0 : index
    %159 = vector.load %arg8[%c0_44, %c0_45] : memref<1x128xf32, #tpu.memory_space<vmem>>, vector<1x128xf32>
    %160 = vector.shape_cast %159 : vector<1x128xf32> to vector<128xf32>
    %161 = vector.shape_cast %160 : vector<128xf32> to vector<1x128xf32>
    %162 = vector.broadcast %161 : vector<1x128xf32> to vector<64x128xf32>
    %163 = arith.mulf %158, %162 : vector<64x128xf32>
    %c0_46 = arith.constant 0 : index
    %c0_47 = arith.constant 0 : index
    %164 = vector.load %arg9[%c0_46, %c0_47] : memref<1x128xf32, #tpu.memory_space<vmem>>, vector<1x128xf32>
    %165 = vector.shape_cast %164 : vector<1x128xf32> to vector<128xf32>
    %166 = vector.shape_cast %165 : vector<128xf32> to vector<1x128xf32>
    %167 = vector.broadcast %166 : vector<1x128xf32> to vector<64x128xf32>
    %168 = arith.addf %163, %167 : vector<64x128xf32>
    %169 = arith.truncf %168 : vector<64x128xf32> to vector<64x128xbf16>
    %c0_48 = arith.constant 0 : index
    %c0_49 = arith.constant 0 : index
    %170 = vector.load %arg10[%c0_48, %c0_49] : memref<128x256xbf16, #tpu.memory_space<vmem>>, vector<128x256xbf16>
    %cst_50 = arith.constant dense<0.000000e+00> : vector<64x256xf32>
    %171 = tpu.matmul %169, %170, %cst_50 {dimension_numbers = #tpu.dot_dimension_numbers<[1], [0], [0], [1], [0, 0, 1, 1], [], []>} : vector<64x128xbf16>, vector<128x256xbf16>, vector<64x256xf32> -> vector<64x256xf32>
    %c0_51 = arith.constant 0 : index
    %c0_52 = arith.constant 0 : index
    %172 = vector.load %arg11[%c0_51, %c0_52] : memref<1x256xf32, #tpu.memory_space<vmem>>, vector<1x256xf32>
    %173 = vector.shape_cast %172 : vector<1x256xf32> to vector<256xf32>
    %174 = vector.shape_cast %173 : vector<256xf32> to vector<1x256xf32>
    %175 = vector.broadcast %174 : vector<1x256xf32> to vector<64x256xf32>
    %176 = arith.addf %171, %175 : vector<64x256xf32>
    %cst_53 = arith.constant 1.702000e+00 : f32
    %177 = vector.broadcast %cst_53 : f32 to vector<64x256xf32>
    %178 = arith.mulf %177, %176 : vector<64x256xf32>
    %179 = arith.negf %178 : vector<64x256xf32>
    %180 = math.exp %179 : vector<64x256xf32>
    %cst_54 = arith.constant 1.000000e+00 : f32
    %181 = vector.broadcast %cst_54 : f32 to vector<64x256xf32>
    %182 = arith.addf %181, %180 : vector<64x256xf32>
    %183 = arith.divf %181, %182 : vector<64x256xf32>
    %184 = arith.mulf %176, %183 : vector<64x256xf32>
    %185 = arith.truncf %184 : vector<64x256xf32> to vector<64x256xbf16>
    %c0_55 = arith.constant 0 : index
    %c0_56 = arith.constant 0 : index
    %186 = vector.load %arg12[%c0_55, %c0_56] : memref<256x128xbf16, #tpu.memory_space<vmem>>, vector<256x128xbf16>
    %cst_57 = arith.constant dense<0.000000e+00> : vector<64x128xf32>
    %187 = tpu.matmul %185, %186, %cst_57 {dimension_numbers = #tpu.dot_dimension_numbers<[1], [0], [0], [1], [0, 0, 1, 1], [], []>} : vector<64x256xbf16>, vector<256x128xbf16>, vector<64x128xf32> -> vector<64x128xf32>
    %c0_58 = arith.constant 0 : index
    %c0_59 = arith.constant 0 : index
    %188 = vector.load %arg13[%c0_58, %c0_59] : memref<1x128xf32, #tpu.memory_space<vmem>>, vector<1x128xf32>
    %189 = vector.shape_cast %188 : vector<1x128xf32> to vector<128xf32>
    %190 = vector.shape_cast %189 : vector<128xf32> to vector<1x128xf32>
    %191 = vector.broadcast %190 : vector<1x128xf32> to vector<64x128xf32>
    %192 = arith.addf %187, %191 : vector<64x128xf32>
    %193 = arith.addf %140, %192 : vector<64x128xf32>
    %194 = vector.shape_cast %193 : vector<64x128xf32> to vector<2x32x128xf32>
    %c0_60 = arith.constant 0 : index
    %c0_61 = arith.constant 0 : index
    %c0_62 = arith.constant 0 : index
    %195 = vector.load %arg14[%c0_60, %c0_61, %c0_62] : memref<2x32x128xf32, #tpu.memory_space<vmem>>, vector<2x32x128xf32>
    tpu.vector_store %arg14[%c0_60, %c0_61, %c0_62], %194 {strides = array<i32>} : memref<2x32x128xf32, #tpu.memory_space<vmem>>, vector<2x32x128xf32>,
    return
  }
  func.func @transform_0(%arg0: i32) -> (i32, i32, i32) {
    %c0_i32 = arith.constant 0 : i32
    %c0_i32_0 = arith.constant 0 : i32
    %c0_i32_1 = arith.constant 0 : i32
    return %arg0, %c0_i32, %c0_i32_0 : i32, i32, i32
  }
  func.func @transform_1(%arg0: i32) -> (i32, i32) {
    %c0_i32 = arith.constant 0 : i32
    %c0_i32_0 = arith.constant 0 : i32
    %c0_i32_1 = arith.constant 0 : i32
    return %c0_i32, %c0_i32_0 : i32, i32
  }
  func.func @transform_2(%arg0: i32) -> (i32, i32) {
    %c0_i32 = arith.constant 0 : i32
    %c0_i32_0 = arith.constant 0 : i32
    %c0_i32_1 = arith.constant 0 : i32
    return %c0_i32, %c0_i32_0 : i32, i32
  }
  func.func @transform_3(%arg0: i32) -> (i32, i32) {
    %c0_i32 = arith.constant 0 : i32
    %c0_i32_0 = arith.constant 0 : i32
    %c0_i32_1 = arith.constant 0 : i32
    return %c0_i32, %c0_i32_0 : i32, i32
  }
  func.func @transform_4(%arg0: i32) -> (i32, i32) {
    %c0_i32 = arith.constant 0 : i32
    %c0_i32_0 = arith.constant 0 : i32
    %c0_i32_1 = arith.constant 0 : i32
    return %c0_i32, %c0_i32_0 : i32, i32
  }
  func.func @transform_5(%arg0: i32) -> (i32, i32) {
    %c0_i32 = arith.constant 0 : i32
    %c0_i32_0 = arith.constant 0 : i32
    %c0_i32_1 = arith.constant 0 : i32
    return %c0_i32, %c0_i32_0 : i32, i32
  }
  func.func @transform_6(%arg0: i32) -> (i32, i32) {
    %c0_i32 = arith.constant 0 : i32
    %c0_i32_0 = arith.constant 0 : i32
    %c0_i32_1 = arith.constant 0 : i32
    return %c0_i32, %c0_i32_0 : i32, i32
  }
  func.func @transform_7(%arg0: i32) -> (i32, i32) {
    %c0_i32 = arith.constant 0 : i32
    %c0_i32_0 = arith.constant 0 : i32
    %c0_i32_1 = arith.constant 0 : i32
    return %c0_i32, %c0_i32_0 : i32, i32
  }
  func.func @transform_8(%arg0: i32) -> (i32, i32) {
    %c0_i32 = arith.constant 0 : i32
    %c0_i32_0 = arith.constant 0 : i32
    %c0_i32_1 = arith.constant 0 : i32
    return %c0_i32, %c0_i32_0 : i32, i32
  }
  func.func @transform_9(%arg0: i32) -> (i32, i32) {
    %c0_i32 = arith.constant 0 : i32
    %c0_i32_0 = arith.constant 0 : i32
    %c0_i32_1 = arith.constant 0 : i32
    return %c0_i32, %c0_i32_0 : i32, i32
  }
  func.func @transform_10(%arg0: i32) -> (i32, i32) {
    %c0_i32 = arith.constant 0 : i32
    %c0_i32_0 = arith.constant 0 : i32
    %c0_i32_1 = arith.constant 0 : i32
    return %c0_i32, %c0_i32_0 : i32, i32
  }
  func.func @transform_11(%arg0: i32) -> (i32, i32) {
    %c0_i32 = arith.constant 0 : i32
    %c0_i32_0 = arith.constant 0 : i32
    %c0_i32_1 = arith.constant 0 : i32
    return %c0_i32, %c0_i32_0 : i32, i32
  }
  func.func @transform_12(%arg0: i32) -> (i32, i32) {
    %c0_i32 = arith.constant 0 : i32
    %c0_i32_0 = arith.constant 0 : i32
    %c0_i32_1 = arith.constant 0 : i32
    return %c0_i32, %c0_i32_0 : i32, i32
  }
  func.func @transform_13(%arg0: i32) -> (i32, i32, i32) {
    %c0_i32 = arith.constant 0 : i32
    %c0_i32_0 = arith.constant 0 : i32
    %c0_i32_1 = arith.constant 0 : i32
    return %arg0, %c0_i32, %c0_i32_0 : i32, i32, i32
  }
}

</mosaic_0001>

<llo_original>
// kernel: tpu_custom_call.1
$region0: #{tpu_custom_call.1}
  #allocation0 [shape = 'u32[]', space=smem, size = 0x4, offset = 0x4, fixed_abs, tag = 'smem constant byte address 0x4 - core index']
  #allocation1 [shape = 'u32[144,128]{1,0:T(1,128)}', space=vmem, size = 0x12000, scoped, tag = 'internal scratch']
  %s0 = inlined_call_operand.hbm [shape: f32[4,32,128], index: 0, kind: input, shape index: {}]
  %s1 = inlined_call_operand.hbm [shape: f32[1,128], index: 1, kind: input, shape index: {}]
  %s2 = inlined_call_operand.hbm [shape: f32[1,128], index: 2, kind: input, shape index: {}]
  %s3 = inlined_call_operand.hbm [shape: bf16[128,384], index: 3, kind: input, shape index: {}]
  %s4 = inlined_call_operand.vmem [shape: f32[1,384], index: 4, kind: input, shape index: {}]
  %s5 = inlined_call_operand.hbm [shape: bf16[128,128], index: 5, kind: input, shape index: {}]
  %s6 = inlined_call_operand.vmem [shape: f32[1,128], index: 6, kind: input, shape index: {}]
  %s7 = inlined_call_operand.vmem [shape: f32[1,128], index: 7, kind: input, shape index: {}]
  %s8 = inlined_call_operand.vmem [shape: f32[1,128], index: 8, kind: input, shape index: {}]
  %s9 = inlined_call_operand.hbm [shape: bf16[128,256], index: 9, kind: input, shape index: {}]
  %s10 = inlined_call_operand.vmem [shape: f32[1,256], index: 10, kind: input, shape index: {}]
  %s11 = inlined_call_operand.hbm [shape: bf16[256,128], index: 11, kind: input, shape index: {}]
  %s12 = inlined_call_operand.vmem [shape: f32[1,128], index: 12, kind: input, shape index: {}]
  %s13 = inlined_call_operand.hbm [shape: f32[4,32,128], index: 13, kind: output, shape index: {}]
  %s14 = sld [smem:[#allocation0]]
  $region113: #{tpu_custom_call.1} parent=0
    _
  %s16 = ssub.s32 1, %s14
  %s17 = scalar_select 0, %s16, %s14
  $region1: #{tpu_custom_call.1} parent=0
    #allocation2 [shape = 'u8[65536]{0}', space=vmem, size = 0x10000, scoped, tag = 'input window, operand 0']
    #allocation3 [shape = 's32[2]{0}', space=sflag, size = 0x8, scoped, tag = 'scoped memory for tpu_custom_call.1']
    #allocation4 [shape = 's32[2]{0}', space=sflag, size = 0x8, scoped, tag = 'scoped memory for tpu_custom_call.1']
    #allocation5 [shape = 'u8[512]{0}', space=vmem, size = 0x400, scoped, tag = 'input window, operand 1, single buffered']
    #allocation6 [shape = 's32[1]{0}', space=sflag, size = 0x4, scoped, tag = 'scoped memory for tpu_custom_call.1']
    #allocation7 [shape = 'u8[512]{0}', space=vmem, size = 0x400, scoped, tag = 'input window, operand 2, single buffered']
    #allocation8 [shape = 'u8[98304]{0}', space=vmem, size = 0x18000, scoped, tag = 'input window, operand 3, single buffered']
    #allocation9 [shape = 's32[1]{0}', space=sflag, size = 0x4, scoped, tag = 'scoped memory for tpu_custom_call.1']
    #allocation10 [shape = 'u8[32768]{0}', space=vmem, size = 0x8000, scoped, tag = 'input window, operand 5, single buffered']
    #allocation11 [shape = 'u8[65536]{0}', space=vmem, size = 0x10000, scoped, tag = 'input window, operand 9, single buffered']
    #allocation12 [shape = 's32[1]{0}', space=sflag, size = 0x4, scoped, tag = 'scoped memory for tpu_custom_call.1']
    #allocation13 [shape = 'u8[65536]{0}', space=vmem, size = 0x10000, scoped, tag = 'input window, operand 11, single buffered']
    #allocation14 [shape = 'u8[65536]{0}', space=vmem, size = 0x10000, scoped, tag = 'output window, operand 0']
    %18 = vsyncpa [#allocation3], 0
    %s19 = scalar_lea.sflag [#allocation3], 1
    %20 = vsyncpa %s19, 0
    %21 = vsyncpa [#allocation6], 0
    %22 = vsyncpa [#allocation9], 0
    %23 = vsyncpa [#allocation12], 0
    %24 = vsyncpa [#allocation4], 0
    %s25 = scalar_lea.sflag [#allocation4], 1
    %26 = vsyncpa %s25, 0
    loop: start=0, step=1, limit=4
    $region2: #{tpu_custom_call.1} parent=1 // loop_pre_header
      _
    $region3: #{tpu_custom_call.1} parent=1 // loop_header
      %s28 = sphi 0, %s32
      %p29 = scmp.ge.s32.totalorder %s28, 4
      %s38 = sphi 0, %s40
      %s41 = sphi 0, %s38
      %s42 = sphi 0, %s41
      %s58 = sphi 0, %s42
      %s62 = sphi 0, %s62
      %s64 = sphi 0, %s62
      %s65 = sphi 0, %s64
      %s79 = sphi 0, %s65
      %s83 = sphi 0, %s83
      %s85 = sphi 0, %s83
      %s86 = sphi 0, %s85
      %s100 = sphi 0, %s86
      %s104 = sphi 0, %s104
      %s106 = sphi 0, %s104
      %s107 = sphi 0, %s106
      %s121 = sphi 0, %s107
      %s125 = sphi 0, %s125
      %s127 = sphi 0, %s125
      %s128 = sphi 0, %s127
      %s142 = sphi 0, %s128
      %s146 = sphi 0, %s146
      %s148 = sphi 0, %s146
      %s149 = sphi 0, %s148
      %s163 = sphi 0, %s149
      %s167 = sphi 0, %s167
      %s169 = sphi 0, %s167
      %s170 = sphi 0, %s169
      %s184 = sphi 0, %s170
      %s188 = sphi 0, %s188
      %s190 = sphi 0, %s188
      %s191 = sphi 0, %s190
      %s205 = sphi 0, %s191
      %s209 = sphi 0, %s209
      %s211 = sphi 0, %s209
      %s212 = sphi 0, %s211
      %s226 = sphi 0, %s212
      %s230 = sphi 0, %s230
      %s232 = sphi 0, %s230
      %s233 = sphi 0, %s232
      %s247 = sphi 0, %s233
      %s251 = sphi 0, %s251
      %s253 = sphi 0, %s251
      %s254 = sphi 0, %s253
      %s268 = sphi 0, %s254
      %s272 = sphi 0, %s272
      %s274 = sphi 0, %s272
      %s275 = sphi 0, %s274
      %s289 = sphi 0, %s275
      %s293 = sphi 0, %s293
      %s295 = sphi 0, %s293
      %s296 = sphi 0, %s295
      %s310 = sphi 0, %s296
      %s316 = sphi 0, %s318
      %s319 = sphi 0, %s316
      %s320 = sphi 0, %s319
      %s336 = sphi 0, %s320
    $region4: #{tpu_custom_call.1} parent=1 // loop_header_branch
      %31 = sbr.rel (%p29) target = $region8
    $region5: #{tpu_custom_call.1} parent=1 // loop_body
      %s33 = ssub.s32 %s28, 1
      %s34 = ssub.s32 %s28, 2
      %s35 = sadd.s32 %s28, 1
      %s36 = ssub.s32 %s28, %s35
      %p37 = scmp.eq.s32.totalorder %s36, 0
      %s39 = sadd.s32 %s38, 1
      %s40 = scalar_select %p37, %s38, %s39
      %p43 = pneg %p37
      %p44 = scmp.eq.s32.totalorder %s28, 1
      %p45 = por %p43, %p44
      %p46 = scmp.ne.s32.totalorder %s38, %s41
      %p47 = scmp.eq.s32.totalorder %s28, 0
      %p48 = por %p46, %p47
      %p49 = scmp.ne.s32.totalorder %s38, %s41
      %p50 = scmp.eq.s32.totalorder %s33, 1
      %p51 = por %p49, %p50
      %p52 = scmp.ne.s32.totalorder %s41, %s42
      %p53 = scmp.eq.s32.totalorder %s33, 0
      %p54 = por %p52, %p53
      %p55 = scmp.ne.s32.totalorder %s41, %s42
      %p56 = scmp.eq.s32.totalorder %s34, 1
      %p57 = por %p55, %p56
      %p59 = scmp.ne.s32.totalorder %s42, %s58
      %p60 = scmp.eq.s32.totalorder %s34, 0
      %p61 = por %p59, %p60
      %s63 = sadd.s32 %s62, 1
      %p66 = scmp.eq.s32.totalorder %s28, 1
      %p67 = scmp.ne.s32.totalorder %s62, %s64
      %p68 = scmp.eq.s32.totalorder %s28, 0
      %p69 = por %p67, %p68
      %p70 = scmp.ne.s32.totalorder %s62, %s64
      %p71 = scmp.eq.s32.totalorder %s33, 1
      %p72 = por %p70, %p71
      %p73 = scmp.ne.s32.totalorder %s64, %s65
      %p74 = scmp.eq.s32.totalorder %s33, 0
      %p75 = por %p73, %p74
      %p76 = scmp.ne.s32.totalorder %s64, %s65
      %p77 = scmp.eq.s32.totalorder %s34, 1
      %p78 = por %p76, %p77
      %p80 = scmp.ne.s32.totalorder %s65, %s79
      %p81 = scmp.eq.s32.totalorder %s34, 0
      %p82 = por %p80, %p81
      %s84 = sadd.s32 %s83, 1
      %p87 = scmp.eq.s32.totalorder %s28, 1
      %p88 = scmp.ne.s32.totalorder %s83, %s85
      %p89 = scmp.eq.s32.totalorder %s28, 0
      %p90 = por %p88, %p89
      %p91 = scmp.ne.s32.totalorder %s83, %s85
      %p92 = scmp.eq.s32.totalorder %s33, 1
      %p93 = por %p91, %p92
      %p94 = scmp.ne.s32.totalorder %s85, %s86
      %p95 = scmp.eq.s32.totalorder %s33, 0
      %p96 = por %p94, %p95
      %p97 = scmp.ne.s32.totalorder %s85, %s86
      %p98 = scmp.eq.s32.totalorder %s34, 1
      %p99 = por %p97, %p98
      %p101 = scmp.ne.s32.totalorder %s86, %s100
      %p102 = scmp.eq.s32.totalorder %s34, 0
      %p103 = por %p101, %p102
      %s105 = sadd.s32 %s104, 1
      %p108 = scmp.eq.s32.totalorder %s28, 1
      %p109 = scmp.ne.s32.totalorder %s104, %s106
      %p110 = scmp.eq.s32.totalorder %s28, 0
      %p111 = por %p109, %p110
      %p112 = scmp.ne.s32.totalorder %s104, %s106
      %p113 = scmp.eq.s32.totalorder %s33, 1
      %p114 = por %p112, %p113
      %p115 = scmp.ne.s32.totalorder %s106, %s107
      %p116 = scmp.eq.s32.totalorder %s33, 0
      %p117 = por %p115, %p116
      %p118 = scmp.ne.s32.totalorder %s106, %s107
      %p119 = scmp.eq.s32.totalorder %s34, 1
      %p120 = por %p118, %p119
      %p122 = scmp.ne.s32.totalorder %s107, %s121
      %p123 = scmp.eq.s32.totalorder %s34, 0
      %p124 = por %p122, %p123
      %s126 = sadd.s32 %s125, 1
      %p129 = scmp.eq.s32.totalorder %s28, 1
      %p130 = scmp.ne.s32.totalorder %s125, %s127
      %p131 = scmp.eq.s32.totalorder %s28, 0
      %p132 = por %p130, %p131
      %p133 = scmp.ne.s32.totalorder %s125, %s127
      %p134 = scmp.eq.s32.totalorder %s33, 1
      %p135 = por %p133, %p134
      %p136 = scmp.ne.s32.totalorder %s127, %s128
      %p137 = scmp.eq.s32.totalorder %s33, 0
      %p138 = por %p136, %p137
      %p139 = scmp.ne.s32.totalorder %s127, %s128
      %p140 = scmp.eq.s32.totalorder %s34, 1
      %p141 = por %p139, %p140
      %p143 = scmp.ne.s32.totalorder %s128, %s142
      %p144 = scmp.eq.s32.totalorder %s34, 0
      %p145 = por %p143, %p144
      %s147 = sadd.s32 %s146, 1
      %p150 = scmp.eq.s32.totalorder %s28, 1
      %p151 = scmp.ne.s32.totalorder %s146, %s148
      %p152 = scmp.eq.s32.totalorder %s28, 0
      %p153 = por %p151, %p152
      %p154 = scmp.ne.s32.totalorder %s146, %s148
      %p155 = scmp.eq.s32.totalorder %s33, 1
      %p156 = por %p154, %p155
      %p157 = scmp.ne.s32.totalorder %s148, %s149
      %p158 = scmp.eq.s32.totalorder %s33, 0
      %p159 = por %p157, %p158
      %p160 = scmp.ne.s32.totalorder %s148, %s149
      %p161 = scmp.eq.s32.totalorder %s34, 1
      %p162 = por %p160, %p161
      %p164 = scmp.ne.s32.totalorder %s149, %s163
      %p165 = scmp.eq.s32.totalorder %s34, 0
      %p166 = por %p164, %p165
      %s168 = sadd.s32 %s167, 1
      %p171 = scmp.eq.s32.totalorder %s28, 1
      %p172 = scmp.ne.s32.totalorder %s167, %s169
      %p173 = scmp.eq.s32.totalorder %s28, 0
      %p174 = por %p172, %p173
      %p175 = scmp.ne.s32.totalorder %s167, %s169
      %p176 = scmp.eq.s32.totalorder %s33, 1
      %p177 = por %p175, %p176
      %p178 = scmp.ne.s32.totalorder %s169, %s170
      %p179 = scmp.eq.s32.totalorder %s33, 0
      %p180 = por %p178, %p179
      %p181 = scmp.ne.s32.totalorder %s169, %s170
      %p182 = scmp.eq.s32.totalorder %s34, 1
      %p183 = por %p181, %p182
      %p185 = scmp.ne.s32.totalorder %s170, %s184
      %p186 = scmp.eq.s32.totalorder %s34, 0
      %p187 = por %p185, %p186
      %s189 = sadd.s32 %s188, 1
      %p192 = scmp.eq.s32.totalorder %s28, 1
      %p193 = scmp.ne.s32.totalorder %s188, %s190
      %p194 = scmp.eq.s32.totalorder %s28, 0
      %p195 = por %p193, %p194
      %p196 = scmp.ne.s32.totalorder %s188, %s190
      %p197 = scmp.eq.s32.totalorder %s33, 1
      %p198 = por %p196, %p197
      %p199 = scmp.ne.s32.totalorder %s190, %s191
      %p200 = scmp.eq.s32.totalorder %s33, 0
      %p201 = por %p199, %p200
      %p202 = scmp.ne.s32.totalorder %s190, %s191
      %p203 = scmp.eq.s32.totalorder %s34, 1
      %p204 = por %p202, %p203
      %p206 = scmp.ne.s32.totalorder %s191, %s205
      %p207 = scmp.eq.s32.totalorder %s34, 0
      %p208 = por %p206, %p207
      %s210 = sadd.s32 %s209, 1
      %p213 = scmp.eq.s32.totalorder %s28, 1
      %p214 = scmp.ne.s32.totalorder %s209, %s211
      %p215 = scmp.eq.s32.totalorder %s28, 0
      %p216 = por %p214, %p215
      %p217 = scmp.ne.s32.totalorder %s209, %s211
      %p218 = scmp.eq.s32.totalorder %s33, 1
      %p219 = por %p217, %p218
      %p220 = scmp.ne.s32.totalorder %s211, %s212
      %p221 = scmp.eq.s32.totalorder %s33, 0
      %p222 = por %p220, %p221
      %p223 = scmp.ne.s32.totalorder %s211, %s212
      %p224 = scmp.eq.s32.totalorder %s34, 1
      %p225 = por %p223, %p224
      %p227 = scmp.ne.s32.totalorder %s212, %s226
      %p228 = scmp.eq.s32.totalorder %s34, 0
      %p229 = por %p227, %p228
      %s231 = sadd.s32 %s230, 1
      %p234 = scmp.eq.s32.totalorder %s28, 1
      %p235 = scmp.ne.s32.totalorder %s230, %s232
      %p236 = scmp.eq.s32.totalorder %s28, 0
      %p237 = por %p235, %p236
      %p238 = scmp.ne.s32.totalorder %s230, %s232
      %p239 = scmp.eq.s32.totalorder %s33, 1
      %p240 = por %p238, %p239
      %p241 = scmp.ne.s32.totalorder %s232, %s233
      %p242 = scmp.eq.s32.totalorder %s33, 0
      %p243 = por %p241, %p242
      %p244 = scmp.ne.s32.totalorder %s232, %s233
      %p245 = scmp.eq.s32.totalorder %s34, 1
      %p246 = por %p244, %p245
      %p248 = scmp.ne.s32.totalorder %s233, %s247
      %p249 = scmp.eq.s32.totalorder %s34, 0
      %p250 = por %p248, %p249
      %s252 = sadd.s32 %s251, 1
      %p255 = scmp.eq.s32.totalorder %s28, 1
      %p256 = scmp.ne.s32.totalorder %s251, %s253
      %p257 = scmp.eq.s32.totalorder %s28, 0
      %p258 = por %p256, %p257
      %p259 = scmp.ne.s32.totalorder %s251, %s253
      %p260 = scmp.eq.s32.totalorder %s33, 1
      %p261 = por %p259, %p260
      %p262 = scmp.ne.s32.totalorder %s253, %s254
      %p263 = scmp.eq.s32.totalorder %s33, 0
      %p264 = por %p262, %p263
      %p265 = scmp.ne.s32.totalorder %s253, %s254
      %p266 = scmp.eq.s32.totalorder %s34, 1
      %p267 = por %p265, %p266
      %p269 = scmp.ne.s32.totalorder %s254, %s268
      %p270 = scmp.eq.s32.totalorder %s34, 0
      %p271 = por %p269, %p270
      %s273 = sadd.s32 %s272, 1
      %p276 = scmp.eq.s32.totalorder %s28, 1
      %p277 = scmp.ne.s32.totalorder %s272, %s274
      %p278 = scmp.eq.s32.totalorder %s28, 0
      %p279 = por %p277, %p278
      %p280 = scmp.ne.s32.totalorder %s272, %s274
      %p281 = scmp.eq.s32.totalorder %s33, 1
      %p282 = por %p280, %p281
      %p283 = scmp.ne.s32.totalorder %s274, %s275
      %p284 = scmp.eq.s32.totalorder %s33, 0
      %p285 = por %p283, %p284
      %p286 = scmp.ne.s32.totalorder %s274, %s275
      %p287 = scmp.eq.s32.totalorder %s34, 1
      %p288 = por %p286, %p287
      %p290 = scmp.ne.s32.totalorder %s275, %s289
      %p291 = scmp.eq.s32.totalorder %s34, 0
      %p292 = por %p290, %p291
      %s294 = sadd.s32 %s293, 1
      %p297 = scmp.eq.s32.totalorder %s28, 1
      %p298 = scmp.ne.s32.totalorder %s293, %s295
      %p299 = scmp.eq.s32.totalorder %s28, 0
      %p300 = por %p298, %p299
      %p301 = scmp.ne.s32.totalorder %s293, %s295
      %p302 = scmp.eq.s32.totalorder %s33, 1
      %p303 = por %p301, %p302
      %p304 = scmp.ne.s32.totalorder %s295, %s296
      %p305 = scmp.eq.s32.totalorder %s33, 0
      %p306 = por %p304, %p305
      %p307 = scmp.ne.s32.totalorder %s295, %s296
      %p308 = scmp.eq.s32.totalorder %s34, 1
      %p309 = por %p307, %p308
      %p311 = scmp.ne.s32.totalorder %s296, %s310
      %p312 = scmp.eq.s32.totalorder %s34, 0
      %p313 = por %p311, %p312
      %s314 = ssub.s32 %s28, %s35
      %p315 = scmp.eq.s32.totalorder %s314, 0
      %s317 = sadd.s32 %s316, 1
      %s318 = scalar_select %p315, %s316, %s317
      %p321 = pneg %p315
      %p322 = scmp.eq.s32.totalorder %s28, 1
      %p323 = por %p321, %p322
      %p324 = scmp.ne.s32.totalorder %s316, %s319
      %p325 = scmp.eq.s32.totalorder %s28, 0
      %p326 = por %p324, %p325
      %p327 = scmp.ne.s32.totalorder %s316, %s319
      %p328 = scmp.eq.s32.totalorder %s33, 1
      %p329 = por %p327, %p328
      %p330 = scmp.ne.s32.totalorder %s319, %s320
      %p331 = scmp.eq.s32.totalorder %s33, 0
      %p332 = por %p330, %p331
      %p333 = scmp.ne.s32.totalorder %s319, %s320
      %p334 = scmp.eq.s32.totalorder %s34, 1
      %p335 = por %p333, %p334
      %p337 = scmp.ne.s32.totalorder %s320, %s336
      %p338 = scmp.eq.s32.totalorder %s34, 0
      %p339 = por %p337, %p338
      %p340 = scmp.le.s32.totalorder 1, %s28
      %p341 = scmp.lt.s32.totalorder %s28, 3
      %p342 = pnand %p340, %p341
      %p343 = pneg %p342
      // Predicated region
      $region9: #{tpu_custom_call.1} parent=5 // pred_check
        _
      $region10: #{tpu_custom_call.1} parent=5 // pred_check_branch
        %345 = sbr.rel (%p342) target = $region12
      $region11: #{tpu_custom_call.1} parent=5 // pred_region
        %s346 = ssub.s32 %s28, 1
        // Predicated region
        $region13: #{tpu_custom_call.1} parent=11 // pred_check
          %p347 = pneg %p75
        $region14: #{tpu_custom_call.1} parent=11 // pred_check_branch
          %349 = sbr.rel (%p347) target = $region16
        $region15: #{tpu_custom_call.1} parent=11 // pred_region
          %s351 = ssub.s32 16, 16
          %352 = vsyncadd [#allocation6], %s351
          %s354 = sshll.u32 [#allocation5], 4
          %s355 = int_to_ptr.vmem [resolvable:$true] %s354
          %357 = dma.hbm_to_vmem [thread:$0]  %s1, 16, %s355, [#allocation6]
        $region16: #{tpu_custom_call.1} parent=11 // pred_fallthru
          _
        // Predicated region
        $region17: #{tpu_custom_call.1} parent=11 // pred_check
          %p358 = pneg %p96
        $region18: #{tpu_custom_call.1} parent=11 // pred_check_branch
          %360 = sbr.rel (%p358) target = $region20
        $region19: #{tpu_custom_call.1} parent=11 // pred_region
          %s362 = ssub.s32 16, 16
          %363 = vsyncadd [#allocation6], %s362
          %s365 = sshll.u32 [#allocation7], 4
          %s366 = int_to_ptr.vmem [resolvable:$true] %s365
          %368 = dma.hbm_to_vmem [thread:$0]  %s2, 16, %s366, [#allocation6]
        $region20: #{tpu_custom_call.1} parent=11 // pred_fallthru
          _
        // Predicated region
        $region21: #{tpu_custom_call.1} parent=11 // pred_check
          %p369 = pneg %p117
        $region22: #{tpu_custom_call.1} parent=11 // pred_check_branch
          %371 = sbr.rel (%p369) target = $region24
        $region23: #{tpu_custom_call.1} parent=11 // pred_region
          %s373 = ssub.s32 3072, 3072
          %374 = vsyncadd [#allocation9], %s373
          %s375 = sshll.u32 [#allocation8], 4
          %s376 = int_to_ptr.vmem [resolvable:$true] %s375
          %381 = dma.hbm_to_vmem [thread:$0]  %s3, 3072, %s376, [#allocation9], 192, 192, 12
        $region24: #{tpu_custom_call.1} parent=11 // pred_fallthru
          _
        // Predicated region
        $region25: #{tpu_custom_call.1} parent=11 // pred_check
          %p382 = pneg %p138
        $region26: #{tpu_custom_call.1} parent=11 // pred_check_branch
          %384 = sbr.rel (%p382) target = $region28
        $region27: #{tpu_custom_call.1} parent=11 // pred_region
          _
        $region28: #{tpu_custom_call.1} parent=11 // pred_fallthru
          _
        // Predicated region
        $region29: #{tpu_custom_call.1} parent=11 // pred_check
          %p385 = pneg %p159
        $region30: #{tpu_custom_call.1} parent=11 // pred_check_branch
          %387 = sbr.rel (%p385) target = $region32
        $region31: #{tpu_custom_call.1} parent=11 // pred_region
          %s389 = ssub.s32 1024, 1024
          %390 = vsyncadd [#allocation9], %s389
          %s391 = sshll.u32 [#allocation10], 4
          %s392 = int_to_ptr.vmem [resolvable:$true] %s391
          %397 = dma.hbm_to_vmem [thread:$0]  %s5, 1024, %s392, [#allocation9], 64, 64, 4
        $region32: #{tpu_custom_call.1} parent=11 // pred_fallthru
          _
        // Predicated region
        $region33: #{tpu_custom_call.1} parent=11 // pred_check
          %p398 = pneg %p180
        $region34: #{tpu_custom_call.1} parent=11 // pred_check_branch
          %400 = sbr.rel (%p398) target = $region36
        $region35: #{tpu_custom_call.1} parent=11 // pred_region
          _
        $region36: #{tpu_custom_call.1} parent=11 // pred_fallthru
          _
        // Predicated region
        $region37: #{tpu_custom_call.1} parent=11 // pred_check
          %p401 = pneg %p201
        $region38: #{tpu_custom_call.1} parent=11 // pred_check_branch
          %403 = sbr.rel (%p401) target = $region40
        $region39: #{tpu_custom_call.1} parent=11 // pred_region
          _
        $region40: #{tpu_custom_call.1} parent=11 // pred_fallthru
          _
        // Predicated region
        $region41: #{tpu_custom_call.1} parent=11 // pred_check
          %p404 = pneg %p222
        $region42: #{tpu_custom_call.1} parent=11 // pred_check_branch
          %406 = sbr.rel (%p404) target = $region44
        $region43: #{tpu_custom_call.1} parent=11 // pred_region
          _
        $region44: #{tpu_custom_call.1} parent=11 // pred_fallthru
          _
        // Predicated region
        $region45: #{tpu_custom_call.1} parent=11 // pred_check
          %p407 = pneg %p243
        $region46: #{tpu_custom_call.1} parent=11 // pred_check_branch
          %409 = sbr.rel (%p407) target = $region48
        $region47: #{tpu_custom_call.1} parent=11 // pred_region
          %s411 = ssub.s32 2048, 2048
          %412 = vsyncadd [#allocation12], %s411
          %s413 = sshll.u32 [#allocation11], 4
          %s414 = int_to_ptr.vmem [resolvable:$true] %s413
          %419 = dma.hbm_to_vmem [thread:$0]  %s9, 2048, %s414, [#allocation12], 128, 128, 8
        $region48: #{tpu_custom_call.1} parent=11 // pred_fallthru
          _
        // Predicated region
        $region49: #{tpu_custom_call.1} parent=11 // pred_check
          %p420 = pneg %p264
        $region50: #{tpu_custom_call.1} parent=11 // pred_check_branch
          %422 = sbr.rel (%p420) target = $region52
        $region51: #{tpu_custom_call.1} parent=11 // pred_region
          _
        $region52: #{tpu_custom_call.1} parent=11 // pred_fallthru
          _
        // Predicated region
        $region53: #{tpu_custom_call.1} parent=11 // pred_check
          %p423 = pneg %p285
        $region54: #{tpu_custom_call.1} parent=11 // pred_check_branch
          %425 = sbr.rel (%p423) target = $region56
        $region55: #{tpu_custom_call.1} parent=11 // pred_region
          %s427 = ssub.s32 2048, 2048
          %428 = vsyncadd [#allocation12], %s427
          %s429 = sshll.u32 [#allocation13], 4
          %s430 = int_to_ptr.vmem [resolvable:$true] %s429
          %435 = dma.hbm_to_vmem [thread:$0]  %s11, 2048, %s430, [#allocation12], 64, 64, 4
        $region56: #{tpu_custom_call.1} parent=11 // pred_fallthru
          _
        // Predicated region
        $region57: #{tpu_custom_call.1} parent=11 // pred_check
          %p436 = pneg %p306
        $region58: #{tpu_custom_call.1} parent=11 // pred_check_branch
          %438 = sbr.rel (%p436) target = $region60
        $region59: #{tpu_custom_call.1} parent=11 // pred_region
          _
        $region60: #{tpu_custom_call.1} parent=11 // pred_fallthru
          _
      $region12: #{tpu_custom_call.1} parent=5 // pred_fallthru
        _
      %p439 = scmp.lt.s32.totalorder %s28, 2
      // Predicated region
      $region61: #{tpu_custom_call.1} parent=5 // pred_check
        %p440 = pneg %p439
      $region62: #{tpu_custom_call.1} parent=5 // pred_check_branch
        %442 = sbr.rel (%p440) target = $region64
      $region63: #{tpu_custom_call.1} parent=5 // pred_region
        // Predicated region
        $region65: #{tpu_custom_call.1} parent=63 // pred_check
          %p443 = pneg %p48
        $region66: #{tpu_custom_call.1} parent=63 // pred_check_branch
          %445 = sbr.rel (%p443) target = $region68
        $region67: #{tpu_custom_call.1} parent=63 // pred_region
          %s446 = sand.u32 %s38, 1
          %s447 = scalar_lea.sflag [#allocation3], %s446
          %s448 = sand.u32 %s38, 1
          %s449 = smul.addr %s448, 64
          %s450 = scalar_lea.vmem [#allocation2], %s449
          %s451 = smul.u32 2, %s28
          %s453 = ssub.s32 1024, 1024
          %454 = vsyncadd %s447, %s453
          %s455 = smul.addr %s451, 4
          %s456 = smul.addr %s455, 128
          %s457 = scalar_lea.hbm %s0, %s456
          %s458 = sshll.u32 %s450, 4
          %s459 = int_to_ptr.vmem [resolvable:$true] %s458
          %464 = dma.hbm_to_vmem [thread:$0]  %s457, 1024, %s459, %s447, 128, 128, 8
        $region68: #{tpu_custom_call.1} parent=63 // pred_fallthru
          _
      $region64: #{tpu_custom_call.1} parent=5 // pred_fallthru
        _
      %p465 = scmp.le.s32.totalorder 1, %s28
      %p466 = scmp.lt.s32.totalorder %s28, 3
      %p467 = pnand %p465, %p466
      %p468 = pneg %p467
      // Predicated region
      $region69: #{tpu_custom_call.1} parent=5 // pred_check
        _
      $region70: #{tpu_custom_call.1} parent=5 // pred_check_branch
        %470 = sbr.rel (%p467) target = $region72
      $region71: #{tpu_custom_call.1} parent=5 // pred_region
        %s471 = ssub.s32 %s28, 1
        %s472 = sand.u32 %s41, 1
        %s473 = scalar_lea.sflag [#allocation3], %s472
        %s474 = sand.u32 %s41, 1
        %s475 = smul.addr %s474, 64
        %s476 = scalar_lea.vmem [#allocation2], %s475
        // Predicated region
        $region73: #{tpu_custom_call.1} parent=71 // pred_check
          %p477 = pneg %p54
        $region74: #{tpu_custom_call.1} parent=71 // pred_check_branch
          %479 = sbr.rel (%p477) target = $region76
        $region75: #{tpu_custom_call.1} parent=71 // pred_region
          %480 = dma.done %s473, 1024
        $region76: #{tpu_custom_call.1} parent=71 // pred_fallthru
          _
        // Predicated region
        $region77: #{tpu_custom_call.1} parent=71 // pred_check
          %p481 = pneg %p75
        $region78: #{tpu_custom_call.1} parent=71 // pred_check_branch
          %483 = sbr.rel (%p481) target = $region80
        $region79: #{tpu_custom_call.1} parent=71 // pred_region
          %484 = dma.done [#allocation6], 16
        $region80: #{tpu_custom_call.1} parent=71 // pred_fallthru
          _
        // Predicated region
        $region81: #{tpu_custom_call.1} parent=71 // pred_check
          %p485 = pneg %p96
        $region82: #{tpu_custom_call.1} parent=71 // pred_check_branch
          %487 = sbr.rel (%p485) target = $region84
        $region83: #{tpu_custom_call.1} parent=71 // pred_region
          %488 = dma.done [#allocation6], 16
        $region84: #{tpu_custom_call.1} parent=71 // pred_fallthru
          _
        // Predicated region
        $region85: #{tpu_custom_call.1} parent=71 // pred_check
          %p489 = pneg %p117
        $region86: #{tpu_custom_call.1} parent=71 // pred_check_branch
          %491 = sbr.rel (%p489) target = $region88
        $region87: #{tpu_custom_call.1} parent=71 // pred_region
          %492 = dma.done [#allocation9], 3072
        $region88: #{tpu_custom_call.1} parent=71 // pred_fallthru
          _
        // Predicated region
        $region89: #{tpu_custom_call.1} parent=71 // pred_check
          %p493 = pneg %p159
        $region90: #{tpu_custom_call.1} parent=71 // pred_check_branch
          %495 = sbr.rel (%p493) target = $region92
        $region91: #{tpu_custom_call.1} parent=71 // pred_region
          %496 = dma.done [#allocation9], 1024
        $region92: #{tpu_custom_call.1} parent=71 // pred_fallthru
          _
        // Predicated region
        $region93: #{tpu_custom_call.1} parent=71 // pred_check
          %p497 = pneg %p243
        $region94: #{tpu_custom_call.1} parent=71 // pred_check_branch
          %499 = sbr.rel (%p497) target = $region96
        $region95: #{tpu_custom_call.1} parent=71 // pred_region
          %500 = dma.done [#allocation12], 2048
        $region96: #{tpu_custom_call.1} parent=71 // pred_fallthru
          _
        // Predicated region
        $region97: #{tpu_custom_call.1} parent=71 // pred_check
          %p501 = pneg %p285
        $region98: #{tpu_custom_call.1} parent=71 // pred_check_branch
          %503 = sbr.rel (%p501) target = $region100
        $region99: #{tpu_custom_call.1} parent=71 // pred_region
          %504 = dma.done [#allocation12], 2048
        $region100: #{tpu_custom_call.1} parent=71 // pred_fallthru
          _
        %s505 = sand.u32 %s41, 1
        %s506 = scalar_lea.sflag [#allocation3], %s505
        %s507 = sand.u32 %s41, 1
        %s508 = smul.addr %s507, 64
        %s509 = scalar_lea.vmem [#allocation2], %s508
        %p510 = pneg %p54
        %p511 = pneg %p51
        %p512 = pneg %p75
        %p513 = pneg %p72
        %p514 = pneg %p96
        %p515 = pneg %p93
        %p516 = pneg %p117
        %p517 = pneg %p114
        %p518 = pneg %p138
        %p519 = pneg %p135
        %p520 = pneg %p159
        %p521 = pneg %p156
        %p522 = pneg %p180
        %p523 = pneg %p177
        %p524 = pneg %p201
        %p525 = pneg %p198
        %p526 = pneg %p222
        %p527 = pneg %p219
        %p528 = pneg %p243
        %p529 = pneg %p240
        %p530 = pneg %p264
        %p531 = pneg %p261
        %p532 = pneg %p285
        %p533 = pneg %p282
        %p534 = pneg %p306
        %p535 = pneg %p303
        %p536 = pneg %p332
        %p537 = pneg %p329
        %s538 = sand.u32 %s319, 1
        %s539 = scalar_lea.sflag [#allocation4], %s538
        %s540 = sand.u32 %s319, 1
        %s541 = smul.addr %s540, 64
        %s542 = scalar_lea.vmem [#allocation14], %s541
        %s543 = smul.u32 2, %s33
        %s544 = smul.u32 2, %s33
        %v546 = vld [vmem:[%s476] sm:$0xff]
        %v547 = vld [vmem:[%s476 + $0x8] sm:$0xff]
        %v548 = vld [vmem:[%s476 + $0x10] sm:$0xff]
        %v549 = vld [vmem:[%s476 + $0x18] sm:$0xff]
        %v550 = vld [vmem:[%s476 + $0x20] sm:$0xff]
        %v551 = vld [vmem:[%s476 + $0x28] sm:$0xff]
        %v552 = vld [vmem:[%s476 + $0x30] sm:$0xff]
        %v553 = vld [vmem:[%s476 + $0x38] sm:$0xff]
        %554 = vadd.xlane.f32.xlu0 %v546
        %v555 = vpop.xlane.xlu0 %554
        %556 = vadd.xlane.f32.xlu0 %v547
        %v557 = vpop.xlane.xlu0 %556
        %558 = vadd.xlane.f32.xlu0 %v548
        %v559 = vpop.xlane.xlu0 %558
        %560 = vadd.xlane.f32.xlu0 %v549
        %v561 = vpop.xlane.xlu0 %560
        %562 = vadd.xlane.f32.xlu0 %v550
        %v563 = vpop.xlane.xlu0 %562
        %564 = vadd.xlane.f32.xlu0 %v551
        %v565 = vpop.xlane.xlu0 %564
        %566 = vadd.xlane.f32.xlu0 %v552
        %v567 = vpop.xlane.xlu0 %566
        %568 = vadd.xlane.f32.xlu0 %v553
        %v569 = vpop.xlane.xlu0 %568
        %v570 = vrcp.pop 128.0
        %v571 = vmul.f32 %v555, %v570
        %v572 = vmul.f32 %v557, %v570
        %v573 = vmul.f32 %v559, %v570
        %v574 = vmul.f32 %v561, %v570
        %v575 = vmul.f32 %v563, %v570
        %v576 = vmul.f32 %v565, %v570
        %v577 = vmul.f32 %v567, %v570
        %v578 = vmul.f32 %v569, %v570
        %v579 = vsub.f32 %v546, %v571
        %v580 = vsub.f32 %v547, %v572
        %v581 = vsub.f32 %v548, %v573
        %v582 = vsub.f32 %v549, %v574
        %v583 = vsub.f32 %v550, %v575
        %v584 = vsub.f32 %v551, %v576
        %v585 = vsub.f32 %v552, %v577
        %v586 = vsub.f32 %v553, %v578
        %v587 = vmul.f32 %v579, %v579
        %v588 = vmul.f32 %v580, %v580
        %v589 = vmul.f32 %v581, %v581
        %v590 = vmul.f32 %v582, %v582
        %v591 = vmul.f32 %v583, %v583
        %v592 = vmul.f32 %v584, %v584
        %v593 = vmul.f32 %v585, %v585
        %v594 = vmul.f32 %v586, %v586
        %595 = vadd.xlane.f32.xlu0 %v587
        %v596 = vpop.xlane.xlu0 %595
        %597 = vadd.xlane.f32.xlu0 %v588
        %v598 = vpop.xlane.xlu0 %597
        %599 = vadd.xlane.f32.xlu0 %v589
        %v600 = vpop.xlane.xlu0 %599
        %601 = vadd.xlane.f32.xlu0 %v590
        %v602 = vpop.xlane.xlu0 %601
        %603 = vadd.xlane.f32.xlu0 %v591
        %v604 = vpop.xlane.xlu0 %603
        %605 = vadd.xlane.f32.xlu0 %v592
        %v606 = vpop.xlane.xlu0 %605
        %607 = vadd.xlane.f32.xlu0 %v593
        %v608 = vpop.xlane.xlu0 %607
        %609 = vadd.xlane.f32.xlu0 %v594
        %v610 = vpop.xlane.xlu0 %609
        %v611 = vmul.f32 %v596, %v570
        %v612 = vmul.f32 %v598, %v570
        %v613 = vmul.f32 %v600, %v570
        %v614 = vmul.f32 %v602, %v570
        %v615 = vmul.f32 %v604, %v570
        %v616 = vmul.f32 %v606, %v570
        %v617 = vmul.f32 %v608, %v570
        %v618 = vmul.f32 %v610, %v570
        %v619 = vadd.f32 %v611, 1e-05
        %v620 = vadd.f32 %v612, 1e-05
        %v621 = vadd.f32 %v613, 1e-05
        %v622 = vadd.f32 %v614, 1e-05
        %v623 = vadd.f32 %v615, 1e-05
        %v624 = vadd.f32 %v616, 1e-05
        %v625 = vadd.f32 %v617, 1e-05
        %v626 = vadd.f32 %v618, 1e-05
        %v627 = vrsqrt.pop %v619
        %v628 = vrsqrt.pop %v620
        %v629 = vrsqrt.pop %v621
        %v630 = vrsqrt.pop %v622
        %v631 = vrsqrt.pop %v623
        %v632 = vrsqrt.pop %v624
        %v633 = vrsqrt.pop %v625
        %v634 = vrsqrt.pop %v626
        %v635 = vmul.f32 %v579, %v627
        %v636 = vmul.f32 %v580, %v628
        %v637 = vmul.f32 %v581, %v629
        %v638 = vmul.f32 %v582, %v630
        %v639 = vmul.f32 %v583, %v631
        %v640 = vmul.f32 %v584, %v632
        %v641 = vmul.f32 %v585, %v633
        %v642 = vmul.f32 %v586, %v634
        %v643 = vld [vmem:[#allocation5] sm:$0x1]
        %v645 = vlaneseq
        %v646 = vshrl.u32 %v645, 7
        %v647 = vsub.s32 0, %v646
        %v648 = vrot.slane %v643, %v647
        %v650 = vmul.f32 %v635, %v648
        %v651 = vmul.f32 %v636, %v648
        %v652 = vmul.f32 %v637, %v648
        %v653 = vmul.f32 %v638, %v648
        %v654 = vmul.f32 %v639, %v648
        %v655 = vmul.f32 %v640, %v648
        %v656 = vmul.f32 %v641, %v648
        %v657 = vmul.f32 %v642, %v648
        %v658 = vld [vmem:[#allocation7] sm:$0x1]
        %v660 = vlaneseq
        %v661 = vshrl.u32 %v660, 7
        %v662 = vsub.s32 0, %v661
        %v663 = vrot.slane %v658, %v662
        %v665 = vadd.f32 %v650, %v663
        %v666 = vadd.f32 %v651, %v663
        %v667 = vadd.f32 %v652, %v663
        %v668 = vadd.f32 %v653, %v663
        %v669 = vadd.f32 %v654, %v663
        %v670 = vadd.f32 %v655, %v663
        %v671 = vadd.f32 %v656, %v663
        %v672 = vadd.f32 %v657, %v663
        %v673 = vpack.c.bf16 %v666, %v665
        %v674 = vpack.c.bf16 %v668, %v667
        %v675 = vpack.c.bf16 %v670, %v669
        %v676 = vpack.c.bf16 %v672, %v671
        %v677 = vld [vmem:[#allocation8] sm:$0xff]
        %v678 = vld [vmem:[#allocation8 + $0x8] sm:$0xf]
        %v679 = vld [vmem:[#allocation8 + $0xc] sm:$0xff]
        %v680 = vld [vmem:[#allocation8 + $0x14] sm:$0xf]
        %v681 = vld [vmem:[#allocation8 + $0x18] sm:$0xff]
        %v682 = vld [vmem:[#allocation8 + $0x20] sm:$0xf]
        %v683 = vld [vmem:[#allocation8 + $0x24] sm:$0xff]
        %v684 = vld [vmem:[#allocation8 + $0x2c] sm:$0xf]
        %v685 = vld [vmem:[#allocation8 + $0x30] sm:$0xff]
        %v686 = vld [vmem:[#allocation8 + $0x38] sm:$0xf]
        %v687 = vld [vmem:[#allocation8 + $0x3c] sm:$0xff]
        %v688 = vld [vmem:[#allocation8 + $0x44] sm:$0xf]
        %v689 = vld [vmem:[#allocation8 + $0x48] sm:$0xff]
        %v690 = vld [vmem:[#allocation8 + $0x50] sm:$0xf]
        %v691 = vld [vmem:[#allocation8 + $0x54] sm:$0xff]
        %v692 = vld [vmem:[#allocation8 + $0x5c] sm:$0xf]
        %v693 = vld [vmem:[#allocation8 + $0x60] sm:$0xff]
        %v694 = vld [vmem:[#allocation8 + $0x68] sm:$0xf]
        %v695 = vld [vmem:[#allocation8 + $0x6c] sm:$0xff]
        %v696 = vld [vmem:[#allocation8 + $0x74] sm:$0xf]
        %v697 = vld [vmem:[#allocation8 + $0x78] sm:$0xff]
        %v698 = vld [vmem:[#allocation8 + $0x80] sm:$0xf]
        %v699 = vld [vmem:[#allocation8 + $0x84] sm:$0xff]
        %v700 = vld [vmem:[#allocation8 + $0x8c] sm:$0xf]
        %v701 = vld [vmem:[#allocation8 + $0x90] sm:$0xff]
        %v702 = vld [vmem:[#allocation8 + $0x98] sm:$0xf]
        %v703 = vld [vmem:[#allocation8 + $0x9c] sm:$0xff]
        %v704 = vld [vmem:[#allocation8 + $0xa4] sm:$0xf]
        %v705 = vld [vmem:[#allocation8 + $0xa8] sm:$0xff]
        %v706 = vld [vmem:[#allocation8 + $0xb0] sm:$0xf]
        %v707 = vld [vmem:[#allocation8 + $0xb4] sm:$0xff]
        %v708 = vld [vmem:[#allocation8 + $0xbc] sm:$0xf]
        %v709 = vld [vmem:[%s4] sm:$0x7]
        %v711 = vlaneseq
        %v712 = vshrl.u32 %v711, 7
        %v713 = vsub.s32 0, %v712
        %v714 = vrot.slane %v709, %v713
        %v715 = vlaneseq
        %v716 = vshrl.u32 %v715, 7
        %v717 = vsub.s32 1, %v716
        %v718 = vrot.slane %v709, %v717
        %v719 = vlaneseq
        %v720 = vshrl.u32 %v719, 7
        %v721 = vsub.s32 2, %v720
        %v722 = vrot.slane %v709, %v721
        %v758 = vunpack.c.l.b16 %v677
        %v759 = vunpack.c.h.b16 %v677
        %v760 = vunpack.c.l.b16 %v678
        %v761 = vunpack.c.l.b16 %v679
        %v762 = vunpack.c.h.b16 %v679
        %v763 = vunpack.c.l.b16 %v680
        %v764 = vunpack.c.l.b16 %v681
        %v765 = vunpack.c.h.b16 %v681
        %v766 = vunpack.c.l.b16 %v682
        %v767 = vunpack.c.l.b16 %v683
        %v768 = vunpack.c.h.b16 %v683
        %v769 = vunpack.c.l.b16 %v684
        %v770 = vunpack.c.l.b16 %v685
        %v771 = vunpack.c.h.b16 %v685
        %v772 = vunpack.c.l.b16 %v686
        %v773 = vunpack.c.l.b16 %v687
        %v774 = vunpack.c.h.b16 %v687
        %v775 = vunpack.c.l.b16 %v688
        %v776 = vunpack.c.l.b16 %v689
        %v777 = vunpack.c.h.b16 %v689
        %v778 = vunpack.c.l.b16 %v690
        %v779 = vunpack.c.l.b16 %v691
        %v780 = vunpack.c.h.b16 %v691
        %v781 = vunpack.c.l.b16 %v692
        %v782 = vunpack.c.l.b16 %v693
        %v783 = vunpack.c.h.b16 %v693
        %v784 = vunpack.c.l.b16 %v694
        %v785 = vunpack.c.l.b16 %v695
        %v786 = vunpack.c.h.b16 %v695
        %v787 = vunpack.c.l.b16 %v696
        %v788 = vunpack.c.l.b16 %v697
        %v789 = vunpack.c.h.b16 %v697
        %v790 = vunpack.c.l.b16 %v698
        %v791 = vunpack.c.l.b16 %v699
        %v792 = vunpack.c.h.b16 %v699
        %v793 = vunpack.c.l.b16 %v700
        %v794 = vunpack.c.l.b16 %v701
        %v795 = vunpack.c.h.b16 %v701
        %v796 = vunpack.c.l.b16 %v702
        %v797 = vunpack.c.l.b16 %v703
        %v798 = vunpack.c.h.b16 %v703
        %v799 = vunpack.c.l.b16 %v704
        %v800 = vunpack.c.l.b16 %v705
        %v801 = vunpack.c.h.b16 %v705
        %v802 = vunpack.c.l.b16 %v706
        %v803 = vunpack.c.l.b16 %v707
        %v804 = vunpack.c.h.b16 %v707
        %v805 = vunpack.c.l.b16 %v708
        %v806 = vpack.c.b16 %v761, %v758
        %v807 = vpack.c.b16 %v762, %v759
        %v808 = vpack.c.b16 %v763, %v760
        %v809 = vpack.c.b16 %v767, %v764
        %v810 = vpack.c.b16 %v768, %v765
        %v811 = vpack.c.b16 %v769, %v766
        %v812 = vpack.c.b16 %v773, %v770
        %v813 = vpack.c.b16 %v774, %v771
        %v814 = vpack.c.b16 %v775, %v772
        %v815 = vpack.c.b16 %v779, %v776
        %v816 = vpack.c.b16 %v780, %v777
        %v817 = vpack.c.b16 %v781, %v778
        %v818 = vpack.c.b16 %v785, %v782
        %v819 = vpack.c.b16 %v786, %v783
        %v820 = vpack.c.b16 %v787, %v784
        %v821 = vpack.c.b16 %v791, %v788
        %v822 = vpack.c.b16 %v792, %v789
        %v823 = vpack.c.b16 %v793, %v790
        %v824 = vpack.c.b16 %v797, %v794
        %v825 = vpack.c.b16 %v798, %v795
        %v826 = vpack.c.b16 %v799, %v796
        %v827 = vpack.c.b16 %v803, %v800
        %v828 = vpack.c.b16 %v804, %v801
        %v829 = vpack.c.b16 %v805, %v802
        %854 = vmatprep.subr.bf16.mxu0 %v828
        %855 = vmatpush1.bf16.msra.mxu0 %v827
        %856 = vmatprep.subr.bf16.mxu0 %v825
        %857 = vmatpush1.bf16.msra.mxu0 %v824
        %858 = vmatprep.subr.bf16.mxu0 %v822
        %859 = vmatpush1.bf16.msra.mxu0 %v821
        %860 = vmatprep.subr.bf16.mxu0 %v819
        %861 = vmatpush1.bf16.msra.mxu0 %v818
        %862 = vmatprep.subr.bf16.mxu0 %v816
        %863 = vmatpush1.bf16.msra.mxu0 %v815
        %864 = vmatprep.subr.bf16.mxu0 %v813
        %865 = vmatpush1.bf16.msra.mxu0 %v812
        %866 = vmatprep.subr.bf16.mxu0 %v810
        %867 = vmatpush1.bf16.msra.mxu0 %v809
        %868 = vmatprep.subr.bf16.mxu0 %v807
        %869 = vmatpush1.bf16.msra.mxu0 %v806
        %870 = vmatprep.subr.bf16.mxu0 0
        %871 = vmatpush2.bf16.msra.mxu0 0
        %872 = vmatprep.subr.bf16.mxu0 0
        %873 = vmatpush2.bf16.msra.mxu0 0
        %874 = vmatprep.subr.bf16.mxu0 0
        %875 = vmatpush2.bf16.msra.mxu0 0
        %876 = vmatprep.subr.bf16.mxu0 0
        %877 = vmatpush2.bf16.msra.mxu0 0
        %878 = vmatprep.subr.bf16.mxu0 0
        %879 = vmatpush2.bf16.msra.mxu0 0
        %880 = vmatprep.subr.bf16.mxu0 0
        %881 = vmatpush2.bf16.msra.mxu0 0
        %882 = vmatprep.subr.bf16.mxu0 0
        %883 = vmatpush2.bf16.msra.mxu0 0
        %884 = vmatprep.subr.bf16.mxu0 0
        %885 = vmatpush2.bf16.msra.mxu0 0
        %886 = vmatprep.mubr.bf16.mxu0 0
        %887 = vmatmul.mubr.bf16.gmra.mxu0 %v673
        %v888 = vpop.f32.mrf.mxu0
        %v889 = vadd.f32 %v714, %v888
        %v890 = vpop.f32.mrf.mxu0
        %v891 = vadd.f32 %v718, %v890
        %v892 = vpop.f32.mrf.mxu0
        %v893 = vadd.f32 %v714, %v892
        %v894 = vpop.f32.mrf.mxu0
        %v895 = vadd.f32 %v718, %v894
        %896 = vmatprep.mubr.bf16.mxu0 0
        %897 = vmatmul.mubr.bf16.gmra.mxu0 %v674
        %v898 = vpop.f32.mrf.mxu0
        %v899 = vadd.f32 %v714, %v898
        %v900 = vpop.f32.mrf.mxu0
        %v901 = vadd.f32 %v718, %v900
        %v902 = vpop.f32.mrf.mxu0
        %v903 = vadd.f32 %v714, %v902
        %v904 = vpop.f32.mrf.mxu0
        %v905 = vadd.f32 %v718, %v904
        %906 = vmatprep.mubr.bf16.mxu0 0
        %907 = vmatmul.mubr.bf16.gmra.mxu0 %v675
        %v908 = vpop.f32.mrf.mxu0
        %v909 = vadd.f32 %v714, %v908
        %v910 = vpop.f32.mrf.mxu0
        %v911 = vadd.f32 %v718, %v910
        %v912 = vpop.f32.mrf.mxu0
        %v913 = vadd.f32 %v714, %v912
        %v914 = vpop.f32.mrf.mxu0
        %v915 = vadd.f32 %v718, %v914
        %916 = vmatprep.mubr.bf16.mxu0 0
        %917 = vmatmul.mubr.bf16.gmra.mxu0 %v676
        %v918 = vpop.f32.mrf.mxu0
        %v919 = vadd.f32 %v714, %v918
        %v920 = vpop.f32.mrf.mxu0
        %v921 = vadd.f32 %v718, %v920
        %v922 = vpop.f32.mrf.mxu0
        %v923 = vadd.f32 %v714, %v922
        %v924 = vpop.f32.mrf.mxu0
        %v925 = vadd.f32 %v718, %v924
        %926 = vdwg.mxu0
        %927 = vmatprep.subr.bf16.mxu0 0
        %928 = vmatpush1.bf16.msra.mxu0 %v829
        %929 = vmatprep.subr.bf16.mxu0 0
        %930 = vmatpush1.bf16.msra.mxu0 %v826
        %931 = vmatprep.subr.bf16.mxu0 0
        %932 = vmatpush1.bf16.msra.mxu0 %v823
        %933 = vmatprep.subr.bf16.mxu0 0
        %934 = vmatpush1.bf16.msra.mxu0 %v820
        %935 = vmatprep.subr.bf16.mxu0 0
        %936 = vmatpush1.bf16.msra.mxu0 %v817
        %937 = vmatprep.subr.bf16.mxu0 0
        %938 = vmatpush1.bf16.msra.mxu0 %v814
        %939 = vmatprep.subr.bf16.mxu0 0
        %940 = vmatpush1.bf16.msra.mxu0 %v811
        %941 = vmatprep.subr.bf16.mxu0 0
        %942 = vmatpush1.bf16.msra.mxu0 %v808
        %943 = vmatprep.subr.bf16.mxu0 0
        %944 = vmatpush2.bf16.msra.mxu0 0
        %945 = vmatprep.subr.bf16.mxu0 0
        %946 = vmatpush2.bf16.msra.mxu0 0
        %947 = vmatprep.subr.bf16.mxu0 0
        %948 = vmatpush2.bf16.msra.mxu0 0
        %949 = vmatprep.subr.bf16.mxu0 0
        %950 = vmatpush2.bf16.msra.mxu0 0
        %951 = vmatprep.subr.bf16.mxu0 0
        %952 = vmatpush2.bf16.msra.mxu0 0
        %953 = vmatprep.subr.bf16.mxu0 0
        %954 = vmatpush2.bf16.msra.mxu0 0
        %955 = vmatprep.subr.bf16.mxu0 0
        %956 = vmatpush2.bf16.msra.mxu0 0
        %957 = vmatprep.subr.bf16.mxu0 0
        %958 = vmatpush2.bf16.msra.mxu0 0
        %959 = vmatprep.mubr.bf16.mxu0 0
        %960 = vmatmul.mubr.bf16.gmra.mxu0 %v673
        %v961 = vpop.f32.mrf.mxu0
        %v962 = vadd.f32 %v722, %v961
        %v963 = vpop.f32.mrf.mxu0
        %v964 = vpop.f32.mrf.mxu0
        %v965 = vadd.f32 %v722, %v964
        %v966 = vpop.f32.mrf.mxu0
        %967 = vmatprep.mubr.bf16.mxu0 0
        %968 = vmatmul.mubr.bf16.gmra.mxu0 %v674
        %v969 = vpop.f32.mrf.mxu0
        %v970 = vadd.f32 %v722, %v969
        %v971 = vpop.f32.mrf.mxu0
        %v972 = vpop.f32.mrf.mxu0
        %v973 = vadd.f32 %v722, %v972
        %v974 = vpop.f32.mrf.mxu0
        %975 = vmatprep.mubr.bf16.mxu0 0
        %976 = vmatmul.mubr.bf16.gmra.mxu0 %v675
        %v977 = vpop.f32.mrf.mxu0
        %v978 = vadd.f32 %v722, %v977
        %v979 = vpop.f32.mrf.mxu0
        %v980 = vpop.f32.mrf.mxu0
        %v981 = vadd.f32 %v722, %v980
        %v982 = vpop.f32.mrf.mxu0
        %983 = vmatprep.mubr.bf16.mxu0 0
        %984 = vmatmul.mubr.bf16.gmra.mxu0 %v676
        %v985 = vpop.f32.mrf.mxu0
        %v986 = vadd.f32 %v722, %v985
        %v987 = vpop.f32.mrf.mxu0
        %v988 = vpop.f32.mrf.mxu0
        %v989 = vadd.f32 %v722, %v988
        %v990 = vpop.f32.mrf.mxu0
        %991 = vdwg.mxu0
        %v992 = vld [vmem:[#allocation10] sm:$0xf]
        %v993 = vld [vmem:[#allocation10 + $0x4] sm:$0xf]
        %v994 = vld [vmem:[#allocation10 + $0x8] sm:$0xf]
        %v995 = vld [vmem:[#allocation10 + $0xc] sm:$0xf]
        %v996 = vld [vmem:[#allocation10 + $0x10] sm:$0xf]
        %v997 = vld [vmem:[#allocation10 + $0x14] sm:$0xf]
        %v998 = vld [vmem:[#allocation10 + $0x18] sm:$0xf]
        %v999 = vld [vmem:[#allocation10 + $0x1c] sm:$0xf]
        %v1000 = vld [vmem:[#allocation10 + $0x20] sm:$0xf]
        %v1001 = vld [vmem:[#allocation10 + $0x24] sm:$0xf]
        %v1002 = vld [vmem:[#allocation10 + $0x28] sm:$0xf]
        %v1003 = vld [vmem:[#allocation10 + $0x2c] sm:$0xf]
        %v1004 = vld [vmem:[#allocation10 + $0x30] sm:$0xf]
        %v1005 = vld [vmem:[#allocation10 + $0x34] sm:$0xf]
        %v1006 = vld [vmem:[#allocation10 + $0x38] sm:$0xf]
        %v1007 = vld [vmem:[#allocation10 + $0x3c] sm:$0xf]
        %v1008 = vld [vmem:[%s6] sm:$0x1]
        %v1010 = vlaneseq
        %v1011 = vshrl.u32 %v1010, 7
        %v1012 = vsub.s32 0, %v1011
        %v1013 = vrot.slane %v1008, %v1012
        %v1015 = vadd.f32 %v546, %v1013
        %v1016 = vadd.f32 %v547, %v1013
        %v1017 = vadd.f32 %v548, %v1013
        %v1018 = vadd.f32 %v549, %v1013
        %v1019 = vadd.f32 %v550, %v1013
        %v1020 = vadd.f32 %v551, %v1013
        %v1021 = vadd.f32 %v552, %v1013
        %v1022 = vadd.f32 %v553, %v1013
        %v1023 = vpack.c.bf16 %v893, %v889
        %v1024 = vpack.c.bf16 %v903, %v899
        %v1025 = vpack.c.bf16 %v913, %v909
        %v1026 = vpack.c.bf16 %v923, %v919
        %v1027 = vpack.c.bf16 %v895, %v891
        %v1028 = vpack.c.bf16 %v905, %v901
        %v1029 = vpack.c.bf16 %v915, %v911
        %v1030 = vpack.c.bf16 %v925, %v921
        %v1031 = vpack.c.bf16 %v965, %v962
        %v1032 = vpack.c.bf16 %v973, %v970
        %v1033 = vpack.c.bf16 %v981, %v978
        %v1034 = vpack.c.bf16 %v989, %v986
        %vm1035 = vcmask 261120
        %v1037 = vsel %vm1035, %v1023, 0
        %v1040 = vsel %vm1035, %v1024, 0
        %v1043 = vsel %vm1035, %v1027, 0
        %v1046 = vsel %vm1035, %v1028, 0
        %1048 = vmatprep.subr.bf16.mxu0 0
        %1049 = vmatpush1.bf16.xpose.msra.mxu0 0
        %1050 = vmatprep.subr.bf16.mxu0 0
        %1051 = vmatpush1.bf16.xpose.msra.mxu0 0
        %1052 = vmatprep.subr.bf16.mxu0 0
        %1053 = vmatpush1.bf16.xpose.msra.mxu0 0
        %1054 = vmatprep.subr.bf16.mxu0 0
        %1055 = vmatpush1.bf16.xpose.msra.mxu0 0
        %1056 = vmatprep.subr.bf16.mxu0 0
        %1057 = vmatpush1.bf16.xpose.msra.mxu0 0
        %1058 = vmatprep.subr.bf16.mxu0 0
        %1059 = vmatpush1.bf16.xpose.msra.mxu0 0
        %1060 = vmatprep.subr.bf16.mxu0 0
        %1061 = vmatpush1.bf16.xpose.msra.mxu0 %v1046
        %1062 = vmatprep.subr.bf16.mxu0 0
        %1063 = vmatpush1.bf16.xpose.msra.mxu0 %v1043
        %1064 = vmatprep.subr.bf16.mxu0 0
        %1065 = vmatpush2.bf16.xpose.msra.mxu0 0
        %1066 = vmatprep.subr.bf16.mxu0 0
        %1067 = vmatpush2.bf16.xpose.msra.mxu0 0
        %1068 = vmatprep.subr.bf16.mxu0 0
        %1069 = vmatpush2.bf16.xpose.msra.mxu0 0
        %1070 = vmatprep.subr.bf16.mxu0 0
        %1071 = vmatpush2.bf16.xpose.msra.mxu0 0
        %1072 = vmatprep.subr.bf16.mxu0 0
        %1073 = vmatpush2.bf16.xpose.msra.mxu0 0
        %1074 = vmatprep.subr.bf16.mxu0 0
        %1075 = vmatpush2.bf16.xpose.msra.mxu0 0
        %1076 = vmatprep.subr.bf16.mxu0 0
        %1077 = vmatpush2.bf16.xpose.msra.mxu0 0
        %1078 = vmatprep.subr.bf16.mxu0 0
        %1079 = vmatpush2.bf16.xpose.msra.mxu0 0
        %1080 = vmatprep.mubr.bf16.mxu0 0
        %1081 = vmatmul.mubr.bf16.gmra.mxu0 %v1037
        %v1082 = vpop.f32.mrf.mxu0
        %v1083 = vadd.f32 0.0, %v1082
        %v1084 = vpop.f32.mrf.mxu0
        %v1085 = vpop.f32.mrf.mxu0
        %v1086 = vadd.f32 0.0, %v1085
        %v1087 = vpop.f32.mrf.mxu0
        %1088 = vmatprep.mubr.bf16.mxu0 0
        %1089 = vmatmul.mubr.bf16.gmra.mxu0 %v1040
        %v1090 = vpop.f32.mrf.mxu0
        %v1091 = vadd.f32 0.0, %v1090
        %v1092 = vpop.f32.mrf.mxu0
        %v1093 = vpop.f32.mrf.mxu0
        %v1094 = vadd.f32 0.0, %v1093
        %v1095 = vpop.f32.mrf.mxu0
        %1096 = vdwg.mxu0
        %v1098 = vsel %vm1035, %v1025, 0
        %v1101 = vsel %vm1035, %v1026, 0
        %v1104 = vsel %vm1035, %v1029, 0
        %v1107 = vsel %vm1035, %v1030, 0
        %1109 = vmatprep.subr.bf16.mxu0 0
        %1110 = vmatpush1.bf16.xpose.msra.mxu0 0
        %1111 = vmatprep.subr.bf16.mxu0 0
        %1112 = vmatpush1.bf16.xpose.msra.mxu0 0
        %1113 = vmatprep.subr.bf16.mxu0 0
        %1114 = vmatpush1.bf16.xpose.msra.mxu0 0
        %1115 = vmatprep.subr.bf16.mxu0 0
        %1116 = vmatpush1.bf16.xpose.msra.mxu0 0
        %1117 = vmatprep.subr.bf16.mxu0 0
        %1118 = vmatpush1.bf16.xpose.msra.mxu0 0
        %1119 = vmatprep.subr.bf16.mxu0 0
        %1120 = vmatpush1.bf16.xpose.msra.mxu0 0
        %1121 = vmatprep.subr.bf16.mxu0 0
        %1122 = vmatpush1.bf16.xpose.msra.mxu0 %v1107
        %1123 = vmatprep.subr.bf16.mxu0 0
        %1124 = vmatpush1.bf16.xpose.msra.mxu0 %v1104
        %1125 = vmatprep.subr.bf16.mxu0 0
        %1126 = vmatpush2.bf16.xpose.msra.mxu0 0
        %1127 = vmatprep.subr.bf16.mxu0 0
        %1128 = vmatpush2.bf16.xpose.msra.mxu0 0
        %1129 = vmatprep.subr.bf16.mxu0 0
        %1130 = vmatpush2.bf16.xpose.msra.mxu0 0
        %1131 = vmatprep.subr.bf16.mxu0 0
        %1132 = vmatpush2.bf16.xpose.msra.mxu0 0
        %1133 = vmatprep.subr.bf16.mxu0 0
        %1134 = vmatpush2.bf16.xpose.msra.mxu0 0
        %1135 = vmatprep.subr.bf16.mxu0 0
        %1136 = vmatpush2.bf16.xpose.msra.mxu0 0
        %1137 = vmatprep.subr.bf16.mxu0 0
        %1138 = vmatpush2.bf16.xpose.msra.mxu0 0
        %1139 = vmatprep.subr.bf16.mxu0 0
        %1140 = vmatpush2.bf16.xpose.msra.mxu0 0
        %1141 = vmatprep.mubr.bf16.mxu0 0
        %1142 = vmatmul.mubr.bf16.gmra.mxu0 %v1098
        %v1143 = vpop.f32.mrf.mxu0
        %v1144 = vadd.f32 0.0, %v1143
        %v1145 = vpop.f32.mrf.mxu0
        %v1146 = vpop.f32.mrf.mxu0
        %v1147 = vadd.f32 0.0, %v1146
        %v1148 = vpop.f32.mrf.mxu0
        %1149 = vmatprep.mubr.bf16.mxu0 0
        %1150 = vmatmul.mubr.bf16.gmra.mxu0 %v1101
        %v1151 = vpop.f32.mrf.mxu0
        %v1152 = vadd.f32 0.0, %v1151
        %v1153 = vpop.f32.mrf.mxu0
        %v1154 = vpop.f32.mrf.mxu0
        %v1155 = vadd.f32 0.0, %v1154
        %v1156 = vpop.f32.mrf.mxu0
        %1157 = vdwg.mxu0
        %v1158 = vsel %vm1035, %v1083, -inf
        %1159 = vmax.xlane.f32.xlu0 %v1158
        %v1160 = vpop.xlane.xlu0 %1159
        %v1161 = vsel %vm1035, %v1086, -inf
        %1162 = vmax.xlane.f32.xlu0 %v1161
        %v1163 = vpop.xlane.xlu0 %1162
        %v1164 = vsel %vm1035, %v1091, -inf
        %1165 = vmax.xlane.f32.xlu0 %v1164
        %v1166 = vpop.xlane.xlu0 %1165
        %v1167 = vsel %vm1035, %v1094, -inf
        %1168 = vmax.xlane.f32.xlu0 %v1167
        %v1169 = vpop.xlane.xlu0 %1168
        %v1170 = vsel %vm1035, %v1144, -inf
        %1171 = vmax.xlane.f32.xlu0 %v1170
        %v1172 = vpop.xlane.xlu0 %1171
        %v1173 = vsel %vm1035, %v1147, -inf
        %1174 = vmax.xlane.f32.xlu0 %v1173
        %v1175 = vpop.xlane.xlu0 %1174
        %v1176 = vsel %vm1035, %v1152, -inf
        %1177 = vmax.xlane.f32.xlu0 %v1176
        %v1178 = vpop.xlane.xlu0 %1177
        %v1179 = vsel %vm1035, %v1155, -inf
        %1180 = vmax.xlane.f32.xlu0 %v1179
        %v1181 = vpop.xlane.xlu0 %1180
        %v1182 = vsub.f32 %v1083, %v1160
        %v1183 = vsub.f32 %v1086, %v1163
        %v1184 = vsub.f32 %v1091, %v1166
        %v1185 = vsub.f32 %v1094, %v1169
        %v1186 = vsub.f32 %v1144, %v1172
        %v1187 = vsub.f32 %v1147, %v1175
        %v1188 = vsub.f32 %v1152, %v1178
        %v1189 = vsub.f32 %v1155, %v1181
        %v1190 = vmul.f32 %v1182, 1.442695
        %v1191 = vpow.pop %v1190
        %v1192 = vmul.f32 %v1183, 1.442695
        %v1193 = vpow.pop %v1192
        %v1194 = vmul.f32 %v1184, 1.442695
        %v1195 = vpow.pop %v1194
        %v1196 = vmul.f32 %v1185, 1.442695
        %v1197 = vpow.pop %v1196
        %v1198 = vmul.f32 %v1186, 1.442695
        %v1199 = vpow.pop %v1198
        %v1200 = vmul.f32 %v1187, 1.442695
        %v1201 = vpow.pop %v1200
        %v1202 = vmul.f32 %v1188, 1.442695
        %v1203 = vpow.pop %v1202
        %v1204 = vmul.f32 %v1189, 1.442695
        %v1205 = vpow.pop %v1204
        %v1206 = vsel %vm1035, %v1191, 0.0
        %1207 = vadd.xlane.f32.xlu0 %v1206
        %v1208 = vpop.xlane.xlu0 %1207
        %v1209 = vsel %vm1035, %v1193, 0.0
        %1210 = vadd.xlane.f32.xlu0 %v1209
        %v1211 = vpop.xlane.xlu0 %1210
        %v1212 = vsel %vm1035, %v1195, 0.0
        %1213 = vadd.xlane.f32.xlu0 %v1212
        %v1214 = vpop.xlane.xlu0 %1213
        %v1215 = vsel %vm1035, %v1197, 0.0
        %1216 = vadd.xlane.f32.xlu0 %v1215
        %v1217 = vpop.xlane.xlu0 %1216
        %v1218 = vsel %vm1035, %v1199, 0.0
        %1219 = vadd.xlane.f32.xlu0 %v1218
        %v1220 = vpop.xlane.xlu0 %1219
        %v1221 = vsel %vm1035, %v1201, 0.0
        %1222 = vadd.xlane.f32.xlu0 %v1221
        %v1223 = vpop.xlane.xlu0 %1222
        %v1224 = vsel %vm1035, %v1203, 0.0
        %1225 = vadd.xlane.f32.xlu0 %v1224
        %v1226 = vpop.xlane.xlu0 %1225
        %v1227 = vsel %vm1035, %v1205, 0.0
        %1228 = vadd.xlane.f32.xlu0 %v1227
        %v1229 = vpop.xlane.xlu0 %1228
        %v1230 = vpack.c.bf16 %v1193, %v1191
        %v1231 = vpack.c.bf16 %v1197, %v1195
        %v1232 = vpack.c.bf16 %v1201, %v1199
        %v1233 = vpack.c.bf16 %v1205, %v1203
        %v1235 = vsel %vm1035, %v1230, 0
        %v1238 = vsel %vm1035, %v1231, 0
        %1240 = vmatprep.subr.bf16.mxu0 0
        %1241 = vmatpush1.bf16.msra.mxu0 0
        %1242 = vmatprep.subr.bf16.mxu0 0
        %1243 = vmatpush1.bf16.msra.mxu0 0
        %1244 = vmatprep.subr.bf16.mxu0 0
        %1245 = vmatpush1.bf16.msra.mxu0 0
        %1246 = vmatprep.subr.bf16.mxu0 0
        %1247 = vmatpush1.bf16.msra.mxu0 0
        %1248 = vmatprep.subr.bf16.mxu0 0
        %1249 = vmatpush1.bf16.msra.mxu0 0
        %1250 = vmatprep.subr.bf16.mxu0 0
        %1251 = vmatpush1.bf16.msra.mxu0 0
        %1252 = vmatprep.subr.bf16.mxu0 0
        %1253 = vmatpush1.bf16.msra.mxu0 %v1032
        %1254 = vmatprep.subr.bf16.mxu0 0
        %1255 = vmatpush1.bf16.msra.mxu0 %v1031
        %1256 = vmatprep.subr.bf16.mxu0 0
        %1257 = vmatpush2.bf16.msra.mxu0 0
        %1258 = vmatprep.subr.bf16.mxu0 0
        %1259 = vmatpush2.bf16.msra.mxu0 0
        %1260 = vmatprep.subr.bf16.mxu0 0
        %1261 = vmatpush2.bf16.msra.mxu0 0
        %1262 = vmatprep.subr.bf16.mxu0 0
        %1263 = vmatpush2.bf16.msra.mxu0 0
        %1264 = vmatprep.subr.bf16.mxu0 0
        %1265 = vmatpush2.bf16.msra.mxu0 0
        %1266 = vmatprep.subr.bf16.mxu0 0
        %1267 = vmatpush2.bf16.msra.mxu0 0
        %1268 = vmatprep.subr.bf16.mxu0 0
        %1269 = vmatpush2.bf16.msra.mxu0 0
        %1270 = vmatprep.subr.bf16.mxu0 0
        %1271 = vmatpush2.bf16.msra.mxu0 0
        %1272 = vmatprep.mubr.bf16.mxu0 0
        %1273 = vmatmul.mubr.bf16.gmra.mxu0 %v1235
        %v1274 = vpop.f32.mrf.mxu0
        %v1275 = vadd.f32 0.0, %v1274
        %v1276 = vpop.f32.mrf.mxu0
        %v1277 = vpop.f32.mrf.mxu0
        %v1278 = vadd.f32 0.0, %v1277
        %v1279 = vpop.f32.mrf.mxu0
        %1280 = vmatprep.mubr.bf16.mxu0 0
        %1281 = vmatmul.mubr.bf16.gmra.mxu0 %v1238
        %v1282 = vpop.f32.mrf.mxu0
        %v1283 = vadd.f32 0.0, %v1282
        %v1284 = vpop.f32.mrf.mxu0
        %v1285 = vpop.f32.mrf.mxu0
        %v1286 = vadd.f32 0.0, %v1285
        %v1287 = vpop.f32.mrf.mxu0
        %1288 = vdwg.mxu0
        %v1290 = vsel %vm1035, %v1232, 0
        %v1293 = vsel %vm1035, %v1233, 0
        %1295 = vmatprep.subr.bf16.mxu0 0
        %1296 = vmatpush1.bf16.msra.mxu0 0
        %1297 = vmatprep.subr.bf16.mxu0 0
        %1298 = vmatpush1.bf16.msra.mxu0 0
        %1299 = vmatprep.subr.bf16.mxu0 0
        %1300 = vmatpush1.bf16.msra.mxu0 0
        %1301 = vmatprep.subr.bf16.mxu0 0
        %1302 = vmatpush1.bf16.msra.mxu0 0
        %1303 = vmatprep.subr.bf16.mxu0 0
        %1304 = vmatpush1.bf16.msra.mxu0 0
        %1305 = vmatprep.subr.bf16.mxu0 0
        %1306 = vmatpush1.bf16.msra.mxu0 0
        %1307 = vmatprep.subr.bf16.mxu0 0
        %1308 = vmatpush1.bf16.msra.mxu0 %v1034
        %1309 = vmatprep.subr.bf16.mxu0 0
        %1310 = vmatpush1.bf16.msra.mxu0 %v1033
        %1311 = vmatprep.subr.bf16.mxu0 0
        %1312 = vmatpush2.bf16.msra.mxu0 0
        %1313 = vmatprep.subr.bf16.mxu0 0
        %1314 = vmatpush2.bf16.msra.mxu0 0
        %1315 = vmatprep.subr.bf16.mxu0 0
        %1316 = vmatpush2.bf16.msra.mxu0 0
        %1317 = vmatprep.subr.bf16.mxu0 0
        %1318 = vmatpush2.bf16.msra.mxu0 0
        %1319 = vmatprep.subr.bf16.mxu0 0
        %1320 = vmatpush2.bf16.msra.mxu0 0
        %1321 = vmatprep.subr.bf16.mxu0 0
        %1322 = vmatpush2.bf16.msra.mxu0 0
        %1323 = vmatprep.subr.bf16.mxu0 0
        %1324 = vmatpush2.bf16.msra.mxu0 0
        %1325 = vmatprep.subr.bf16.mxu0 0
        %1326 = vmatpush2.bf16.msra.mxu0 0
        %1327 = vmatprep.mubr.bf16.mxu0 0
        %1328 = vmatmul.mubr.bf16.gmra.mxu0 %v1290
        %v1329 = vpop.f32.mrf.mxu0
        %v1330 = vadd.f32 0.0, %v1329
        %v1331 = vpop.f32.mrf.mxu0
        %v1332 = vpop.f32.mrf.mxu0
        %v1333 = vadd.f32 0.0, %v1332
        %v1334 = vpop.f32.mrf.mxu0
        %1335 = vmatprep.mubr.bf16.mxu0 0
        %1336 = vmatmul.mubr.bf16.gmra.mxu0 %v1293
        %v1337 = vpop.f32.mrf.mxu0
        %v1338 = vadd.f32 0.0, %v1337
        %v1339 = vpop.f32.mrf.mxu0
        %v1340 = vpop.f32.mrf.mxu0
        %v1341 = vadd.f32 0.0, %v1340
        %v1342 = vpop.f32.mrf.mxu0
        %1343 = vdwg.mxu0
        %v1344 = vrcp.pop %v1208
        %v1345 = vrcp.pop %v1211
        %v1346 = vrcp.pop %v1214
        %v1347 = vrcp.pop %v1217
        %v1348 = vrcp.pop %v1220
        %v1349 = vrcp.pop %v1223
        %v1350 = vrcp.pop %v1226
        %v1351 = vrcp.pop %v1229
        %v1352 = vmul.f32 %v1275, %v1344
        %v1353 = vmul.f32 %v1278, %v1345
        %v1354 = vmul.f32 %v1283, %v1346
        %v1355 = vmul.f32 %v1286, %v1347
        %v1356 = vmul.f32 %v1330, %v1348
        %v1357 = vmul.f32 %v1333, %v1349
        %v1358 = vmul.f32 %v1338, %v1350
        %v1359 = vmul.f32 %v1341, %v1351
        %v1360 = vpack.c.bf16 %v1353, %v1352
        %v1361 = vpack.c.bf16 %v1355, %v1354
        %v1362 = vpack.c.bf16 %v1357, %v1356
        %v1363 = vpack.c.bf16 %v1359, %v1358
        %v1368 = vunpack.c.l.b16 %v992
        %v1369 = vunpack.c.l.b16 %v993
        %v1370 = vunpack.c.l.b16 %v994
        %v1371 = vunpack.c.l.b16 %v995
        %v1372 = vpack.c.b16 %v1369, %v1368
        %v1373 = vpack.c.b16 %v1371, %v1370
        %v1377 = vsel %vm1035, %v1360, 0
        %v1380 = vsel %vm1035, %v1361, 0
        %v1383 = vsel %vm1035, %v1362, 0
        %v1386 = vsel %vm1035, %v1363, 0
        %1388 = vmatprep.subr.bf16.mxu0 0
        %1389 = vmatpush1.bf16.msra.mxu0 0
        %1390 = vmatprep.subr.bf16.mxu0 0
        %1391 = vmatpush1.bf16.msra.mxu0 0
        %1392 = vmatprep.subr.bf16.mxu0 0
        %1393 = vmatpush1.bf16.msra.mxu0 0
        %1394 = vmatprep.subr.bf16.mxu0 0
        %1395 = vmatpush1.bf16.msra.mxu0 0
        %1396 = vmatprep.subr.bf16.mxu0 0
        %1397 = vmatpush1.bf16.msra.mxu0 0
        %1398 = vmatprep.subr.bf16.mxu0 0
        %1399 = vmatpush1.bf16.msra.mxu0 0
        %1400 = vmatprep.subr.bf16.mxu0 0
        %1401 = vmatpush1.bf16.msra.mxu0 %v1373
        %1402 = vmatprep.subr.bf16.mxu0 0
        %1403 = vmatpush1.bf16.msra.mxu0 %v1372
        %1404 = vmatprep.subr.bf16.mxu0 0
        %1405 = vmatpush2.bf16.msra.mxu0 0
        %1406 = vmatprep.subr.bf16.mxu0 0
        %1407 = vmatpush2.bf16.msra.mxu0 0
        %1408 = vmatprep.subr.bf16.mxu0 0
        %1409 = vmatpush2.bf16.msra.mxu0 0
        %1410 = vmatprep.subr.bf16.mxu0 0
        %1411 = vmatpush2.bf16.msra.mxu0 0
        %1412 = vmatprep.subr.bf16.mxu0 0
        %1413 = vmatpush2.bf16.msra.mxu0 0
        %1414 = vmatprep.subr.bf16.mxu0 0
        %1415 = vmatpush2.bf16.msra.mxu0 0
        %1416 = vmatprep.subr.bf16.mxu0 0
        %1417 = vmatpush2.bf16.msra.mxu0 0
        %1418 = vmatprep.subr.bf16.mxu0 0
        %1419 = vmatpush2.bf16.msra.mxu0 0
        %1420 = vmatprep.mubr.bf16.mxu0 0
        %1421 = vmatmul.mubr.bf16.gmra.mxu0 %v1377
        %v1422 = vpop.f32.mrf.mxu0
        %v1423 = vadd.f32 0.0, %v1422
        %v1424 = vpop.f32.mrf.mxu0
        %v1425 = vpop.f32.mrf.mxu0
        %v1426 = vadd.f32 0.0, %v1425
        %v1427 = vpop.f32.mrf.mxu0
        %1428 = vmatprep.mubr.bf16.mxu0 0
        %1429 = vmatmul.mubr.bf16.gmra.mxu0 %v1380
        %v1430 = vpop.f32.mrf.mxu0
        %v1431 = vadd.f32 0.0, %v1430
        %v1432 = vpop.f32.mrf.mxu0
        %v1433 = vpop.f32.mrf.mxu0
        %v1434 = vadd.f32 0.0, %v1433
        %v1435 = vpop.f32.mrf.mxu0
        %1436 = vmatprep.mubr.bf16.mxu0 0
        %1437 = vmatmul.mubr.bf16.gmra.mxu0 %v1383
        %v1438 = vpop.f32.mrf.mxu0
        %v1439 = vadd.f32 0.0, %v1438
        %v1440 = vpop.f32.mrf.mxu0
        %v1441 = vpop.f32.mrf.mxu0
        %v1442 = vadd.f32 0.0, %v1441
        %v1443 = vpop.f32.mrf.mxu0
        %1444 = vmatprep.mubr.bf16.mxu0 0
        %1445 = vmatmul.mubr.bf16.gmra.mxu0 %v1386
        %v1446 = vpop.f32.mrf.mxu0
        %v1447 = vadd.f32 0.0, %v1446
        %v1448 = vpop.f32.mrf.mxu0
        %v1449 = vpop.f32.mrf.mxu0
        %v1450 = vadd.f32 0.0, %v1449
        %v1451 = vpop.f32.mrf.mxu0
        %1452 = vdwg.mxu0
        %v1453 = vadd.f32 %v1015, %v1423
        %v1454 = vadd.f32 %v1016, %v1426
        %v1455 = vadd.f32 %v1017, %v1431
        %v1456 = vadd.f32 %v1018, %v1434
        %v1457 = vadd.f32 %v1019, %v1439
        %v1458 = vadd.f32 %v1020, %v1442
        %v1459 = vadd.f32 %v1021, %v1447
        %v1460 = vadd.f32 %v1022, %v1450
        %1463 = vrot.lane.b32.xlu0 %v1023, 96
        %v1464 = vpop.permute.xlu0 %1463
        %1465 = vrot.lane.b32.xlu0 %v1024, 96
        %v1466 = vpop.permute.xlu0 %1465
        %1469 = vrot.lane.b32.xlu0 %v1027, 96
        %v1470 = vpop.permute.xlu0 %1469
        %1471 = vrot.lane.b32.xlu0 %v1028, 96
        %v1472 = vpop.permute.xlu0 %1471
        %v1474 = vsel %vm1035, %v1464, 0
        %v1477 = vsel %vm1035, %v1466, 0
        %v1480 = vsel %vm1035, %v1470, 0
        %v1483 = vsel %vm1035, %v1472, 0
        %1485 = vmatprep.subr.bf16.mxu0 0
        %1486 = vmatpush1.bf16.xpose.msra.mxu0 0
        %1487 = vmatprep.subr.bf16.mxu0 0
        %1488 = vmatpush1.bf16.xpose.msra.mxu0 0
        %1489 = vmatprep.subr.bf16.mxu0 0
        %1490 = vmatpush1.bf16.xpose.msra.mxu0 0
        %1491 = vmatprep.subr.bf16.mxu0 0
        %1492 = vmatpush1.bf16.xpose.msra.mxu0 0
        %1493 = vmatprep.subr.bf16.mxu0 0
        %1494 = vmatpush1.bf16.xpose.msra.mxu0 0
        %1495 = vmatprep.subr.bf16.mxu0 0
        %1496 = vmatpush1.bf16.xpose.msra.mxu0 0
        %1497 = vmatprep.subr.bf16.mxu0 0
        %1498 = vmatpush1.bf16.xpose.msra.mxu0 %v1483
        %1499 = vmatprep.subr.bf16.mxu0 0
        %1500 = vmatpush1.bf16.xpose.msra.mxu0 %v1480
        %1501 = vmatprep.subr.bf16.mxu0 0
        %1502 = vmatpush2.bf16.xpose.msra.mxu0 0
        %1503 = vmatprep.subr.bf16.mxu0 0
        %1504 = vmatpush2.bf16.xpose.msra.mxu0 0
        %1505 = vmatprep.subr.bf16.mxu0 0
        %1506 = vmatpush2.bf16.xpose.msra.mxu0 0
        %1507 = vmatprep.subr.bf16.mxu0 0
        %1508 = vmatpush2.bf16.xpose.msra.mxu0 0
        %1509 = vmatprep.subr.bf16.mxu0 0
        %1510 = vmatpush2.bf16.xpose.msra.mxu0 0
        %1511 = vmatprep.subr.bf16.mxu0 0
        %1512 = vmatpush2.bf16.xpose.msra.mxu0 0
        %1513 = vmatprep.subr.bf16.mxu0 0
        %1514 = vmatpush2.bf16.xpose.msra.mxu0 0
        %1515 = vmatprep.subr.bf16.mxu0 0
        %1516 = vmatpush2.bf16.xpose.msra.mxu0 0
        %1517 = vmatprep.mubr.bf16.mxu0 0
        %1518 = vmatmul.mubr.bf16.gmra.mxu0 %v1474
        %v1519 = vpop.f32.mrf.mxu0
        %v1520 = vadd.f32 0.0, %v1519
        %v1521 = vpop.f32.mrf.mxu0
        %v1522 = vpop.f32.mrf.mxu0
        %v1523 = vadd.f32 0.0, %v1522
        %v1524 = vpop.f32.mrf.mxu0
        %1525 = vmatprep.mubr.bf16.mxu0 0
        %1526 = vmatmul.mubr.bf16.gmra.mxu0 %v1477
        %v1527 = vpop.f32.mrf.mxu0
        %v1528 = vadd.f32 0.0, %v1527
        %v1529 = vpop.f32.mrf.mxu0
        %v1530 = vpop.f32.mrf.mxu0
        %v1531 = vadd.f32 0.0, %v1530
        %v1532 = vpop.f32.mrf.mxu0
        %1533 = vdwg.mxu0
        %1536 = vrot.lane.b32.xlu0 %v1025, 96
        %v1537 = vpop.permute.xlu0 %1536
        %1538 = vrot.lane.b32.xlu0 %v1026, 96
        %v1539 = vpop.permute.xlu0 %1538
        %1542 = vrot.lane.b32.xlu0 %v1029, 96
        %v1543 = vpop.permute.xlu0 %1542
        %1544 = vrot.lane.b32.xlu0 %v1030, 96
        %v1545 = vpop.permute.xlu0 %1544
        %v1547 = vsel %vm1035, %v1537, 0
        %v1550 = vsel %vm1035, %v1539, 0
        %v1553 = vsel %vm1035, %v1543, 0
        %v1556 = vsel %vm1035, %v1545, 0
        %1558 = vmatprep.subr.bf16.mxu0 0
        %1559 = vmatpush1.bf16.xpose.msra.mxu0 0
        %1560 = vmatprep.subr.bf16.mxu0 0
        %1561 = vmatpush1.bf16.xpose.msra.mxu0 0
        %1562 = vmatprep.subr.bf16.mxu0 0
        %1563 = vmatpush1.bf16.xpose.msra.mxu0 0
        %1564 = vmatprep.subr.bf16.mxu0 0
        %1565 = vmatpush1.bf16.xpose.msra.mxu0 0
        %1566 = vmatprep.subr.bf16.mxu0 0
        %1567 = vmatpush1.bf16.xpose.msra.mxu0 0
        %1568 = vmatprep.subr.bf16.mxu0 0
        %1569 = vmatpush1.bf16.xpose.msra.mxu0 0
        %1570 = vmatprep.subr.bf16.mxu0 0
        %1571 = vmatpush1.bf16.xpose.msra.mxu0 %v1556
        %1572 = vmatprep.subr.bf16.mxu0 0
        %1573 = vmatpush1.bf16.xpose.msra.mxu0 %v1553
        %1574 = vmatprep.subr.bf16.mxu0 0
        %1575 = vmatpush2.bf16.xpose.msra.mxu0 0
        %1576 = vmatprep.subr.bf16.mxu0 0
        %1577 = vmatpush2.bf16.xpose.msra.mxu0 0
        %1578 = vmatprep.subr.bf16.mxu0 0
        %1579 = vmatpush2.bf16.xpose.msra.mxu0 0
        %1580 = vmatprep.subr.bf16.mxu0 0
        %1581 = vmatpush2.bf16.xpose.msra.mxu0 0
        %1582 = vmatprep.subr.bf16.mxu0 0
        %1583 = vmatpush2.bf16.xpose.msra.mxu0 0
        %1584 = vmatprep.subr.bf16.mxu0 0
        %1585 = vmatpush2.bf16.xpose.msra.mxu0 0
        %1586 = vmatprep.subr.bf16.mxu0 0
        %1587 = vmatpush2.bf16.xpose.msra.mxu0 0
        %1588 = vmatprep.subr.bf16.mxu0 0
        %1589 = vmatpush2.bf16.xpose.msra.mxu0 0
        %1590 = vmatprep.mubr.bf16.mxu0 0
        %1591 = vmatmul.mubr.bf16.gmra.mxu0 %v1547
        %v1592 = vpop.f32.mrf.mxu0
        %v1593 = vadd.f32 0.0, %v1592
        %v1594 = vpop.f32.mrf.mxu0
        %v1595 = vpop.f32.mrf.mxu0
        %v1596 = vadd.f32 0.0, %v1595
        %v1597 = vpop.f32.mrf.mxu0
        %1598 = vmatprep.mubr.bf16.mxu0 0
        %1599 = vmatmul.mubr.bf16.gmra.mxu0 %v1550
        %v1600 = vpop.f32.mrf.mxu0
        %v1601 = vadd.f32 0.0, %v1600
        %v1602 = vpop.f32.mrf.mxu0
        %v1603 = vpop.f32.mrf.mxu0
        %v1604 = vadd.f32 0.0, %v1603
        %v1605 = vpop.f32.mrf.mxu0
        %1606 = vdwg.mxu0
        %v1607 = vsel %vm1035, %v1520, -inf
        %1608 = vmax.xlane.f32.xlu0 %v1607
        %v1609 = vpop.xlane.xlu0 %1608
        %v1610 = vsel %vm1035, %v1523, -inf
        %1611 = vmax.xlane.f32.xlu0 %v1610
        %v1612 = vpop.xlane.xlu0 %1611
        %v1613 = vsel %vm1035, %v1528, -inf
        %1614 = vmax.xlane.f32.xlu0 %v1613
        %v1615 = vpop.xlane.xlu0 %1614
        %v1616 = vsel %vm1035, %v1531, -inf
        %1617 = vmax.xlane.f32.xlu0 %v1616
        %v1618 = vpop.xlane.xlu0 %1617
        %v1619 = vsel %vm1035, %v1593, -inf
        %1620 = vmax.xlane.f32.xlu0 %v1619
        %v1621 = vpop.xlane.xlu0 %1620
        %v1622 = vsel %vm1035, %v1596, -inf
        %1623 = vmax.xlane.f32.xlu0 %v1622
        %v1624 = vpop.xlane.xlu0 %1623
        %v1625 = vsel %vm1035, %v1601, -inf
        %1626 = vmax.xlane.f32.xlu0 %v1625
        %v1627 = vpop.xlane.xlu0 %1626
        %v1628 = vsel %vm1035, %v1604, -inf
        %1629 = vmax.xlane.f32.xlu0 %v1628
        %v1630 = vpop.xlane.xlu0 %1629
        %v1631 = vsub.f32 %v1520, %v1609
        %v1632 = vsub.f32 %v1523, %v1612
        %v1633 = vsub.f32 %v1528, %v1615
        %v1634 = vsub.f32 %v1531, %v1618
        %v1635 = vsub.f32 %v1593, %v1621
        %v1636 = vsub.f32 %v1596, %v1624
        %v1637 = vsub.f32 %v1601, %v1627
        %v1638 = vsub.f32 %v1604, %v1630
        %v1639 = vmul.f32 %v1631, 1.442695
        %v1640 = vpow.pop %v1639
        %v1641 = vmul.f32 %v1632, 1.442695
        %v1642 = vpow.pop %v1641
        %v1643 = vmul.f32 %v1633, 1.442695
        %v1644 = vpow.pop %v1643
        %v1645 = vmul.f32 %v1634, 1.442695
        %v1646 = vpow.pop %v1645
        %v1647 = vmul.f32 %v1635, 1.442695
        %v1648 = vpow.pop %v1647
        %v1649 = vmul.f32 %v1636, 1.442695
        %v1650 = vpow.pop %v1649
        %v1651 = vmul.f32 %v1637, 1.442695
        %v1652 = vpow.pop %v1651
        %v1653 = vmul.f32 %v1638, 1.442695
        %v1654 = vpow.pop %v1653
        %v1655 = vsel %vm1035, %v1640, 0.0
        %1656 = vadd.xlane.f32.xlu0 %v1655
        %v1657 = vpop.xlane.xlu0 %1656
        %v1658 = vsel %vm1035, %v1642, 0.0
        %1659 = vadd.xlane.f32.xlu0 %v1658
        %v1660 = vpop.xlane.xlu0 %1659
        %v1661 = vsel %vm1035, %v1644, 0.0
        %1662 = vadd.xlane.f32.xlu0 %v1661
        %v1663 = vpop.xlane.xlu0 %1662
        %v1664 = vsel %vm1035, %v1646, 0.0
        %1665 = vadd.xlane.f32.xlu0 %v1664
        %v1666 = vpop.xlane.xlu0 %1665
        %v1667 = vsel %vm1035, %v1648, 0.0
        %1668 = vadd.xlane.f32.xlu0 %v1667
        %v1669 = vpop.xlane.xlu0 %1668
        %v1670 = vsel %vm1035, %v1650, 0.0
        %1671 = vadd.xlane.f32.xlu0 %v1670
        %v1672 = vpop.xlane.xlu0 %1671
        %v1673 = vsel %vm1035, %v1652, 0.0
        %1674 = vadd.xlane.f32.xlu0 %v1673
        %v1675 = vpop.xlane.xlu0 %1674
        %v1676 = vsel %vm1035, %v1654, 0.0
        %1677 = vadd.xlane.f32.xlu0 %v1676
        %v1678 = vpop.xlane.xlu0 %1677
        %v1679 = vpack.c.bf16 %v1642, %v1640
        %v1680 = vpack.c.bf16 %v1646, %v1644
        %v1681 = vpack.c.bf16 %v1650, %v1648
        %v1682 = vpack.c.bf16 %v1654, %v1652
        %1685 = vrot.lane.b32.xlu0 %v1031, 96
        %v1686 = vpop.permute.xlu0 %1685
        %1687 = vrot.lane.b32.xlu0 %v1032, 96
        %v1688 = vpop.permute.xlu0 %1687
        %v1692 = vsel %vm1035, %v1679, 0
        %v1695 = vsel %vm1035, %v1680, 0
        %1697 = vmatprep.subr.bf16.mxu0 0
        %1698 = vmatpush1.bf16.msra.mxu0 0
        %1699 = vmatprep.subr.bf16.mxu0 0
        %1700 = vmatpush1.bf16.msra.mxu0 0
        %1701 = vmatprep.subr.bf16.mxu0 0
        %1702 = vmatpush1.bf16.msra.mxu0 0
        %1703 = vmatprep.subr.bf16.mxu0 0
        %1704 = vmatpush1.bf16.msra.mxu0 0
        %1705 = vmatprep.subr.bf16.mxu0 0
        %1706 = vmatpush1.bf16.msra.mxu0 0
        %1707 = vmatprep.subr.bf16.mxu0 0
        %1708 = vmatpush1.bf16.msra.mxu0 0
        %1709 = vmatprep.subr.bf16.mxu0 0
        %1710 = vmatpush1.bf16.msra.mxu0 %v1688
        %1711 = vmatprep.subr.bf16.mxu0 0
        %1712 = vmatpush1.bf16.msra.mxu0 %v1686
        %1713 = vmatprep.subr.bf16.mxu0 0
        %1714 = vmatpush2.bf16.msra.mxu0 0
        %1715 = vmatprep.subr.bf16.mxu0 0
        %1716 = vmatpush2.bf16.msra.mxu0 0
        %1717 = vmatprep.subr.bf16.mxu0 0
        %1718 = vmatpush2.bf16.msra.mxu0 0
        %1719 = vmatprep.subr.bf16.mxu0 0
        %1720 = vmatpush2.bf16.msra.mxu0 0
        %1721 = vmatprep.subr.bf16.mxu0 0
        %1722 = vmatpush2.bf16.msra.mxu0 0
        %1723 = vmatprep.subr.bf16.mxu0 0
        %1724 = vmatpush2.bf16.msra.mxu0 0
        %1725 = vmatprep.subr.bf16.mxu0 0
        %1726 = vmatpush2.bf16.msra.mxu0 0
        %1727 = vmatprep.subr.bf16.mxu0 0
        %1728 = vmatpush2.bf16.msra.mxu0 0
        %1729 = vmatprep.mubr.bf16.mxu0 0
        %1730 = vmatmul.mubr.bf16.gmra.mxu0 %v1692
        %v1731 = vpop.f32.mrf.mxu0
        %v1732 = vadd.f32 0.0, %v1731
        %v1733 = vpop.f32.mrf.mxu0
        %v1734 = vpop.f32.mrf.mxu0
        %v1735 = vadd.f32 0.0, %v1734
        %v1736 = vpop.f32.mrf.mxu0
        %1737 = vmatprep.mubr.bf16.mxu0 0
        %1738 = vmatmul.mubr.bf16.gmra.mxu0 %v1695
        %v1739 = vpop.f32.mrf.mxu0
        %v1740 = vadd.f32 0.0, %v1739
        %v1741 = vpop.f32.mrf.mxu0
        %v1742 = vpop.f32.mrf.mxu0
        %v1743 = vadd.f32 0.0, %v1742
        %v1744 = vpop.f32.mrf.mxu0
        %1745 = vdwg.mxu0
        %1748 = vrot.lane.b32.xlu0 %v1033, 96
        %v1749 = vpop.permute.xlu0 %1748
        %1750 = vrot.lane.b32.xlu0 %v1034, 96
        %v1751 = vpop.permute.xlu0 %1750
        %v1755 = vsel %vm1035, %v1681, 0
        %v1758 = vsel %vm1035, %v1682, 0
        %1760 = vmatprep.subr.bf16.mxu0 0
        %1761 = vmatpush1.bf16.msra.mxu0 0
        %1762 = vmatprep.subr.bf16.mxu0 0
        %1763 = vmatpush1.bf16.msra.mxu0 0
        %1764 = vmatprep.subr.bf16.mxu0 0
        %1765 = vmatpush1.bf16.msra.mxu0 0
        %1766 = vmatprep.subr.bf16.mxu0 0
        %1767 = vmatpush1.bf16.msra.mxu0 0
        %1768 = vmatprep.subr.bf16.mxu0 0
        %1769 = vmatpush1.bf16.msra.mxu0 0
        %1770 = vmatprep.subr.bf16.mxu0 0
        %1771 = vmatpush1.bf16.msra.mxu0 0
        %1772 = vmatprep.subr.bf16.mxu0 0
        %1773 = vmatpush1.bf16.msra.mxu0 %v1751
        %1774 = vmatprep.subr.bf16.mxu0 0
        %1775 = vmatpush1.bf16.msra.mxu0 %v1749
        %1776 = vmatprep.subr.bf16.mxu0 0
        %1777 = vmatpush2.bf16.msra.mxu0 0
        %1778 = vmatprep.subr.bf16.mxu0 0
        %1779 = vmatpush2.bf16.msra.mxu0 0
        %1780 = vmatprep.subr.bf16.mxu0 0
        %1781 = vmatpush2.bf16.msra.mxu0 0
        %1782 = vmatprep.subr.bf16.mxu0 0
        %1783 = vmatpush2.bf16.msra.mxu0 0
        %1784 = vmatprep.subr.bf16.mxu0 0
        %1785 = vmatpush2.bf16.msra.mxu0 0
        %1786 = vmatprep.subr.bf16.mxu0 0
        %1787 = vmatpush2.bf16.msra.mxu0 0
        %1788 = vmatprep.subr.bf16.mxu0 0
        %1789 = vmatpush2.bf16.msra.mxu0 0
        %1790 = vmatprep.subr.bf16.mxu0 0
        %1791 = vmatpush2.bf16.msra.mxu0 0
        %1792 = vmatprep.mubr.bf16.mxu0 0
        %1793 = vmatmul.mubr.bf16.gmra.mxu0 %v1755
        %v1794 = vpop.f32.mrf.mxu0
        %v1795 = vadd.f32 0.0, %v1794
        %v1796 = vpop.f32.mrf.mxu0
        %v1797 = vpop.f32.mrf.mxu0
        %v1798 = vadd.f32 0.0, %v1797
        %v1799 = vpop.f32.mrf.mxu0
        %1800 = vmatprep.mubr.bf16.mxu0 0
        %1801 = vmatmul.mubr.bf16.gmra.mxu0 %v1758
        %v1802 = vpop.f32.mrf.mxu0
        %v1803 = vadd.f32 0.0, %v1802
        %v1804 = vpop.f32.mrf.mxu0
        %v1805 = vpop.f32.mrf.mxu0
        %v1806 = vadd.f32 0.0, %v1805
        %v1807 = vpop.f32.mrf.mxu0
        %1808 = vdwg.mxu0
        %v1809 = vrcp.pop %v1657
        %v1810 = vrcp.pop %v1660
        %v1811 = vrcp.pop %v1663
        %v1812 = vrcp.pop %v1666
        %v1813 = vrcp.pop %v1669
        %v1814 = vrcp.pop %v1672
        %v1815 = vrcp.pop %v1675
        %v1816 = vrcp.pop %v1678
        %v1817 = vmul.f32 %v1732, %v1809
        %v1818 = vmul.f32 %v1735, %v1810
        %v1819 = vmul.f32 %v1740, %v1811
        %v1820 = vmul.f32 %v1743, %v1812
        %v1821 = vmul.f32 %v1795, %v1813
        %v1822 = vmul.f32 %v1798, %v1814
        %v1823 = vmul.f32 %v1803, %v1815
        %v1824 = vmul.f32 %v1806, %v1816
        %v1825 = vpack.c.bf16 %v1818, %v1817
        %v1826 = vpack.c.bf16 %v1820, %v1819
        %v1827 = vpack.c.bf16 %v1822, %v1821
        %v1828 = vpack.c.bf16 %v1824, %v1823
        %v1833 = vunpack.c.l.b16 %v996
        %v1834 = vunpack.c.l.b16 %v997
        %v1835 = vunpack.c.l.b16 %v998
        %v1836 = vunpack.c.l.b16 %v999
        %v1837 = vpack.c.b16 %v1834, %v1833
        %v1838 = vpack.c.b16 %v1836, %v1835
        %v1842 = vsel %vm1035, %v1825, 0
        %v1845 = vsel %vm1035, %v1826, 0
        %v1848 = vsel %vm1035, %v1827, 0
        %v1851 = vsel %vm1035, %v1828, 0
        %1853 = vmatprep.subr.bf16.mxu0 0
        %1854 = vmatpush1.bf16.msra.mxu0 0
        %1855 = vmatprep.subr.bf16.mxu0 0
        %1856 = vmatpush1.bf16.msra.mxu0 0
        %1857 = vmatprep.subr.bf16.mxu0 0
        %1858 = vmatpush1.bf16.msra.mxu0 0
        %1859 = vmatprep.subr.bf16.mxu0 0
        %1860 = vmatpush1.bf16.msra.mxu0 0
        %1861 = vmatprep.subr.bf16.mxu0 0
        %1862 = vmatpush1.bf16.msra.mxu0 0
        %1863 = vmatprep.subr.bf16.mxu0 0
        %1864 = vmatpush1.bf16.msra.mxu0 0
        %1865 = vmatprep.subr.bf16.mxu0 0
        %1866 = vmatpush1.bf16.msra.mxu0 %v1838
        %1867 = vmatprep.subr.bf16.mxu0 0
        %1868 = vmatpush1.bf16.msra.mxu0 %v1837
        %1869 = vmatprep.subr.bf16.mxu0 0
        %1870 = vmatpush2.bf16.msra.mxu0 0
        %1871 = vmatprep.subr.bf16.mxu0 0
        %1872 = vmatpush2.bf16.msra.mxu0 0
        %1873 = vmatprep.subr.bf16.mxu0 0
        %1874 = vmatpush2.bf16.msra.mxu0 0
        %1875 = vmatprep.subr.bf16.mxu0 0
        %1876 = vmatpush2.bf16.msra.mxu0 0
        %1877 = vmatprep.subr.bf16.mxu0 0
        %1878 = vmatpush2.bf16.msra.mxu0 0
        %1879 = vmatprep.subr.bf16.mxu0 0
        %1880 = vmatpush2.bf16.msra.mxu0 0
        %1881 = vmatprep.subr.bf16.mxu0 0
        %1882 = vmatpush2.bf16.msra.mxu0 0
        %1883 = vmatprep.subr.bf16.mxu0 0
        %1884 = vmatpush2.bf16.msra.mxu0 0
        %1885 = vmatprep.mubr.bf16.mxu0 0
        %1886 = vmatmul.mubr.bf16.gmra.mxu0 %v1842
        %v1887 = vpop.f32.mrf.mxu0
        %v1888 = vadd.f32 0.0, %v1887
        %v1889 = vpop.f32.mrf.mxu0
        %v1890 = vpop.f32.mrf.mxu0
        %v1891 = vadd.f32 0.0, %v1890
        %v1892 = vpop.f32.mrf.mxu0
        %1893 = vmatprep.mubr.bf16.mxu0 0
        %1894 = vmatmul.mubr.bf16.gmra.mxu0 %v1845
        %v1895 = vpop.f32.mrf.mxu0
        %v1896 = vadd.f32 0.0, %v1895
        %v1897 = vpop.f32.mrf.mxu0
        %v1898 = vpop.f32.mrf.mxu0
        %v1899 = vadd.f32 0.0, %v1898
        %v1900 = vpop.f32.mrf.mxu0
        %1901 = vmatprep.mubr.bf16.mxu0 0
        %1902 = vmatmul.mubr.bf16.gmra.mxu0 %v1848
        %v1903 = vpop.f32.mrf.mxu0
        %v1904 = vadd.f32 0.0, %v1903
        %v1905 = vpop.f32.mrf.mxu0
        %v1906 = vpop.f32.mrf.mxu0
        %v1907 = vadd.f32 0.0, %v1906
        %v1908 = vpop.f32.mrf.mxu0
        %1909 = vmatprep.mubr.bf16.mxu0 0
        %1910 = vmatmul.mubr.bf16.gmra.mxu0 %v1851
        %v1911 = vpop.f32.mrf.mxu0
        %v1912 = vadd.f32 0.0, %v1911
        %v1913 = vpop.f32.mrf.mxu0
        %v1914 = vpop.f32.mrf.mxu0
        %v1915 = vadd.f32 0.0, %v1914
        %v1916 = vpop.f32.mrf.mxu0
        %1917 = vdwg.mxu0
        %v1918 = vadd.f32 %v1453, %v1888
        %v1919 = vadd.f32 %v1454, %v1891
        %v1920 = vadd.f32 %v1455, %v1896
        %v1921 = vadd.f32 %v1456, %v1899
        %v1922 = vadd.f32 %v1457, %v1904
        %v1923 = vadd.f32 %v1458, %v1907
        %v1924 = vadd.f32 %v1459, %v1912
        %v1925 = vadd.f32 %v1460, %v1915
        %1926 = vrot.lane.b32.xlu0 %v1023, 64
        %v1927 = vpop.permute.xlu0 %1926
        %1928 = vrot.lane.b32.xlu0 %v1024, 64
        %v1929 = vpop.permute.xlu0 %1928
        %1930 = vrot.lane.b32.xlu0 %v1027, 64
        %v1931 = vpop.permute.xlu0 %1930
        %1932 = vrot.lane.b32.xlu0 %v1028, 64
        %v1933 = vpop.permute.xlu0 %1932
        %v1935 = vsel %vm1035, %v1927, 0
        %v1938 = vsel %vm1035, %v1929, 0
        %v1941 = vsel %vm1035, %v1931, 0
        %v1944 = vsel %vm1035, %v1933, 0
        %1946 = vmatprep.subr.bf16.mxu0 0
        %1947 = vmatpush1.bf16.xpose.msra.mxu0 0
        %1948 = vmatprep.subr.bf16.mxu0 0
        %1949 = vmatpush1.bf16.xpose.msra.mxu0 0
        %1950 = vmatprep.subr.bf16.mxu0 0
        %1951 = vmatpush1.bf16.xpose.msra.mxu0 0
        %1952 = vmatprep.subr.bf16.mxu0 0
        %1953 = vmatpush1.bf16.xpose.msra.mxu0 0
        %1954 = vmatprep.subr.bf16.mxu0 0
        %1955 = vmatpush1.bf16.xpose.msra.mxu0 0
        %1956 = vmatprep.subr.bf16.mxu0 0
        %1957 = vmatpush1.bf16.xpose.msra.mxu0 0
        %1958 = vmatprep.subr.bf16.mxu0 0
        %1959 = vmatpush1.bf16.xpose.msra.mxu0 %v1944
        %1960 = vmatprep.subr.bf16.mxu0 0
        %1961 = vmatpush1.bf16.xpose.msra.mxu0 %v1941
        %1962 = vmatprep.subr.bf16.mxu0 0
        %1963 = vmatpush2.bf16.xpose.msra.mxu0 0
        %1964 = vmatprep.subr.bf16.mxu0 0
        %1965 = vmatpush2.bf16.xpose.msra.mxu0 0
        %1966 = vmatprep.subr.bf16.mxu0 0
        %1967 = vmatpush2.bf16.xpose.msra.mxu0 0
        %1968 = vmatprep.subr.bf16.mxu0 0
        %1969 = vmatpush2.bf16.xpose.msra.mxu0 0
        %1970 = vmatprep.subr.bf16.mxu0 0
        %1971 = vmatpush2.bf16.xpose.msra.mxu0 0
        %1972 = vmatprep.subr.bf16.mxu0 0
        %1973 = vmatpush2.bf16.xpose.msra.mxu0 0
        %1974 = vmatprep.subr.bf16.mxu0 0
        %1975 = vmatpush2.bf16.xpose.msra.mxu0 0
        %1976 = vmatprep.subr.bf16.mxu0 0
        %1977 = vmatpush2.bf16.xpose.msra.mxu0 0
        %1978 = vmatprep.mubr.bf16.mxu0 0
        %1979 = vmatmul.mubr.bf16.gmra.mxu0 %v1935
        %v1980 = vpop.f32.mrf.mxu0
        %v1981 = vadd.f32 0.0, %v1980
        %v1982 = vpop.f32.mrf.mxu0
        %v1983 = vpop.f32.mrf.mxu0
        %v1984 = vadd.f32 0.0, %v1983
        %v1985 = vpop.f32.mrf.mxu0
        %1986 = vmatprep.mubr.bf16.mxu0 0
        %1987 = vmatmul.mubr.bf16.gmra.mxu0 %v1938
        %v1988 = vpop.f32.mrf.mxu0
        %v1989 = vadd.f32 0.0, %v1988
        %v1990 = vpop.f32.mrf.mxu0
        %v1991 = vpop.f32.mrf.mxu0
        %v1992 = vadd.f32 0.0, %v1991
        %v1993 = vpop.f32.mrf.mxu0
        %1994 = vdwg.mxu0
        %1995 = vrot.lane.b32.xlu0 %v1025, 64
        %v1996 = vpop.permute.xlu0 %1995
        %1997 = vrot.lane.b32.xlu0 %v1026, 64
        %v1998 = vpop.permute.xlu0 %1997
        %1999 = vrot.lane.b32.xlu0 %v1029, 64
        %v2000 = vpop.permute.xlu0 %1999
        %2001 = vrot.lane.b32.xlu0 %v1030, 64
        %v2002 = vpop.permute.xlu0 %2001
        %v2004 = vsel %vm1035, %v1996, 0
        %v2007 = vsel %vm1035, %v1998, 0
        %v2010 = vsel %vm1035, %v2000, 0
        %v2013 = vsel %vm1035, %v2002, 0
        %2015 = vmatprep.subr.bf16.mxu0 0
        %2016 = vmatpush1.bf16.xpose.msra.mxu0 0
        %2017 = vmatprep.subr.bf16.mxu0 0
        %2018 = vmatpush1.bf16.xpose.msra.mxu0 0
        %2019 = vmatprep.subr.bf16.mxu0 0
        %2020 = vmatpush1.bf16.xpose.msra.mxu0 0
        %2021 = vmatprep.subr.bf16.mxu0 0
        %2022 = vmatpush1.bf16.xpose.msra.mxu0 0
        %2023 = vmatprep.subr.bf16.mxu0 0
        %2024 = vmatpush1.bf16.xpose.msra.mxu0 0
        %2025 = vmatprep.subr.bf16.mxu0 0
        %2026 = vmatpush1.bf16.xpose.msra.mxu0 0
        %2027 = vmatprep.subr.bf16.mxu0 0
        %2028 = vmatpush1.bf16.xpose.msra.mxu0 %v2013
        %2029 = vmatprep.subr.bf16.mxu0 0
        %2030 = vmatpush1.bf16.xpose.msra.mxu0 %v2010
        %2031 = vmatprep.subr.bf16.mxu0 0
        %2032 = vmatpush2.bf16.xpose.msra.mxu0 0
        %2033 = vmatprep.subr.bf16.mxu0 0
        %2034 = vmatpush2.bf16.xpose.msra.mxu0 0
        %2035 = vmatprep.subr.bf16.mxu0 0
        %2036 = vmatpush2.bf16.xpose.msra.mxu0 0
        %2037 = vmatprep.subr.bf16.mxu0 0
        %2038 = vmatpush2.bf16.xpose.msra.mxu0 0
        %2039 = vmatprep.subr.bf16.mxu0 0
        %2040 = vmatpush2.bf16.xpose.msra.mxu0 0
        %2041 = vmatprep.subr.bf16.mxu0 0
        %2042 = vmatpush2.bf16.xpose.msra.mxu0 0
        %2043 = vmatprep.subr.bf16.mxu0 0
        %2044 = vmatpush2.bf16.xpose.msra.mxu0 0
        %2045 = vmatprep.subr.bf16.mxu0 0
        %2046 = vmatpush2.bf16.xpose.msra.mxu0 0
        %2047 = vmatprep.mubr.bf16.mxu0 0
        %2048 = vmatmul.mubr.bf16.gmra.mxu0 %v2004
        %v2049 = vpop.f32.mrf.mxu0
        %v2050 = vadd.f32 0.0, %v2049
        %v2051 = vpop.f32.mrf.mxu0
        %v2052 = vpop.f32.mrf.mxu0
        %v2053 = vadd.f32 0.0, %v2052
        %v2054 = vpop.f32.mrf.mxu0
        %2055 = vmatprep.mubr.bf16.mxu0 0
        %2056 = vmatmul.mubr.bf16.gmra.mxu0 %v2007
        %v2057 = vpop.f32.mrf.mxu0
        %v2058 = vadd.f32 0.0, %v2057
        %v2059 = vpop.f32.mrf.mxu0
        %v2060 = vpop.f32.mrf.mxu0
        %v2061 = vadd.f32 0.0, %v2060
        %v2062 = vpop.f32.mrf.mxu0
        %2063 = vdwg.mxu0
        %v2064 = vsel %vm1035, %v1981, -inf
        %2065 = vmax.xlane.f32.xlu0 %v2064
        %v2066 = vpop.xlane.xlu0 %2065
        %v2067 = vsel %vm1035, %v1984, -inf
        %2068 = vmax.xlane.f32.xlu0 %v2067
        %v2069 = vpop.xlane.xlu0 %2068
        %v2070 = vsel %vm1035, %v1989, -inf
        %2071 = vmax.xlane.f32.xlu0 %v2070
        %v2072 = vpop.xlane.xlu0 %2071
        %v2073 = vsel %vm1035, %v1992, -inf
        %2074 = vmax.xlane.f32.xlu0 %v2073
        %v2075 = vpop.xlane.xlu0 %2074
        %v2076 = vsel %vm1035, %v2050, -inf
        %2077 = vmax.xlane.f32.xlu0 %v2076
        %v2078 = vpop.xlane.xlu0 %2077
        %v2079 = vsel %vm1035, %v2053, -inf
        %2080 = vmax.xlane.f32.xlu0 %v2079
        %v2081 = vpop.xlane.xlu0 %2080
        %v2082 = vsel %vm1035, %v2058, -inf
        %2083 = vmax.xlane.f32.xlu0 %v2082
        %v2084 = vpop.xlane.xlu0 %2083
        %v2085 = vsel %vm1035, %v2061, -inf
        %2086 = vmax.xlane.f32.xlu0 %v2085
        %v2087 = vpop.xlane.xlu0 %2086
        %v2088 = vsub.f32 %v1981, %v2066
        %v2089 = vsub.f32 %v1984, %v2069
        %v2090 = vsub.f32 %v1989, %v2072
        %v2091 = vsub.f32 %v1992, %v2075
        %v2092 = vsub.f32 %v2050, %v2078
        %v2093 = vsub.f32 %v2053, %v2081
        %v2094 = vsub.f32 %v2058, %v2084
        %v2095 = vsub.f32 %v2061, %v2087
        %v2096 = vmul.f32 %v2088, 1.442695
        %v2097 = vpow.pop %v2096
        %v2098 = vmul.f32 %v2089, 1.442695
        %v2099 = vpow.pop %v2098
        %v2100 = vmul.f32 %v2090, 1.442695
        %v2101 = vpow.pop %v2100
        %v2102 = vmul.f32 %v2091, 1.442695
        %v2103 = vpow.pop %v2102
        %v2104 = vmul.f32 %v2092, 1.442695
        %v2105 = vpow.pop %v2104
        %v2106 = vmul.f32 %v2093, 1.442695
        %v2107 = vpow.pop %v2106
        %v2108 = vmul.f32 %v2094, 1.442695
        %v2109 = vpow.pop %v2108
        %v2110 = vmul.f32 %v2095, 1.442695
        %v2111 = vpow.pop %v2110
        %v2112 = vsel %vm1035, %v2097, 0.0
        %2113 = vadd.xlane.f32.xlu0 %v2112
        %v2114 = vpop.xlane.xlu0 %2113
        %v2115 = vsel %vm1035, %v2099, 0.0
        %2116 = vadd.xlane.f32.xlu0 %v2115
        %v2117 = vpop.xlane.xlu0 %2116
        %v2118 = vsel %vm1035, %v2101, 0.0
        %2119 = vadd.xlane.f32.xlu0 %v2118
        %v2120 = vpop.xlane.xlu0 %2119
        %v2121 = vsel %vm1035, %v2103, 0.0
        %2122 = vadd.xlane.f32.xlu0 %v2121
        %v2123 = vpop.xlane.xlu0 %2122
        %v2124 = vsel %vm1035, %v2105, 0.0
        %2125 = vadd.xlane.f32.xlu0 %v2124
        %v2126 = vpop.xlane.xlu0 %2125
        %v2127 = vsel %vm1035, %v2107, 0.0
        %2128 = vadd.xlane.f32.xlu0 %v2127
        %v2129 = vpop.xlane.xlu0 %2128
        %v2130 = vsel %vm1035, %v2109, 0.0
        %2131 = vadd.xlane.f32.xlu0 %v2130
        %v2132 = vpop.xlane.xlu0 %2131
        %v2133 = vsel %vm1035, %v2111, 0.0
        %2134 = vadd.xlane.f32.xlu0 %v2133
        %v2135 = vpop.xlane.xlu0 %2134
        %v2136 = vpack.c.bf16 %v2099, %v2097
        %v2137 = vpack.c.bf16 %v2103, %v2101
        %v2138 = vpack.c.bf16 %v2107, %v2105
        %v2139 = vpack.c.bf16 %v2111, %v2109
        %2140 = vrot.lane.b32.xlu0 %v1031, 64
        %v2141 = vpop.permute.xlu0 %2140
        %2142 = vrot.lane.b32.xlu0 %v1032, 64
        %v2143 = vpop.permute.xlu0 %2142
        %v2147 = vsel %vm1035, %v2136, 0
        %v2150 = vsel %vm1035, %v2137, 0
        %2152 = vmatprep.subr.bf16.mxu0 0
        %2153 = vmatpush1.bf16.msra.mxu0 0
        %2154 = vmatprep.subr.bf16.mxu0 0
        %2155 = vmatpush1.bf16.msra.mxu0 0
        %2156 = vmatprep.subr.bf16.mxu0 0
        %2157 = vmatpush1.bf16.msra.mxu0 0
        %2158 = vmatprep.subr.bf16.mxu0 0
        %2159 = vmatpush1.bf16.msra.mxu0 0
        %2160 = vmatprep.subr.bf16.mxu0 0
        %2161 = vmatpush1.bf16.msra.mxu0 0
        %2162 = vmatprep.subr.bf16.mxu0 0
        %2163 = vmatpush1.bf16.msra.mxu0 0
        %2164 = vmatprep.subr.bf16.mxu0 0
        %2165 = vmatpush1.bf16.msra.mxu0 %v2143
        %2166 = vmatprep.subr.bf16.mxu0 0
        %2167 = vmatpush1.bf16.msra.mxu0 %v2141
        %2168 = vmatprep.subr.bf16.mxu0 0
        %2169 = vmatpush2.bf16.msra.mxu0 0
        %2170 = vmatprep.subr.bf16.mxu0 0
        %2171 = vmatpush2.bf16.msra.mxu0 0
        %2172 = vmatprep.subr.bf16.mxu0 0
        %2173 = vmatpush2.bf16.msra.mxu0 0
        %2174 = vmatprep.subr.bf16.mxu0 0
        %2175 = vmatpush2.bf16.msra.mxu0 0
        %2176 = vmatprep.subr.bf16.mxu0 0
        %2177 = vmatpush2.bf16.msra.mxu0 0
        %2178 = vmatprep.subr.bf16.mxu0 0
        %2179 = vmatpush2.bf16.msra.mxu0 0
        %2180 = vmatprep.subr.bf16.mxu0 0
        %2181 = vmatpush2.bf16.msra.mxu0 0
        %2182 = vmatprep.subr.bf16.mxu0 0
        %2183 = vmatpush2.bf16.msra.mxu0 0
        %2184 = vmatprep.mubr.bf16.mxu0 0
        %2185 = vmatmul.mubr.bf16.gmra.mxu0 %v2147
        %v2186 = vpop.f32.mrf.mxu0
        %v2187 = vadd.f32 0.0, %v2186
        %v2188 = vpop.f32.mrf.mxu0
        %v2189 = vpop.f32.mrf.mxu0
        %v2190 = vadd.f32 0.0, %v2189
        %v2191 = vpop.f32.mrf.mxu0
        %2192 = vmatprep.mubr.bf16.mxu0 0
        %2193 = vmatmul.mubr.bf16.gmra.mxu0 %v2150
        %v2194 = vpop.f32.mrf.mxu0
        %v2195 = vadd.f32 0.0, %v2194
        %v2196 = vpop.f32.mrf.mxu0
        %v2197 = vpop.f32.mrf.mxu0
        %v2198 = vadd.f32 0.0, %v2197
        %v2199 = vpop.f32.mrf.mxu0
        %2200 = vdwg.mxu0
        %2201 = vrot.lane.b32.xlu0 %v1033, 64
        %v2202 = vpop.permute.xlu0 %2201
        %2203 = vrot.lane.b32.xlu0 %v1034, 64
        %v2204 = vpop.permute.xlu0 %2203
        %v2208 = vsel %vm1035, %v2138, 0
        %v2211 = vsel %vm1035, %v2139, 0
        %2213 = vmatprep.subr.bf16.mxu0 0
        %2214 = vmatpush1.bf16.msra.mxu0 0
        %2215 = vmatprep.subr.bf16.mxu0 0
        %2216 = vmatpush1.bf16.msra.mxu0 0
        %2217 = vmatprep.subr.bf16.mxu0 0
        %2218 = vmatpush1.bf16.msra.mxu0 0
        %2219 = vmatprep.subr.bf16.mxu0 0
        %2220 = vmatpush1.bf16.msra.mxu0 0
        %2221 = vmatprep.subr.bf16.mxu0 0
        %2222 = vmatpush1.bf16.msra.mxu0 0
        %2223 = vmatprep.subr.bf16.mxu0 0
        %2224 = vmatpush1.bf16.msra.mxu0 0
        %2225 = vmatprep.subr.bf16.mxu0 0
        %2226 = vmatpush1.bf16.msra.mxu0 %v2204
        %2227 = vmatprep.subr.bf16.mxu0 0
        %2228 = vmatpush1.bf16.msra.mxu0 %v2202
        %2229 = vmatprep.subr.bf16.mxu0 0
        %2230 = vmatpush2.bf16.msra.mxu0 0
        %2231 = vmatprep.subr.bf16.mxu0 0
        %2232 = vmatpush2.bf16.msra.mxu0 0
        %2233 = vmatprep.subr.bf16.mxu0 0
        %2234 = vmatpush2.bf16.msra.mxu0 0
        %2235 = vmatprep.subr.bf16.mxu0 0
        %2236 = vmatpush2.bf16.msra.mxu0 0
        %2237 = vmatprep.subr.bf16.mxu0 0
        %2238 = vmatpush2.bf16.msra.mxu0 0
        %2239 = vmatprep.subr.bf16.mxu0 0
        %2240 = vmatpush2.bf16.msra.mxu0 0
        %2241 = vmatprep.subr.bf16.mxu0 0
        %2242 = vmatpush2.bf16.msra.mxu0 0
        %2243 = vmatprep.subr.bf16.mxu0 0
        %2244 = vmatpush2.bf16.msra.mxu0 0
        %2245 = vmatprep.mubr.bf16.mxu0 0
        %2246 = vmatmul.mubr.bf16.gmra.mxu0 %v2208
        %v2247 = vpop.f32.mrf.mxu0
        %v2248 = vadd.f32 0.0, %v2247
        %v2249 = vpop.f32.mrf.mxu0
        %v2250 = vpop.f32.mrf.mxu0
        %v2251 = vadd.f32 0.0, %v2250
        %v2252 = vpop.f32.mrf.mxu0
        %2253 = vmatprep.mubr.bf16.mxu0 0
        %2254 = vmatmul.mubr.bf16.gmra.mxu0 %v2211
        %v2255 = vpop.f32.mrf.mxu0
        %v2256 = vadd.f32 0.0, %v2255
        %v2257 = vpop.f32.mrf.mxu0
        %v2258 = vpop.f32.mrf.mxu0
        %v2259 = vadd.f32 0.0, %v2258
        %v2260 = vpop.f32.mrf.mxu0
        %2261 = vdwg.mxu0
        %v2262 = vrcp.pop %v2114
        %v2263 = vrcp.pop %v2117
        %v2264 = vrcp.pop %v2120
        %v2265 = vrcp.pop %v2123
        %v2266 = vrcp.pop %v2126
        %v2267 = vrcp.pop %v2129
        %v2268 = vrcp.pop %v2132
        %v2269 = vrcp.pop %v2135
        %v2270 = vmul.f32 %v2187, %v2262
        %v2271 = vmul.f32 %v2190, %v2263
        %v2272 = vmul.f32 %v2195, %v2264
        %v2273 = vmul.f32 %v2198, %v2265
        %v2274 = vmul.f32 %v2248, %v2266
        %v2275 = vmul.f32 %v2251, %v2267
        %v2276 = vmul.f32 %v2256, %v2268
        %v2277 = vmul.f32 %v2259, %v2269
        %v2278 = vpack.c.bf16 %v2271, %v2270
        %v2279 = vpack.c.bf16 %v2273, %v2272
        %v2280 = vpack.c.bf16 %v2275, %v2274
        %v2281 = vpack.c.bf16 %v2277, %v2276
        %v2286 = vunpack.c.l.b16 %v1000
        %v2287 = vunpack.c.l.b16 %v1001
        %v2288 = vunpack.c.l.b16 %v1002
        %v2289 = vunpack.c.l.b16 %v1003
        %v2290 = vpack.c.b16 %v2287, %v2286
        %v2291 = vpack.c.b16 %v2289, %v2288
        %v2295 = vsel %vm1035, %v2278, 0
        %v2298 = vsel %vm1035, %v2279, 0
        %v2301 = vsel %vm1035, %v2280, 0
        %v2304 = vsel %vm1035, %v2281, 0
        %2306 = vmatprep.subr.bf16.mxu0 0
        %2307 = vmatpush1.bf16.msra.mxu0 0
        %2308 = vmatprep.subr.bf16.mxu0 0
        %2309 = vmatpush1.bf16.msra.mxu0 0
        %2310 = vmatprep.subr.bf16.mxu0 0
        %2311 = vmatpush1.bf16.msra.mxu0 0
        %2312 = vmatprep.subr.bf16.mxu0 0
        %2313 = vmatpush1.bf16.msra.mxu0 0
        %2314 = vmatprep.subr.bf16.mxu0 0
        %2315 = vmatpush1.bf16.msra.mxu0 0
        %2316 = vmatprep.subr.bf16.mxu0 0
        %2317 = vmatpush1.bf16.msra.mxu0 0
        %2318 = vmatprep.subr.bf16.mxu0 0
        %2319 = vmatpush1.bf16.msra.mxu0 %v2291
        %2320 = vmatprep.subr.bf16.mxu0 0
        %2321 = vmatpush1.bf16.msra.mxu0 %v2290
        %2322 = vmatprep.subr.bf16.mxu0 0
        %2323 = vmatpush2.bf16.msra.mxu0 0
        %2324 = vmatprep.subr.bf16.mxu0 0
        %2325 = vmatpush2.bf16.msra.mxu0 0
        %2326 = vmatprep.subr.bf16.mxu0 0
        %2327 = vmatpush2.bf16.msra.mxu0 0
        %2328 = vmatprep.subr.bf16.mxu0 0
        %2329 = vmatpush2.bf16.msra.mxu0 0
        %2330 = vmatprep.subr.bf16.mxu0 0
        %2331 = vmatpush2.bf16.msra.mxu0 0
        %2332 = vmatprep.subr.bf16.mxu0 0
        %2333 = vmatpush2.bf16.msra.mxu0 0
        %2334 = vmatprep.subr.bf16.mxu0 0
        %2335 = vmatpush2.bf16.msra.mxu0 0
        %2336 = vmatprep.subr.bf16.mxu0 0
        %2337 = vmatpush2.bf16.msra.mxu0 0
        %2338 = vmatprep.mubr.bf16.mxu0 0
        %2339 = vmatmul.mubr.bf16.gmra.mxu0 %v2295
        %v2340 = vpop.f32.mrf.mxu0
        %v2341 = vadd.f32 0.0, %v2340
        %v2342 = vpop.f32.mrf.mxu0
        %v2343 = vpop.f32.mrf.mxu0
        %v2344 = vadd.f32 0.0, %v2343
        %v2345 = vpop.f32.mrf.mxu0
        %2346 = vmatprep.mubr.bf16.mxu0 0
        %2347 = vmatmul.mubr.bf16.gmra.mxu0 %v2298
        %v2348 = vpop.f32.mrf.mxu0
        %v2349 = vadd.f32 0.0, %v2348
        %v2350 = vpop.f32.mrf.mxu0
        %v2351 = vpop.f32.mrf.mxu0
        %v2352 = vadd.f32 0.0, %v2351
        %v2353 = vpop.f32.mrf.mxu0
        %2354 = vmatprep.mubr.bf16.mxu0 0
        %2355 = vmatmul.mubr.bf16.gmra.mxu0 %v2301
        %v2356 = vpop.f32.mrf.mxu0
        %v2357 = vadd.f32 0.0, %v2356
        %v2358 = vpop.f32.mrf.mxu0
        %v2359 = vpop.f32.mrf.mxu0
        %v2360 = vadd.f32 0.0, %v2359
        %v2361 = vpop.f32.mrf.mxu0
        %2362 = vmatprep.mubr.bf16.mxu0 0
        %2363 = vmatmul.mubr.bf16.gmra.mxu0 %v2304
        %v2364 = vpop.f32.mrf.mxu0
        %v2365 = vadd.f32 0.0, %v2364
        %v2366 = vpop.f32.mrf.mxu0
        %v2367 = vpop.f32.mrf.mxu0
        %v2368 = vadd.f32 0.0, %v2367
        %v2369 = vpop.f32.mrf.mxu0
        %2370 = vdwg.mxu0
        %v2371 = vadd.f32 %v1918, %v2341
        %v2372 = vadd.f32 %v1919, %v2344
        %v2373 = vadd.f32 %v1920, %v2349
        %v2374 = vadd.f32 %v1921, %v2352
        %v2375 = vadd.f32 %v1922, %v2357
        %v2376 = vadd.f32 %v1923, %v2360
        %v2377 = vadd.f32 %v1924, %v2365
        %v2378 = vadd.f32 %v1925, %v2368
        %2379 = vrot.lane.b32.xlu0 %v1023, 32
        %v2380 = vpop.permute.xlu0 %2379
        %2381 = vrot.lane.b32.xlu0 %v1024, 32
        %v2382 = vpop.permute.xlu0 %2381
        %2383 = vrot.lane.b32.xlu0 %v1027, 32
        %v2384 = vpop.permute.xlu0 %2383
        %2385 = vrot.lane.b32.xlu0 %v1028, 32
        %v2386 = vpop.permute.xlu0 %2385
        %v2388 = vsel %vm1035, %v2380, 0
        %v2391 = vsel %vm1035, %v2382, 0
        %v2394 = vsel %vm1035, %v2384, 0
        %v2397 = vsel %vm1035, %v2386, 0
        %2399 = vmatprep.subr.bf16.mxu0 0
        %2400 = vmatpush1.bf16.xpose.msra.mxu0 0
        %2401 = vmatprep.subr.bf16.mxu0 0
        %2402 = vmatpush1.bf16.xpose.msra.mxu0 0
        %2403 = vmatprep.subr.bf16.mxu0 0
        %2404 = vmatpush1.bf16.xpose.msra.mxu0 0
        %2405 = vmatprep.subr.bf16.mxu0 0
        %2406 = vmatpush1.bf16.xpose.msra.mxu0 0
        %2407 = vmatprep.subr.bf16.mxu0 0
        %2408 = vmatpush1.bf16.xpose.msra.mxu0 0
        %2409 = vmatprep.subr.bf16.mxu0 0
        %2410 = vmatpush1.bf16.xpose.msra.mxu0 0
        %2411 = vmatprep.subr.bf16.mxu0 0
        %2412 = vmatpush1.bf16.xpose.msra.mxu0 %v2397
        %2413 = vmatprep.subr.bf16.mxu0 0
        %2414 = vmatpush1.bf16.xpose.msra.mxu0 %v2394
        %2415 = vmatprep.subr.bf16.mxu0 0
        %2416 = vmatpush2.bf16.xpose.msra.mxu0 0
        %2417 = vmatprep.subr.bf16.mxu0 0
        %2418 = vmatpush2.bf16.xpose.msra.mxu0 0
        %2419 = vmatprep.subr.bf16.mxu0 0
        %2420 = vmatpush2.bf16.xpose.msra.mxu0 0
        %2421 = vmatprep.subr.bf16.mxu0 0
        %2422 = vmatpush2.bf16.xpose.msra.mxu0 0
        %2423 = vmatprep.subr.bf16.mxu0 0
        %2424 = vmatpush2.bf16.xpose.msra.mxu0 0
        %2425 = vmatprep.subr.bf16.mxu0 0
        %2426 = vmatpush2.bf16.xpose.msra.mxu0 0
        %2427 = vmatprep.subr.bf16.mxu0 0
        %2428 = vmatpush2.bf16.xpose.msra.mxu0 0
        %2429 = vmatprep.subr.bf16.mxu0 0
        %2430 = vmatpush2.bf16.xpose.msra.mxu0 0
        %2431 = vmatprep.mubr.bf16.mxu0 0
        %2432 = vmatmul.mubr.bf16.gmra.mxu0 %v2388
        %v2433 = vpop.f32.mrf.mxu0
        %v2434 = vadd.f32 0.0, %v2433
        %v2435 = vpop.f32.mrf.mxu0
        %v2436 = vpop.f32.mrf.mxu0
        %v2437 = vadd.f32 0.0, %v2436
        %v2438 = vpop.f32.mrf.mxu0
        %2439 = vmatprep.mubr.bf16.mxu0 0
        %2440 = vmatmul.mubr.bf16.gmra.mxu0 %v2391
        %v2441 = vpop.f32.mrf.mxu0
        %v2442 = vadd.f32 0.0, %v2441
        %v2443 = vpop.f32.mrf.mxu0
        %v2444 = vpop.f32.mrf.mxu0
        %v2445 = vadd.f32 0.0, %v2444
        %v2446 = vpop.f32.mrf.mxu0
        %2447 = vdwg.mxu0
        %2448 = vrot.lane.b32.xlu0 %v1025, 32
        %v2449 = vpop.permute.xlu0 %2448
        %2450 = vrot.lane.b32.xlu0 %v1026, 32
        %v2451 = vpop.permute.xlu0 %2450
        %2452 = vrot.lane.b32.xlu0 %v1029, 32
        %v2453 = vpop.permute.xlu0 %2452
        %2454 = vrot.lane.b32.xlu0 %v1030, 32
        %v2455 = vpop.permute.xlu0 %2454
        %v2457 = vsel %vm1035, %v2449, 0
        %v2460 = vsel %vm1035, %v2451, 0
        %v2463 = vsel %vm1035, %v2453, 0
        %v2466 = vsel %vm1035, %v2455, 0
        %2468 = vmatprep.subr.bf16.mxu0 0
        %2469 = vmatpush1.bf16.xpose.msra.mxu0 0
        %2470 = vmatprep.subr.bf16.mxu0 0
        %2471 = vmatpush1.bf16.xpose.msra.mxu0 0
        %2472 = vmatprep.subr.bf16.mxu0 0
        %2473 = vmatpush1.bf16.xpose.msra.mxu0 0
        %2474 = vmatprep.subr.bf16.mxu0 0
        %2475 = vmatpush1.bf16.xpose.msra.mxu0 0
        %2476 = vmatprep.subr.bf16.mxu0 0
        %2477 = vmatpush1.bf16.xpose.msra.mxu0 0
        %2478 = vmatprep.subr.bf16.mxu0 0
        %2479 = vmatpush1.bf16.xpose.msra.mxu0 0
        %2480 = vmatprep.subr.bf16.mxu0 0
        %2481 = vmatpush1.bf16.xpose.msra.mxu0 %v2466
        %2482 = vmatprep.subr.bf16.mxu0 0
        %2483 = vmatpush1.bf16.xpose.msra.mxu0 %v2463
        %2484 = vmatprep.subr.bf16.mxu0 0
        %2485 = vmatpush2.bf16.xpose.msra.mxu0 0
        %2486 = vmatprep.subr.bf16.mxu0 0
        %2487 = vmatpush2.bf16.xpose.msra.mxu0 0
        %2488 = vmatprep.subr.bf16.mxu0 0
        %2489 = vmatpush2.bf16.xpose.msra.mxu0 0
        %2490 = vmatprep.subr.bf16.mxu0 0
        %2491 = vmatpush2.bf16.xpose.msra.mxu0 0
        %2492 = vmatprep.subr.bf16.mxu0 0
        %2493 = vmatpush2.bf16.xpose.msra.mxu0 0
        %2494 = vmatprep.subr.bf16.mxu0 0
        %2495 = vmatpush2.bf16.xpose.msra.mxu0 0
        %2496 = vmatprep.subr.bf16.mxu0 0
        %2497 = vmatpush2.bf16.xpose.msra.mxu0 0
        %2498 = vmatprep.subr.bf16.mxu0 0
        %2499 = vmatpush2.bf16.xpose.msra.mxu0 0
        %2500 = vmatprep.mubr.bf16.mxu0 0
        %2501 = vmatmul.mubr.bf16.gmra.mxu0 %v2457
        %v2502 = vpop.f32.mrf.mxu0
        %v2503 = vadd.f32 0.0, %v2502
        %v2504 = vpop.f32.mrf.mxu0
        %v2505 = vpop.f32.mrf.mxu0
        %v2506 = vadd.f32 0.0, %v2505
        %v2507 = vpop.f32.mrf.mxu0
        %2508 = vmatprep.mubr.bf16.mxu0 0
        %2509 = vmatmul.mubr.bf16.gmra.mxu0 %v2460
        %v2510 = vpop.f32.mrf.mxu0
        %v2511 = vadd.f32 0.0, %v2510
        %v2512 = vpop.f32.mrf.mxu0
        %v2513 = vpop.f32.mrf.mxu0
        %v2514 = vadd.f32 0.0, %v2513
        %v2515 = vpop.f32.mrf.mxu0
        %2516 = vdwg.mxu0
        %v2517 = vsel %vm1035, %v2434, -inf
        %2518 = vmax.xlane.f32.xlu0 %v2517
        %v2519 = vpop.xlane.xlu0 %2518
        %v2520 = vsel %vm1035, %v2437, -inf
        %2521 = vmax.xlane.f32.xlu0 %v2520
        %v2522 = vpop.xlane.xlu0 %2521
        %v2523 = vsel %vm1035, %v2442, -inf
        %2524 = vmax.xlane.f32.xlu0 %v2523
        %v2525 = vpop.xlane.xlu0 %2524
        %v2526 = vsel %vm1035, %v2445, -inf
        %2527 = vmax.xlane.f32.xlu0 %v2526
        %v2528 = vpop.xlane.xlu0 %2527
        %v2529 = vsel %vm1035, %v2503, -inf
        %2530 = vmax.xlane.f32.xlu0 %v2529
        %v2531 = vpop.xlane.xlu0 %2530
        %v2532 = vsel %vm1035, %v2506, -inf
        %2533 = vmax.xlane.f32.xlu0 %v2532
        %v2534 = vpop.xlane.xlu0 %2533
        %v2535 = vsel %vm1035, %v2511, -inf
        %2536 = vmax.xlane.f32.xlu0 %v2535
        %v2537 = vpop.xlane.xlu0 %2536
        %v2538 = vsel %vm1035, %v2514, -inf
        %2539 = vmax.xlane.f32.xlu0 %v2538
        %v2540 = vpop.xlane.xlu0 %2539
        %v2541 = vsub.f32 %v2434, %v2519
        %v2542 = vsub.f32 %v2437, %v2522
        %v2543 = vsub.f32 %v2442, %v2525
        %v2544 = vsub.f32 %v2445, %v2528
        %v2545 = vsub.f32 %v2503, %v2531
        %v2546 = vsub.f32 %v2506, %v2534
        %v2547 = vsub.f32 %v2511, %v2537
        %v2548 = vsub.f32 %v2514, %v2540
        %v2549 = vmul.f32 %v2541, 1.442695
        %v2550 = vpow.pop %v2549
        %v2551 = vmul.f32 %v2542, 1.442695
        %v2552 = vpow.pop %v2551
        %v2553 = vmul.f32 %v2543, 1.442695
        %v2554 = vpow.pop %v2553
        %v2555 = vmul.f32 %v2544, 1.442695
        %v2556 = vpow.pop %v2555
        %v2557 = vmul.f32 %v2545, 1.442695
        %v2558 = vpow.pop %v2557
        %v2559 = vmul.f32 %v2546, 1.442695
        %v2560 = vpow.pop %v2559
        %v2561 = vmul.f32 %v2547, 1.442695
        %v2562 = vpow.pop %v2561
        %v2563 = vmul.f32 %v2548, 1.442695
        %v2564 = vpow.pop %v2563
        %v2565 = vsel %vm1035, %v2550, 0.0
        %2566 = vadd.xlane.f32.xlu0 %v2565
        %v2567 = vpop.xlane.xlu0 %2566
        %v2568 = vsel %vm1035, %v2552, 0.0
        %2569 = vadd.xlane.f32.xlu0 %v2568
        %v2570 = vpop.xlane.xlu0 %2569
        %v2571 = vsel %vm1035, %v2554, 0.0
        %2572 = vadd.xlane.f32.xlu0 %v2571
        %v2573 = vpop.xlane.xlu0 %2572
        %v2574 = vsel %vm1035, %v2556, 0.0
        %2575 = vadd.xlane.f32.xlu0 %v2574
        %v2576 = vpop.xlane.xlu0 %2575
        %v2577 = vsel %vm1035, %v2558, 0.0
        %2578 = vadd.xlane.f32.xlu0 %v2577
        %v2579 = vpop.xlane.xlu0 %2578
        %v2580 = vsel %vm1035, %v2560, 0.0
        %2581 = vadd.xlane.f32.xlu0 %v2580
        %v2582 = vpop.xlane.xlu0 %2581
        %v2583 = vsel %vm1035, %v2562, 0.0
        %2584 = vadd.xlane.f32.xlu0 %v2583
        %v2585 = vpop.xlane.xlu0 %2584
        %v2586 = vsel %vm1035, %v2564, 0.0
        %2587 = vadd.xlane.f32.xlu0 %v2586
        %v2588 = vpop.xlane.xlu0 %2587
        %v2589 = vpack.c.bf16 %v2552, %v2550
        %v2590 = vpack.c.bf16 %v2556, %v2554
        %v2591 = vpack.c.bf16 %v2560, %v2558
        %v2592 = vpack.c.bf16 %v2564, %v2562
        %2593 = vrot.lane.b32.xlu0 %v1031, 32
        %v2594 = vpop.permute.xlu0 %2593
        %2595 = vrot.lane.b32.xlu0 %v1032, 32
        %v2596 = vpop.permute.xlu0 %2595
        %v2600 = vsel %vm1035, %v2589, 0
        %v2603 = vsel %vm1035, %v2590, 0
        %2605 = vmatprep.subr.bf16.mxu0 0
        %2606 = vmatpush1.bf16.msra.mxu0 0
        %2607 = vmatprep.subr.bf16.mxu0 0
        %2608 = vmatpush1.bf16.msra.mxu0 0
        %2609 = vmatprep.subr.bf16.mxu0 0
        %2610 = vmatpush1.bf16.msra.mxu0 0
        %2611 = vmatprep.subr.bf16.mxu0 0
        %2612 = vmatpush1.bf16.msra.mxu0 0
        %2613 = vmatprep.subr.bf16.mxu0 0
        %2614 = vmatpush1.bf16.msra.mxu0 0
        %2615 = vmatprep.subr.bf16.mxu0 0
        %2616 = vmatpush1.bf16.msra.mxu0 0
        %2617 = vmatprep.subr.bf16.mxu0 0
        %2618 = vmatpush1.bf16.msra.mxu0 %v2596
        %2619 = vmatprep.subr.bf16.mxu0 0
        %2620 = vmatpush1.bf16.msra.mxu0 %v2594
        %2621 = vmatprep.subr.bf16.mxu0 0
        %2622 = vmatpush2.bf16.msra.mxu0 0
        %2623 = vmatprep.subr.bf16.mxu0 0
        %2624 = vmatpush2.bf16.msra.mxu0 0
        %2625 = vmatprep.subr.bf16.mxu0 0
        %2626 = vmatpush2.bf16.msra.mxu0 0
        %2627 = vmatprep.subr.bf16.mxu0 0
        %2628 = vmatpush2.bf16.msra.mxu0 0
        %2629 = vmatprep.subr.bf16.mxu0 0
        %2630 = vmatpush2.bf16.msra.mxu0 0
        %2631 = vmatprep.subr.bf16.mxu0 0
        %2632 = vmatpush2.bf16.msra.mxu0 0
        %2633 = vmatprep.subr.bf16.mxu0 0
        %2634 = vmatpush2.bf16.msra.mxu0 0
        %2635 = vmatprep.subr.bf16.mxu0 0
        %2636 = vmatpush2.bf16.msra.mxu0 0
        %2637 = vmatprep.mubr.bf16.mxu0 0
        %2638 = vmatmul.mubr.bf16.gmra.mxu0 %v2600
        %v2639 = vpop.f32.mrf.mxu0
        %v2640 = vadd.f32 0.0, %v2639
        %v2641 = vpop.f32.mrf.mxu0
        %v2642 = vpop.f32.mrf.mxu0
        %v2643 = vadd.f32 0.0, %v2642
        %v2644 = vpop.f32.mrf.mxu0
        %2645 = vmatprep.mubr.bf16.mxu0 0
        %2646 = vmatmul.mubr.bf16.gmra.mxu0 %v2603
        %v2647 = vpop.f32.mrf.mxu0
        %v2648 = vadd.f32 0.0, %v2647
        %v2649 = vpop.f32.mrf.mxu0
        %v2650 = vpop.f32.mrf.mxu0
        %v2651 = vadd.f32 0.0, %v2650
        %v2652 = vpop.f32.mrf.mxu0
        %2653 = vdwg.mxu0
        %2654 = vrot.lane.b32.xlu0 %v1033, 32
        %v2655 = vpop.permute.xlu0 %2654
        %2656 = vrot.lane.b32.xlu0 %v1034, 32
        %v2657 = vpop.permute.xlu0 %2656
        %v2661 = vsel %vm1035, %v2591, 0
        %v2664 = vsel %vm1035, %v2592, 0
        %2666 = vmatprep.subr.bf16.mxu0 0
        %2667 = vmatpush1.bf16.msra.mxu0 0
        %2668 = vmatprep.subr.bf16.mxu0 0
        %2669 = vmatpush1.bf16.msra.mxu0 0
        %2670 = vmatprep.subr.bf16.mxu0 0
        %2671 = vmatpush1.bf16.msra.mxu0 0
        %2672 = vmatprep.subr.bf16.mxu0 0
        %2673 = vmatpush1.bf16.msra.mxu0 0
        %2674 = vmatprep.subr.bf16.mxu0 0
        %2675 = vmatpush1.bf16.msra.mxu0 0
        %2676 = vmatprep.subr.bf16.mxu0 0
        %2677 = vmatpush1.bf16.msra.mxu0 0
        %2678 = vmatprep.subr.bf16.mxu0 0
        %2679 = vmatpush1.bf16.msra.mxu0 %v2657
        %2680 = vmatprep.subr.bf16.mxu0 0
        %2681 = vmatpush1.bf16.msra.mxu0 %v2655
        %2682 = vmatprep.subr.bf16.mxu0 0
        %2683 = vmatpush2.bf16.msra.mxu0 0
        %2684 = vmatprep.subr.bf16.mxu0 0
        %2685 = vmatpush2.bf16.msra.mxu0 0
        %2686 = vmatprep.subr.bf16.mxu0 0
        %2687 = vmatpush2.bf16.msra.mxu0 0
        %2688 = vmatprep.subr.bf16.mxu0 0
        %2689 = vmatpush2.bf16.msra.mxu0 0
        %2690 = vmatprep.subr.bf16.mxu0 0
        %2691 = vmatpush2.bf16.msra.mxu0 0
        %2692 = vmatprep.subr.bf16.mxu0 0
        %2693 = vmatpush2.bf16.msra.mxu0 0
        %2694 = vmatprep.subr.bf16.mxu0 0
        %2695 = vmatpush2.bf16.msra.mxu0 0
        %2696 = vmatprep.subr.bf16.mxu0 0
        %2697 = vmatpush2.bf16.msra.mxu0 0
        %2698 = vmatprep.mubr.bf16.mxu0 0
        %2699 = vmatmul.mubr.bf16.gmra.mxu0 %v2661
        %v2700 = vpop.f32.mrf.mxu0
        %v2701 = vadd.f32 0.0, %v2700
        %v2702 = vpop.f32.mrf.mxu0
        %v2703 = vpop.f32.mrf.mxu0
        %v2704 = vadd.f32 0.0, %v2703
        %v2705 = vpop.f32.mrf.mxu0
        %2706 = vmatprep.mubr.bf16.mxu0 0
        %2707 = vmatmul.mubr.bf16.gmra.mxu0 %v2664
        %v2708 = vpop.f32.mrf.mxu0
        %v2709 = vadd.f32 0.0, %v2708
        %v2710 = vpop.f32.mrf.mxu0
        %v2711 = vpop.f32.mrf.mxu0
        %v2712 = vadd.f32 0.0, %v2711
        %v2713 = vpop.f32.mrf.mxu0
        %2714 = vdwg.mxu0
        %v2715 = vrcp.pop %v2567
        %v2716 = vrcp.pop %v2570
        %v2717 = vrcp.pop %v2573
        %v2718 = vrcp.pop %v2576
        %v2719 = vrcp.pop %v2579
        %v2720 = vrcp.pop %v2582
        %v2721 = vrcp.pop %v2585
        %v2722 = vrcp.pop %v2588
        %v2723 = vmul.f32 %v2640, %v2715
        %v2724 = vmul.f32 %v2643, %v2716
        %v2725 = vmul.f32 %v2648, %v2717
        %v2726 = vmul.f32 %v2651, %v2718
        %v2727 = vmul.f32 %v2701, %v2719
        %v2728 = vmul.f32 %v2704, %v2720
        %v2729 = vmul.f32 %v2709, %v2721
        %v2730 = vmul.f32 %v2712, %v2722
        %v2731 = vpack.c.bf16 %v2724, %v2723
        %v2732 = vpack.c.bf16 %v2726, %v2725
        %v2733 = vpack.c.bf16 %v2728, %v2727
        %v2734 = vpack.c.bf16 %v2730, %v2729
        %v2739 = vunpack.c.l.b16 %v1004
        %v2740 = vunpack.c.l.b16 %v1005
        %v2741 = vunpack.c.l.b16 %v1006
        %v2742 = vunpack.c.l.b16 %v1007
        %v2743 = vpack.c.b16 %v2740, %v2739
        %v2744 = vpack.c.b16 %v2742, %v2741
        %v2748 = vsel %vm1035, %v2731, 0
        %v2751 = vsel %vm1035, %v2732, 0
        %v2754 = vsel %vm1035, %v2733, 0
        %v2757 = vsel %vm1035, %v2734, 0
        %2759 = vmatprep.subr.bf16.mxu0 0
        %2760 = vmatpush1.bf16.msra.mxu0 0
        %2761 = vmatprep.subr.bf16.mxu0 0
        %2762 = vmatpush1.bf16.msra.mxu0 0
        %2763 = vmatprep.subr.bf16.mxu0 0
        %2764 = vmatpush1.bf16.msra.mxu0 0
        %2765 = vmatprep.subr.bf16.mxu0 0
        %2766 = vmatpush1.bf16.msra.mxu0 0
        %2767 = vmatprep.subr.bf16.mxu0 0
        %2768 = vmatpush1.bf16.msra.mxu0 0
        %2769 = vmatprep.subr.bf16.mxu0 0
        %2770 = vmatpush1.bf16.msra.mxu0 0
        %2771 = vmatprep.subr.bf16.mxu0 0
        %2772 = vmatpush1.bf16.msra.mxu0 %v2744
        %2773 = vmatprep.subr.bf16.mxu0 0
        %2774 = vmatpush1.bf16.msra.mxu0 %v2743
        %2775 = vmatprep.subr.bf16.mxu0 0
        %2776 = vmatpush2.bf16.msra.mxu0 0
        %2777 = vmatprep.subr.bf16.mxu0 0
        %2778 = vmatpush2.bf16.msra.mxu0 0
        %2779 = vmatprep.subr.bf16.mxu0 0
        %2780 = vmatpush2.bf16.msra.mxu0 0
        %2781 = vmatprep.subr.bf16.mxu0 0
        %2782 = vmatpush2.bf16.msra.mxu0 0
        %2783 = vmatprep.subr.bf16.mxu0 0
        %2784 = vmatpush2.bf16.msra.mxu0 0
        %2785 = vmatprep.subr.bf16.mxu0 0
        %2786 = vmatpush2.bf16.msra.mxu0 0
        %2787 = vmatprep.subr.bf16.mxu0 0
        %2788 = vmatpush2.bf16.msra.mxu0 0
        %2789 = vmatprep.subr.bf16.mxu0 0
        %2790 = vmatpush2.bf16.msra.mxu0 0
        %2791 = vmatprep.mubr.bf16.mxu0 0
        %2792 = vmatmul.mubr.bf16.gmra.mxu0 %v2748
        %v2793 = vpop.f32.mrf.mxu0
        %v2794 = vadd.f32 0.0, %v2793
        %v2795 = vpop.f32.mrf.mxu0
        %v2796 = vpop.f32.mrf.mxu0
        %v2797 = vadd.f32 0.0, %v2796
        %v2798 = vpop.f32.mrf.mxu0
        %2799 = vmatprep.mubr.bf16.mxu0 0
        %2800 = vmatmul.mubr.bf16.gmra.mxu0 %v2751
        %v2801 = vpop.f32.mrf.mxu0
        %v2802 = vadd.f32 0.0, %v2801
        %v2803 = vpop.f32.mrf.mxu0
        %v2804 = vpop.f32.mrf.mxu0
        %v2805 = vadd.f32 0.0, %v2804
        %v2806 = vpop.f32.mrf.mxu0
        %2807 = vmatprep.mubr.bf16.mxu0 0
        %2808 = vmatmul.mubr.bf16.gmra.mxu0 %v2754
        %v2809 = vpop.f32.mrf.mxu0
        %v2810 = vadd.f32 0.0, %v2809
        %v2811 = vpop.f32.mrf.mxu0
        %v2812 = vpop.f32.mrf.mxu0
        %v2813 = vadd.f32 0.0, %v2812
        %v2814 = vpop.f32.mrf.mxu0
        %2815 = vmatprep.mubr.bf16.mxu0 0
        %2816 = vmatmul.mubr.bf16.gmra.mxu0 %v2757
        %v2817 = vpop.f32.mrf.mxu0
        %v2818 = vadd.f32 0.0, %v2817
        %v2819 = vpop.f32.mrf.mxu0
        %v2820 = vpop.f32.mrf.mxu0
        %v2821 = vadd.f32 0.0, %v2820
        %v2822 = vpop.f32.mrf.mxu0
        %2823 = vdwg.mxu0
        %v2824 = vadd.f32 %v2371, %v2794
        %v2825 = vadd.f32 %v2372, %v2797
        %v2826 = vadd.f32 %v2373, %v2802
        %v2827 = vadd.f32 %v2374, %v2805
        %v2828 = vadd.f32 %v2375, %v2810
        %v2829 = vadd.f32 %v2376, %v2813
        %v2830 = vadd.f32 %v2377, %v2818
        %v2831 = vadd.f32 %v2378, %v2821
        %2832 = vadd.xlane.f32.xlu0 %v2824
        %v2833 = vpop.xlane.xlu0 %2832
        %2834 = vadd.xlane.f32.xlu0 %v2825
        %v2835 = vpop.xlane.xlu0 %2834
        %2836 = vadd.xlane.f32.xlu0 %v2826
        %v2837 = vpop.xlane.xlu0 %2836
        %2838 = vadd.xlane.f32.xlu0 %v2827
        %v2839 = vpop.xlane.xlu0 %2838
        %2840 = vadd.xlane.f32.xlu0 %v2828
        %v2841 = vpop.xlane.xlu0 %2840
        %2842 = vadd.xlane.f32.xlu0 %v2829
        %v2843 = vpop.xlane.xlu0 %2842
        %2844 = vadd.xlane.f32.xlu0 %v2830
        %v2845 = vpop.xlane.xlu0 %2844
        %2846 = vadd.xlane.f32.xlu0 %v2831
        %v2847 = vpop.xlane.xlu0 %2846
        %v2848 = vmul.f32 %v2833, %v570
        %v2849 = vmul.f32 %v2835, %v570
        %v2850 = vmul.f32 %v2837, %v570
        %v2851 = vmul.f32 %v2839, %v570
        %v2852 = vmul.f32 %v2841, %v570
        %v2853 = vmul.f32 %v2843, %v570
        %v2854 = vmul.f32 %v2845, %v570
        %v2855 = vmul.f32 %v2847, %v570
        %v2856 = vsub.f32 %v2824, %v2848
        %v2857 = vsub.f32 %v2825, %v2849
        %v2858 = vsub.f32 %v2826, %v2850
        %v2859 = vsub.f32 %v2827, %v2851
        %v2860 = vsub.f32 %v2828, %v2852
        %v2861 = vsub.f32 %v2829, %v2853
        %v2862 = vsub.f32 %v2830, %v2854
        %v2863 = vsub.f32 %v2831, %v2855
        %v2864 = vmul.f32 %v2856, %v2856
        %v2865 = vmul.f32 %v2857, %v2857
        %v2866 = vmul.f32 %v2858, %v2858
        %v2867 = vmul.f32 %v2859, %v2859
        %v2868 = vmul.f32 %v2860, %v2860
        %v2869 = vmul.f32 %v2861, %v2861
        %v2870 = vmul.f32 %v2862, %v2862
        %v2871 = vmul.f32 %v2863, %v2863
        %2872 = vadd.xlane.f32.xlu0 %v2864
        %v2873 = vpop.xlane.xlu0 %2872
        %2874 = vadd.xlane.f32.xlu0 %v2865
        %v2875 = vpop.xlane.xlu0 %2874
        %2876 = vadd.xlane.f32.xlu0 %v2866
        %v2877 = vpop.xlane.xlu0 %2876
        %2878 = vadd.xlane.f32.xlu0 %v2867
        %v2879 = vpop.xlane.xlu0 %2878
        %2880 = vadd.xlane.f32.xlu0 %v2868
        %v2881 = vpop.xlane.xlu0 %2880
        %2882 = vadd.xlane.f32.xlu0 %v2869
        %v2883 = vpop.xlane.xlu0 %2882
        %2884 = vadd.xlane.f32.xlu0 %v2870
        %v2885 = vpop.xlane.xlu0 %2884
        %2886 = vadd.xlane.f32.xlu0 %v2871
        %v2887 = vpop.xlane.xlu0 %2886
        %v2888 = vmul.f32 %v2873, %v570
        %v2889 = vmul.f32 %v2875, %v570
        %v2890 = vmul.f32 %v2877, %v570
        %v2891 = vmul.f32 %v2879, %v570
        %v2892 = vmul.f32 %v2881, %v570
        %v2893 = vmul.f32 %v2883, %v570
        %v2894 = vmul.f32 %v2885, %v570
        %v2895 = vmul.f32 %v2887, %v570
        %v2896 = vadd.f32 %v2888, 1e-05
        %v2897 = vadd.f32 %v2889, 1e-05
        %v2898 = vadd.f32 %v2890, 1e-05
        %v2899 = vadd.f32 %v2891, 1e-05
        %v2900 = vadd.f32 %v2892, 1e-05
        %v2901 = vadd.f32 %v2893, 1e-05
        %v2902 = vadd.f32 %v2894, 1e-05
        %v2903 = vadd.f32 %v2895, 1e-05
        %v2904 = vrsqrt.pop %v2896
        %v2905 = vrsqrt.pop %v2897
        %v2906 = vrsqrt.pop %v2898
        %v2907 = vrsqrt.pop %v2899
        %v2908 = vrsqrt.pop %v2900
        %v2909 = vrsqrt.pop %v2901
        %v2910 = vrsqrt.pop %v2902
        %v2911 = vrsqrt.pop %v2903
        %v2912 = vmul.f32 %v2856, %v2904
        %v2913 = vmul.f32 %v2857, %v2905
        %v2914 = vmul.f32 %v2858, %v2906
        %v2915 = vmul.f32 %v2859, %v2907
        %v2916 = vmul.f32 %v2860, %v2908
        %v2917 = vmul.f32 %v2861, %v2909
        %v2918 = vmul.f32 %v2862, %v2910
        %v2919 = vmul.f32 %v2863, %v2911
        %v2920 = vld [vmem:[%s7] sm:$0x1]
        %v2922 = vlaneseq
        %v2923 = vshrl.u32 %v2922, 7
        %v2924 = vsub.s32 0, %v2923
        %v2925 = vrot.slane %v2920, %v2924
        %v2927 = vmul.f32 %v2912, %v2925
        %v2928 = vmul.f32 %v2913, %v2925
        %v2929 = vmul.f32 %v2914, %v2925
        %v2930 = vmul.f32 %v2915, %v2925
        %v2931 = vmul.f32 %v2916, %v2925
        %v2932 = vmul.f32 %v2917, %v2925
        %v2933 = vmul.f32 %v2918, %v2925
        %v2934 = vmul.f32 %v2919, %v2925
        %v2935 = vld [vmem:[%s8] sm:$0x1]
        %v2937 = vlaneseq
        %v2938 = vshrl.u32 %v2937, 7
        %v2939 = vsub.s32 0, %v2938
        %v2940 = vrot.slane %v2935, %v2939
        %v2942 = vadd.f32 %v2927, %v2940
        %v2943 = vadd.f32 %v2928, %v2940
        %v2944 = vadd.f32 %v2929, %v2940
        %v2945 = vadd.f32 %v2930, %v2940
        %v2946 = vadd.f32 %v2931, %v2940
        %v2947 = vadd.f32 %v2932, %v2940
        %v2948 = vadd.f32 %v2933, %v2940
        %v2949 = vadd.f32 %v2934, %v2940
        %v2950 = vpack.c.bf16 %v2943, %v2942
        %v2951 = vpack.c.bf16 %v2945, %v2944
        %v2952 = vpack.c.bf16 %v2947, %v2946
        %v2953 = vpack.c.bf16 %v2949, %v2948
        %v2954 = vld [vmem:[#allocation11] sm:$0xff]
        %v2955 = vld [vmem:[#allocation11 + $0x8] sm:$0xff]
        %v2956 = vld [vmem:[#allocation11 + $0x10] sm:$0xff]
        %v2957 = vld [vmem:[#allocation11 + $0x18] sm:$0xff]
        %v2958 = vld [vmem:[#allocation11 + $0x20] sm:$0xff]
        %v2959 = vld [vmem:[#allocation11 + $0x28] sm:$0xff]
        %v2960 = vld [vmem:[#allocation11 + $0x30] sm:$0xff]
        %v2961 = vld [vmem:[#allocation11 + $0x38] sm:$0xff]
        %v2962 = vld [vmem:[#allocation11 + $0x40] sm:$0xff]
        %v2963 = vld [vmem:[#allocation11 + $0x48] sm:$0xff]
        %v2964 = vld [vmem:[#allocation11 + $0x50] sm:$0xff]
        %v2965 = vld [vmem:[#allocation11 + $0x58] sm:$0xff]
        %v2966 = vld [vmem:[#allocation11 + $0x60] sm:$0xff]
        %v2967 = vld [vmem:[#allocation11 + $0x68] sm:$0xff]
        %v2968 = vld [vmem:[#allocation11 + $0x70] sm:$0xff]
        %v2969 = vld [vmem:[#allocation11 + $0x78] sm:$0xff]
        %v2970 = vld [vmem:[%s10] sm:$0x3]
        %v2972 = vlaneseq
        %v2973 = vshrl.u32 %v2972, 7
        %v2974 = vsub.s32 0, %v2973
        %v2975 = vrot.slane %v2970, %v2974
        %v2976 = vlaneseq
        %v2977 = vshrl.u32 %v2976, 7
        %v2978 = vsub.s32 1, %v2977
        %v2979 = vrot.slane %v2970, %v2978
        %v2998 = vunpack.c.l.b16 %v2954
        %v2999 = vunpack.c.h.b16 %v2954
        %v3000 = vunpack.c.l.b16 %v2955
        %v3001 = vunpack.c.h.b16 %v2955
        %v3002 = vunpack.c.l.b16 %v2956
        %v3003 = vunpack.c.h.b16 %v2956
        %v3004 = vunpack.c.l.b16 %v2957
        %v3005 = vunpack.c.h.b16 %v2957
        %v3006 = vunpack.c.l.b16 %v2958
        %v3007 = vunpack.c.h.b16 %v2958
        %v3008 = vunpack.c.l.b16 %v2959
        %v3009 = vunpack.c.h.b16 %v2959
        %v3010 = vunpack.c.l.b16 %v2960
        %v3011 = vunpack.c.h.b16 %v2960
        %v3012 = vunpack.c.l.b16 %v2961
        %v3013 = vunpack.c.h.b16 %v2961
        %v3014 = vunpack.c.l.b16 %v2962
        %v3015 = vunpack.c.h.b16 %v2962
        %v3016 = vunpack.c.l.b16 %v2963
        %v3017 = vunpack.c.h.b16 %v2963
        %v3018 = vunpack.c.l.b16 %v2964
        %v3019 = vunpack.c.h.b16 %v2964
        %v3020 = vunpack.c.l.b16 %v2965
        %v3021 = vunpack.c.h.b16 %v2965
        %v3022 = vunpack.c.l.b16 %v2966
        %v3023 = vunpack.c.h.b16 %v2966
        %v3024 = vunpack.c.l.b16 %v2967
        %v3025 = vunpack.c.h.b16 %v2967
        %v3026 = vunpack.c.l.b16 %v2968
        %v3027 = vunpack.c.h.b16 %v2968
        %v3028 = vunpack.c.l.b16 %v2969
        %v3029 = vunpack.c.h.b16 %v2969
        %v3030 = vpack.c.b16 %v3000, %v2998
        %v3031 = vpack.c.b16 %v3001, %v2999
        %v3032 = vpack.c.b16 %v3004, %v3002
        %v3033 = vpack.c.b16 %v3005, %v3003
        %v3034 = vpack.c.b16 %v3008, %v3006
        %v3035 = vpack.c.b16 %v3009, %v3007
        %v3036 = vpack.c.b16 %v3012, %v3010
        %v3037 = vpack.c.b16 %v3013, %v3011
        %v3038 = vpack.c.b16 %v3016, %v3014
        %v3039 = vpack.c.b16 %v3017, %v3015
        %v3040 = vpack.c.b16 %v3020, %v3018
        %v3041 = vpack.c.b16 %v3021, %v3019
        %v3042 = vpack.c.b16 %v3024, %v3022
        %v3043 = vpack.c.b16 %v3025, %v3023
        %v3044 = vpack.c.b16 %v3028, %v3026
        %v3045 = vpack.c.b16 %v3029, %v3027
        %3062 = vmatprep.subr.bf16.mxu0 %v3045
        %3063 = vmatpush1.bf16.msra.mxu0 %v3044
        %3064 = vmatprep.subr.bf16.mxu0 %v3043
        %3065 = vmatpush1.bf16.msra.mxu0 %v3042
        %3066 = vmatprep.subr.bf16.mxu0 %v3041
        %3067 = vmatpush1.bf16.msra.mxu0 %v3040
        %3068 = vmatprep.subr.bf16.mxu0 %v3039
        %3069 = vmatpush1.bf16.msra.mxu0 %v3038
        %3070 = vmatprep.subr.bf16.mxu0 %v3037
        %3071 = vmatpush1.bf16.msra.mxu0 %v3036
        %3072 = vmatprep.subr.bf16.mxu0 %v3035
        %3073 = vmatpush1.bf16.msra.mxu0 %v3034
        %3074 = vmatprep.subr.bf16.mxu0 %v3033
        %3075 = vmatpush1.bf16.msra.mxu0 %v3032
        %3076 = vmatprep.subr.bf16.mxu0 %v3031
        %3077 = vmatpush1.bf16.msra.mxu0 %v3030
        %3078 = vmatprep.subr.bf16.mxu0 0
        %3079 = vmatpush2.bf16.msra.mxu0 0
        %3080 = vmatprep.subr.bf16.mxu0 0
        %3081 = vmatpush2.bf16.msra.mxu0 0
        %3082 = vmatprep.subr.bf16.mxu0 0
        %3083 = vmatpush2.bf16.msra.mxu0 0
        %3084 = vmatprep.subr.bf16.mxu0 0
        %3085 = vmatpush2.bf16.msra.mxu0 0
        %3086 = vmatprep.subr.bf16.mxu0 0
        %3087 = vmatpush2.bf16.msra.mxu0 0
        %3088 = vmatprep.subr.bf16.mxu0 0
        %3089 = vmatpush2.bf16.msra.mxu0 0
        %3090 = vmatprep.subr.bf16.mxu0 0
        %3091 = vmatpush2.bf16.msra.mxu0 0
        %3092 = vmatprep.subr.bf16.mxu0 0
        %3093 = vmatpush2.bf16.msra.mxu0 0
        %3094 = vmatprep.mubr.bf16.mxu0 0
        %3095 = vmatmul.mubr.bf16.gmra.mxu0 %v2950
        %v3096 = vpop.f32.mrf.mxu0
        %v3097 = vadd.f32 %v2975, %v3096
        %v3098 = vpop.f32.mrf.mxu0
        %v3099 = vadd.f32 %v2979, %v3098
        %v3100 = vpop.f32.mrf.mxu0
        %v3101 = vadd.f32 %v2975, %v3100
        %v3102 = vpop.f32.mrf.mxu0
        %v3103 = vadd.f32 %v2979, %v3102
        %3104 = vmatprep.mubr.bf16.mxu0 0
        %3105 = vmatmul.mubr.bf16.gmra.mxu0 %v2951
        %v3106 = vpop.f32.mrf.mxu0
        %v3107 = vadd.f32 %v2975, %v3106
        %v3108 = vpop.f32.mrf.mxu0
        %v3109 = vadd.f32 %v2979, %v3108
        %v3110 = vpop.f32.mrf.mxu0
        %v3111 = vadd.f32 %v2975, %v3110
        %v3112 = vpop.f32.mrf.mxu0
        %v3113 = vadd.f32 %v2979, %v3112
        %3114 = vmatprep.mubr.bf16.mxu0 0
        %3115 = vmatmul.mubr.bf16.gmra.mxu0 %v2952
        %v3116 = vpop.f32.mrf.mxu0
        %v3117 = vadd.f32 %v2975, %v3116
        %v3118 = vpop.f32.mrf.mxu0
        %v3119 = vadd.f32 %v2979, %v3118
        %v3120 = vpop.f32.mrf.mxu0
        %v3121 = vadd.f32 %v2975, %v3120
        %v3122 = vpop.f32.mrf.mxu0
        %v3123 = vadd.f32 %v2979, %v3122
        %3124 = vmatprep.mubr.bf16.mxu0 0
        %3125 = vmatmul.mubr.bf16.gmra.mxu0 %v2953
        %v3126 = vpop.f32.mrf.mxu0
        %v3127 = vadd.f32 %v2975, %v3126
        %v3128 = vpop.f32.mrf.mxu0
        %v3129 = vadd.f32 %v2979, %v3128
        %v3130 = vpop.f32.mrf.mxu0
        %v3131 = vadd.f32 %v2975, %v3130
        %v3132 = vpop.f32.mrf.mxu0
        %v3133 = vadd.f32 %v2979, %v3132
        %3134 = vdwg.mxu0
        %v3135 = vmul.f32 %v3097, 1.702
        %v3136 = vmul.f32 %v3099, 1.702
        %v3137 = vmul.f32 %v3101, 1.702
        %v3138 = vmul.f32 %v3103, 1.702
        %v3139 = vmul.f32 %v3107, 1.702
        %v3140 = vmul.f32 %v3109, 1.702
        %v3141 = vmul.f32 %v3111, 1.702
        %v3142 = vmul.f32 %v3113, 1.702
        %v3143 = vmul.f32 %v3117, 1.702
        %v3144 = vmul.f32 %v3119, 1.702
        %v3145 = vmul.f32 %v3121, 1.702
        %v3146 = vmul.f32 %v3123, 1.702
        %v3147 = vmul.f32 %v3127, 1.702
        %v3148 = vmul.f32 %v3129, 1.702
        %v3149 = vmul.f32 %v3131, 1.702
        %v3150 = vmul.f32 %v3133, 1.702
        %v3151 = vxor.u32 %v3135, 2147483648
        %v3152 = vxor.u32 %v3136, 2147483648
        %v3153 = vxor.u32 %v3137, 2147483648
        %v3154 = vxor.u32 %v3138, 2147483648
        %v3155 = vxor.u32 %v3139, 2147483648
        %v3156 = vxor.u32 %v3140, 2147483648
        %v3157 = vxor.u32 %v3141, 2147483648
        %v3158 = vxor.u32 %v3142, 2147483648
        %v3159 = vxor.u32 %v3143, 2147483648
        %v3160 = vxor.u32 %v3144, 2147483648
        %v3161 = vxor.u32 %v3145, 2147483648
        %v3162 = vxor.u32 %v3146, 2147483648
        %v3163 = vxor.u32 %v3147, 2147483648
        %v3164 = vxor.u32 %v3148, 2147483648
        %v3165 = vxor.u32 %v3149, 2147483648
        %v3166 = vxor.u32 %v3150, 2147483648
        %v3167 = vmul.f32 %v3151, 1.442695
        %v3168 = vpow.pop %v3167
        %v3169 = vmul.f32 %v3152, 1.442695
        %v3170 = vpow.pop %v3169
        %v3171 = vmul.f32 %v3153, 1.442695
        %v3172 = vpow.pop %v3171
        %v3173 = vmul.f32 %v3154, 1.442695
        %v3174 = vpow.pop %v3173
        %v3175 = vmul.f32 %v3155, 1.442695
        %v3176 = vpow.pop %v3175
        %v3177 = vmul.f32 %v3156, 1.442695
        %v3178 = vpow.pop %v3177
        %v3179 = vmul.f32 %v3157, 1.442695
        %v3180 = vpow.pop %v3179
        %v3181 = vmul.f32 %v3158, 1.442695
        %v3182 = vpow.pop %v3181
        %v3183 = vmul.f32 %v3159, 1.442695
        %v3184 = vpow.pop %v3183
        %v3185 = vmul.f32 %v3160, 1.442695
        %v3186 = vpow.pop %v3185
        %v3187 = vmul.f32 %v3161, 1.442695
        %v3188 = vpow.pop %v3187
        %v3189 = vmul.f32 %v3162, 1.442695
        %v3190 = vpow.pop %v3189
        %v3191 = vmul.f32 %v3163, 1.442695
        %v3192 = vpow.pop %v3191
        %v3193 = vmul.f32 %v3164, 1.442695
        %v3194 = vpow.pop %v3193
        %v3195 = vmul.f32 %v3165, 1.442695
        %v3196 = vpow.pop %v3195
        %v3197 = vmul.f32 %v3166, 1.442695
        %v3198 = vpow.pop %v3197
        %v3199 = vadd.f32 %v3168, 1.0
        %v3200 = vadd.f32 %v3170, 1.0
        %v3201 = vadd.f32 %v3172, 1.0
        %v3202 = vadd.f32 %v3174, 1.0
        %v3203 = vadd.f32 %v3176, 1.0
        %v3204 = vadd.f32 %v3178, 1.0
        %v3205 = vadd.f32 %v3180, 1.0
        %v3206 = vadd.f32 %v3182, 1.0
        %v3207 = vadd.f32 %v3184, 1.0
        %v3208 = vadd.f32 %v3186, 1.0
        %v3209 = vadd.f32 %v3188, 1.0
        %v3210 = vadd.f32 %v3190, 1.0
        %v3211 = vadd.f32 %v3192, 1.0
        %v3212 = vadd.f32 %v3194, 1.0
        %v3213 = vadd.f32 %v3196, 1.0
        %v3214 = vadd.f32 %v3198, 1.0
        %v3215 = vrcp.pop %v3199
        %v3216 = vmul.f32 1.0, %v3215
        %v3217 = vrcp.pop %v3200
        %v3218 = vmul.f32 1.0, %v3217
        %v3219 = vrcp.pop %v3201
        %v3220 = vmul.f32 1.0, %v3219
        %v3221 = vrcp.pop %v3202
        %v3222 = vmul.f32 1.0, %v3221
        %v3223 = vrcp.pop %v3203
        %v3224 = vmul.f32 1.0, %v3223
        %v3225 = vrcp.pop %v3204
        %v3226 = vmul.f32 1.0, %v3225
        %v3227 = vrcp.pop %v3205
        %v3228 = vmul.f32 1.0, %v3227
        %v3229 = vrcp.pop %v3206
        %v3230 = vmul.f32 1.0, %v3229
        %v3231 = vrcp.pop %v3207
        %v3232 = vmul.f32 1.0, %v3231
        %v3233 = vrcp.pop %v3208
        %v3234 = vmul.f32 1.0, %v3233
        %v3235 = vrcp.pop %v3209
        %v3236 = vmul.f32 1.0, %v3235
        %v3237 = vrcp.pop %v3210
        %v3238 = vmul.f32 1.0, %v3237
        %v3239 = vrcp.pop %v3211
        %v3240 = vmul.f32 1.0, %v3239
        %v3241 = vrcp.pop %v3212
        %v3242 = vmul.f32 1.0, %v3241
        %v3243 = vrcp.pop %v3213
        %v3244 = vmul.f32 1.0, %v3243
        %v3245 = vrcp.pop %v3214
        %v3246 = vmul.f32 1.0, %v3245
        %v3247 = vmul.f32 %v3097, %v3216
        %v3248 = vmul.f32 %v3099, %v3218
        %v3249 = vmul.f32 %v3101, %v3220
        %v3250 = vmul.f32 %v3103, %v3222
        %v3251 = vmul.f32 %v3107, %v3224
        %v3252 = vmul.f32 %v3109, %v3226
        %v3253 = vmul.f32 %v3111, %v3228
        %v3254 = vmul.f32 %v3113, %v3230
        %v3255 = vmul.f32 %v3117, %v3232
        %v3256 = vmul.f32 %v3119, %v3234
        %v3257 = vmul.f32 %v3121, %v3236
        %v3258 = vmul.f32 %v3123, %v3238
        %v3259 = vmul.f32 %v3127, %v3240
        %v3260 = vmul.f32 %v3129, %v3242
        %v3261 = vmul.f32 %v3131, %v3244
        %v3262 = vmul.f32 %v3133, %v3246
        %v3263 = vpack.c.bf16 %v3249, %v3247
        %v3264 = vpack.c.bf16 %v3250, %v3248
        %v3265 = vpack.c.bf16 %v3253, %v3251
        %v3266 = vpack.c.bf16 %v3254, %v3252
        %v3267 = vpack.c.bf16 %v3257, %v3255
        %v3268 = vpack.c.bf16 %v3258, %v3256
        %v3269 = vpack.c.bf16 %v3261, %v3259
        %v3270 = vpack.c.bf16 %v3262, %v3260
        %v3271 = vld [vmem:[#allocation13] sm:$0xf]
        %v3272 = vld [vmem:[#allocation13 + $0x4] sm:$0xf]
        %v3273 = vld [vmem:[#allocation13 + $0x8] sm:$0xf]
        %v3274 = vld [vmem:[#allocation13 + $0xc] sm:$0xf]
        %v3275 = vld [vmem:[#allocation13 + $0x10] sm:$0xf]
        %v3276 = vld [vmem:[#allocation13 + $0x14] sm:$0xf]
        %v3277 = vld [vmem:[#allocation13 + $0x18] sm:$0xf]
        %v3278 = vld [vmem:[#allocation13 + $0x1c] sm:$0xf]
        %v3279 = vld [vmem:[#allocation13 + $0x20] sm:$0xf]
        %v3280 = vld [vmem:[#allocation13 + $0x24] sm:$0xf]
        %v3281 = vld [vmem:[#allocation13 + $0x28] sm:$0xf]
        %v3282 = vld [vmem:[#allocation13 + $0x2c] sm:$0xf]
        %v3283 = vld [vmem:[#allocation13 + $0x30] sm:$0xf]
        %v3284 = vld [vmem:[#allocation13 + $0x34] sm:$0xf]
        %v3285 = vld [vmem:[#allocation13 + $0x38] sm:$0xf]
        %v3286 = vld [vmem:[#allocation13 + $0x3c] sm:$0xf]
        %v3287 = vld [vmem:[#allocation13 + $0x40] sm:$0xf]
        %v3288 = vld [vmem:[#allocation13 + $0x44] sm:$0xf]
        %v3289 = vld [vmem:[#allocation13 + $0x48] sm:$0xf]
        %v3290 = vld [vmem:[#allocation13 + $0x4c] sm:$0xf]
        %v3291 = vld [vmem:[#allocation13 + $0x50] sm:$0xf]
        %v3292 = vld [vmem:[#allocation13 + $0x54] sm:$0xf]
        %v3293 = vld [vmem:[#allocation13 + $0x58] sm:$0xf]
        %v3294 = vld [vmem:[#allocation13 + $0x5c] sm:$0xf]
        %v3295 = vld [vmem:[#allocation13 + $0x60] sm:$0xf]
        %v3296 = vld [vmem:[#allocation13 + $0x64] sm:$0xf]
        %v3297 = vld [vmem:[#allocation13 + $0x68] sm:$0xf]
        %v3298 = vld [vmem:[#allocation13 + $0x6c] sm:$0xf]
        %v3299 = vld [vmem:[#allocation13 + $0x70] sm:$0xf]
        %v3300 = vld [vmem:[#allocation13 + $0x74] sm:$0xf]
        %v3301 = vld [vmem:[#allocation13 + $0x78] sm:$0xf]
        %v3302 = vld [vmem:[#allocation13 + $0x7c] sm:$0xf]
        %v3303 = vld [vmem:[%s12] sm:$0x1]
        %v3305 = vlaneseq
        %v3306 = vshrl.u32 %v3305, 7
        %v3307 = vsub.s32 0, %v3306
        %v3308 = vrot.slane %v3303, %v3307
        %v3342 = vunpack.c.l.b16 %v3271
        %v3343 = vunpack.c.l.b16 %v3272
        %v3344 = vunpack.c.l.b16 %v3273
        %v3345 = vunpack.c.l.b16 %v3274
        %v3346 = vunpack.c.l.b16 %v3275
        %v3347 = vunpack.c.l.b16 %v3276
        %v3348 = vunpack.c.l.b16 %v3277
        %v3349 = vunpack.c.l.b16 %v3278
        %v3350 = vunpack.c.l.b16 %v3279
        %v3351 = vunpack.c.l.b16 %v3280
        %v3352 = vunpack.c.l.b16 %v3281
        %v3353 = vunpack.c.l.b16 %v3282
        %v3354 = vunpack.c.l.b16 %v3283
        %v3355 = vunpack.c.l.b16 %v3284
        %v3356 = vunpack.c.l.b16 %v3285
        %v3357 = vunpack.c.l.b16 %v3286
        %v3358 = vunpack.c.l.b16 %v3287
        %v3359 = vunpack.c.l.b16 %v3288
        %v3360 = vunpack.c.l.b16 %v3289
        %v3361 = vunpack.c.l.b16 %v3290
        %v3362 = vunpack.c.l.b16 %v3291
        %v3363 = vunpack.c.l.b16 %v3292
        %v3364 = vunpack.c.l.b16 %v3293
        %v3365 = vunpack.c.l.b16 %v3294
        %v3366 = vunpack.c.l.b16 %v3295
        %v3367 = vunpack.c.l.b16 %v3296
        %v3368 = vunpack.c.l.b16 %v3297
        %v3369 = vunpack.c.l.b16 %v3298
        %v3370 = vunpack.c.l.b16 %v3299
        %v3371 = vunpack.c.l.b16 %v3300
        %v3372 = vunpack.c.l.b16 %v3301
        %v3373 = vunpack.c.l.b16 %v3302
        %v3374 = vpack.c.b16 %v3343, %v3342
        %v3375 = vpack.c.b16 %v3345, %v3344
        %v3376 = vpack.c.b16 %v3347, %v3346
        %v3377 = vpack.c.b16 %v3349, %v3348
        %v3378 = vpack.c.b16 %v3351, %v3350
        %v3379 = vpack.c.b16 %v3353, %v3352
        %v3380 = vpack.c.b16 %v3355, %v3354
        %v3381 = vpack.c.b16 %v3357, %v3356
        %v3382 = vpack.c.b16 %v3359, %v3358
        %v3383 = vpack.c.b16 %v3361, %v3360
        %v3384 = vpack.c.b16 %v3363, %v3362
        %v3385 = vpack.c.b16 %v3365, %v3364
        %v3386 = vpack.c.b16 %v3367, %v3366
        %v3387 = vpack.c.b16 %v3369, %v3368
        %v3388 = vpack.c.b16 %v3371, %v3370
        %v3389 = vpack.c.b16 %v3373, %v3372
        %3406 = vmatprep.subr.bf16.mxu0 0
        %3407 = vmatpush1.bf16.msra.mxu0 %v3381
        %3408 = vmatprep.subr.bf16.mxu0 0
        %3409 = vmatpush1.bf16.msra.mxu0 %v3380
        %3410 = vmatprep.subr.bf16.mxu0 0
        %3411 = vmatpush1.bf16.msra.mxu0 %v3379
        %3412 = vmatprep.subr.bf16.mxu0 0
        %3413 = vmatpush1.bf16.msra.mxu0 %v3378
        %3414 = vmatprep.subr.bf16.mxu0 0
        %3415 = vmatpush1.bf16.msra.mxu0 %v3377
        %3416 = vmatprep.subr.bf16.mxu0 0
        %3417 = vmatpush1.bf16.msra.mxu0 %v3376
        %3418 = vmatprep.subr.bf16.mxu0 0
        %3419 = vmatpush1.bf16.msra.mxu0 %v3375
        %3420 = vmatprep.subr.bf16.mxu0 0
        %3421 = vmatpush1.bf16.msra.mxu0 %v3374
        %3422 = vmatprep.subr.bf16.mxu0 0
        %3423 = vmatpush2.bf16.msra.mxu0 %v3389
        %3424 = vmatprep.subr.bf16.mxu0 0
        %3425 = vmatpush2.bf16.msra.mxu0 %v3388
        %3426 = vmatprep.subr.bf16.mxu0 0
        %3427 = vmatpush2.bf16.msra.mxu0 %v3387
        %3428 = vmatprep.subr.bf16.mxu0 0
        %3429 = vmatpush2.bf16.msra.mxu0 %v3386
        %3430 = vmatprep.subr.bf16.mxu0 0
        %3431 = vmatpush2.bf16.msra.mxu0 %v3385
        %3432 = vmatprep.subr.bf16.mxu0 0
        %3433 = vmatpush2.bf16.msra.mxu0 %v3384
        %3434 = vmatprep.subr.bf16.mxu0 0
        %3435 = vmatpush2.bf16.msra.mxu0 %v3383
        %3436 = vmatprep.subr.bf16.mxu0 0
        %3437 = vmatpush2.bf16.msra.mxu0 %v3382
        %3438 = vmatprep.mubr.bf16.mxu0 %v3264
        %3439 = vmatmul.mubr.bf16.gmra.mxu0 %v3263
        %v3440 = vpop.f32.mrf.mxu0
        %v3441 = vadd.f32 %v3308, %v3440
        %v3442 = vpop.f32.mrf.mxu0
        %v3443 = vpop.f32.mrf.mxu0
        %v3444 = vadd.f32 %v3308, %v3443
        %v3445 = vpop.f32.mrf.mxu0
        %3446 = vmatprep.mubr.bf16.mxu0 %v3266
        %3447 = vmatmul.mubr.bf16.gmra.mxu0 %v3265
        %v3448 = vpop.f32.mrf.mxu0
        %v3449 = vadd.f32 %v3308, %v3448
        %v3450 = vpop.f32.mrf.mxu0
        %v3451 = vpop.f32.mrf.mxu0
        %v3452 = vadd.f32 %v3308, %v3451
        %v3453 = vpop.f32.mrf.mxu0
        %3454 = vmatprep.mubr.bf16.mxu0 %v3268
        %3455 = vmatmul.mubr.bf16.gmra.mxu0 %v3267
        %v3456 = vpop.f32.mrf.mxu0
        %v3457 = vadd.f32 %v3308, %v3456
        %v3458 = vpop.f32.mrf.mxu0
        %v3459 = vpop.f32.mrf.mxu0
        %v3460 = vadd.f32 %v3308, %v3459
        %v3461 = vpop.f32.mrf.mxu0
        %3462 = vmatprep.mubr.bf16.mxu0 %v3270
        %3463 = vmatmul.mubr.bf16.gmra.mxu0 %v3269
        %v3464 = vpop.f32.mrf.mxu0
        %v3465 = vadd.f32 %v3308, %v3464
        %v3466 = vpop.f32.mrf.mxu0
        %v3467 = vpop.f32.mrf.mxu0
        %v3468 = vadd.f32 %v3308, %v3467
        %v3469 = vpop.f32.mrf.mxu0
        %3470 = vdwg.mxu0
        %v3471 = vadd.f32 %v2824, %v3441
        %v3472 = vadd.f32 %v2825, %v3444
        %v3473 = vadd.f32 %v2826, %v3449
        %v3474 = vadd.f32 %v2827, %v3452
        %v3475 = vadd.f32 %v2828, %v3457
        %v3476 = vadd.f32 %v2829, %v3460
        %v3477 = vadd.f32 %v2830, %v3465
        %v3478 = vadd.f32 %v2831, %v3468
        %3479 = vst [vmem:[%s542] sm:$0xff] %v3471
        %3480 = vst [vmem:[%s542 + $0x8] sm:$0xff] %v3472
        %3481 = vst [vmem:[%s542 + $0x10] sm:$0xff] %v3473
        %3482 = vst [vmem:[%s542 + $0x18] sm:$0xff] %v3474
        %3483 = vst [vmem:[%s542 + $0x20] sm:$0xff] %v3475
        %3484 = vst [vmem:[%s542 + $0x28] sm:$0xff] %v3476
        %3485 = vst [vmem:[%s542 + $0x30] sm:$0xff] %v3477
        %3486 = vst [vmem:[%s542 + $0x38] sm:$0xff] %v3478
        %s3487 = sand.u32 %s319, 1
        %s3488 = scalar_lea.sflag [#allocation4], %s3487
        %s3489 = sand.u32 %s319, 1
        %s3490 = smul.addr %s3489, 64
        %s3491 = scalar_lea.vmem [#allocation14], %s3490
        // Predicated region
        $region101: #{tpu_custom_call.1} parent=71 // pred_check
          %p3492 = pneg %p329
        $region102: #{tpu_custom_call.1} parent=71 // pred_check_branch
          %3494 = sbr.rel (%p3492) target = $region104
        $region103: #{tpu_custom_call.1} parent=71 // pred_region
          %s3495 = smul.u32 2, %s33
          %s3497 = ssub.s32 1024, 1024
          %3498 = vsyncadd %s3488, %s3497
          %s3499 = smul.addr %s3495, 4
          %s3500 = smul.addr %s3499, 128
          %s3501 = scalar_lea.hbm %s13, %s3500
          %s3502 = sshll.u32 %s3491, 4
          %s3503 = int_to_ptr.vmem [resolvable:$true] %s3502
          %3508 = dma.vmem_to_hbm [thread:$0]  %s3503, 1024, %s3501, %s3488, 128, 128, 8
        $region104: #{tpu_custom_call.1} parent=71 // pred_fallthru
          _
      $region72: #{tpu_custom_call.1} parent=5 // pred_fallthru
        _
      %p3509 = scmp.le.s32.totalorder 2, %s28
      // Predicated region
      $region105: #{tpu_custom_call.1} parent=5 // pred_check
        %p3510 = pneg %p3509
      $region106: #{tpu_custom_call.1} parent=5 // pred_check_branch
        %3512 = sbr.rel (%p3510) target = $region108
      $region107: #{tpu_custom_call.1} parent=5 // pred_region
        %s3513 = ssub.s32 %s28, 2
        // Predicated region
        $region109: #{tpu_custom_call.1} parent=107 // pred_check
          %p3514 = pneg %p335
        $region110: #{tpu_custom_call.1} parent=107 // pred_check_branch
          %3516 = sbr.rel (%p3514) target = $region112
        $region111: #{tpu_custom_call.1} parent=107 // pred_region
          %s3517 = sand.u32 %s320, 1
          %s3518 = scalar_lea.sflag [#allocation4], %s3517
          %s3519 = sand.u32 %s320, 1
          %s3520 = smul.addr %s3519, 64
          %s3521 = scalar_lea.vmem [#allocation14], %s3520
          %3522 = dma.done %s3518, 1024
        $region112: #{tpu_custom_call.1} parent=107 // pred_fallthru
          _
      $region108: #{tpu_custom_call.1} parent=5 // pred_fallthru
        _
    $region6: #{tpu_custom_call.1} parent=1 // loop_footer
      %s32 = sadd.s32 1, %s28
    $region7: #{tpu_custom_call.1} parent=1 // loop_footer_branch
      %27 = sbr.rel target = $region3
    $region8: #{tpu_custom_call.1} parent=1 // loop_exit
      _
    %3523 = vsyncpa [#allocation3], 1
    %s3524 = scalar_lea.sflag [#allocation3], 1
    %3525 = vsyncpa %s3524, 1
    %3526 = vsyncpa [#allocation6], 1
    %3527 = vsyncpa [#allocation9], 1
    %3528 = vsyncpa [#allocation12], 1
    %3529 = vsyncpa [#allocation4], 1
    %s3530 = scalar_lea.sflag [#allocation4], 1
    %3531 = vsyncpa %s3530, 1

// kernel: tpu_custom_call.1
$region0: #{tpu_custom_call.1}
  #allocation0 [shape = 'u32[]', space=smem, size = 0x4, offset = 0x4, fixed_abs, tag = 'smem constant byte address 0x4 - core index']
  #allocation1 [shape = 'u32[144,128]{1,0:T(1,128)}', space=vmem, size = 0x12000, scoped, tag = 'internal scratch']
  %s0 = inlined_call_operand.hbm [shape: f32[4,32,128], index: 0, kind: input, shape index: {}]
  %s1 = inlined_call_operand.hbm [shape: f32[1,128], index: 1, kind: input, shape index: {}]
  %s2 = inlined_call_operand.hbm [shape: f32[1,128], index: 2, kind: input, shape index: {}]
  %s3 = inlined_call_operand.hbm [shape: bf16[128,384], index: 3, kind: input, shape index: {}]
  %s4 = inlined_call_operand.vmem [shape: f32[1,384], index: 4, kind: input, shape index: {}]
  %s5 = inlined_call_operand.hbm [shape: bf16[128,128], index: 5, kind: input, shape index: {}]
  %s6 = inlined_call_operand.vmem [shape: f32[1,128], index: 6, kind: input, shape index: {}]
  %s7 = inlined_call_operand.vmem [shape: f32[1,128], index: 7, kind: input, shape index: {}]
  %s8 = inlined_call_operand.vmem [shape: f32[1,128], index: 8, kind: input, shape index: {}]
  %s9 = inlined_call_operand.hbm [shape: bf16[128,256], index: 9, kind: input, shape index: {}]
  %s10 = inlined_call_operand.vmem [shape: f32[1,256], index: 10, kind: input, shape index: {}]
  %s11 = inlined_call_operand.hbm [shape: bf16[256,128], index: 11, kind: input, shape index: {}]
  %s12 = inlined_call_operand.vmem [shape: f32[1,128], index: 12, kind: input, shape index: {}]
  %s13 = inlined_call_operand.hbm [shape: f32[4,32,128], index: 13, kind: output, shape index: {}]
  %s14 = sld [smem:[#allocation0]]
  $region113: #{tpu_custom_call.1} parent=0
    _
  %s16 = ssub.s32 1, %s14
  %s17 = scalar_select 0, %s16, %s14
  $region1: #{tpu_custom_call.1} parent=0
    #allocation2 [shape = 'u8[65536]{0}', space=vmem, size = 0x10000, scoped, tag = 'input window, operand 0']
    #allocation3 [shape = 's32[2]{0}', space=sflag, size = 0x8, scoped, tag = 'scoped memory for tpu_custom_call.1']
    #allocation4 [shape = 's32[2]{0}', space=sflag, size = 0x8, scoped, tag = 'scoped memory for tpu_custom_call.1']
    #allocation5 [shape = 'u8[512]{0}', space=vmem, size = 0x400, scoped, tag = 'input window, operand 1, single buffered']
    #allocation6 [shape = 's32[1]{0}', space=sflag, size = 0x4, scoped, tag = 'scoped memory for tpu_custom_call.1']
    #allocation7 [shape = 'u8[512]{0}', space=vmem, size = 0x400, scoped, tag = 'input window, operand 2, single buffered']
    #allocation8 [shape = 'u8[98304]{0}', space=vmem, size = 0x18000, scoped, tag = 'input window, operand 3, single buffered']
    #allocation9 [shape = 's32[1]{0}', space=sflag, size = 0x4, scoped, tag = 'scoped memory for tpu_custom_call.1']
    #allocation10 [shape = 'u8[32768]{0}', space=vmem, size = 0x8000, scoped, tag = 'input window, operand 5, single buffered']
    #allocation11 [shape = 'u8[65536]{0}', space=vmem, size = 0x10000, scoped, tag = 'input window, operand 9, single buffered']
    #allocation12 [shape = 's32[1]{0}', space=sflag, size = 0x4, scoped, tag = 'scoped memory for tpu_custom_call.1']
    #allocation13 [shape = 'u8[65536]{0}', space=vmem, size = 0x10000, scoped, tag = 'input window, operand 11, single buffered']
    #allocation14 [shape = 'u8[65536]{0}', space=vmem, size = 0x10000, scoped, tag = 'output window, operand 0']
    %18 = vsyncpa [#allocation3], 0
    %s19 = scalar_lea.sflag [#allocation3], 1
    %20 = vsyncpa %s19, 0
    %21 = vsyncpa [#allocation6], 0
    %22 = vsyncpa [#allocation9], 0
    %23 = vsyncpa [#allocation12], 0
    %24 = vsyncpa [#allocation4], 0
    %s25 = scalar_lea.sflag [#allocation4], 1
    %26 = vsyncpa %s25, 0
    loop: start=0, step=1, limit=4
    $region2: #{tpu_custom_call.1} parent=1 // loop_pre_header
      _
    $region3: #{tpu_custom_call.1} parent=1 // loop_header
      %s28 = sphi 0, %s32
      %p29 = scmp.ge.s32.totalorder %s28, 4
      %s38 = sphi 0, %s40
      %s41 = sphi 0, %s38
      %s42 = sphi 0, %s41
      %s58 = sphi 0, %s42
      %s62 = sphi 0, %s62
      %s64 = sphi 0, %s62
      %s65 = sphi 0, %s64
      %s79 = sphi 0, %s65
      %s83 = sphi 0, %s83
      %s85 = sphi 0, %s83
      %s86 = sphi 0, %s85
      %s100 = sphi 0, %s86
      %s104 = sphi 0, %s104
      %s106 = sphi 0, %s104
      %s107 = sphi 0, %s106
      %s121 = sphi 0, %s107
      %s125 = sphi 0, %s125
      %s127 = sphi 0, %s125
      %s128 = sphi 0, %s127
      %s142 = sphi 0, %s128
      %s146 = sphi 0, %s146
      %s148 = sphi 0, %s146
      %s149 = sphi 0, %s148
      %s163 = sphi 0, %s149
      %s167 = sphi 0, %s167
      %s169 = sphi 0, %s167
      %s170 = sphi 0, %s169
      %s184 = sphi 0, %s170
      %s188 = sphi 0, %s188
      %s190 = sphi 0, %s188
      %s191 = sphi 0, %s190
      %s205 = sphi 0, %s191
      %s209 = sphi 0, %s209
      %s211 = sphi 0, %s209
      %s212 = sphi 0, %s211
      %s226 = sphi 0, %s212
      %s230 = sphi 0, %s230
      %s232 = sphi 0, %s230
      %s233 = sphi 0, %s232
      %s247 = sphi 0, %s233
      %s251 = sphi 0, %s251
      %s253 = sphi 0, %s251
      %s254 = sphi 0, %s253
      %s268 = sphi 0, %s254
      %s272 = sphi 0, %s272
      %s274 = sphi 0, %s272
      %s275 = sphi 0, %s274
      %s289 = sphi 0, %s275
      %s293 = sphi 0, %s293
      %s295 = sphi 0, %s293
      %s296 = sphi 0, %s295
      %s310 = sphi 0, %s296
      %s316 = sphi 0, %s318
      %s319 = sphi 0, %s316
      %s320 = sphi 0, %s319
      %s336 = sphi 0, %s320
    $region4: #{tpu_custom_call.1} parent=1 // loop_header_branch
      %31 = sbr.rel (%p29) target = $region8
    $region5: #{tpu_custom_call.1} parent=1 // loop_body
      %s33 = ssub.s32 %s28, 1
      %s34 = ssub.s32 %s28, 2
      %s35 = sadd.s32 %s28, 1
      %s36 = ssub.s32 %s28, %s35
      %p37 = scmp.eq.s32.totalorder %s36, 0
      %s39 = sadd.s32 %s38, 1
      %s40 = scalar_select %p37, %s38, %s39
      %p43 = pneg %p37
      %p44 = scmp.eq.s32.totalorder %s28, 1
      %p45 = por %p43, %p44
      %p46 = scmp.ne.s32.totalorder %s38, %s41
      %p47 = scmp.eq.s32.totalorder %s28, 0
      %p48 = por %p46, %p47
      %p49 = scmp.ne.s32.totalorder %s38, %s41
      %p50 = scmp.eq.s32.totalorder %s33, 1
      %p51 = por %p49, %p50
      %p52 = scmp.ne.s32.totalorder %s41, %s42
      %p53 = scmp.eq.s32.totalorder %s33, 0
      %p54 = por %p52, %p53
      %p55 = scmp.ne.s32.totalorder %s41, %s42
      %p56 = scmp.eq.s32.totalorder %s34, 1
      %p57 = por %p55, %p56
      %p59 = scmp.ne.s32.totalorder %s42, %s58
      %p60 = scmp.eq.s32.totalorder %s34, 0
      %p61 = por %p59, %p60
      %s63 = sadd.s32 %s62, 1
      %p66 = scmp.eq.s32.totalorder %s28, 1
      %p67 = scmp.ne.s32.totalorder %s62, %s64
      %p68 = scmp.eq.s32.totalorder %s28, 0
      %p69 = por %p67, %p68
      %p70 = scmp.ne.s32.totalorder %s62, %s64
      %p71 = scmp.eq.s32.totalorder %s33, 1
      %p72 = por %p70, %p71
      %p73 = scmp.ne.s32.totalorder %s64, %s65
      %p74 = scmp.eq.s32.totalorder %s33, 0
      %p75 = por %p73, %p74
      %p76 = scmp.ne.s32.totalorder %s64, %s65
      %p77 = scmp.eq.s32.totalorder %s34, 1
      %p78 = por %p76, %p77
      %p80 = scmp.ne.s32.totalorder %s65, %s79
      %p81 = scmp.eq.s32.totalorder %s34, 0
      %p82 = por %p80, %p81
      %s84 = sadd.s32 %s83, 1
      %p87 = scmp.eq.s32.totalorder %s28, 1
      %p88 = scmp.ne.s32.totalorder %s83, %s85
      %p89 = scmp.eq.s32.totalorder %s28, 0
      %p90 = por %p88, %p89
      %p91 = scmp.ne.s32.totalorder %s83, %s85
      %p92 = scmp.eq.s32.totalorder %s33, 1
      %p93 = por %p91, %p92
      %p94 = scmp.ne.s32.totalorder %s85, %s86
      %p95 = scmp.eq.s32.totalorder %s33, 0
      %p96 = por %p94, %p95
      %p97 = scmp.ne.s32.totalorder %s85, %s86
      %p98 = scmp.eq.s32.totalorder %s34, 1
      %p99 = por %p97, %p98
      %p101 = scmp.ne.s32.totalorder %s86, %s100
      %p102 = scmp.eq.s32.totalorder %s34, 0
      %p103 = por %p101, %p102
      %s105 = sadd.s32 %s104, 1
      %p108 = scmp.eq.s32.totalorder %s28, 1
      %p109 = scmp.ne.s32.totalorder %s104, %s106
      %p110 = scmp.eq.s32.totalorder %s28, 0
      %p111 = por %p109, %p110
      %p112 = scmp.ne.s32.totalorder %s104, %s106
      %p113 = scmp.eq.s32.totalorder %s33, 1
      %p114 = por %p112, %p113
      %p115 = scmp.ne.s32.totalorder %s106, %s107
      %p116 = scmp.eq.s32.totalorder %s33, 0
      %p117 = por %p115, %p116
      %p118 = scmp.ne.s32.totalorder %s106, %s107
      %p119 = scmp.eq.s32.totalorder %s34, 1
      %p120 = por %p118, %p119
      %p122 = scmp.ne.s32.totalorder %s107, %s121
      %p123 = scmp.eq.s32.totalorder %s34, 0
      %p124 = por %p122, %p123
      %s126 = sadd.s32 %s125, 1
      %p129 = scmp.eq.s32.totalorder %s28, 1
      %p130 = scmp.ne.s32.totalorder %s125, %s127
      %p131 = scmp.eq.s32.totalorder %s28, 0
      %p132 = por %p130, %p131
      %p133 = scmp.ne.s32.totalorder %s125, %s127
      %p134 = scmp.eq.s32.totalorder %s33, 1
      %p135 = por %p133, %p134
      %p136 = scmp.ne.s32.totalorder %s127, %s128
      %p137 = scmp.eq.s32.totalorder %s33, 0
      %p138 = por %p136, %p137
      %p139 = scmp.ne.s32.totalorder %s127, %s128
      %p140 = scmp.eq.s32.totalorder %s34, 1
      %p141 = por %p139, %p140
      %p143 = scmp.ne.s32.totalorder %s128, %s142
      %p144 = scmp.eq.s32.totalorder %s34, 0
      %p145 = por %p143, %p144
      %s147 = sadd.s32 %s146, 1
      %p150 = scmp.eq.s32.totalorder %s28, 1
      %p151 = scmp.ne.s32.totalorder %s146, %s148
      %p152 = scmp.eq.s32.totalorder %s28, 0
      %p153 = por %p151, %p152
      %p154 = scmp.ne.s32.totalorder %s146, %s148
      %p155 = scmp.eq.s32.totalorder %s33, 1
      %p156 = por %p154, %p155
      %p157 = scmp.ne.s32.totalorder %s148, %s149
      %p158 = scmp.eq.s32.totalorder %s33, 0
      %p159 = por %p157, %p158
      %p160 = scmp.ne.s32.totalorder %s148, %s149
      %p161 = scmp.eq.s32.totalorder %s34, 1
      %p162 = por %p160, %p161
      %p164 = scmp.ne.s32.totalorder %s149, %s163
      %p165 = scmp.eq.s32.totalorder %s34, 0
      %p166 = por %p164, %p165
      %s168 = sadd.s32 %s167, 1
      %p171 = scmp.eq.s32.totalorder %s28, 1
      %p172 = scmp.ne.s32.totalorder %s167, %s169
      %p173 = scmp.eq.s32.totalorder %s28, 0
      %p174 = por %p172, %p173
      %p175 = scmp.ne.s32.totalorder %s167, %s169
      %p176 = scmp.eq.s32.totalorder %s33, 1
      %p177 = por %p175, %p176
      %p178 = scmp.ne.s32.totalorder %s169, %s170
      %p179 = scmp.eq.s32.totalorder %s33, 0
      %p180 = por %p178, %p179
      %p181 = scmp.ne.s32.totalorder %s169, %s170
      %p182 = scmp.eq.s32.totalorder %s34, 1
      %p183 = por %p181, %p182
      %p185 = scmp.ne.s32.totalorder %s170, %s184
      %p186 = scmp.eq.s32.totalorder %s34, 0
      %p187 = por %p185, %p186
      %s189 = sadd.s32 %s188, 1
      %p192 = scmp.eq.s32.totalorder %s28, 1
      %p193 = scmp.ne.s32.totalorder %s188, %s190
      %p194 = scmp.eq.s32.totalorder %s28, 0
      %p195 = por %p193, %p194
      %p196 = scmp.ne.s32.totalorder %s188, %s190
      %p197 = scmp.eq.s32.totalorder %s33, 1
      %p198 = por %p196, %p197
      %p199 = scmp.ne.s32.totalorder %s190, %s191
      %p200 = scmp.eq.s32.totalorder %s33, 0
      %p201 = por %p199, %p200
      %p202 = scmp.ne.s32.totalorder %s190, %s191
      %p203 = scmp.eq.s32.totalorder %s34, 1
      %p204 = por %p202, %p203
      %p206 = scmp.ne.s32.totalorder %s191, %s205
      %p207 = scmp.eq.s32.totalorder %s34, 0
      %p208 = por %p206, %p207
      %s210 = sadd.s32 %s209, 1
      %p213 = scmp.eq.s32.totalorder %s28, 1
      %p214 = scmp.ne.s32.totalorder %s209, %s211
      %p215 = scmp.eq.s32.totalorder %s28, 0
      %p216 = por %p214, %p215
      %p217 = scmp.ne.s32.totalorder %s209, %s211
      %p218 = scmp.eq.s32.totalorder %s33, 1
      %p219 = por %p217, %p218
      %p220 = scmp.ne.s32.totalorder %s211, %s212
      %p221 = scmp.eq.s32.totalorder %s33, 0
      %p222 = por %p220, %p221
      %p223 = scmp.ne.s32.totalorder %s211, %s212
      %p224 = scmp.eq.s32.totalorder %s34, 1
      %p225 = por %p223, %p224
      %p227 = scmp.ne.s32.totalorder %s212, %s226
      %p228 = scmp.eq.s32.totalorder %s34, 0
      %p229 = por %p227, %p228
      %s231 = sadd.s32 %s230, 1
      %p234 = scmp.eq.s32.totalorder %s28, 1
      %p235 = scmp.ne.s32.totalorder %s230, %s232
      %p236 = scmp.eq.s32.totalorder %s28, 0
      %p237 = por %p235, %p236
      %p238 = scmp.ne.s32.totalorder %s230, %s232
      %p239 = scmp.eq.s32.totalorder %s33, 1
      %p240 = por %p238, %p239
      %p241 = scmp.ne.s32.totalorder %s232, %s233
      %p242 = scmp.eq.s32.totalorder %s33, 0
      %p243 = por %p241, %p242
      %p244 = scmp.ne.s32.totalorder %s232, %s233
      %p245 = scmp.eq.s32.totalorder %s34, 1
      %p246 = por %p244, %p245
      %p248 = scmp.ne.s32.totalorder %s233, %s247
      %p249 = scmp.eq.s32.totalorder %s34, 0
      %p250 = por %p248, %p249
      %s252 = sadd.s32 %s251, 1
      %p255 = scmp.eq.s32.totalorder %s28, 1
      %p256 = scmp.ne.s32.totalorder %s251, %s253
      %p257 = scmp.eq.s32.totalorder %s28, 0
      %p258 = por %p256, %p257
      %p259 = scmp.ne.s32.totalorder %s251, %s253
      %p260 = scmp.eq.s32.totalorder %s33, 1
      %p261 = por %p259, %p260
      %p262 = scmp.ne.s32.totalorder %s253, %s254
      %p263 = scmp.eq.s32.totalorder %s33, 0
      %p264 = por %p262, %p263
      %p265 = scmp.ne.s32.totalorder %s253, %s254
      %p266 = scmp.eq.s32.totalorder %s34, 1
      %p267 = por %p265, %p266
      %p269 = scmp.ne.s32.totalorder %s254, %s268
      %p270 = scmp.eq.s32.totalorder %s34, 0
      %p271 = por %p269, %p270
      %s273 = sadd.s32 %s272, 1
      %p276 = scmp.eq.s32.totalorder %s28, 1
      %p277 = scmp.ne.s32.totalorder %s272, %s274
      %p278 = scmp.eq.s32.totalorder %s28, 0
      %p279 = por %p277, %p278
      %p280 = scmp.ne.s32.totalorder %s272, %s274
      %p281 = scmp.eq.s32.totalorder %s33, 1
      %p282 = por %p280, %p281
      %p283 = scmp.ne.s32.totalorder %s274, %s275
      %p284 = scmp.eq.s32.totalorder %s33, 0
      %p285 = por %p283, %p284
      %p286 = scmp.ne.s32.totalorder %s274, %s275
      %p287 = scmp.eq.s32.totalorder %s34, 1
      %p288 = por %p286, %p287
      %p290 = scmp.ne.s32.totalorder %s275, %s289
      %p291 = scmp.eq.s32.totalorder %s34, 0
      %p292 = por %p290, %p291
      %s294 = sadd.s32 %s293, 1
      %p297 = scmp.eq.s32.totalorder %s28, 1
      %p298 = scmp.ne.s32.totalorder %s293, %s295
      %p299 = scmp.eq.s32.totalorder %s28, 0
      %p300 = por %p298, %p299
      %p301 = scmp.ne.s32.totalorder %s293, %s295
      %p302 = scmp.eq.s32.totalorder %s33, 1
      %p303 = por %p301, %p302
      %p304 = scmp.ne.s32.totalorder %s295, %s296
      %p305 = scmp.eq.s32.totalorder %s33, 0
      %p306 = por %p304, %p305
      %p307 = scmp.ne.s32.totalorder %s295, %s296
      %p308 = scmp.eq.s32.totalorder %s34, 1
      %p309 = por %p307, %p308
      %p311 = scmp.ne.s32.totalorder %s296, %s310
      %p312 = scmp.eq.s32.totalorder %s34, 0
      %p313 = por %p311, %p312
      %s314 = ssub.s32 %s28, %s35
      %p315 = scmp.eq.s32.totalorder %s314, 0
      %s317 = sadd.s32 %s316, 1
      %s318 = scalar_select %p315, %s316, %s317
      %p321 = pneg %p315
      %p322 = scmp.eq.s32.totalorder %s28, 1
      %p323 = por %p321, %p322
      %p324 = scmp.ne.s32.totalorder %s316, %s319
      %p325 = scmp.eq.s32.totalorder %s28, 0
      %p326 = por %p324, %p325
      %p327 = scmp.ne.s32.totalorder %s316, %s319
      %p328 = scmp.eq.s32.totalorder %s33, 1
      %p329 = por %p327, %p328
      %p330 = scmp.ne.s32.totalorder %s319, %s320
      %p331 = scmp.eq.s32.totalorder %s33, 0
      %p332 = por %p330, %p331
      %p333 = scmp.ne.s32.totalorder %s319, %s320
      %p334 = scmp.eq.s32.totalorder %s34, 1
      %p335 = por %p333, %p334
      %p337 = scmp.ne.s32.totalorder %s320, %s336
      %p338 = scmp.eq.s32.totalorder %s34, 0
      %p339 = por %p337, %p338
      %p340 = scmp.le.s32.totalorder 1, %s28
      %p341 = scmp.lt.s32.totalorder %s28, 3
      %p342 = pnand %p340, %p341
      %p343 = pneg %p342
      // Predicated region
      $region9: #{tpu_custom_call.1} parent=5 // pred_check
        _
      $region10: #{tpu_custom_call.1} parent=5 // pred_check_branch
        %345 = sbr.rel (%p342) target = $region12
      $region11: #{tpu_custom_call.1} parent=5 // pred_region
        %s346 = ssub.s32 %s28, 1
        // Predicated region
        $region13: #{tpu_custom_call.1} parent=11 // pred_check
          %p347 = pneg %p75
        $region14: #{tpu_custom_call.1} parent=11 // pred_check_branch
          %349 = sbr.rel (%p347) target = $region16
        $region15: #{tpu_custom_call.1} parent=11 // pred_region
          %s351 = ssub.s32 16, 16
          %352 = vsyncadd [#allocation6], %s351
          %s354 = sshll.u32 [#allocation5], 4
          %s355 = int_to_ptr.vmem [resolvable:$true] %s354
          %357 = dma.hbm_to_vmem [thread:$0]  %s1, 16, %s355, [#allocation6]
        $region16: #{tpu_custom_call.1} parent=11 // pred_fallthru
          _
        // Predicated region
        $region17: #{tpu_custom_call.1} parent=11 // pred_check
          %p358 = pneg %p96
        $region18: #{tpu_custom_call.1} parent=11 // pred_check_branch
          %360 = sbr.rel (%p358) target = $region20
        $region19: #{tpu_custom_call.1} parent=11 // pred_region
          %s362 = ssub.s32 16, 16
          %363 = vsyncadd [#allocation6], %s362
          %s365 = sshll.u32 [#allocation7], 4
          %s366 = int_to_ptr.vmem [resolvable:$true] %s365
          %368 = dma.hbm_to_vmem [thread:$0]  %s2, 16, %s366, [#allocation6]
        $region20: #{tpu_custom_call.1} parent=11 // pred_fallthru
          _
        // Predicated region
        $region21: #{tpu_custom_call.1} parent=11 // pred_check
          %p369 = pneg %p117
        $region22: #{tpu_custom_call.1} parent=11 // pred_check_branch
          %371 = sbr.rel (%p369) target = $region24
        $region23: #{tpu_custom_call.1} parent=11 // pred_region
          %s373 = ssub.s32 3072, 3072
          %374 = vsyncadd [#allocation9], %s373
          %s375 = sshll.u32 [#allocation8], 4
          %s376 = int_to_ptr.vmem [resolvable:$true] %s375
          %381 = dma.hbm_to_vmem [thread:$0]  %s3, 3072, %s376, [#allocation9], 192, 192, 12
        $region24: #{tpu_custom_call.1} parent=11 // pred_fallthru
          _
        // Predicated region
        $region25: #{tpu_custom_call.1} parent=11 // pred_check
          %p382 = pneg %p138
        $region26: #{tpu_custom_call.1} parent=11 // pred_check_branch
          %384 = sbr.rel (%p382) target = $region28
        $region27: #{tpu_custom_call.1} parent=11 // pred_region
          _
        $region28: #{tpu_custom_call.1} parent=11 // pred_fallthru
          _
        // Predicated region
        $region29: #{tpu_custom_call.1} parent=11 // pred_check
          %p385 = pneg %p159
        $region30: #{tpu_custom_call.1} parent=11 // pred_check_branch
          %387 = sbr.rel (%p385) target = $region32
        $region31: #{tpu_custom_call.1} parent=11 // pred_region
          %s389 = ssub.s32 1024, 1024
          %390 = vsyncadd [#allocation9], %s389
          %s391 = sshll.u32 [#allocation10], 4
          %s392 = int_to_ptr.vmem [resolvable:$true] %s391
          %397 = dma.hbm_to_vmem [thread:$0]  %s5, 1024, %s392, [#allocation9], 64, 64, 4
        $region32: #{tpu_custom_call.1} parent=11 // pred_fallthru
          _
        // Predicated region
        $region33: #{tpu_custom_call.1} parent=11 // pred_check
          %p398 = pneg %p180
        $region34: #{tpu_custom_call.1} parent=11 // pred_check_branch
          %400 = sbr.rel (%p398) target = $region36
        $region35: #{tpu_custom_call.1} parent=11 // pred_region
          _
        $region36: #{tpu_custom_call.1} parent=11 // pred_fallthru
          _
        // Predicated region
        $region37: #{tpu_custom_call.1} parent=11 // pred_check
          %p401 = pneg %p201
        $region38: #{tpu_custom_call.1} parent=11 // pred_check_branch
          %403 = sbr.rel (%p401) target = $region40
        $region39: #{tpu_custom_call.1} parent=11 // pred_region
          _
        $region40: #{tpu_custom_call.1} parent=11 // pred_fallthru
          _
        // Predicated region
        $region41: #{tpu_custom_call.1} parent=11 // pred_check
          %p404 = pneg %p222
        $region42: #{tpu_custom_call.1} parent=11 // pred_check_branch
          %406 = sbr.rel (%p404) target = $region44
        $region43: #{tpu_custom_call.1} parent=11 // pred_region
          _
        $region44: #{tpu_custom_call.1} parent=11 // pred_fallthru
          _
        // Predicated region
        $region45: #{tpu_custom_call.1} parent=11 // pred_check
          %p407 = pneg %p243
        $region46: #{tpu_custom_call.1} parent=11 // pred_check_branch
          %409 = sbr.rel (%p407) target = $region48
        $region47: #{tpu_custom_call.1} parent=11 // pred_region
          %s411 = ssub.s32 2048, 2048
          %412 = vsyncadd [#allocation12], %s411
          %s413 = sshll.u32 [#allocation11], 4
          %s414 = int_to_ptr.vmem [resolvable:$true] %s413
          %419 = dma.hbm_to_vmem [thread:$0]  %s9, 2048, %s414, [#allocation12], 128, 128, 8
        $region48: #{tpu_custom_call.1} parent=11 // pred_fallthru
          _
        // Predicated region
        $region49: #{tpu_custom_call.1} parent=11 // pred_check
          %p420 = pneg %p264
        $region50: #{tpu_custom_call.1} parent=11 // pred_check_branch
          %422 = sbr.rel (%p420) target = $region52
        $region51: #{tpu_custom_call.1} parent=11 // pred_region
          _
        $region52: #{tpu_custom_call.1} parent=11 // pred_fallthru
          _
        // Predicated region
        $region53: #{tpu_custom_call.1} parent=11 // pred_check
          %p423 = pneg %p285
        $region54: #{tpu_custom_call.1} parent=11 // pred_check_branch
          %425 = sbr.rel (%p423) target = $region56
        $region55: #{tpu_custom_call.1} parent=11 // pred_region
          %s427 = ssub.s32 2048, 2048
          %428 = vsyncadd [#allocation12], %s427
          %s429 = sshll.u32 [#allocation13], 4
          %s430 = int_to_ptr.vmem [resolvable:$true] %s429
          %435 = dma.hbm_to_vmem [thread:$0]  %s11, 2048, %s430, [#allocation12], 64, 64, 4
        $region56: #{tpu_custom_call.1} parent=11 // pred_fallthru
          _
        // Predicated region
        $region57: #{tpu_custom_call.1} parent=11 // pred_check
          %p436 = pneg %p306
        $region58: #{tpu_custom_call.1} parent=11 // pred_check_branch
          %438 = sbr.rel (%p436) target = $region60
        $region59: #{tpu_custom_call.1} parent=11 // pred_region
          _
        $region60: #{tpu_custom_call.1} parent=11 // pred_fallthru
          _
      $region12: #{tpu_custom_call.1} parent=5 // pred_fallthru
        _
      %p439 = scmp.lt.s32.totalorder %s28, 2
      // Predicated region
      $region61: #{tpu_custom_call.1} parent=5 // pred_check
        %p440 = pneg %p439
      $region62: #{tpu_custom_call.1} parent=5 // pred_check_branch
        %442 = sbr.rel (%p440) target = $region64
      $region63: #{tpu_custom_call.1} parent=5 // pred_region
        // Predicated region
        $region65: #{tpu_custom_call.1} parent=63 // pred_check
          %p443 = pneg %p48
        $region66: #{tpu_custom_call.1} parent=63 // pred_check_branch
          %445 = sbr.rel (%p443) target = $region68
        $region67: #{tpu_custom_call.1} parent=63 // pred_region
          %s446 = sand.u32 %s38, 1
          %s447 = scalar_lea.sflag [#allocation3], %s446
          %s448 = sand.u32 %s38, 1
          %s449 = smul.addr %s448, 64
          %s450 = scalar_lea.vmem [#allocation2], %s449
          %s451 = smul.u32 2, %s28
          %s453 = ssub.s32 1024, 1024
          %454 = vsyncadd %s447, %s453
          %s455 = smul.addr %s451, 4
          %s456 = smul.addr %s455, 128
          %s457 = scalar_lea.hbm %s0, %s456
          %s458 = sshll.u32 %s450, 4
          %s459 = int_to_ptr.vmem [resolvable:$true] %s458
          %464 = dma.hbm_to_vmem [thread:$0]  %s457, 1024, %s459, %s447, 128, 128, 8
        $region68: #{tpu_custom_call.1} parent=63 // pred_fallthru
          _
      $region64: #{tpu_custom_call.1} parent=5 // pred_fallthru
        _
      %p465 = scmp.le.s32.totalorder 1, %s28
      %p466 = scmp.lt.s32.totalorder %s28, 3
      %p467 = pnand %p465, %p466
      %p468 = pneg %p467
      // Predicated region
      $region69: #{tpu_custom_call.1} parent=5 // pred_check
        _
      $region70: #{tpu_custom_call.1} parent=5 // pred_check_branch
        %470 = sbr.rel (%p467) target = $region72
      $region71: #{tpu_custom_call.1} parent=5 // pred_region
        %s471 = ssub.s32 %s28, 1
        %s472 = sand.u32 %s41, 1
        %s473 = scalar_lea.sflag [#allocation3], %s472
        %s474 = sand.u32 %s41, 1
        %s475 = smul.addr %s474, 64
        %s476 = scalar_lea.vmem [#allocation2], %s475
        // Predicated region
        $region73: #{tpu_custom_call.1} parent=71 // pred_check
          %p477 = pneg %p54
        $region74: #{tpu_custom_call.1} parent=71 // pred_check_branch
          %479 = sbr.rel (%p477) target = $region76
        $region75: #{tpu_custom_call.1} parent=71 // pred_region
          %480 = dma.done %s473, 1024
        $region76: #{tpu_custom_call.1} parent=71 // pred_fallthru
          _
        // Predicated region
        $region77: #{tpu_custom_call.1} parent=71 // pred_check
          %p481 = pneg %p75
        $region78: #{tpu_custom_call.1} parent=71 // pred_check_branch
          %483 = sbr.rel (%p481) target = $region80
        $region79: #{tpu_custom_call.1} parent=71 // pred_region
          %484 = dma.done [#allocation6], 16
        $region80: #{tpu_custom_call.1} parent=71 // pred_fallthru
          _
        // Predicated region
        $region81: #{tpu_custom_call.1} parent=71 // pred_check
          %p485 = pneg %p96
        $region82: #{tpu_custom_call.1} parent=71 // pred_check_branch
          %487 = sbr.rel (%p485) target = $region84
        $region83: #{tpu_custom_call.1} parent=71 // pred_region
          %488 = dma.done [#allocation6], 16
        $region84: #{tpu_custom_call.1} parent=71 // pred_fallthru
          _
        // Predicated region
        $region85: #{tpu_custom_call.1} parent=71 // pred_check
          %p489 = pneg %p117
        $region86: #{tpu_custom_call.1} parent=71 // pred_check_branch
          %491 = sbr.rel (%p489) target = $region88
        $region87: #{tpu_custom_call.1} parent=71 // pred_region
          %492 = dma.done [#allocation9], 3072
        $region88: #{tpu_custom_call.1} parent=71 // pred_fallthru
          _
        // Predicated region
        $region89: #{tpu_custom_call.1} parent=71 // pred_check
          %p493 = pneg %p159
        $region90: #{tpu_custom_call.1} parent=71 // pred_check_branch
          %495 = sbr.rel (%p493) target = $region92
        $region91: #{tpu_custom_call.1} parent=71 // pred_region
          %496 = dma.done [#allocation9], 1024
        $region92: #{tpu_custom_call.1} parent=71 // pred_fallthru
          _
        // Predicated region
        $region93: #{tpu_custom_call.1} parent=71 // pred_check
          %p497 = pneg %p243
        $region94: #{tpu_custom_call.1} parent=71 // pred_check_branch
          %499 = sbr.rel (%p497) target = $region96
        $region95: #{tpu_custom_call.1} parent=71 // pred_region
          %500 = dma.done [#allocation12], 2048
        $region96: #{tpu_custom_call.1} parent=71 // pred_fallthru
          _
        // Predicated region
        $region97: #{tpu_custom_call.1} parent=71 // pred_check
          %p501 = pneg %p285
        $region98: #{tpu_custom_call.1} parent=71 // pred_check_branch
          %503 = sbr.rel (%p501) target = $region100
        $region99: #{tpu_custom_call.1} parent=71 // pred_region
          %504 = dma.done [#allocation12], 2048
        $region100: #{tpu_custom_call.1} parent=71 // pred_fallthru
          _
        %s505 = sand.u32 %s41, 1
        %s506 = scalar_lea.sflag [#allocation3], %s505
        %s507 = sand.u32 %s41, 1
        %s508 = smul.addr %s507, 64
        %s509 = scalar_lea.vmem [#allocation2], %s508
        %p510 = pneg %p54
        %p511 = pneg %p51
        %p512 = pneg %p75
        %p513 = pneg %p72
        %p514 = pneg %p96
        %p515 = pneg %p93
        %p516 = pneg %p117
        %p517 = pneg %p114
        %p518 = pneg %p138
        %p519 = pneg %p135
        %p520 = pneg %p159
        %p521 = pneg %p156
        %p522 = pneg %p180
        %p523 = pneg %p177
        %p524 = pneg %p201
        %p525 = pneg %p198
        %p526 = pneg %p222
        %p527 = pneg %p219
        %p528 = pneg %p243
        %p529 = pneg %p240
        %p530 = pneg %p264
        %p531 = pneg %p261
        %p532 = pneg %p285
        %p533 = pneg %p282
        %p534 = pneg %p306
        %p535 = pneg %p303
        %p536 = pneg %p332
        %p537 = pneg %p329
        %s538 = sand.u32 %s319, 1
        %s539 = scalar_lea.sflag [#allocation4], %s538
        %s540 = sand.u32 %s319, 1
        %s541 = smul.addr %s540, 64
        %s542 = scalar_lea.vmem [#allocation14], %s541
        %s543 = smul.u32 2, %s33
        %s544 = smul.u32 2, %s33
        %v546 = vld [vmem:[%s476] sm:$0xff]
        %v547 = vld [vmem:[%s476 + $0x8] sm:$0xff]
        %v548 = vld [vmem:[%s476 + $0x10] sm:$0xff]
        %v549 = vld [vmem:[%s476 + $0x18] sm:$0xff]
        %v550 = vld [vmem:[%s476 + $0x20] sm:$0xff]
        %v551 = vld [vmem:[%s476 + $0x28] sm:$0xff]
        %v552 = vld [vmem:[%s476 + $0x30] sm:$0xff]
        %v553 = vld [vmem:[%s476 + $0x38] sm:$0xff]
        %554 = vadd.xlane.f32.xlu0 %v546
        %v555 = vpop.xlane.xlu0 %554
        %556 = vadd.xlane.f32.xlu0 %v547
        %v557 = vpop.xlane.xlu0 %556
        %558 = vadd.xlane.f32.xlu0 %v548
        %v559 = vpop.xlane.xlu0 %558
        %560 = vadd.xlane.f32.xlu0 %v549
        %v561 = vpop.xlane.xlu0 %560
        %562 = vadd.xlane.f32.xlu0 %v550
        %v563 = vpop.xlane.xlu0 %562
        %564 = vadd.xlane.f32.xlu0 %v551
        %v565 = vpop.xlane.xlu0 %564
        %566 = vadd.xlane.f32.xlu0 %v552
        %v567 = vpop.xlane.xlu0 %566
        %568 = vadd.xlane.f32.xlu0 %v553
        %v569 = vpop.xlane.xlu0 %568
        %v570 = vrcp.pop 128.0
        %v571 = vmul.f32 %v555, %v570
        %v572 = vmul.f32 %v557, %v570
        %v573 = vmul.f32 %v559, %v570
        %v574 = vmul.f32 %v561, %v570
        %v575 = vmul.f32 %v563, %v570
        %v576 = vmul.f32 %v565, %v570
        %v577 = vmul.f32 %v567, %v570
        %v578 = vmul.f32 %v569, %v570
        %v579 = vsub.f32 %v546, %v571
        %v580 = vsub.f32 %v547, %v572
        %v581 = vsub.f32 %v548, %v573
        %v582 = vsub.f32 %v549, %v574
        %v583 = vsub.f32 %v550, %v575
        %v584 = vsub.f32 %v551, %v576
        %v585 = vsub.f32 %v552, %v577
        %v586 = vsub.f32 %v553, %v578
        %v587 = vmul.f32 %v579, %v579
        %v588 = vmul.f32 %v580, %v580
        %v589 = vmul.f32 %v581, %v581
        %v590 = vmul.f32 %v582, %v582
        %v591 = vmul.f32 %v583, %v583
        %v592 = vmul.f32 %v584, %v584
        %v593 = vmul.f32 %v585, %v585
        %v594 = vmul.f32 %v586, %v586
        %595 = vadd.xlane.f32.xlu0 %v587
        %v596 = vpop.xlane.xlu0 %595
        %597 = vadd.xlane.f32.xlu0 %v588
        %v598 = vpop.xlane.xlu0 %597
        %599 = vadd.xlane.f32.xlu0 %v589
        %v600 = vpop.xlane.xlu0 %599
        %601 = vadd.xlane.f32.xlu0 %v590
        %v602 = vpop.xlane.xlu0 %601
        %603 = vadd.xlane.f32.xlu0 %v591
        %v604 = vpop.xlane.xlu0 %603
        %605 = vadd.xlane.f32.xlu0 %v592
        %v606 = vpop.xlane.xlu0 %605
        %607 = vadd.xlane.f32.xlu0 %v593
        %v608 = vpop.xlane.xlu0 %607
        %609 = vadd.xlane.f32.xlu0 %v594
        %v610 = vpop.xlane.xlu0 %609
        %v611 = vmul.f32 %v596, %v570
        %v612 = vmul.f32 %v598, %v570
        %v613 = vmul.f32 %v600, %v570
        %v614 = vmul.f32 %v602, %v570
        %v615 = vmul.f32 %v604, %v570
        %v616 = vmul.f32 %v606, %v570
        %v617 = vmul.f32 %v608, %v570
        %v618 = vmul.f32 %v610, %v570
        %v619 = vadd.f32 %v611, 1e-05
        %v620 = vadd.f32 %v612, 1e-05
        %v621 = vadd.f32 %v613, 1e-05
        %v622 = vadd.f32 %v614, 1e-05
        %v623 = vadd.f32 %v615, 1e-05
        %v624 = vadd.f32 %v616, 1e-05
        %v625 = vadd.f32 %v617, 1e-05
        %v626 = vadd.f32 %v618, 1e-05
        %v627 = vrsqrt.pop %v619
        %v628 = vrsqrt.pop %v620
        %v629 = vrsqrt.pop %v621
        %v630 = vrsqrt.pop %v622
        %v631 = vrsqrt.pop %v623
        %v632 = vrsqrt.pop %v624
        %v633 = vrsqrt.pop %v625
        %v634 = vrsqrt.pop %v626
        %v635 = vmul.f32 %v579, %v627
        %v636 = vmul.f32 %v580, %v628
        %v637 = vmul.f32 %v581, %v629
        %v638 = vmul.f32 %v582, %v630
        %v639 = vmul.f32 %v583, %v631
        %v640 = vmul.f32 %v584, %v632
        %v641 = vmul.f32 %v585, %v633
        %v642 = vmul.f32 %v586, %v634
        %v643 = vld [vmem:[#allocation5] sm:$0x1]
        %v645 = vlaneseq
        %v646 = vshrl.u32 %v645, 7
        %v647 = vsub.s32 0, %v646
        %v648 = vrot.slane %v643, %v647
        %v650 = vmul.f32 %v635, %v648
        %v651 = vmul.f32 %v636, %v648
        %v652 = vmul.f32 %v637, %v648
        %v653 = vmul.f32 %v638, %v648
        %v654 = vmul.f32 %v639, %v648
        %v655 = vmul.f32 %v640, %v648
        %v656 = vmul.f32 %v641, %v648
        %v657 = vmul.f32 %v642, %v648
        %v658 = vld [vmem:[#allocation7] sm:$0x1]
        %v660 = vlaneseq
        %v661 = vshrl.u32 %v660, 7
        %v662 = vsub.s32 0, %v661
        %v663 = vrot.slane %v658, %v662
        %v665 = vadd.f32 %v650, %v663
        %v666 = vadd.f32 %v651, %v663
        %v667 = vadd.f32 %v652, %v663
        %v668 = vadd.f32 %v653, %v663
        %v669 = vadd.f32 %v654, %v663
        %v670 = vadd.f32 %v655, %v663
        %v671 = vadd.f32 %v656, %v663
        %v672 = vadd.f32 %v657, %v663
        %v673 = vpack.c.bf16 %v666, %v665
        %v674 = vpack.c.bf16 %v668, %v667
        %v675 = vpack.c.bf16 %v670, %v669
        %v676 = vpack.c.bf16 %v672, %v671
        %v677 = vld [vmem:[#allocation8] sm:$0xff]
        %v678 = vld [vmem:[#allocation8 + $0x8] sm:$0xf]
        %v679 = vld [vmem:[#allocation8 + $0xc] sm:$0xff]
        %v680 = vld [vmem:[#allocation8 + $0x14] sm:$0xf]
        %v681 = vld [vmem:[#allocation8 + $0x18] sm:$0xff]
        %v682 = vld [vmem:[#allocation8 + $0x20] sm:$0xf]
        %v683 = vld [vmem:[#allocation8 + $0x24] sm:$0xff]
        %v684 = vld [vmem:[#allocation8 + $0x2c] sm:$0xf]
        %v685 = vld [vmem:[#allocation8 + $0x30] sm:$0xff]
        %v686 = vld [vmem:[#allocation8 + $0x38] sm:$0xf]
        %v687 = vld [vmem:[#allocation8 + $0x3c] sm:$0xff]
        %v688 = vld [vmem:[#allocation8 + $0x44] sm:$0xf]
        %v689 = vld [vmem:[#allocation8 + $0x48] sm:$0xff]
        %v690 = vld [vmem:[#allocation8 + $0x50] sm:$0xf]
        %v691 = vld [vmem:[#allocation8 + $0x54] sm:$0xff]
        %v692 = vld [vmem:[#allocation8 + $0x5c] sm:$0xf]
        %v693 = vld [vmem:[#allocation8 + $0x60] sm:$0xff]
        %v694 = vld [vmem:[#allocation8 + $0x68] sm:$0xf]
        %v695 = vld [vmem:[#allocation8 + $0x6c] sm:$0xff]
        %v696 = vld [vmem:[#allocation8 + $0x74] sm:$0xf]
        %v697 = vld [vmem:[#allocation8 + $0x78] sm:$0xff]
        %v698 = vld [vmem:[#allocation8 + $0x80] sm:$0xf]
        %v699 = vld [vmem:[#allocation8 + $0x84] sm:$0xff]
        %v700 = vld [vmem:[#allocation8 + $0x8c] sm:$0xf]
        %v701 = vld [vmem:[#allocation8 + $0x90] sm:$0xff]
        %v702 = vld [vmem:[#allocation8 + $0x98] sm:$0xf]
        %v703 = vld [vmem:[#allocation8 + $0x9c] sm:$0xff]
        %v704 = vld [vmem:[#allocation8 + $0xa4] sm:$0xf]
        %v705 = vld [vmem:[#allocation8 + $0xa8] sm:$0xff]
        %v706 = vld [vmem:[#allocation8 + $0xb0] sm:$0xf]
        %v707 = vld [vmem:[#allocation8 + $0xb4] sm:$0xff]
        %v708 = vld [vmem:[#allocation8 + $0xbc] sm:$0xf]
        %v709 = vld [vmem:[%s4] sm:$0x7]
        %v711 = vlaneseq
        %v712 = vshrl.u32 %v711, 7
        %v713 = vsub.s32 0, %v712
        %v714 = vrot.slane %v709, %v713
        %v715 = vlaneseq
        %v716 = vshrl.u32 %v715, 7
        %v717 = vsub.s32 1, %v716
        %v718 = vrot.slane %v709, %v717
        %v719 = vlaneseq
        %v720 = vshrl.u32 %v719, 7
        %v721 = vsub.s32 2, %v720
        %v722 = vrot.slane %v709, %v721
        %v758 = vunpack.c.l.b16 %v677
        %v759 = vunpack.c.h.b16 %v677
        %v760 = vunpack.c.l.b16 %v678
        %v761 = vunpack.c.l.b16 %v679
        %v762 = vunpack.c.h.b16 %v679
        %v763 = vunpack.c.l.b16 %v680
        %v764 = vunpack.c.l.b16 %v681
        %v765 = vunpack.c.h.b16 %v681
        %v766 = vunpack.c.l.b16 %v682
        %v767 = vunpack.c.l.b16 %v683
        %v768 = vunpack.c.h.b16 %v683
        %v769 = vunpack.c.l.b16 %v684
        %v770 = vunpack.c.l.b16 %v685
        %v771 = vunpack.c.h.b16 %v685
        %v772 = vunpack.c.l.b16 %v686
        %v773 = vunpack.c.l.b16 %v687
        %v774 = vunpack.c.h.b16 %v687
        %v775 = vunpack.c.l.b16 %v688
        %v776 = vunpack.c.l.b16 %v689
        %v777 = vunpack.c.h.b16 %v689
        %v778 = vunpack.c.l.b16 %v690
        %v779 = vunpack.c.l.b16 %v691
        %v780 = vunpack.c.h.b16 %v691
        %v781 = vunpack.c.l.b16 %v692
        %v782 = vunpack.c.l.b16 %v693
        %v783 = vunpack.c.h.b16 %v693
        %v784 = vunpack.c.l.b16 %v694
        %v785 = vunpack.c.l.b16 %v695
        %v786 = vunpack.c.h.b16 %v695
        %v787 = vunpack.c.l.b16 %v696
        %v788 = vunpack.c.l.b16 %v697
        %v789 = vunpack.c.h.b16 %v697
        %v790 = vunpack.c.l.b16 %v698
        %v791 = vunpack.c.l.b16 %v699
        %v792 = vunpack.c.h.b16 %v699
        %v793 = vunpack.c.l.b16 %v700
        %v794 = vunpack.c.l.b16 %v701
        %v795 = vunpack.c.h.b16 %v701
        %v796 = vunpack.c.l.b16 %v702
        %v797 = vunpack.c.l.b16 %v703
        %v798 = vunpack.c.h.b16 %v703
        %v799 = vunpack.c.l.b16 %v704
        %v800 = vunpack.c.l.b16 %v705
        %v801 = vunpack.c.h.b16 %v705
        %v802 = vunpack.c.l.b16 %v706
        %v803 = vunpack.c.l.b16 %v707
        %v804 = vunpack.c.h.b16 %v707
        %v805 = vunpack.c.l.b16 %v708
        %v806 = vpack.c.b16 %v761, %v758
        %v807 = vpack.c.b16 %v762, %v759
        %v808 = vpack.c.b16 %v763, %v760
        %v809 = vpack.c.b16 %v767, %v764
        %v810 = vpack.c.b16 %v768, %v765
        %v811 = vpack.c.b16 %v769, %v766
        %v812 = vpack.c.b16 %v773, %v770
        %v813 = vpack.c.b16 %v774, %v771
        %v814 = vpack.c.b16 %v775, %v772
        %v815 = vpack.c.b16 %v779, %v776
        %v816 = vpack.c.b16 %v780, %v777
        %v817 = vpack.c.b16 %v781, %v778
        %v818 = vpack.c.b16 %v785, %v782
        %v819 = vpack.c.b16 %v786, %v783
        %v820 = vpack.c.b16 %v787, %v784
        %v821 = vpack.c.b16 %v791, %v788
        %v822 = vpack.c.b16 %v792, %v789
        %v823 = vpack.c.b16 %v793, %v790
        %v824 = vpack.c.b16 %v797, %v794
        %v825 = vpack.c.b16 %v798, %v795
        %v826 = vpack.c.b16 %v799, %v796
        %v827 = vpack.c.b16 %v803, %v800
        %v828 = vpack.c.b16 %v804, %v801
        %v829 = vpack.c.b16 %v805, %v802
        %854 = vmatprep.subr.bf16.mxu0 %v828
        %855 = vmatpush1.bf16.msra.mxu0 %v827
        %856 = vmatprep.subr.bf16.mxu0 %v825
        %857 = vmatpush1.bf16.msra.mxu0 %v824
        %858 = vmatprep.subr.bf16.mxu0 %v822
        %859 = vmatpush1.bf16.msra.mxu0 %v821
        %860 = vmatprep.subr.bf16.mxu0 %v819
        %861 = vmatpush1.bf16.msra.mxu0 %v818
        %862 = vmatprep.subr.bf16.mxu0 %v816
        %863 = vmatpush1.bf16.msra.mxu0 %v815
        %864 = vmatprep.subr.bf16.mxu0 %v813
        %865 = vmatpush1.bf16.msra.mxu0 %v812
        %866 = vmatprep.subr.bf16.mxu0 %v810
        %867 = vmatpush1.bf16.msra.mxu0 %v809
        %868 = vmatprep.subr.bf16.mxu0 %v807
        %869 = vmatpush1.bf16.msra.mxu0 %v806
        %870 = vmatprep.subr.bf16.mxu0 0
        %871 = vmatpush2.bf16.msra.mxu0 0
        %872 = vmatprep.subr.bf16.mxu0 0
        %873 = vmatpush2.bf16.msra.mxu0 0
        %874 = vmatprep.subr.bf16.mxu0 0
        %875 = vmatpush2.bf16.msra.mxu0 0
        %876 = vmatprep.subr.bf16.mxu0 0
        %877 = vmatpush2.bf16.msra.mxu0 0
        %878 = vmatprep.subr.bf16.mxu0 0
        %879 = vmatpush2.bf16.msra.mxu0 0
        %880 = vmatprep.subr.bf16.mxu0 0
        %881 = vmatpush2.bf16.msra.mxu0 0
        %882 = vmatprep.subr.bf16.mxu0 0
        %883 = vmatpush2.bf16.msra.mxu0 0
        %884 = vmatprep.subr.bf16.mxu0 0
        %885 = vmatpush2.bf16.msra.mxu0 0
        %886 = vmatprep.mubr.bf16.mxu0 0
        %887 = vmatmul.mubr.bf16.gmra.mxu0 %v673
        %v888 = vpop.f32.mrf.mxu0
        %v889 = vadd.f32 %v714, %v888
        %v890 = vpop.f32.mrf.mxu0
        %v891 = vadd.f32 %v718, %v890
        %v892 = vpop.f32.mrf.mxu0
        %v893 = vadd.f32 %v714, %v892
        %v894 = vpop.f32.mrf.mxu0
        %v895 = vadd.f32 %v718, %v894
        %896 = vmatprep.mubr.bf16.mxu0 0
        %897 = vmatmul.mubr.bf16.gmra.mxu0 %v674
        %v898 = vpop.f32.mrf.mxu0
        %v899 = vadd.f32 %v714, %v898
        %v900 = vpop.f32.mrf.mxu0
        %v901 = vadd.f32 %v718, %v900
        %v902 = vpop.f32.mrf.mxu0
        %v903 = vadd.f32 %v714, %v902
        %v904 = vpop.f32.mrf.mxu0
        %v905 = vadd.f32 %v718, %v904
        %906 = vmatprep.mubr.bf16.mxu0 0
        %907 = vmatmul.mubr.bf16.gmra.mxu0 %v675
        %v908 = vpop.f32.mrf.mxu0
        %v909 = vadd.f32 %v714, %v908
        %v910 = vpop.f32.mrf.mxu0
        %v911 = vadd.f32 %v718, %v910
        %v912 = vpop.f32.mrf.mxu0
        %v913 = vadd.f32 %v714, %v912
        %v914 = vpop.f32.mrf.mxu0
        %v915 = vadd.f32 %v718, %v914
        %916 = vmatprep.mubr.bf16.mxu0 0
        %917 = vmatmul.mubr.bf16.gmra.mxu0 %v676
        %v918 = vpop.f32.mrf.mxu0
        %v919 = vadd.f32 %v714, %v918
        %v920 = vpop.f32.mrf.mxu0
        %v921 = vadd.f32 %v718, %v920
        %v922 = vpop.f32.mrf.mxu0
        %v923 = vadd.f32 %v714, %v922
        %v924 = vpop.f32.mrf.mxu0
        %v925 = vadd.f32 %v718, %v924
        %926 = vdwg.mxu0
        %927 = vmatprep.subr.bf16.mxu0 0
        %928 = vmatpush1.bf16.msra.mxu0 %v829
        %929 = vmatprep.subr.bf16.mxu0 0
        %930 = vmatpush1.bf16.msra.mxu0 %v826
        %931 = vmatprep.subr.bf16.mxu0 0
        %932 = vmatpush1.bf16.msra.mxu0 %v823
        %933 = vmatprep.subr.bf16.mxu0 0
        %934 = vmatpush1.bf16.msra.mxu0 %v820
        %935 = vmatprep.subr.bf16.mxu0 0
        %936 = vmatpush1.bf16.msra.mxu0 %v817
        %937 = vmatprep.subr.bf16.mxu0 0
        %938 = vmatpush1.bf16.msra.mxu0 %v814
        %939 = vmatprep.subr.bf16.mxu0 0
        %940 = vmatpush1.bf16.msra.mxu0 %v811
        %941 = vmatprep.subr.bf16.mxu0 0
        %942 = vmatpush1.bf16.msra.mxu0 %v808
        %943 = vmatprep.subr.bf16.mxu0 0
        %944 = vmatpush2.bf16.msra.mxu0 0
        %945 = vmatprep.subr.bf16.mxu0 0
        %946 = vmatpush2.bf16.msra.mxu0 0
        %947 = vmatprep.subr.bf16.mxu0 0
        %948 = vmatpush2.bf16.msra.mxu0 0
        %949 = vmatprep.subr.bf16.mxu0 0
        %950 = vmatpush2.bf16.msra.mxu0 0
        %951 = vmatprep.subr.bf16.mxu0 0
        %952 = vmatpush2.bf16.msra.mxu0 0
        %953 = vmatprep.subr.bf16.mxu0 0
        %954 = vmatpush2.bf16.msra.mxu0 0
        %955 = vmatprep.subr.bf16.mxu0 0
        %956 = vmatpush2.bf16.msra.mxu0 0
        %957 = vmatprep.subr.bf16.mxu0 0
        %958 = vmatpush2.bf16.msra.mxu0 0
        %959 = vmatprep.mubr.bf16.mxu0 0
        %960 = vmatmul.mubr.bf16.gmra.mxu0 %v673
        %v961 = vpop.f32.mrf.mxu0
        %v962 = vadd.f32 %v722, %v961
        %v963 = vpop.f32.mrf.mxu0
        %v964 = vpop.f32.mrf.mxu0
        %v965 = vadd.f32 %v722, %v964
        %v966 = vpop.f32.mrf.mxu0
        %967 = vmatprep.mubr.bf16.mxu0 0
        %968 = vmatmul.mubr.bf16.gmra.mxu0 %v674
        %v969 = vpop.f32.mrf.mxu0
        %v970 = vadd.f32 %v722, %v969
        %v971 = vpop.f32.mrf.mxu0
        %v972 = vpop.f32.mrf.mxu0
        %v973 = vadd.f32 %v722, %v972
        %v974 = vpop.f32.mrf.mxu0
        %975 = vmatprep.mubr.bf16.mxu0 0
        %976 = vmatmul.mubr.bf16.gmra.mxu0 %v675
        %v977 = vpop.f32.mrf.mxu0
        %v978 = vadd.f32 %v722, %v977
        %v979 = vpop.f32.mrf.mxu0
        %v980 = vpop.f32.mrf.mxu0
        %v981 = vadd.f32 %v722, %v980
        %v982 = vpop.f32.mrf.mxu0
        %983 = vmatprep.mubr.bf16.mxu0 0
        %984 = vmatmul.mubr.bf16.gmra.mxu0 %v676
        %v985 = vpop.f32.mrf.mxu0
        %v986 = vadd.f32 %v722, %v985
        %v987 = vpop.f32.mrf.mxu0
        %v988 = vpop.f32.mrf.mxu0
        %v989 = vadd.f32 %v722, %v988
        %v990 = vpop.f32.mrf.mxu0
        %991 = vdwg.mxu0
        %v992 = vld [vmem:[#allocation10] sm:$0xf]
        %v993 = vld [vmem:[#allocation10 + $0x4] sm:$0xf]
        %v994 = vld [vmem:[#allocation10 + $0x8] sm:$0xf]
        %v995 = vld [vmem:[#allocation10 + $0xc] sm:$0xf]
        %v996 = vld [vmem:[#allocation10 + $0x10] sm:$0xf]
        %v997 = vld [vmem:[#allocation10 + $0x14] sm:$0xf]
        %v998 = vld [vmem:[#allocation10 + $0x18] sm:$0xf]
        %v999 = vld [vmem:[#allocation10 + $0x1c] sm:$0xf]
        %v1000 = vld [vmem:[#allocation10 + $0x20] sm:$0xf]
        %v1001 = vld [vmem:[#allocation10 + $0x24] sm:$0xf]
        %v1002 = vld [vmem:[#allocation10 + $0x28] sm:$0xf]
        %v1003 = vld [vmem:[#allocation10 + $0x2c] sm:$0xf]
        %v1004 = vld [vmem:[#allocation10 + $0x30] sm:$0xf]
        %v1005 = vld [vmem:[#allocation10 + $0x34] sm:$0xf]
        %v1006 = vld [vmem:[#allocation10 + $0x38] sm:$0xf]
        %v1007 = vld [vmem:[#allocation10 + $0x3c] sm:$0xf]
        %v1008 = vld [vmem:[%s6] sm:$0x1]
        %v1010 = vlaneseq
        %v1011 = vshrl.u32 %v1010, 7
        %v1012 = vsub.s32 0, %v1011
        %v1013 = vrot.slane %v1008, %v1012
        %v1015 = vadd.f32 %v546, %v1013
        %v1016 = vadd.f32 %v547, %v1013
        %v1017 = vadd.f32 %v548, %v1013
        %v1018 = vadd.f32 %v549, %v1013
        %v1019 = vadd.f32 %v550, %v1013
        %v1020 = vadd.f32 %v551, %v1013
        %v1021 = vadd.f32 %v552, %v1013
        %v1022 = vadd.f32 %v553, %v1013
        %v1023 = vpack.c.bf16 %v893, %v889
        %v1024 = vpack.c.bf16 %v903, %v899
        %v1025 = vpack.c.bf16 %v913, %v909
        %v1026 = vpack.c.bf16 %v923, %v919
        %v1027 = vpack.c.bf16 %v895, %v891
        %v1028 = vpack.c.bf16 %v905, %v901
        %v1029 = vpack.c.bf16 %v915, %v911
        %v1030 = vpack.c.bf16 %v925, %v921
        %v1031 = vpack.c.bf16 %v965, %v962
        %v1032 = vpack.c.bf16 %v973, %v970
        %v1033 = vpack.c.bf16 %v981, %v978
        %v1034 = vpack.c.bf16 %v989, %v986
        %vm1035 = vcmask 261120
        %v1037 = vsel %vm1035, %v1023, 0
        %v1040 = vsel %vm1035, %v1024, 0
        %v1043 = vsel %vm1035, %v1027, 0
        %v1046 = vsel %vm1035, %v1028, 0
        %1048 = vmatprep.subr.bf16.mxu0 0
        %1049 = vmatpush1.bf16.xpose.msra.mxu0 0
        %1050 = vmatprep.subr.bf16.mxu0 0
        %1051 = vmatpush1.bf16.xpose.msra.mxu0 0
        %1052 = vmatprep.subr.bf16.mxu0 0
        %1053 = vmatpush1.bf16.xpose.msra.mxu0 0
        %1054 = vmatprep.subr.bf16.mxu0 0
        %1055 = vmatpush1.bf16.xpose.msra.mxu0 0
        %1056 = vmatprep.subr.bf16.mxu0 0
        %1057 = vmatpush1.bf16.xpose.msra.mxu0 0
        %1058 = vmatprep.subr.bf16.mxu0 0
        %1059 = vmatpush1.bf16.xpose.msra.mxu0 0
        %1060 = vmatprep.subr.bf16.mxu0 0
        %1061 = vmatpush1.bf16.xpose.msra.mxu0 %v1046
        %1062 = vmatprep.subr.bf16.mxu0 0
        %1063 = vmatpush1.bf16.xpose.msra.mxu0 %v1043
        %1064 = vmatprep.subr.bf16.mxu0 0
        %1065 = vmatpush2.bf16.xpose.msra.mxu0 0
        %1066 = vmatprep.subr.bf16.mxu0 0
        %1067 = vmatpush2.bf16.xpose.msra.mxu0 0
        %1068 = vmatprep.subr.bf16.mxu0 0
        %1069 = vmatpush2.bf16.xpose.msra.mxu0 0
        %1070 = vmatprep.subr.bf16.mxu0 0
        %1071 = vmatpush2.bf16.xpose.msra.mxu0 0
        %1072 = vmatprep.subr.bf16.mxu0 0
        %1073 = vmatpush2.bf16.xpose.msra.mxu0 0
        %1074 = vmatprep.subr.bf16.mxu0 0
        %1075 = vmatpush2.bf16.xpose.msra.mxu0 0
        %1076 = vmatprep.subr.bf16.mxu0 0
        %1077 = vmatpush2.bf16.xpose.msra.mxu0 0
        %1078 = vmatprep.subr.bf16.mxu0 0
        %1079 = vmatpush2.bf16.xpose.msra.mxu0 0
        %1080 = vmatprep.mubr.bf16.mxu0 0
        %1081 = vmatmul.mubr.bf16.gmra.mxu0 %v1037
        %v1082 = vpop.f32.mrf.mxu0
        %v1083 = vadd.f32 0.0, %v1082
        %v1084 = vpop.f32.mrf.mxu0
        %v1085 = vpop.f32.mrf.mxu0
        %v1086 = vadd.f32 0.0, %v1085
        %v1087 = vpop.f32.mrf.mxu0
        %1088 = vmatprep.mubr.bf16.mxu0 0
        %1089 = vmatmul.mubr.bf16.gmra.mxu0 %v1040
        %v1090 = vpop.f32.mrf.mxu0
        %v1091 = vadd.f32 0.0, %v1090
        %v1092 = vpop.f32.mrf.mxu0
        %v1093 = vpop.f32.mrf.mxu0
        %v1094 = vadd.f32 0.0, %v1093
        %v1095 = vpop.f32.mrf.mxu0
        %1096 = vdwg.mxu0
        %v1098 = vsel %vm1035, %v1025, 0
        %v1101 = vsel %vm1035, %v1026, 0
        %v1104 = vsel %vm1035, %v1029, 0
        %v1107 = vsel %vm1035, %v1030, 0
        %1109 = vmatprep.subr.bf16.mxu0 0
        %1110 = vmatpush1.bf16.xpose.msra.mxu0 0
        %1111 = vmatprep.subr.bf16.mxu0 0
        %1112 = vmatpush1.bf16.xpose.msra.mxu0 0
        %1113 = vmatprep.subr.bf16.mxu0 0
        %1114 = vmatpush1.bf16.xpose.msra.mxu0 0
        %1115 = vmatprep.subr.bf16.mxu0 0
        %1116 = vmatpush1.bf16.xpose.msra.mxu0 0
        %1117 = vmatprep.subr.bf16.mxu0 0
        %1118 = vmatpush1.bf16.xpose.msra.mxu0 0
        %1119 = vmatprep.subr.bf16.mxu0 0
        %1120 = vmatpush1.bf16.xpose.msra.mxu0 0
        %1121 = vmatprep.subr.bf16.mxu0 0
        %1122 = vmatpush1.bf16.xpose.msra.mxu0 %v1107
        %1123 = vmatprep.subr.bf16.mxu0 0
        %1124 = vmatpush1.bf16.xpose.msra.mxu0 %v1104
        %1125 = vmatprep.subr.bf16.mxu0 0
        %1126 = vmatpush2.bf16.xpose.msra.mxu0 0
        %1127 = vmatprep.subr.bf16.mxu0 0
        %1128 = vmatpush2.bf16.xpose.msra.mxu0 0
        %1129 = vmatprep.subr.bf16.mxu0 0
        %1130 = vmatpush2.bf16.xpose.msra.mxu0 0
        %1131 = vmatprep.subr.bf16.mxu0 0
        %1132 = vmatpush2.bf16.xpose.msra.mxu0 0
        %1133 = vmatprep.subr.bf16.mxu0 0
        %1134 = vmatpush2.bf16.xpose.msra.mxu0 0
        %1135 = vmatprep.subr.bf16.mxu0 0
        %1136 = vmatpush2.bf16.xpose.msra.mxu0 0
        %1137 = vmatprep.subr.bf16.mxu0 0
        %1138 = vmatpush2.bf16.xpose.msra.mxu0 0
        %1139 = vmatprep.subr.bf16.mxu0 0
        %1140 = vmatpush2.bf16.xpose.msra.mxu0 0
        %1141 = vmatprep.mubr.bf16.mxu0 0
        %1142 = vmatmul.mubr.bf16.gmra.mxu0 %v1098
        %v1143 = vpop.f32.mrf.mxu0
        %v1144 = vadd.f32 0.0, %v1143
        %v1145 = vpop.f32.mrf.mxu0
        %v1146 = vpop.f32.mrf.mxu0
        %v1147 = vadd.f32 0.0, %v1146
        %v1148 = vpop.f32.mrf.mxu0
        %1149 = vmatprep.mubr.bf16.mxu0 0
        %1150 = vmatmul.mubr.bf16.gmra.mxu0 %v1101
        %v1151 = vpop.f32.mrf.mxu0
        %v1152 = vadd.f32 0.0, %v1151
        %v1153 = vpop.f32.mrf.mxu0
        %v1154 = vpop.f32.mrf.mxu0
        %v1155 = vadd.f32 0.0, %v1154
        %v1156 = vpop.f32.mrf.mxu0
        %1157 = vdwg.mxu0
        %v1158 = vsel %vm1035, %v1083, -inf
        %1159 = vmax.xlane.f32.xlu0 %v1158
        %v1160 = vpop.xlane.xlu0 %1159
        %v1161 = vsel %vm1035, %v1086, -inf
        %1162 = vmax.xlane.f32.xlu0 %v1161
        %v1163 = vpop.xlane.xlu0 %1162
        %v1164 = vsel %vm1035, %v1091, -inf
        %1165 = vmax.xlane.f32.xlu0 %v1164
        %v1166 = vpop.xlane.xlu0 %1165
        %v1167 = vsel %vm1035, %v1094, -inf
        %1168 = vmax.xlane.f32.xlu0 %v1167
        %v1169 = vpop.xlane.xlu0 %1168
        %v1170 = vsel %vm1035, %v1144, -inf
        %1171 = vmax.xlane.f32.xlu0 %v1170
        %v1172 = vpop.xlane.xlu0 %1171
        %v1173 = vsel %vm1035, %v1147, -inf
        %1174 = vmax.xlane.f32.xlu0 %v1173
        %v1175 = vpop.xlane.xlu0 %1174
        %v1176 = vsel %vm1035, %v1152, -inf
        %1177 = vmax.xlane.f32.xlu0 %v1176
        %v1178 = vpop.xlane.xlu0 %1177
        %v1179 = vsel %vm1035, %v1155, -inf
        %1180 = vmax.xlane.f32.xlu0 %v1179
        %v1181 = vpop.xlane.xlu0 %1180
        %v1182 = vsub.f32 %v1083, %v1160
        %v1183 = vsub.f32 %v1086, %v1163
        %v1184 = vsub.f32 %v1091, %v1166
        %v1185 = vsub.f32 %v1094, %v1169
        %v1186 = vsub.f32 %v1144, %v1172
        %v1187 = vsub.f32 %v1147, %v1175
        %v1188 = vsub.f32 %v1152, %v1178
        %v1189 = vsub.f32 %v1155, %v1181
        %v1190 = vmul.f32 %v1182, 1.442695
        %v1191 = vpow.pop %v1190
        %v1192 = vmul.f32 %v1183, 1.442695
        %v1193 = vpow.pop %v1192
        %v1194 = vmul.f32 %v1184, 1.442695
        %v1195 = vpow.pop %v1194
        %v1196 = vmul.f32 %v1185, 1.442695
        %v1197 = vpow.pop %v1196
        %v1198 = vmul.f32 %v1186, 1.442695
        %v1199 = vpow.pop %v1198
        %v1200 = vmul.f32 %v1187, 1.442695
        %v1201 = vpow.pop %v1200
        %v1202 = vmul.f32 %v1188, 1.442695
        %v1203 = vpow.pop %v1202
        %v1204 = vmul.f32 %v1189, 1.442695
        %v1205 = vpow.pop %v1204
        %v1206 = vsel %vm1035, %v1191, 0.0
        %1207 = vadd.xlane.f32.xlu0 %v1206
        %v1208 = vpop.xlane.xlu0 %1207
        %v1209 = vsel %vm1035, %v1193, 0.0
        %1210 = vadd.xlane.f32.xlu0 %v1209
        %v1211 = vpop.xlane.xlu0 %1210
        %v1212 = vsel %vm1035, %v1195, 0.0
        %1213 = vadd.xlane.f32.xlu0 %v1212
        %v1214 = vpop.xlane.xlu0 %1213
        %v1215 = vsel %vm1035, %v1197, 0.0
        %1216 = vadd.xlane.f32.xlu0 %v1215
        %v1217 = vpop.xlane.xlu0 %1216
        %v1218 = vsel %vm1035, %v1199, 0.0
        %1219 = vadd.xlane.f32.xlu0 %v1218
        %v1220 = vpop.xlane.xlu0 %1219
        %v1221 = vsel %vm1035, %v1201, 0.0
        %1222 = vadd.xlane.f32.xlu0 %v1221
        %v1223 = vpop.xlane.xlu0 %1222
        %v1224 = vsel %vm1035, %v1203, 0.0
        %1225 = vadd.xlane.f32.xlu0 %v1224
        %v1226 = vpop.xlane.xlu0 %1225
        %v1227 = vsel %vm1035, %v1205, 0.0
        %1228 = vadd.xlane.f32.xlu0 %v1227
        %v1229 = vpop.xlane.xlu0 %1228
        %v1230 = vpack.c.bf16 %v1193, %v1191
        %v1231 = vpack.c.bf16 %v1197, %v1195
        %v1232 = vpack.c.bf16 %v1201, %v1199
        %v1233 = vpack.c.bf16 %v1205, %v1203
        %v1235 = vsel %vm1035, %v1230, 0
        %v1238 = vsel %vm1035, %v1231, 0
        %1240 = vmatprep.subr.bf16.mxu0 0
        %1241 = vmatpush1.bf16.msra.mxu0 0
        %1242 = vmatprep.subr.bf16.mxu0 0
        %1243 = vmatpush1.bf16.msra.mxu0 0
        %1244 = vmatprep.subr.bf16.mxu0 0
        %1245 = vmatpush1.bf16.msra.mxu0 0
        %1246 = vmatprep.subr.bf16.mxu0 0
        %1247 = vmatpush1.bf16.msra.mxu0 0
        %1248 = vmatprep.subr.bf16.mxu0 0
        %1249 = vmatpush1.bf16.msra.mxu0 0
        %1250 = vmatprep.subr.bf16.mxu0 0
        %1251 = vmatpush1.bf16.msra.mxu0 0
        %1252 = vmatprep.subr.bf16.mxu0 0
        %1253 = vmatpush1.bf16.msra.mxu0 %v1032
        %1254 = vmatprep.subr.bf16.mxu0 0
        %1255 = vmatpush1.bf16.msra.mxu0 %v1031
        %1256 = vmatprep.subr.bf16.mxu0 0
        %1257 = vmatpush2.bf16.msra.mxu0 0
        %1258 = vmatprep.subr.bf16.mxu0 0
        %1259 = vmatpush2.bf16.msra.mxu0 0
        %1260 = vmatprep.subr.bf16.mxu0 0
        %1261 = vmatpush2.bf16.msra.mxu0 0
        %1262 = vmatprep.subr.bf16.mxu0 0
        %1263 = vmatpush2.bf16.msra.mxu0 0
        %1264 = vmatprep.subr.bf16.mxu0 0
        %1265 = vmatpush2.bf16.msra.mxu0 0
        %1266 = vmatprep.subr.bf16.mxu0 0
        %1267 = vmatpush2.bf16.msra.mxu0 0
        %1268 = vmatprep.subr.bf16.mxu0 0
        %1269 = vmatpush2.bf16.msra.mxu0 0
        %1270 = vmatprep.subr.bf16.mxu0 0
        %1271 = vmatpush2.bf16.msra.mxu0 0
        %1272 = vmatprep.mubr.bf16.mxu0 0
        %1273 = vmatmul.mubr.bf16.gmra.mxu0 %v1235
        %v1274 = vpop.f32.mrf.mxu0
        %v1275 = vadd.f32 0.0, %v1274
        %v1276 = vpop.f32.mrf.mxu0
        %v1277 = vpop.f32.mrf.mxu0
        %v1278 = vadd.f32 0.0, %v1277
        %v1279 = vpop.f32.mrf.mxu0
        %1280 = vmatprep.mubr.bf16.mxu0 0
        %1281 = vmatmul.mubr.bf16.gmra.mxu0 %v1238
        %v1282 = vpop.f32.mrf.mxu0
        %v1283 = vadd.f32 0.0, %v1282
        %v1284 = vpop.f32.mrf.mxu0
        %v1285 = vpop.f32.mrf.mxu0
        %v1286 = vadd.f32 0.0, %v1285
        %v1287 = vpop.f32.mrf.mxu0
        %1288 = vdwg.mxu0
        %v1290 = vsel %vm1035, %v1232, 0
        %v1293 = vsel %vm1035, %v1233, 0
        %1295 = vmatprep.subr.bf16.mxu0 0
        %1296 = vmatpush1.bf16.msra.mxu0 0
        %1297 = vmatprep.subr.bf16.mxu0 0
        %1298 = vmatpush1.bf16.msra.mxu0 0
        %1299 = vmatprep.subr.bf16.mxu0 0
        %1300 = vmatpush1.bf16.msra.mxu0 0
        %1301 = vmatprep.subr.bf16.mxu0 0
        %1302 = vmatpush1.bf16.msra.mxu0 0
        %1303 = vmatprep.subr.bf16.mxu0 0
        %1304 = vmatpush1.bf16.msra.mxu0 0
        %1305 = vmatprep.subr.bf16.mxu0 0
        %1306 = vmatpush1.bf16.msra.mxu0 0
        %1307 = vmatprep.subr.bf16.mxu0 0
        %1308 = vmatpush1.bf16.msra.mxu0 %v1034
        %1309 = vmatprep.subr.bf16.mxu0 0
        %1310 = vmatpush1.bf16.msra.mxu0 %v1033
        %1311 = vmatprep.subr.bf16.mxu0 0
        %1312 = vmatpush2.bf16.msra.mxu0 0
        %1313 = vmatprep.subr.bf16.mxu0 0
        %1314 = vmatpush2.bf16.msra.mxu0 0
        %1315 = vmatprep.subr.bf16.mxu0 0
        %1316 = vmatpush2.bf16.msra.mxu0 0
        %1317 = vmatprep.subr.bf16.mxu0 0
        %1318 = vmatpush2.bf16.msra.mxu0 0
        %1319 = vmatprep.subr.bf16.mxu0 0
        %1320 = vmatpush2.bf16.msra.mxu0 0
        %1321 = vmatprep.subr.bf16.mxu0 0
        %1322 = vmatpush2.bf16.msra.mxu0 0
        %1323 = vmatprep.subr.bf16.mxu0 0
        %1324 = vmatpush2.bf16.msra.mxu0 0
        %1325 = vmatprep.subr.bf16.mxu0 0
        %1326 = vmatpush2.bf16.msra.mxu0 0
        %1327 = vmatprep.mubr.bf16.mxu0 0
        %1328 = vmatmul.mubr.bf16.gmra.mxu0 %v1290
        %v1329 = vpop.f32.mrf.mxu0
        %v1330 = vadd.f32 0.0, %v1329
        %v1331 = vpop.f32.mrf.mxu0
        %v1332 = vpop.f32.mrf.mxu0
        %v1333 = vadd.f32 0.0, %v1332
        %v1334 = vpop.f32.mrf.mxu0
        %1335 = vmatprep.mubr.bf16.mxu0 0
        %1336 = vmatmul.mubr.bf16.gmra.mxu0 %v1293
        %v1337 = vpop.f32.mrf.mxu0
        %v1338 = vadd.f32 0.0, %v1337
        %v1339 = vpop.f32.mrf.mxu0
        %v1340 = vpop.f32.mrf.mxu0
        %v1341 = vadd.f32 0.0, %v1340
        %v1342 = vpop.f32.mrf.mxu0
        %1343 = vdwg.mxu0
        %v1344 = vrcp.pop %v1208
        %v1345 = vrcp.pop %v1211
        %v1346 = vrcp.pop %v1214
        %v1347 = vrcp.pop %v1217
        %v1348 = vrcp.pop %v1220
        %v1349 = vrcp.pop %v1223
        %v1350 = vrcp.pop %v1226
        %v1351 = vrcp.pop %v1229
        %v1352 = vmul.f32 %v1275, %v1344
        %v1353 = vmul.f32 %v1278, %v1345
        %v1354 = vmul.f32 %v1283, %v1346
        %v1355 = vmul.f32 %v1286, %v1347
        %v1356 = vmul.f32 %v1330, %v1348
        %v1357 = vmul.f32 %v1333, %v1349
        %v1358 = vmul.f32 %v1338, %v1350
        %v1359 = vmul.f32 %v1341, %v1351
        %v1360 = vpack.c.bf16 %v1353, %v1352
        %v1361 = vpack.c.bf16 %v1355, %v1354
        %v1362 = vpack.c.bf16 %v1357, %v1356
        %v1363 = vpack.c.bf16 %v1359, %v1358
        %v1368 = vunpack.c.l.b16 %v992
        %v1369 = vunpack.c.l.b16 %v993
        %v1370 = vunpack.c.l.b16 %v994
        %v1371 = vunpack.c.l.b16 %v995
        %v1372 = vpack.c.b16 %v1369, %v1368
        %v1373 = vpack.c.b16 %v1371, %v1370
        %v1377 = vsel %vm1035, %v1360, 0
        %v1380 = vsel %vm1035, %v1361, 0
        %v1383 = vsel %vm1035, %v1362, 0
        %v1386 = vsel %vm1035, %v1363, 0
        %1388 = vmatprep.subr.bf16.mxu0 0
        %1389 = vmatpush1.bf16.msra.mxu0 0
        %1390 = vmatprep.subr.bf16.mxu0 0
        %1391 = vmatpush1.bf16.msra.mxu0 0
        %1392 = vmatprep.subr.bf16.mxu0 0
        %1393 = vmatpush1.bf16.msra.mxu0 0
        %1394 = vmatprep.subr.bf16.mxu0 0
        %1395 = vmatpush1.bf16.msra.mxu0 0
        %1396 = vmatprep.subr.bf16.mxu0 0
        %1397 = vmatpush1.bf16.msra.mxu0 0
        %1398 = vmatprep.subr.bf16.mxu0 0
        %1399 = vmatpush1.bf16.msra.mxu0 0
        %1400 = vmatprep.subr.bf16.mxu0 0
        %1401 = vmatpush1.bf16.msra.mxu0 %v1373
        %1402 = vmatprep.subr.bf16.mxu0 0
        %1403 = vmatpush1.bf16.msra.mxu0 %v1372
        %1404 = vmatprep.subr.bf16.mxu0 0
        %1405 = vmatpush2.bf16.msra.mxu0 0
        %1406 = vmatprep.subr.bf16.mxu0 0
        %1407 = vmatpush2.bf16.msra.mxu0 0
        %1408 = vmatprep.subr.bf16.mxu0 0
        %1409 = vmatpush2.bf16.msra.mxu0 0
        %1410 = vmatprep.subr.bf16.mxu0 0
        %1411 = vmatpush2.bf16.msra.mxu0 0
        %1412 = vmatprep.subr.bf16.mxu0 0
        %1413 = vmatpush2.bf16.msra.mxu0 0
        %1414 = vmatprep.subr.bf16.mxu0 0
        %1415 = vmatpush2.bf16.msra.mxu0 0
        %1416 = vmatprep.subr.bf16.mxu0 0
        %1417 = vmatpush2.bf16.msra.mxu0 0
        %1418 = vmatprep.subr.bf16.mxu0 0
        %1419 = vmatpush2.bf16.msra.mxu0 0
        %1420 = vmatprep.mubr.bf16.mxu0 0
        %1421 = vmatmul.mubr.bf16.gmra.mxu0 %v1377
        %v1422 = vpop.f32.mrf.mxu0
        %v1423 = vadd.f32 0.0, %v1422
        %v1424 = vpop.f32.mrf.mxu0
        %v1425 = vpop.f32.mrf.mxu0
        %v1426 = vadd.f32 0.0, %v1425
        %v1427 = vpop.f32.mrf.mxu0
        %1428 = vmatprep.mubr.bf16.mxu0 0
        %1429 = vmatmul.mubr.bf16.gmra.mxu0 %v1380
        %v1430 = vpop.f32.mrf.mxu0
        %v1431 = vadd.f32 0.0, %v1430
        %v1432 = vpop.f32.mrf.mxu0
        %v1433 = vpop.f32.mrf.mxu0
        %v1434 = vadd.f32 0.0, %v1433
        %v1435 = vpop.f32.mrf.mxu0
        %1436 = vmatprep.mubr.bf16.mxu0 0
        %1437 = vmatmul.mubr.bf16.gmra.mxu0 %v1383
        %v1438 = vpop.f32.mrf.mxu0
        %v1439 = vadd.f32 0.0, %v1438
        %v1440 = vpop.f32.mrf.mxu0
        %v1441 = vpop.f32.mrf.mxu0
        %v1442 = vadd.f32 0.0, %v1441
        %v1443 = vpop.f32.mrf.mxu0
        %1444 = vmatprep.mubr.bf16.mxu0 0
        %1445 = vmatmul.mubr.bf16.gmra.mxu0 %v1386
        %v1446 = vpop.f32.mrf.mxu0
        %v1447 = vadd.f32 0.0, %v1446
        %v1448 = vpop.f32.mrf.mxu0
        %v1449 = vpop.f32.mrf.mxu0
        %v1450 = vadd.f32 0.0, %v1449
        %v1451 = vpop.f32.mrf.mxu0
        %1452 = vdwg.mxu0
        %v1453 = vadd.f32 %v1015, %v1423
        %v1454 = vadd.f32 %v1016, %v1426
        %v1455 = vadd.f32 %v1017, %v1431
        %v1456 = vadd.f32 %v1018, %v1434
        %v1457 = vadd.f32 %v1019, %v1439
        %v1458 = vadd.f32 %v1020, %v1442
        %v1459 = vadd.f32 %v1021, %v1447
        %v1460 = vadd.f32 %v1022, %v1450
        %1463 = vrot.lane.b32.xlu0 %v1023, 96
        %v1464 = vpop.permute.xlu0 %1463
        %1465 = vrot.lane.b32.xlu0 %v1024, 96
        %v1466 = vpop.permute.xlu0 %1465
        %1469 = vrot.lane.b32.xlu0 %v1027, 96
        %v1470 = vpop.permute.xlu0 %1469
        %1471 = vrot.lane.b32.xlu0 %v1028, 96
        %v1472 = vpop.permute.xlu0 %1471
        %v1474 = vsel %vm1035, %v1464, 0
        %v1477 = vsel %vm1035, %v1466, 0
        %v1480 = vsel %vm1035, %v1470, 0
        %v1483 = vsel %vm1035, %v1472, 0
        %1485 = vmatprep.subr.bf16.mxu0 0
        %1486 = vmatpush1.bf16.xpose.msra.mxu0 0
        %1487 = vmatprep.subr.bf16.mxu0 0
        %1488 = vmatpush1.bf16.xpose.msra.mxu0 0
        %1489 = vmatprep.subr.bf16.mxu0 0
        %1490 = vmatpush1.bf16.xpose.msra.mxu0 0
        %1491 = vmatprep.subr.bf16.mxu0 0
        %1492 = vmatpush1.bf16.xpose.msra.mxu0 0
        %1493 = vmatprep.subr.bf16.mxu0 0
        %1494 = vmatpush1.bf16.xpose.msra.mxu0 0
        %1495 = vmatprep.subr.bf16.mxu0 0
        %1496 = vmatpush1.bf16.xpose.msra.mxu0 0
        %1497 = vmatprep.subr.bf16.mxu0 0
        %1498 = vmatpush1.bf16.xpose.msra.mxu0 %v1483
        %1499 = vmatprep.subr.bf16.mxu0 0
        %1500 = vmatpush1.bf16.xpose.msra.mxu0 %v1480
        %1501 = vmatprep.subr.bf16.mxu0 0
        %1502 = vmatpush2.bf16.xpose.msra.mxu0 0
        %1503 = vmatprep.subr.bf16.mxu0 0
        %1504 = vmatpush2.bf16.xpose.msra.mxu0 0
        %1505 = vmatprep.subr.bf16.mxu0 0
        %1506 = vmatpush2.bf16.xpose.msra.mxu0 0
        %1507 = vmatprep.subr.bf16.mxu0 0
        %1508 = vmatpush2.bf16.xpose.msra.mxu0 0
        %1509 = vmatprep.subr.bf16.mxu0 0
        %1510 = vmatpush2.bf16.xpose.msra.mxu0 0
        %1511 = vmatprep.subr.bf16.mxu0 0
        %1512 = vmatpush2.bf16.xpose.msra.mxu0 0
        %1513 = vmatprep.subr.bf16.mxu0 0
        %1514 = vmatpush2.bf16.xpose.msra.mxu0 0
        %1515 = vmatprep.subr.bf16.mxu0 0
        %1516 = vmatpush2.bf16.xpose.msra.mxu0 0
        %1517 = vmatprep.mubr.bf16.mxu0 0
        %1518 = vmatmul.mubr.bf16.gmra.mxu0 %v1474
        %v1519 = vpop.f32.mrf.mxu0
        %v1520 = vadd.f32 0.0, %v1519
        %v1521 = vpop.f32.mrf.mxu0
        %v1522 = vpop.f32.mrf.mxu0
        %v1523 = vadd.f32 0.0, %v1522
        %v1524 = vpop.f32.mrf.mxu0
        %1525 = vmatprep.mubr.bf16.mxu0 0
        %1526 = vmatmul.mubr.bf16.gmra.mxu0 %v1477
        %v1527 = vpop.f32.mrf.mxu0
        %v1528 = vadd.f32 0.0, %v1527
        %v1529 = vpop.f32.mrf.mxu0
        %v1530 = vpop.f32.mrf.mxu0
        %v1531 = vadd.f32 0.0, %v1530
        %v1532 = vpop.f32.mrf.mxu0
        %1533 = vdwg.mxu0
        %1536 = vrot.lane.b32.xlu0 %v1025, 96
        %v1537 = vpop.permute.xlu0 %1536
        %1538 = vrot.lane.b32.xlu0 %v1026, 96
        %v1539 = vpop.permute.xlu0 %1538
        %1542 = vrot.lane.b32.xlu0 %v1029, 96
        %v1543 = vpop.permute.xlu0 %1542
        %1544 = vrot.lane.b32.xlu0 %v1030, 96
        %v1545 = vpop.permute.xlu0 %1544
        %v1547 = vsel %vm1035, %v1537, 0
        %v1550 = vsel %vm1035, %v1539, 0
        %v1553 = vsel %vm1035, %v1543, 0
        %v1556 = vsel %vm1035, %v1545, 0
        %1558 = vmatprep.subr.bf16.mxu0 0
        %1559 = vmatpush1.bf16.xpose.msra.mxu0 0
        %1560 = vmatprep.subr.bf16.mxu0 0
        %1561 = vmatpush1.bf16.xpose.msra.mxu0 0
        %1562 = vmatprep.subr.bf16.mxu0 0
        %1563 = vmatpush1.bf16.xpose.msra.mxu0 0
        %1564 = vmatprep.subr.bf16.mxu0 0
        %1565 = vmatpush1.bf16.xpose.msra.mxu0 0
        %1566 = vmatprep.subr.bf16.mxu0 0
        %1567 = vmatpush1.bf16.xpose.msra.mxu0 0
        %1568 = vmatprep.subr.bf16.mxu0 0
        %1569 = vmatpush1.bf16.xpose.msra.mxu0 0
        %1570 = vmatprep.subr.bf16.mxu0 0
        %1571 = vmatpush1.bf16.xpose.msra.mxu0 %v1556
        %1572 = vmatprep.subr.bf16.mxu0 0
        %1573 = vmatpush1.bf16.xpose.msra.mxu0 %v1553
        %1574 = vmatprep.subr.bf16.mxu0 0
        %1575 = vmatpush2.bf16.xpose.msra.mxu0 0
        %1576 = vmatprep.subr.bf16.mxu0 0
        %1577 = vmatpush2.bf16.xpose.msra.mxu0 0
        %1578 = vmatprep.subr.bf16.mxu0 0
        %1579 = vmatpush2.bf16.xpose.msra.mxu0 0
        %1580 = vmatprep.subr.bf16.mxu0 0
        %1581 = vmatpush2.bf16.xpose.msra.mxu0 0
        %1582 = vmatprep.subr.bf16.mxu0 0
        %1583 = vmatpush2.bf16.xpose.msra.mxu0 0
        %1584 = vmatprep.subr.bf16.mxu0 0
        %1585 = vmatpush2.bf16.xpose.msra.mxu0 0
        %1586 = vmatprep.subr.bf16.mxu0 0
        %1587 = vmatpush2.bf16.xpose.msra.mxu0 0
        %1588 = vmatprep.subr.bf16.mxu0 0
        %1589 = vmatpush2.bf16.xpose.msra.mxu0 0
        %1590 = vmatprep.mubr.bf16.mxu0 0
        %1591 = vmatmul.mubr.bf16.gmra.mxu0 %v1547
        %v1592 = vpop.f32.mrf.mxu0
        %v1593 = vadd.f32 0.0, %v1592
        %v1594 = vpop.f32.mrf.mxu0
        %v1595 = vpop.f32.mrf.mxu0
        %v1596 = vadd.f32 0.0, %v1595
        %v1597 = vpop.f32.mrf.mxu0
        %1598 = vmatprep.mubr.bf16.mxu0 0
        %1599 = vmatmul.mubr.bf16.gmra.mxu0 %v1550
        %v1600 = vpop.f32.mrf.mxu0
        %v1601 = vadd.f32 0.0, %v1600
        %v1602 = vpop.f32.mrf.mxu0
        %v1603 = vpop.f32.mrf.mxu0
        %v1604 = vadd.f32 0.0, %v1603
        %v1605 = vpop.f32.mrf.mxu0
        %1606 = vdwg.mxu0
        %v1607 = vsel %vm1035, %v1520, -inf
        %1608 = vmax.xlane.f32.xlu0 %v1607
        %v1609 = vpop.xlane.xlu0 %1608
        %v1610 = vsel %vm1035, %v1523, -inf
        %1611 = vmax.xlane.f32.xlu0 %v1610
        %v1612 = vpop.xlane.xlu0 %1611
        %v1613 = vsel %vm1035, %v1528, -inf
        %1614 = vmax.xlane.f32.xlu0 %v1613
        %v1615 = vpop.xlane.xlu0 %1614
        %v1616 = vsel %vm1035, %v1531, -inf
        %1617 = vmax.xlane.f32.xlu0 %v1616
        %v1618 = vpop.xlane.xlu0 %1617
        %v1619 = vsel %vm1035, %v1593, -inf
        %1620 = vmax.xlane.f32.xlu0 %v1619
        %v1621 = vpop.xlane.xlu0 %1620
        %v1622 = vsel %vm1035, %v1596, -inf
        %1623 = vmax.xlane.f32.xlu0 %v1622
        %v1624 = vpop.xlane.xlu0 %1623
        %v1625 = vsel %vm1035, %v1601, -inf
        %1626 = vmax.xlane.f32.xlu0 %v1625
        %v1627 = vpop.xlane.xlu0 %1626
        %v1628 = vsel %vm1035, %v1604, -inf
        %1629 = vmax.xlane.f32.xlu0 %v1628
        %v1630 = vpop.xlane.xlu0 %1629
        %v1631 = vsub.f32 %v1520, %v1609
        %v1632 = vsub.f32 %v1523, %v1612
        %v1633 = vsub.f32 %v1528, %v1615
        %v1634 = vsub.f32 %v1531, %v1618
        %v1635 = vsub.f32 %v1593, %v1621
        %v1636 = vsub.f32 %v1596, %v1624
        %v1637 = vsub.f32 %v1601, %v1627
        %v1638 = vsub.f32 %v1604, %v1630
        %v1639 = vmul.f32 %v1631, 1.442695
        %v1640 = vpow.pop %v1639
        %v1641 = vmul.f32 %v1632, 1.442695
        %v1642 = vpow.pop %v1641
        %v1643 = vmul.f32 %v1633, 1.442695
        %v1644 = vpow.pop %v1643
        %v1645 = vmul.f32 %v1634, 1.442695
        %v1646 = vpow.pop %v1645
        %v1647 = vmul.f32 %v1635, 1.442695
        %v1648 = vpow.pop %v1647
        %v1649 = vmul.f32 %v1636, 1.442695
        %v1650 = vpow.pop %v1649
        %v1651 = vmul.f32 %v1637, 1.442695
        %v1652 = vpow.pop %v1651
        %v1653 = vmul.f32 %v1638, 1.442695
        %v1654 = vpow.pop %v1653
        %v1655 = vsel %vm1035, %v1640, 0.0
        %1656 = vadd.xlane.f32.xlu0 %v1655
        %v1657 = vpop.xlane.xlu0 %1656
        %v1658 = vsel %vm1035, %v1642, 0.0
        %1659 = vadd.xlane.f32.xlu0 %v1658
        %v1660 = vpop.xlane.xlu0 %1659
        %v1661 = vsel %vm1035, %v1644, 0.0
        %1662 = vadd.xlane.f32.xlu0 %v1661
        %v1663 = vpop.xlane.xlu0 %1662
        %v1664 = vsel %vm1035, %v1646, 0.0
        %1665 = vadd.xlane.f32.xlu0 %v1664
        %v1666 = vpop.xlane.xlu0 %1665
        %v1667 = vsel %vm1035, %v1648, 0.0
        %1668 = vadd.xlane.f32.xlu0 %v1667
        %v1669 = vpop.xlane.xlu0 %1668
        %v1670 = vsel %vm1035, %v1650, 0.0
        %1671 = vadd.xlane.f32.xlu0 %v1670
        %v1672 = vpop.xlane.xlu0 %1671
        %v1673 = vsel %vm1035, %v1652, 0.0
        %1674 = vadd.xlane.f32.xlu0 %v1673
        %v1675 = vpop.xlane.xlu0 %1674
        %v1676 = vsel %vm1035, %v1654, 0.0
        %1677 = vadd.xlane.f32.xlu0 %v1676
        %v1678 = vpop.xlane.xlu0 %1677
        %v1679 = vpack.c.bf16 %v1642, %v1640
        %v1680 = vpack.c.bf16 %v1646, %v1644
        %v1681 = vpack.c.bf16 %v1650, %v1648
        %v1682 = vpack.c.bf16 %v1654, %v1652
        %1685 = vrot.lane.b32.xlu0 %v1031, 96
        %v1686 = vpop.permute.xlu0 %1685
        %1687 = vrot.lane.b32.xlu0 %v1032, 96
        %v1688 = vpop.permute.xlu0 %1687
        %v1692 = vsel %vm1035, %v1679, 0
        %v1695 = vsel %vm1035, %v1680, 0
        %1697 = vmatprep.subr.bf16.mxu0 0
        %1698 = vmatpush1.bf16.msra.mxu0 0
        %1699 = vmatprep.subr.bf16.mxu0 0
        %1700 = vmatpush1.bf16.msra.mxu0 0
        %1701 = vmatprep.subr.bf16.mxu0 0
        %1702 = vmatpush1.bf16.msra.mxu0 0
        %1703 = vmatprep.subr.bf16.mxu0 0
        %1704 = vmatpush1.bf16.msra.mxu0 0
        %1705 = vmatprep.subr.bf16.mxu0 0
        %1706 = vmatpush1.bf16.msra.mxu0 0
        %1707 = vmatprep.subr.bf16.mxu0 0
        %1708 = vmatpush1.bf16.msra.mxu0 0
        %1709 = vmatprep.subr.bf16.mxu0 0
        %1710 = vmatpush1.bf16.msra.mxu0 %v1688
        %1711 = vmatprep.subr.bf16.mxu0 0
        %1712 = vmatpush1.bf16.msra.mxu0 %v1686
        %1713 = vmatprep.subr.bf16.mxu0 0
        %1714 = vmatpush2.bf16.msra.mxu0 0
        %1715 = vmatprep.subr.bf16.mxu0 0
        %1716 = vmatpush2.bf16.msra.mxu0 0
        %1717 = vmatprep.subr.bf16.mxu0 0
        %1718 = vmatpush2.bf16.msra.mxu0 0
        %1719 = vmatprep.subr.bf16.mxu0 0
        %1720 = vmatpush2.bf16.msra.mxu0 0
        %1721 = vmatprep.subr.bf16.mxu0 0
        %1722 = vmatpush2.bf16.msra.mxu0 0
        %1723 = vmatprep.subr.bf16.mxu0 0
        %1724 = vmatpush2.bf16.msra.mxu0 0
        %1725 = vmatprep.subr.bf16.mxu0 0
        %1726 = vmatpush2.bf16.msra.mxu0 0
        %1727 = vmatprep.subr.bf16.mxu0 0
        %1728 = vmatpush2.bf16.msra.mxu0 0
        %1729 = vmatprep.mubr.bf16.mxu0 0
        %1730 = vmatmul.mubr.bf16.gmra.mxu0 %v1692
        %v1731 = vpop.f32.mrf.mxu0
        %v1732 = vadd.f32 0.0, %v1731
        %v1733 = vpop.f32.mrf.mxu0
        %v1734 = vpop.f32.mrf.mxu0
        %v1735 = vadd.f32 0.0, %v1734
        %v1736 = vpop.f32.mrf.mxu0
        %1737 = vmatprep.mubr.bf16.mxu0 0
        %1738 = vmatmul.mubr.bf16.gmra.mxu0 %v1695
        %v1739 = vpop.f32.mrf.mxu0
        %v1740 = vadd.f32 0.0, %v1739
        %v1741 = vpop.f32.mrf.mxu0
        %v1742 = vpop.f32.mrf.mxu0
        %v1743 = vadd.f32 0.0, %v1742
        %v1744 = vpop.f32.mrf.mxu0
        %1745 = vdwg.mxu0
        %1748 = vrot.lane.b32.xlu0 %v1033, 96
        %v1749 = vpop.permute.xlu0 %1748
        %1750 = vrot.lane.b32.xlu0 %v1034, 96
        %v1751 = vpop.permute.xlu0 %1750
        %v1755 = vsel %vm1035, %v1681, 0
        %v1758 = vsel %vm1035, %v1682, 0
        %1760 = vmatprep.subr.bf16.mxu0 0
        %1761 = vmatpush1.bf16.msra.mxu0 0
        %1762 = vmatprep.subr.bf16.mxu0 0
        %1763 = vmatpush1.bf16.msra.mxu0 0
        %1764 = vmatprep.subr.bf16.mxu0 0
        %1765 = vmatpush1.bf16.msra.mxu0 0
        %1766 = vmatprep.subr.bf16.mxu0 0
        %1767 = vmatpush1.bf16.msra.mxu0 0
        %1768 = vmatprep.subr.bf16.mxu0 0
        %1769 = vmatpush1.bf16.msra.mxu0 0
        %1770 = vmatprep.subr.bf16.mxu0 0
        %1771 = vmatpush1.bf16.msra.mxu0 0
        %1772 = vmatprep.subr.bf16.mxu0 0
        %1773 = vmatpush1.bf16.msra.mxu0 %v1751
        %1774 = vmatprep.subr.bf16.mxu0 0
        %1775 = vmatpush1.bf16.msra.mxu0 %v1749
        %1776 = vmatprep.subr.bf16.mxu0 0
        %1777 = vmatpush2.bf16.msra.mxu0 0
        %1778 = vmatprep.subr.bf16.mxu0 0
        %1779 = vmatpush2.bf16.msra.mxu0 0
        %1780 = vmatprep.subr.bf16.mxu0 0
        %1781 = vmatpush2.bf16.msra.mxu0 0
        %1782 = vmatprep.subr.bf16.mxu0 0
        %1783 = vmatpush2.bf16.msra.mxu0 0
        %1784 = vmatprep.subr.bf16.mxu0 0
        %1785 = vmatpush2.bf16.msra.mxu0 0
        %1786 = vmatprep.subr.bf16.mxu0 0
        %1787 = vmatpush2.bf16.msra.mxu0 0
        %1788 = vmatprep.subr.bf16.mxu0 0
        %1789 = vmatpush2.bf16.msra.mxu0 0
        %1790 = vmatprep.subr.bf16.mxu0 0
        %1791 = vmatpush2.bf16.msra.mxu0 0
        %1792 = vmatprep.mubr.bf16.mxu0 0
        %1793 = vmatmul.mubr.bf16.gmra.mxu0 %v1755
        %v1794 = vpop.f32.mrf.mxu0
        %v1795 = vadd.f32 0.0, %v1794
        %v1796 = vpop.f32.mrf.mxu0
        %v1797 = vpop.f32.mrf.mxu0
        %v1798 = vadd.f32 0.0, %v1797
        %v1799 = vpop.f32.mrf.mxu0
        %1800 = vmatprep.mubr.bf16.mxu0 0
        %1801 = vmatmul.mubr.bf16.gmra.mxu0 %v1758
        %v1802 = vpop.f32.mrf.mxu0
        %v1803 = vadd.f32 0.0, %v1802
        %v1804 = vpop.f32.mrf.mxu0
        %v1805 = vpop.f32.mrf.mxu0
        %v1806 = vadd.f32 0.0, %v1805
        %v1807 = vpop.f32.mrf.mxu0
        %1808 = vdwg.mxu0
        %v1809 = vrcp.pop %v1657
        %v1810 = vrcp.pop %v1660
        %v1811 = vrcp.pop %v1663
        %v1812 = vrcp.pop %v1666
        %v1813 = vrcp.pop %v1669
        %v1814 = vrcp.pop %v1672
        %v1815 = vrcp.pop %v1675
        %v1816 = vrcp.pop %v1678
        %v1817 = vmul.f32 %v1732, %v1809
        %v1818 = vmul.f32 %v1735, %v1810
        %v1819 = vmul.f32 %v1740, %v1811
        %v1820 = vmul.f32 %v1743, %v1812
        %v1821 = vmul.f32 %v1795, %v1813
        %v1822 = vmul.f32 %v1798, %v1814
        %v1823 = vmul.f32 %v1803, %v1815
        %v1824 = vmul.f32 %v1806, %v1816
        %v1825 = vpack.c.bf16 %v1818, %v1817
        %v1826 = vpack.c.bf16 %v1820, %v1819
        %v1827 = vpack.c.bf16 %v1822, %v1821
        %v1828 = vpack.c.bf16 %v1824, %v1823
        %v1833 = vunpack.c.l.b16 %v996
        %v1834 = vunpack.c.l.b16 %v997
        %v1835 = vunpack.c.l.b16 %v998
        %v1836 = vunpack.c.l.b16 %v999
        %v1837 = vpack.c.b16 %v1834, %v1833
        %v1838 = vpack.c.b16 %v1836, %v1835
        %v1842 = vsel %vm1035, %v1825, 0
        %v1845 = vsel %vm1035, %v1826, 0
        %v1848 = vsel %vm1035, %v1827, 0
        %v1851 = vsel %vm1035, %v1828, 0
        %1853 = vmatprep.subr.bf16.mxu0 0
        %1854 = vmatpush1.bf16.msra.mxu0 0
        %1855 = vmatprep.subr.bf16.mxu0 0
        %1856 = vmatpush1.bf16.msra.mxu0 0
        %1857 = vmatprep.subr.bf16.mxu0 0
        %1858 = vmatpush1.bf16.msra.mxu0 0
        %1859 = vmatprep.subr.bf16.mxu0 0
        %1860 = vmatpush1.bf16.msra.mxu0 0
        %1861 = vmatprep.subr.bf16.mxu0 0
        %1862 = vmatpush1.bf16.msra.mxu0 0
        %1863 = vmatprep.subr.bf16.mxu0 0
        %1864 = vmatpush1.bf16.msra.mxu0 0
        %1865 = vmatprep.subr.bf16.mxu0 0
        %1866 = vmatpush1.bf16.msra.mxu0 %v1838
        %1867 = vmatprep.subr.bf16.mxu0 0
        %1868 = vmatpush1.bf16.msra.mxu0 %v1837
        %1869 = vmatprep.subr.bf16.mxu0 0
        %1870 = vmatpush2.bf16.msra.mxu0 0
        %1871 = vmatprep.subr.bf16.mxu0 0
        %1872 = vmatpush2.bf16.msra.mxu0 0
        %1873 = vmatprep.subr.bf16.mxu0 0
        %1874 = vmatpush2.bf16.msra.mxu0 0
        %1875 = vmatprep.subr.bf16.mxu0 0
        %1876 = vmatpush2.bf16.msra.mxu0 0
        %1877 = vmatprep.subr.bf16.mxu0 0
        %1878 = vmatpush2.bf16.msra.mxu0 0
        %1879 = vmatprep.subr.bf16.mxu0 0
        %1880 = vmatpush2.bf16.msra.mxu0 0
        %1881 = vmatprep.subr.bf16.mxu0 0
        %1882 = vmatpush2.bf16.msra.mxu0 0
        %1883 = vmatprep.subr.bf16.mxu0 0
        %1884 = vmatpush2.bf16.msra.mxu0 0
        %1885 = vmatprep.mubr.bf16.mxu0 0
        %1886 = vmatmul.mubr.bf16.gmra.mxu0 %v1842
        %v1887 = vpop.f32.mrf.mxu0
        %v1888 = vadd.f32 0.0, %v1887
        %v1889 = vpop.f32.mrf.mxu0
        %v1890 = vpop.f32.mrf.mxu0
        %v1891 = vadd.f32 0.0, %v1890
        %v1892 = vpop.f32.mrf.mxu0
        %1893 = vmatprep.mubr.bf16.mxu0 0
        %1894 = vmatmul.mubr.bf16.gmra.mxu0 %v1845
        %v1895 = vpop.f32.mrf.mxu0
        %v1896 = vadd.f32 0.0, %v1895
        %v1897 = vpop.f32.mrf.mxu0
        %v1898 = vpop.f32.mrf.mxu0
        %v1899 = vadd.f32 0.0, %v1898
        %v1900 = vpop.f32.mrf.mxu0
        %1901 = vmatprep.mubr.bf16.mxu0 0
        %1902 = vmatmul.mubr.bf16.gmra.mxu0 %v1848
        %v1903 = vpop.f32.mrf.mxu0
        %v1904 = vadd.f32 0.0, %v1903
        %v1905 = vpop.f32.mrf.mxu0
        %v1906 = vpop.f32.mrf.mxu0
        %v1907 = vadd.f32 0.0, %v1906
        %v1908 = vpop.f32.mrf.mxu0
        %1909 = vmatprep.mubr.bf16.mxu0 0
        %1910 = vmatmul.mubr.bf16.gmra.mxu0 %v1851
        %v1911 = vpop.f32.mrf.mxu0
        %v1912 = vadd.f32 0.0, %v1911
        %v1913 = vpop.f32.mrf.mxu0
        %v1914 = vpop.f32.mrf.mxu0
        %v1915 = vadd.f32 0.0, %v1914
        %v1916 = vpop.f32.mrf.mxu0
        %1917 = vdwg.mxu0
        %v1918 = vadd.f32 %v1453, %v1888
        %v1919 = vadd.f32 %v1454, %v1891
        %v1920 = vadd.f32 %v1455, %v1896
        %v1921 = vadd.f32 %v1456, %v1899
        %v1922 = vadd.f32 %v1457, %v1904
        %v1923 = vadd.f32 %v1458, %v1907
        %v1924 = vadd.f32 %v1459, %v1912
        %v1925 = vadd.f32 %v1460, %v1915
        %1926 = vrot.lane.b32.xlu0 %v1023, 64
        %v1927 = vpop.permute.xlu0 %1926
        %1928 = vrot.lane.b32.xlu0 %v1024, 64
        %v1929 = vpop.permute.xlu0 %1928
        %1930 = vrot.lane.b32.xlu0 %v1027, 64
        %v1931 = vpop.permute.xlu0 %1930
        %1932 = vrot.lane.b32.xlu0 %v1028, 64
        %v1933 = vpop.permute.xlu0 %1932
        %v1935 = vsel %vm1035, %v1927, 0
        %v1938 = vsel %vm1035, %v1929, 0
        %v1941 = vsel %vm1035, %v1931, 0
        %v1944 = vsel %vm1035, %v1933, 0
        %1946 = vmatprep.subr.bf16.mxu0 0
        %1947 = vmatpush1.bf16.xpose.msra.mxu0 0
        %1948 = vmatprep.subr.bf16.mxu0 0
        %1949 = vmatpush1.bf16.xpose.msra.mxu0 0
        %1950 = vmatprep.subr.bf16.mxu0 0
        %1951 = vmatpush1.bf16.xpose.msra.mxu0 0
        %1952 = vmatprep.subr.bf16.mxu0 0
        %1953 = vmatpush1.bf16.xpose.msra.mxu0 0
        %1954 = vmatprep.subr.bf16.mxu0 0
        %1955 = vmatpush1.bf16.xpose.msra.mxu0 0
        %1956 = vmatprep.subr.bf16.mxu0 0
        %1957 = vmatpush1.bf16.xpose.msra.mxu0 0
        %1958 = vmatprep.subr.bf16.mxu0 0
        %1959 = vmatpush1.bf16.xpose.msra.mxu0 %v1944
        %1960 = vmatprep.subr.bf16.mxu0 0
        %1961 = vmatpush1.bf16.xpose.msra.mxu0 %v1941
        %1962 = vmatprep.subr.bf16.mxu0 0
        %1963 = vmatpush2.bf16.xpose.msra.mxu0 0
        %1964 = vmatprep.subr.bf16.mxu0 0
        %1965 = vmatpush2.bf16.xpose.msra.mxu0 0
        %1966 = vmatprep.subr.bf16.mxu0 0
        %1967 = vmatpush2.bf16.xpose.msra.mxu0 0
        %1968 = vmatprep.subr.bf16.mxu0 0
        %1969 = vmatpush2.bf16.xpose.msra.mxu0 0
        %1970 = vmatprep.subr.bf16.mxu0 0
        %1971 = vmatpush2.bf16.xpose.msra.mxu0 0
        %1972 = vmatprep.subr.bf16.mxu0 0
        %1973 = vmatpush2.bf16.xpose.msra.mxu0 0
        %1974 = vmatprep.subr.bf16.mxu0 0
        %1975 = vmatpush2.bf16.xpose.msra.mxu0 0
        %1976 = vmatprep.subr.bf16.mxu0 0
        %1977 = vmatpush2.bf16.xpose.msra.mxu0 0
        %1978 = vmatprep.mubr.bf16.mxu0 0
        %1979 = vmatmul.mubr.bf16.gmra.mxu0 %v1935
        %v1980 = vpop.f32.mrf.mxu0
        %v1981 = vadd.f32 0.0, %v1980
        %v1982 = vpop.f32.mrf.mxu0
        %v1983 = vpop.f32.mrf.mxu0
        %v1984 = vadd.f32 0.0, %v1983
        %v1985 = vpop.f32.mrf.mxu0
        %1986 = vmatprep.mubr.bf16.mxu0 0
        %1987 = vmatmul.mubr.bf16.gmra.mxu0 %v1938
        %v1988 = vpop.f32.mrf.mxu0
        %v1989 = vadd.f32 0.0, %v1988
        %v1990 = vpop.f32.mrf.mxu0
        %v1991 = vpop.f32.mrf.mxu0
        %v1992 = vadd.f32 0.0, %v1991
        %v1993 = vpop.f32.mrf.mxu0
        %1994 = vdwg.mxu0
        %1995 = vrot.lane.b32.xlu0 %v1025, 64
        %v1996 = vpop.permute.xlu0 %1995
        %1997 = vrot.lane.b32.xlu0 %v1026, 64
        %v1998 = vpop.permute.xlu0 %1997
        %1999 = vrot.lane.b32.xlu0 %v1029, 64
        %v2000 = vpop.permute.xlu0 %1999
        %2001 = vrot.lane.b32.xlu0 %v1030, 64
        %v2002 = vpop.permute.xlu0 %2001
        %v2004 = vsel %vm1035, %v1996, 0
        %v2007 = vsel %vm1035, %v1998, 0
        %v2010 = vsel %vm1035, %v2000, 0
        %v2013 = vsel %vm1035, %v2002, 0
        %2015 = vmatprep.subr.bf16.mxu0 0
        %2016 = vmatpush1.bf16.xpose.msra.mxu0 0
        %2017 = vmatprep.subr.bf16.mxu0 0
        %2018 = vmatpush1.bf16.xpose.msra.mxu0 0
        %2019 = vmatprep.subr.bf16.mxu0 0
        %2020 = vmatpush1.bf16.xpose.msra.mxu0 0
        %2021 = vmatprep.subr.bf16.mxu0 0
        %2022 = vmatpush1.bf16.xpose.msra.mxu0 0
        %2023 = vmatprep.subr.bf16.mxu0 0
        %2024 = vmatpush1.bf16.xpose.msra.mxu0 0
        %2025 = vmatprep.subr.bf16.mxu0 0
        %2026 = vmatpush1.bf16.xpose.msra.mxu0 0
        %2027 = vmatprep.subr.bf16.mxu0 0
        %2028 = vmatpush1.bf16.xpose.msra.mxu0 %v2013
        %2029 = vmatprep.subr.bf16.mxu0 0
        %2030 = vmatpush1.bf16.xpose.msra.mxu0 %v2010
        %2031 = vmatprep.subr.bf16.mxu0 0
        %2032 = vmatpush2.bf16.xpose.msra.mxu0 0
        %2033 = vmatprep.subr.bf16.mxu0 0
        %2034 = vmatpush2.bf16.xpose.msra.mxu0 0
        %2035 = vmatprep.subr.bf16.mxu0 0
        %2036 = vmatpush2.bf16.xpose.msra.mxu0 0
        %2037 = vmatprep.subr.bf16.mxu0 0
        %2038 = vmatpush2.bf16.xpose.msra.mxu0 0
        %2039 = vmatprep.subr.bf16.mxu0 0
        %2040 = vmatpush2.bf16.xpose.msra.mxu0 0
        %2041 = vmatprep.subr.bf16.mxu0 0
        %2042 = vmatpush2.bf16.xpose.msra.mxu0 0
        %2043 = vmatprep.subr.bf16.mxu0 0
        %2044 = vmatpush2.bf16.xpose.msra.mxu0 0
        %2045 = vmatprep.subr.bf16.mxu0 0
        %2046 = vmatpush2.bf16.xpose.msra.mxu0 0
        %2047 = vmatprep.mubr.bf16.mxu0 0
        %2048 = vmatmul.mubr.bf16.gmra.mxu0 %v2004
        %v2049 = vpop.f32.mrf.mxu0
        %v2050 = vadd.f32 0.0, %v2049
        %v2051 = vpop.f32.mrf.mxu0
        %v2052 = vpop.f32.mrf.mxu0
        %v2053 = vadd.f32 0.0, %v2052
        %v2054 = vpop.f32.mrf.mxu0
        %2055 = vmatprep.mubr.bf16.mxu0 0
        %2056 = vmatmul.mubr.bf16.gmra.mxu0 %v2007
        %v2057 = vpop.f32.mrf.mxu0
        %v2058 = vadd.f32 0.0, %v2057
        %v2059 = vpop.f32.mrf.mxu0
        %v2060 = vpop.f32.mrf.mxu0
        %v2061 = vadd.f32 0.0, %v2060
        %v2062 = vpop.f32.mrf.mxu0
        %2063 = vdwg.mxu0
        %v2064 = vsel %vm1035, %v1981, -inf
        %2065 = vmax.xlane.f32.xlu0 %v2064
        %v2066 = vpop.xlane.xlu0 %2065
        %v2067 = vsel %vm1035, %v1984, -inf
        %2068 = vmax.xlane.f32.xlu0 %v2067
        %v2069 = vpop.xlane.xlu0 %2068
        %v2070 = vsel %vm1035, %v1989, -inf
        %2071 = vmax.xlane.f32.xlu0 %v2070
        %v2072 = vpop.xlane.xlu0 %2071
        %v2073 = vsel %vm1035, %v1992, -inf
        %2074 = vmax.xlane.f32.xlu0 %v2073
        %v2075 = vpop.xlane.xlu0 %2074
        %v2076 = vsel %vm1035, %v2050, -inf
        %2077 = vmax.xlane.f32.xlu0 %v2076
        %v2078 = vpop.xlane.xlu0 %2077
        %v2079 = vsel %vm1035, %v2053, -inf
        %2080 = vmax.xlane.f32.xlu0 %v2079
        %v2081 = vpop.xlane.xlu0 %2080
        %v2082 = vsel %vm1035, %v2058, -inf
        %2083 = vmax.xlane.f32.xlu0 %v2082
        %v2084 = vpop.xlane.xlu0 %2083
        %v2085 = vsel %vm1035, %v2061, -inf
        %2086 = vmax.xlane.f32.xlu0 %v2085
        %v2087 = vpop.xlane.xlu0 %2086
        %v2088 = vsub.f32 %v1981, %v2066
        %v2089 = vsub.f32 %v1984, %v2069
        %v2090 = vsub.f32 %v1989, %v2072
        %v2091 = vsub.f32 %v1992, %v2075
        %v2092 = vsub.f32 %v2050, %v2078
        %v2093 = vsub.f32 %v2053, %v2081
        %v2094 = vsub.f32 %v2058, %v2084
        %v2095 = vsub.f32 %v2061, %v2087
        %v2096 = vmul.f32 %v2088, 1.442695
        %v2097 = vpow.pop %v2096
        %v2098 = vmul.f32 %v2089, 1.442695
        %v2099 = vpow.pop %v2098
        %v2100 = vmul.f32 %v2090, 1.442695
        %v2101 = vpow.pop %v2100
        %v2102 = vmul.f32 %v2091, 1.442695
        %v2103 = vpow.pop %v2102
        %v2104 = vmul.f32 %v2092, 1.442695
        %v2105 = vpow.pop %v2104
        %v2106 = vmul.f32 %v2093, 1.442695
        %v2107 = vpow.pop %v2106
        %v2108 = vmul.f32 %v2094, 1.442695
        %v2109 = vpow.pop %v2108
        %v2110 = vmul.f32 %v2095, 1.442695
        %v2111 = vpow.pop %v2110
        %v2112 = vsel %vm1035, %v2097, 0.0
        %2113 = vadd.xlane.f32.xlu0 %v2112
        %v2114 = vpop.xlane.xlu0 %2113
        %v2115 = vsel %vm1035, %v2099, 0.0
        %2116 = vadd.xlane.f32.xlu0 %v2115
        %v2117 = vpop.xlane.xlu0 %2116
        %v2118 = vsel %vm1035, %v2101, 0.0
        %2119 = vadd.xlane.f32.xlu0 %v2118
        %v2120 = vpop.xlane.xlu0 %2119
        %v2121 = vsel %vm1035, %v2103, 0.0
        %2122 = vadd.xlane.f32.xlu0 %v2121
        %v2123 = vpop.xlane.xlu0 %2122
        %v2124 = vsel %vm1035, %v2105, 0.0
        %2125 = vadd.xlane.f32.xlu0 %v2124
        %v2126 = vpop.xlane.xlu0 %2125
        %v2127 = vsel %vm1035, %v2107, 0.0
        %2128 = vadd.xlane.f32.xlu0 %v2127
        %v2129 = vpop.xlane.xlu0 %2128
        %v2130 = vsel %vm1035, %v2109, 0.0
        %2131 = vadd.xlane.f32.xlu0 %v2130
        %v2132 = vpop.xlane.xlu0 %2131
        %v2133 = vsel %vm1035, %v2111, 0.0
        %2134 = vadd.xlane.f32.xlu0 %v2133
        %v2135 = vpop.xlane.xlu0 %2134
        %v2136 = vpack.c.bf16 %v2099, %v2097
        %v2137 = vpack.c.bf16 %v2103, %v2101
        %v2138 = vpack.c.bf16 %v2107, %v2105
        %v2139 = vpack.c.bf16 %v2111, %v2109
        %2140 = vrot.lane.b32.xlu0 %v1031, 64
        %v2141 = vpop.permute.xlu0 %2140
        %2142 = vrot.lane.b32.xlu0 %v1032, 64
        %v2143 = vpop.permute.xlu0 %2142
        %v2147 = vsel %vm1035, %v2136, 0
        %v2150 = vsel %vm1035, %v2137, 0
        %2152 = vmatprep.subr.bf16.mxu0 0
        %2153 = vmatpush1.bf16.msra.mxu0 0
        %2154 = vmatprep.subr.bf16.mxu0 0
        %2155 = vmatpush1.bf16.msra.mxu0 0
        %2156 = vmatprep.subr.bf16.mxu0 0
        %2157 = vmatpush1.bf16.msra.mxu0 0
        %2158 = vmatprep.subr.bf16.mxu0 0
        %2159 = vmatpush1.bf16.msra.mxu0 0
        %2160 = vmatprep.subr.bf16.mxu0 0
        %2161 = vmatpush1.bf16.msra.mxu0 0
        %2162 = vmatprep.subr.bf16.mxu0 0
        %2163 = vmatpush1.bf16.msra.mxu0 0
        %2164 = vmatprep.subr.bf16.mxu0 0
        %2165 = vmatpush1.bf16.msra.mxu0 %v2143
        %2166 = vmatprep.subr.bf16.mxu0 0
        %2167 = vmatpush1.bf16.msra.mxu0 %v2141
        %2168 = vmatprep.subr.bf16.mxu0 0
        %2169 = vmatpush2.bf16.msra.mxu0 0
        %2170 = vmatprep.subr.bf16.mxu0 0
        %2171 = vmatpush2.bf16.msra.mxu0 0
        %2172 = vmatprep.subr.bf16.mxu0 0
        %2173 = vmatpush2.bf16.msra.mxu0 0
        %2174 = vmatprep.subr.bf16.mxu0 0
        %2175 = vmatpush2.bf16.msra.mxu0 0
        %2176 = vmatprep.subr.bf16.mxu0 0
        %2177 = vmatpush2.bf16.msra.mxu0 0
        %2178 = vmatprep.subr.bf16.mxu0 0
        %2179 = vmatpush2.bf16.msra.mxu0 0
        %2180 = vmatprep.subr.bf16.mxu0 0
        %2181 = vmatpush2.bf16.msra.mxu0 0
        %2182 = vmatprep.subr.bf16.mxu0 0
        %2183 = vmatpush2.bf16.msra.mxu0 0
        %2184 = vmatprep.mubr.bf16.mxu0 0
        %2185 = vmatmul.mubr.bf16.gmra.mxu0 %v2147
        %v2186 = vpop.f32.mrf.mxu0
        %v2187 = vadd.f32 0.0, %v2186
        %v2188 = vpop.f32.mrf.mxu0
        %v2189 = vpop.f32.mrf.mxu0
        %v2190 = vadd.f32 0.0, %v2189
        %v2191 = vpop.f32.mrf.mxu0
        %2192 = vmatprep.mubr.bf16.mxu0 0
        %2193 = vmatmul.mubr.bf16.gmra.mxu0 %v2150
        %v2194 = vpop.f32.mrf.mxu0
        %v2195 = vadd.f32 0.0, %v2194
        %v2196 = vpop.f32.mrf.mxu0
        %v2197 = vpop.f32.mrf.mxu0
        %v2198 = vadd.f32 0.0, %v2197
        %v2199 = vpop.f32.mrf.mxu0
        %2200 = vdwg.mxu0
        %2201 = vrot.lane.b32.xlu0 %v1033, 64
        %v2202 = vpop.permute.xlu0 %2201
        %2203 = vrot.lane.b32.xlu0 %v1034, 64
        %v2204 = vpop.permute.xlu0 %2203
        %v2208 = vsel %vm1035, %v2138, 0
        %v2211 = vsel %vm1035, %v2139, 0
        %2213 = vmatprep.subr.bf16.mxu0 0
        %2214 = vmatpush1.bf16.msra.mxu0 0
        %2215 = vmatprep.subr.bf16.mxu0 0
        %2216 = vmatpush1.bf16.msra.mxu0 0
        %2217 = vmatprep.subr.bf16.mxu0 0
        %2218 = vmatpush1.bf16.msra.mxu0 0
        %2219 = vmatprep.subr.bf16.mxu0 0
        %2220 = vmatpush1.bf16.msra.mxu0 0
        %2221 = vmatprep.subr.bf16.mxu0 0
        %2222 = vmatpush1.bf16.msra.mxu0 0
        %2223 = vmatprep.subr.bf16.mxu0 0
        %2224 = vmatpush1.bf16.msra.mxu0 0
        %2225 = vmatprep.subr.bf16.mxu0 0
        %2226 = vmatpush1.bf16.msra.mxu0 %v2204
        %2227 = vmatprep.subr.bf16.mxu0 0
        %2228 = vmatpush1.bf16.msra.mxu0 %v2202
        %2229 = vmatprep.subr.bf16.mxu0 0
        %2230 = vmatpush2.bf16.msra.mxu0 0
        %2231 = vmatprep.subr.bf16.mxu0 0
        %2232 = vmatpush2.bf16.msra.mxu0 0
        %2233 = vmatprep.subr.bf16.mxu0 0
        %2234 = vmatpush2.bf16.msra.mxu0 0
        %2235 = vmatprep.subr.bf16.mxu0 0
        %2236 = vmatpush2.bf16.msra.mxu0 0
        %2237 = vmatprep.subr.bf16.mxu0 0
        %2238 = vmatpush2.bf16.msra.mxu0 0
        %2239 = vmatprep.subr.bf16.mxu0 0
        %2240 = vmatpush2.bf16.msra.mxu0 0
        %2241 = vmatprep.subr.bf16.mxu0 0
        %2242 = vmatpush2.bf16.msra.mxu0 0
        %2243 = vmatprep.subr.bf16.mxu0 0
        %2244 = vmatpush2.bf16.msra.mxu0 0
        %2245 = vmatprep.mubr.bf16.mxu0 0
        %2246 = vmatmul.mubr.bf16.gmra.mxu0 %v2208
        %v2247 = vpop.f32.mrf.mxu0
        %v2248 = vadd.f32 0.0, %v2247
        %v2249 = vpop.f32.mrf.mxu0
        %v2250 = vpop.f32.mrf.mxu0
        %v2251 = vadd.f32 0.0, %v2250
        %v2252 = vpop.f32.mrf.mxu0
        %2253 = vmatprep.mubr.bf16.mxu0 0
        %2254 = vmatmul.mubr.bf16.gmra.mxu0 %v2211
        %v2255 = vpop.f32.mrf.mxu0
        %v2256 = vadd.f32 0.0, %v2255
        %v2257 = vpop.f32.mrf.mxu0
        %v2258 = vpop.f32.mrf.mxu0
        %v2259 = vadd.f32 0.0, %v2258
        %v2260 = vpop.f32.mrf.mxu0
        %2261 = vdwg.mxu0
        %v2262 = vrcp.pop %v2114
        %v2263 = vrcp.pop %v2117
        %v2264 = vrcp.pop %v2120
        %v2265 = vrcp.pop %v2123
        %v2266 = vrcp.pop %v2126
        %v2267 = vrcp.pop %v2129
        %v2268 = vrcp.pop %v2132
        %v2269 = vrcp.pop %v2135
        %v2270 = vmul.f32 %v2187, %v2262
        %v2271 = vmul.f32 %v2190, %v2263
        %v2272 = vmul.f32 %v2195, %v2264
        %v2273 = vmul.f32 %v2198, %v2265
        %v2274 = vmul.f32 %v2248, %v2266
        %v2275 = vmul.f32 %v2251, %v2267
        %v2276 = vmul.f32 %v2256, %v2268
        %v2277 = vmul.f32 %v2259, %v2269
        %v2278 = vpack.c.bf16 %v2271, %v2270
        %v2279 = vpack.c.bf16 %v2273, %v2272
        %v2280 = vpack.c.bf16 %v2275, %v2274
        %v2281 = vpack.c.bf16 %v2277, %v2276
        %v2286 = vunpack.c.l.b16 %v1000
        %v2287 = vunpack.c.l.b16 %v1001
        %v2288 = vunpack.c.l.b16 %v1002
        %v2289 = vunpack.c.l.b16 %v1003
        %v2290 = vpack.c.b16 %v2287, %v2286
        %v2291 = vpack.c.b16 %v2289, %v2288
        %v2295 = vsel %vm1035, %v2278, 0
        %v2298 = vsel %vm1035, %v2279, 0
        %v2301 = vsel %vm1035, %v2280, 0
        %v2304 = vsel %vm1035, %v2281, 0
        %2306 = vmatprep.subr.bf16.mxu0 0
        %2307 = vmatpush1.bf16.msra.mxu0 0
        %2308 = vmatprep.subr.bf16.mxu0 0
        %2309 = vmatpush1.bf16.msra.mxu0 0
        %2310 = vmatprep.subr.bf16.mxu0 0
        %2311 = vmatpush1.bf16.msra.mxu0 0
        %2312 = vmatprep.subr.bf16.mxu0 0
        %2313 = vmatpush1.bf16.msra.mxu0 0
        %2314 = vmatprep.subr.bf16.mxu0 0
        %2315 = vmatpush1.bf16.msra.mxu0 0
        %2316 = vmatprep.subr.bf16.mxu0 0
        %2317 = vmatpush1.bf16.msra.mxu0 0
        %2318 = vmatprep.subr.bf16.mxu0 0
        %2319 = vmatpush1.bf16.msra.mxu0 %v2291
        %2320 = vmatprep.subr.bf16.mxu0 0
        %2321 = vmatpush1.bf16.msra.mxu0 %v2290
        %2322 = vmatprep.subr.bf16.mxu0 0
        %2323 = vmatpush2.bf16.msra.mxu0 0
        %2324 = vmatprep.subr.bf16.mxu0 0
        %2325 = vmatpush2.bf16.msra.mxu0 0
        %2326 = vmatprep.subr.bf16.mxu0 0
        %2327 = vmatpush2.bf16.msra.mxu0 0
        %2328 = vmatprep.subr.bf16.mxu0 0
        %2329 = vmatpush2.bf16.msra.mxu0 0
        %2330 = vmatprep.subr.bf16.mxu0 0
        %2331 = vmatpush2.bf16.msra.mxu0 0
        %2332 = vmatprep.subr.bf16.mxu0 0
        %2333 = vmatpush2.bf16.msra.mxu0 0
        %2334 = vmatprep.subr.bf16.mxu0 0
        %2335 = vmatpush2.bf16.msra.mxu0 0
        %2336 = vmatprep.subr.bf16.mxu0 0
        %2337 = vmatpush2.bf16.msra.mxu0 0
        %2338 = vmatprep.mubr.bf16.mxu0 0
        %2339 = vmatmul.mubr.bf16.gmra.mxu0 %v2295
        %v2340 = vpop.f32.mrf.mxu0
        %v2341 = vadd.f32 0.0, %v2340
        %v2342 = vpop.f32.mrf.mxu0
        %v2343 = vpop.f32.mrf.mxu0
        %v2344 = vadd.f32 0.0, %v2343
        %v2345 = vpop.f32.mrf.mxu0
        %2346 = vmatprep.mubr.bf16.mxu0 0
        %2347 = vmatmul.mubr.bf16.gmra.mxu0 %v2298
        %v2348 = vpop.f32.mrf.mxu0
        %v2349 = vadd.f32 0.0, %v2348
        %v2350 = vpop.f32.mrf.mxu0
        %v2351 = vpop.f32.mrf.mxu0
        %v2352 = vadd.f32 0.0, %v2351
        %v2353 = vpop.f32.mrf.mxu0
        %2354 = vmatprep.mubr.bf16.mxu0 0
        %2355 = vmatmul.mubr.bf16.gmra.mxu0 %v2301
        %v2356 = vpop.f32.mrf.mxu0
        %v2357 = vadd.f32 0.0, %v2356
        %v2358 = vpop.f32.mrf.mxu0
        %v2359 = vpop.f32.mrf.mxu0
        %v2360 = vadd.f32 0.0, %v2359
        %v2361 = vpop.f32.mrf.mxu0
        %2362 = vmatprep.mubr.bf16.mxu0 0
        %2363 = vmatmul.mubr.bf16.gmra.mxu0 %v2304
        %v2364 = vpop.f32.mrf.mxu0
        %v2365 = vadd.f32 0.0, %v2364
        %v2366 = vpop.f32.mrf.mxu0
        %v2367 = vpop.f32.mrf.mxu0
        %v2368 = vadd.f32 0.0, %v2367
        %v2369 = vpop.f32.mrf.mxu0
        %2370 = vdwg.mxu0
        %v2371 = vadd.f32 %v1918, %v2341
        %v2372 = vadd.f32 %v1919, %v2344
        %v2373 = vadd.f32 %v1920, %v2349
        %v2374 = vadd.f32 %v1921, %v2352
        %v2375 = vadd.f32 %v1922, %v2357
        %v2376 = vadd.f32 %v1923, %v2360
        %v2377 = vadd.f32 %v1924, %v2365
        %v2378 = vadd.f32 %v1925, %v2368
        %2379 = vrot.lane.b32.xlu0 %v1023, 32
        %v2380 = vpop.permute.xlu0 %2379
        %2381 = vrot.lane.b32.xlu0 %v1024, 32
        %v2382 = vpop.permute.xlu0 %2381
        %2383 = vrot.lane.b32.xlu0 %v1027, 32
        %v2384 = vpop.permute.xlu0 %2383
        %2385 = vrot.lane.b32.xlu0 %v1028, 32
        %v2386 = vpop.permute.xlu0 %2385
        %v2388 = vsel %vm1035, %v2380, 0
        %v2391 = vsel %vm1035, %v2382, 0
        %v2394 = vsel %vm1035, %v2384, 0
        %v2397 = vsel %vm1035, %v2386, 0
        %2399 = vmatprep.subr.bf16.mxu0 0
        %2400 = vmatpush1.bf16.xpose.msra.mxu0 0
        %2401 = vmatprep.subr.bf16.mxu0 0
        %2402 = vmatpush1.bf16.xpose.msra.mxu0 0
        %2403 = vmatprep.subr.bf16.mxu0 0
        %2404 = vmatpush1.bf16.xpose.msra.mxu0 0
        %2405 = vmatprep.subr.bf16.mxu0 0
        %2406 = vmatpush1.bf16.xpose.msra.mxu0 0
        %2407 = vmatprep.subr.bf16.mxu0 0
        %2408 = vmatpush1.bf16.xpose.msra.mxu0 0
        %2409 = vmatprep.subr.bf16.mxu0 0
        %2410 = vmatpush1.bf16.xpose.msra.mxu0 0
        %2411 = vmatprep.subr.bf16.mxu0 0
        %2412 = vmatpush1.bf16.xpose.msra.mxu0 %v2397
        %2413 = vmatprep.subr.bf16.mxu0 0
        %2414 = vmatpush1.bf16.xpose.msra.mxu0 %v2394
        %2415 = vmatprep.subr.bf16.mxu0 0
        %2416 = vmatpush2.bf16.xpose.msra.mxu0 0
        %2417 = vmatprep.subr.bf16.mxu0 0
        %2418 = vmatpush2.bf16.xpose.msra.mxu0 0
        %2419 = vmatprep.subr.bf16.mxu0 0
        %2420 = vmatpush2.bf16.xpose.msra.mxu0 0
        %2421 = vmatprep.subr.bf16.mxu0 0
        %2422 = vmatpush2.bf16.xpose.msra.mxu0 0
        %2423 = vmatprep.subr.bf16.mxu0 0
        %2424 = vmatpush2.bf16.xpose.msra.mxu0 0
        %2425 = vmatprep.subr.bf16.mxu0 0
        %2426 = vmatpush2.bf16.xpose.msra.mxu0 0
        %2427 = vmatprep.subr.bf16.mxu0 0
        %2428 = vmatpush2.bf16.xpose.msra.mxu0 0
        %2429 = vmatprep.subr.bf16.mxu0 0
        %2430 = vmatpush2.bf16.xpose.msra.mxu0 0
        %2431 = vmatprep.mubr.bf16.mxu0 0
        %2432 = vmatmul.mubr.bf16.gmra.mxu0 %v2388
        %v2433 = vpop.f32.mrf.mxu0
        %v2434 = vadd.f32 0.0, %v2433
        %v2435 = vpop.f32.mrf.mxu0
        %v2436 = vpop.f32.mrf.mxu0
        %v2437 = vadd.f32 0.0, %v2436
        %v2438 = vpop.f32.mrf.mxu0
        %2439 = vmatprep.mubr.bf16.mxu0 0
        %2440 = vmatmul.mubr.bf16.gmra.mxu0 %v2391
        %v2441 = vpop.f32.mrf.mxu0
        %v2442 = vadd.f32 0.0, %v2441
        %v2443 = vpop.f32.mrf.mxu0
        %v2444 = vpop.f32.mrf.mxu0
        %v2445 = vadd.f32 0.0, %v2444
        %v2446 = vpop.f32.mrf.mxu0
        %2447 = vdwg.mxu0
        %2448 = vrot.lane.b32.xlu0 %v1025, 32
        %v2449 = vpop.permute.xlu0 %2448
        %2450 = vrot.lane.b32.xlu0 %v1026, 32
        %v2451 = vpop.permute.xlu0 %2450
        %2452 = vrot.lane.b32.xlu0 %v1029, 32
        %v2453 = vpop.permute.xlu0 %2452
        %2454 = vrot.lane.b32.xlu0 %v1030, 32
        %v2455 = vpop.permute.xlu0 %2454
        %v2457 = vsel %vm1035, %v2449, 0
        %v2460 = vsel %vm1035, %v2451, 0
        %v2463 = vsel %vm1035, %v2453, 0
        %v2466 = vsel %vm1035, %v2455, 0
        %2468 = vmatprep.subr.bf16.mxu0 0
        %2469 = vmatpush1.bf16.xpose.msra.mxu0 0
        %2470 = vmatprep.subr.bf16.mxu0 0
        %2471 = vmatpush1.bf16.xpose.msra.mxu0 0
        %2472 = vmatprep.subr.bf16.mxu0 0
        %2473 = vmatpush1.bf16.xpose.msra.mxu0 0
        %2474 = vmatprep.subr.bf16.mxu0 0
        %2475 = vmatpush1.bf16.xpose.msra.mxu0 0
        %2476 = vmatprep.subr.bf16.mxu0 0
        %2477 = vmatpush1.bf16.xpose.msra.mxu0 0
        %2478 = vmatprep.subr.bf16.mxu0 0
        %2479 = vmatpush1.bf16.xpose.msra.mxu0 0
        %2480 = vmatprep.subr.bf16.mxu0 0
        %2481 = vmatpush1.bf16.xpose.msra.mxu0 %v2466
        %2482 = vmatprep.subr.bf16.mxu0 0
        %2483 = vmatpush1.bf16.xpose.msra.mxu0 %v2463
        %2484 = vmatprep.subr.bf16.mxu0 0
        %2485 = vmatpush2.bf16.xpose.msra.mxu0 0
        %2486 = vmatprep.subr.bf16.mxu0 0
        %2487 = vmatpush2.bf16.xpose.msra.mxu0 0
        %2488 = vmatprep.subr.bf16.mxu0 0
        %2489 = vmatpush2.bf16.xpose.msra.mxu0 0
        %2490 = vmatprep.subr.bf16.mxu0 0
        %2491 = vmatpush2.bf16.xpose.msra.mxu0 0
        %2492 = vmatprep.subr.bf16.mxu0 0
        %2493 = vmatpush2.bf16.xpose.msra.mxu0 0
        %2494 = vmatprep.subr.bf16.mxu0 0
        %2495 = vmatpush2.bf16.xpose.msra.mxu0 0
        %2496 = vmatprep.subr.bf16.mxu0 0
        %2497 = vmatpush2.bf16.xpose.msra.mxu0 0
        %2498 = vmatprep.subr.bf16.mxu0 0
        %2499 = vmatpush2.bf16.xpose.msra.mxu0 0
        %2500 = vmatprep.mubr.bf16.mxu0 0
        %2501 = vmatmul.mubr.bf16.gmra.mxu0 %v2457
        %v2502 = vpop.f32.mrf.mxu0
        %v2503 = vadd.f32 0.0, %v2502
        %v2504 = vpop.f32.mrf.mxu0
        %v2505 = vpop.f32.mrf.mxu0
        %v2506 = vadd.f32 0.0, %v2505
        %v2507 = vpop.f32.mrf.mxu0
        %2508 = vmatprep.mubr.bf16.mxu0 0
        %2509 = vmatmul.mubr.bf16.gmra.mxu0 %v2460
        %v2510 = vpop.f32.mrf.mxu0
        %v2511 = vadd.f32 0.0, %v2510
        %v2512 = vpop.f32.mrf.mxu0
        %v2513 = vpop.f32.mrf.mxu0
        %v2514 = vadd.f32 0.0, %v2513
        %v2515 = vpop.f32.mrf.mxu0
        %2516 = vdwg.mxu0
        %v2517 = vsel %vm1035, %v2434, -inf
        %2518 = vmax.xlane.f32.xlu0 %v2517
        %v2519 = vpop.xlane.xlu0 %2518
        %v2520 = vsel %vm1035, %v2437, -inf
        %2521 = vmax.xlane.f32.xlu0 %v2520
        %v2522 = vpop.xlane.xlu0 %2521
        %v2523 = vsel %vm1035, %v2442, -inf
        %2524 = vmax.xlane.f32.xlu0 %v2523
        %v2525 = vpop.xlane.xlu0 %2524
        %v2526 = vsel %vm1035, %v2445, -inf
        %2527 = vmax.xlane.f32.xlu0 %v2526
        %v2528 = vpop.xlane.xlu0 %2527
        %v2529 = vsel %vm1035, %v2503, -inf
        %2530 = vmax.xlane.f32.xlu0 %v2529
        %v2531 = vpop.xlane.xlu0 %2530
        %v2532 = vsel %vm1035, %v2506, -inf
        %2533 = vmax.xlane.f32.xlu0 %v2532
        %v2534 = vpop.xlane.xlu0 %2533
        %v2535 = vsel %vm1035, %v2511, -inf
        %2536 = vmax.xlane.f32.xlu0 %v2535
        %v2537 = vpop.xlane.xlu0 %2536
        %v2538 = vsel %vm1035, %v2514, -inf
        %2539 = vmax.xlane.f32.xlu0 %v2538
        %v2540 = vpop.xlane.xlu0 %2539
        %v2541 = vsub.f32 %v2434, %v2519
        %v2542 = vsub.f32 %v2437, %v2522
        %v2543 = vsub.f32 %v2442, %v2525
        %v2544 = vsub.f32 %v2445, %v2528
        %v2545 = vsub.f32 %v2503, %v2531
        %v2546 = vsub.f32 %v2506, %v2534
        %v2547 = vsub.f32 %v2511, %v2537
        %v2548 = vsub.f32 %v2514, %v2540
        %v2549 = vmul.f32 %v2541, 1.442695
        %v2550 = vpow.pop %v2549
        %v2551 = vmul.f32 %v2542, 1.442695
        %v2552 = vpow.pop %v2551
        %v2553 = vmul.f32 %v2543, 1.442695
        %v2554 = vpow.pop %v2553
        %v2555 = vmul.f32 %v2544, 1.442695
        %v2556 = vpow.pop %v2555
        %v2557 = vmul.f32 %v2545, 1.442695
        %v2558 = vpow.pop %v2557
        %v2559 = vmul.f32 %v2546, 1.442695
        %v2560 = vpow.pop %v2559
        %v2561 = vmul.f32 %v2547, 1.442695
        %v2562 = vpow.pop %v2561
        %v2563 = vmul.f32 %v2548, 1.442695
        %v2564 = vpow.pop %v2563
        %v2565 = vsel %vm1035, %v2550, 0.0
        %2566 = vadd.xlane.f32.xlu0 %v2565
        %v2567 = vpop.xlane.xlu0 %2566
        %v2568 = vsel %vm1035, %v2552, 0.0
        %2569 = vadd.xlane.f32.xlu0 %v2568
        %v2570 = vpop.xlane.xlu0 %2569
        %v2571 = vsel %vm1035, %v2554, 0.0
        %2572 = vadd.xlane.f32.xlu0 %v2571
        %v2573 = vpop.xlane.xlu0 %2572
        %v2574 = vsel %vm1035, %v2556, 0.0
        %2575 = vadd.xlane.f32.xlu0 %v2574
        %v2576 = vpop.xlane.xlu0 %2575
        %v2577 = vsel %vm1035, %v2558, 0.0
        %2578 = vadd.xlane.f32.xlu0 %v2577
        %v2579 = vpop.xlane.xlu0 %2578
        %v2580 = vsel %vm1035, %v2560, 0.0
        %2581 = vadd.xlane.f32.xlu0 %v2580
        %v2582 = vpop.xlane.xlu0 %2581
        %v2583 = vsel %vm1035, %v2562, 0.0
        %2584 = vadd.xlane.f32.xlu0 %v2583
        %v2585 = vpop.xlane.xlu0 %2584
        %v2586 = vsel %vm1035, %v2564, 0.0
        %2587 = vadd.xlane.f32.xlu0 %v2586
        %v2588 = vpop.xlane.xlu0 %2587
        %v2589 = vpack.c.bf16 %v2552, %v2550
        %v2590 = vpack.c.bf16 %v2556, %v2554
        %v2591 = vpack.c.bf16 %v2560, %v2558
        %v2592 = vpack.c.bf16 %v2564, %v2562
        %2593 = vrot.lane.b32.xlu0 %v1031, 32
        %v2594 = vpop.permute.xlu0 %2593
        %2595 = vrot.lane.b32.xlu0 %v1032, 32
        %v2596 = vpop.permute.xlu0 %2595
        %v2600 = vsel %vm1035, %v2589, 0
        %v2603 = vsel %vm1035, %v2590, 0
        %2605 = vmatprep.subr.bf16.mxu0 0
        %2606 = vmatpush1.bf16.msra.mxu0 0
        %2607 = vmatprep.subr.bf16.mxu0 0
        %2608 = vmatpush1.bf16.msra.mxu0 0
        %2609 = vmatprep.subr.bf16.mxu0 0
        %2610 = vmatpush1.bf16.msra.mxu0 0
        %2611 = vmatprep.subr.bf16.mxu0 0
        %2612 = vmatpush1.bf16.msra.mxu0 0
        %2613 = vmatprep.subr.bf16.mxu0 0
        %2614 = vmatpush1.bf16.msra.mxu0 0
        %2615 = vmatprep.subr.bf16.mxu0 0
        %2616 = vmatpush1.bf16.msra.mxu0 0
        %2617 = vmatprep.subr.bf16.mxu0 0
        %2618 = vmatpush1.bf16.msra.mxu0 %v2596
        %2619 = vmatprep.subr.bf16.mxu0 0
        %2620 = vmatpush1.bf16.msra.mxu0 %v2594
        %2621 = vmatprep.subr.bf16.mxu0 0
        %2622 = vmatpush2.bf16.msra.mxu0 0
        %2623 = vmatprep.subr.bf16.mxu0 0
        %2624 = vmatpush2.bf16.msra.mxu0 0
        %2625 = vmatprep.subr.bf16.mxu0 0
        %2626 = vmatpush2.bf16.msra.mxu0 0
        %2627 = vmatprep.subr.bf16.mxu0 0
        %2628 = vmatpush2.bf16.msra.mxu0 0
        %2629 = vmatprep.subr.bf16.mxu0 0
        %2630 = vmatpush2.bf16.msra.mxu0 0
        %2631 = vmatprep.subr.bf16.mxu0 0
        %2632 = vmatpush2.bf16.msra.mxu0 0
        %2633 = vmatprep.subr.bf16.mxu0 0
        %2634 = vmatpush2.bf16.msra.mxu0 0
        %2635 = vmatprep.subr.bf16.mxu0 0
        %2636 = vmatpush2.bf16.msra.mxu0 0
        %2637 = vmatprep.mubr.bf16.mxu0 0
        %2638 = vmatmul.mubr.bf16.gmra.mxu0 %v2600
        %v2639 = vpop.f32.mrf.mxu0
        %v2640 = vadd.f32 0.0, %v2639
        %v2641 = vpop.f32.mrf.mxu0
        %v2642 = vpop.f32.mrf.mxu0
        %v2643 = vadd.f32 0.0, %v2642
        %v2644 = vpop.f32.mrf.mxu0
        %2645 = vmatprep.mubr.bf16.mxu0 0
        %2646 = vmatmul.mubr.bf16.gmra.mxu0 %v2603
        %v2647 = vpop.f32.mrf.mxu0
        %v2648 = vadd.f32 0.0, %v2647
        %v2649 = vpop.f32.mrf.mxu0
        %v2650 = vpop.f32.mrf.mxu0
        %v2651 = vadd.f32 0.0, %v2650
        %v2652 = vpop.f32.mrf.mxu0
        %2653 = vdwg.mxu0
        %2654 = vrot.lane.b32.xlu0 %v1033, 32
        %v2655 = vpop.permute.xlu0 %2654
        %2656 = vrot.lane.b32.xlu0 %v1034, 32
        %v2657 = vpop.permute.xlu0 %2656
        %v2661 = vsel %vm1035, %v2591, 0
        %v2664 = vsel %vm1035, %v2592, 0
        %2666 = vmatprep.subr.bf16.mxu0 0
        %2667 = vmatpush1.bf16.msra.mxu0 0
        %2668 = vmatprep.subr.bf16.mxu0 0
        %2669 = vmatpush1.bf16.msra.mxu0 0
        %2670 = vmatprep.subr.bf16.mxu0 0
        %2671 = vmatpush1.bf16.msra.mxu0 0
        %2672 = vmatprep.subr.bf16.mxu0 0
        %2673 = vmatpush1.bf16.msra.mxu0 0
        %2674 = vmatprep.subr.bf16.mxu0 0
        %2675 = vmatpush1.bf16.msra.mxu0 0
        %2676 = vmatprep.subr.bf16.mxu0 0
        %2677 = vmatpush1.bf16.msra.mxu0 0
        %2678 = vmatprep.subr.bf16.mxu0 0
        %2679 = vmatpush1.bf16.msra.mxu0 %v2657
        %2680 = vmatprep.subr.bf16.mxu0 0
        %2681 = vmatpush1.bf16.msra.mxu0 %v2655
        %2682 = vmatprep.subr.bf16.mxu0 0
        %2683 = vmatpush2.bf16.msra.mxu0 0
        %2684 = vmatprep.subr.bf16.mxu0 0
        %2685 = vmatpush2.bf16.msra.mxu0 0
        %2686 = vmatprep.subr.bf16.mxu0 0
        %2687 = vmatpush2.bf16.msra.mxu0 0
        %2688 = vmatprep.subr.bf16.mxu0 0
        %2689 = vmatpush2.bf16.msra.mxu0 0
        %2690 = vmatprep.subr.bf16.mxu0 0
        %2691 = vmatpush2.bf16.msra.mxu0 0
        %2692 = vmatprep.subr.bf16.mxu0 0
        %2693 = vmatpush2.bf16.msra.mxu0 0
        %2694 = vmatprep.subr.bf16.mxu0 0
        %2695 = vmatpush2.bf16.msra.mxu0 0
        %2696 = vmatprep.subr.bf16.mxu0 0
        %2697 = vmatpush2.bf16.msra.mxu0 0
        %2698 = vmatprep.mubr.bf16.mxu0 0
        %2699 = vmatmul.mubr.bf16.gmra.mxu0 %v2661
        %v2700 = vpop.f32.mrf.mxu0
        %v2701 = vadd.f32 0.0, %v2700
        %v2702 = vpop.f32.mrf.mxu0
        %v2703 = vpop.f32.mrf.mxu0
        %v2704 = vadd.f32 0.0, %v2703
        %v2705 = vpop.f32.mrf.mxu0
        %2706 = vmatprep.mubr.bf16.mxu0 0
        %2707 = vmatmul.mubr.bf16.gmra.mxu0 %v2664
        %v2708 = vpop.f32.mrf.mxu0
        %v2709 = vadd.f32 0.0, %v2708
        %v2710 = vpop.f32.mrf.mxu0
        %v2711 = vpop.f32.mrf.mxu0
        %v2712 = vadd.f32 0.0, %v2711
        %v2713 = vpop.f32.mrf.mxu0
        %2714 = vdwg.mxu0
        %v2715 = vrcp.pop %v2567
        %v2716 = vrcp.pop %v2570
        %v2717 = vrcp.pop %v2573
        %v2718 = vrcp.pop %v2576
        %v2719 = vrcp.pop %v2579
        %v2720 = vrcp.pop %v2582
        %v2721 = vrcp.pop %v2585
        %v2722 = vrcp.pop %v2588
        %v2723 = vmul.f32 %v2640, %v2715
        %v2724 = vmul.f32 %v2643, %v2716
        %v2725 = vmul.f32 %v2648, %v2717
        %v2726 = vmul.f32 %v2651, %v2718
        %v2727 = vmul.f32 %v2701, %v2719
        %v2728 = vmul.f32 %v2704, %v2720
        %v2729 = vmul.f32 %v2709, %v2721
        %v2730 = vmul.f32 %v2712, %v2722
        %v2731 = vpack.c.bf16 %v2724, %v2723
        %v2732 = vpack.c.bf16 %v2726, %v2725
        %v2733 = vpack.c.bf16 %v2728, %v2727
        %v2734 = vpack.c.bf16 %v2730, %v2729
        %v2739 = vunpack.c.l.b16 %v1004
        %v2740 = vunpack.c.l.b16 %v1005
        %v2741 = vunpack.c.l.b16 %v1006
        %v2742 = vunpack.c.l.b16 %v1007
        %v2743 = vpack.c.b16 %v2740, %v2739
        %v2744 = vpack.c.b16 %v2742, %v2741
        %v2748 = vsel %vm1035, %v2731, 0
        %v2751 = vsel %vm1035, %v2732, 0
        %v2754 = vsel %vm1035, %v2733, 0
        %v2757 = vsel %vm1035, %v2734, 0
        %2759 = vmatprep.subr.bf16.mxu0 0
        %2760 = vmatpush1.bf16.msra.mxu0 0
        %2761 = vmatprep.subr.bf16.mxu0 0
        %2762 = vmatpush1.bf16.msra.mxu0 0
        %2763 = vmatprep.subr.bf16.mxu0 0
        %2764 = vmatpush1.bf16.msra.mxu0 0
        %2765 = vmatprep.subr.bf16.mxu0 0
        %2766 = vmatpush1.bf16.msra.mxu0 0
        %2767 = vmatprep.subr.bf16.mxu0 0
        %2768 = vmatpush1.bf16.msra.mxu0 0
        %2769 = vmatprep.subr.bf16.mxu0 0
        %2770 = vmatpush1.bf16.msra.mxu0 0
        %2771 = vmatprep.subr.bf16.mxu0 0
        %2772 = vmatpush1.bf16.msra.mxu0 %v2744
        %2773 = vmatprep.subr.bf16.mxu0 0
        %2774 = vmatpush1.bf16.msra.mxu0 %v2743
        %2775 = vmatprep.subr.bf16.mxu0 0
        %2776 = vmatpush2.bf16.msra.mxu0 0
        %2777 = vmatprep.subr.bf16.mxu0 0
        %2778 = vmatpush2.bf16.msra.mxu0 0
        %2779 = vmatprep.subr.bf16.mxu0 0
        %2780 = vmatpush2.bf16.msra.mxu0 0
        %2781 = vmatprep.subr.bf16.mxu0 0
        %2782 = vmatpush2.bf16.msra.mxu0 0
        %2783 = vmatprep.subr.bf16.mxu0 0
        %2784 = vmatpush2.bf16.msra.mxu0 0
        %2785 = vmatprep.subr.bf16.mxu0 0
        %2786 = vmatpush2.bf16.msra.mxu0 0
        %2787 = vmatprep.subr.bf16.mxu0 0
        %2788 = vmatpush2.bf16.msra.mxu0 0
        %2789 = vmatprep.subr.bf16.mxu0 0
        %2790 = vmatpush2.bf16.msra.mxu0 0
        %2791 = vmatprep.mubr.bf16.mxu0 0
        %2792 = vmatmul.mubr.bf16.gmra.mxu0 %v2748
        %v2793 = vpop.f32.mrf.mxu0
        %v2794 = vadd.f32 0.0, %v2793
        %v2795 = vpop.f32.mrf.mxu0
        %v2796 = vpop.f32.mrf.mxu0
        %v2797 = vadd.f32 0.0, %v2796
        %v2798 = vpop.f32.mrf.mxu0
        %2799 = vmatprep.mubr.bf16.mxu0 0
        %2800 = vmatmul.mubr.bf16.gmra.mxu0 %v2751
        %v2801 = vpop.f32.mrf.mxu0
        %v2802 = vadd.f32 0.0, %v2801
        %v2803 = vpop.f32.mrf.mxu0
        %v2804 = vpop.f32.mrf.mxu0
        %v2805 = vadd.f32 0.0, %v2804
        %v2806 = vpop.f32.mrf.mxu0
        %2807 = vmatprep.mubr.bf16.mxu0 0
        %2808 = vmatmul.mubr.bf16.gmra.mxu0 %v2754
        %v2809 = vpop.f32.mrf.mxu0
        %v2810 = vadd.f32 0.0, %v2809
        %v2811 = vpop.f32.mrf.mxu0
        %v2812 = vpop.f32.mrf.mxu0
        %v2813 = vadd.f32 0.0, %v2812
        %v2814 = vpop.f32.mrf.mxu0
        %2815 = vmatprep.mubr.bf16.mxu0 0
        %2816 = vmatmul.mubr.bf16.gmra.mxu0 %v2757
        %v2817 = vpop.f32.mrf.mxu0
        %v2818 = vadd.f32 0.0, %v2817
        %v2819 = vpop.f32.mrf.mxu0
        %v2820 = vpop.f32.mrf.mxu0
        %v2821 = vadd.f32 0.0, %v2820
        %v2822 = vpop.f32.mrf.mxu0
        %2823 = vdwg.mxu0
        %v2824 = vadd.f32 %v2371, %v2794
        %v2825 = vadd.f32 %v2372, %v2797
        %v2826 = vadd.f32 %v2373, %v2802
        %v2827 = vadd.f32 %v2374, %v2805
        %v2828 = vadd.f32 %v2375, %v2810
        %v2829 = vadd.f32 %v2376, %v2813
        %v2830 = vadd.f32 %v2377, %v2818
        %v2831 = vadd.f32 %v2378, %v2821
        %2832 = vadd.xlane.f32.xlu0 %v2824
        %v2833 = vpop.xlane.xlu0 %2832
        %2834 = vadd.xlane.f32.xlu0 %v2825
        %v2835 = vpop.xlane.xlu0 %2834
        %2836 = vadd.xlane.f32.xlu0 %v2826
        %v2837 = vpop.xlane.xlu0 %2836
        %2838 = vadd.xlane.f32.xlu0 %v2827
        %v2839 = vpop.xlane.xlu0 %2838
        %2840 = vadd.xlane.f32.xlu0 %v2828
        %v2841 = vpop.xlane.xlu0 %2840
        %2842 = vadd.xlane.f32.xlu0 %v2829
        %v2843 = vpop.xlane.xlu0 %2842
        %2844 = vadd.xlane.f32.xlu0 %v2830
        %v2845 = vpop.xlane.xlu0 %2844
        %2846 = vadd.xlane.f32.xlu0 %v2831
        %v2847 = vpop.xlane.xlu0 %2846
        %v2848 = vmul.f32 %v2833, %v570
        %v2849 = vmul.f32 %v2835, %v570
        %v2850 = vmul.f32 %v2837, %v570
        %v2851 = vmul.f32 %v2839, %v570
        %v2852 = vmul.f32 %v2841, %v570
        %v2853 = vmul.f32 %v2843, %v570
        %v2854 = vmul.f32 %v2845, %v570
        %v2855 = vmul.f32 %v2847, %v570
        %v2856 = vsub.f32 %v2824, %v2848
        %v2857 = vsub.f32 %v2825, %v2849
        %v2858 = vsub.f32 %v2826, %v2850
        %v2859 = vsub.f32 %v2827, %v2851
        %v2860 = vsub.f32 %v2828, %v2852
        %v2861 = vsub.f32 %v2829, %v2853
        %v2862 = vsub.f32 %v2830, %v2854
        %v2863 = vsub.f32 %v2831, %v2855
        %v2864 = vmul.f32 %v2856, %v2856
        %v2865 = vmul.f32 %v2857, %v2857
        %v2866 = vmul.f32 %v2858, %v2858
        %v2867 = vmul.f32 %v2859, %v2859
        %v2868 = vmul.f32 %v2860, %v2860
        %v2869 = vmul.f32 %v2861, %v2861
        %v2870 = vmul.f32 %v2862, %v2862
        %v2871 = vmul.f32 %v2863, %v2863
        %2872 = vadd.xlane.f32.xlu0 %v2864
        %v2873 = vpop.xlane.xlu0 %2872
        %2874 = vadd.xlane.f32.xlu0 %v2865
        %v2875 = vpop.xlane.xlu0 %2874
        %2876 = vadd.xlane.f32.xlu0 %v2866
        %v2877 = vpop.xlane.xlu0 %2876
        %2878 = vadd.xlane.f32.xlu0 %v2867
        %v2879 = vpop.xlane.xlu0 %2878
        %2880 = vadd.xlane.f32.xlu0 %v2868
        %v2881 = vpop.xlane.xlu0 %2880
        %2882 = vadd.xlane.f32.xlu0 %v2869
        %v2883 = vpop.xlane.xlu0 %2882
        %2884 = vadd.xlane.f32.xlu0 %v2870
        %v2885 = vpop.xlane.xlu0 %2884
        %2886 = vadd.xlane.f32.xlu0 %v2871
        %v2887 = vpop.xlane.xlu0 %2886
        %v2888 = vmul.f32 %v2873, %v570
        %v2889 = vmul.f32 %v2875, %v570
        %v2890 = vmul.f32 %v2877, %v570
        %v2891 = vmul.f32 %v2879, %v570
        %v2892 = vmul.f32 %v2881, %v570
        %v2893 = vmul.f32 %v2883, %v570
        %v2894 = vmul.f32 %v2885, %v570
        %v2895 = vmul.f32 %v2887, %v570
        %v2896 = vadd.f32 %v2888, 1e-05
        %v2897 = vadd.f32 %v2889, 1e-05
        %v2898 = vadd.f32 %v2890, 1e-05
        %v2899 = vadd.f32 %v2891, 1e-05
        %v2900 = vadd.f32 %v2892, 1e-05
        %v2901 = vadd.f32 %v2893, 1e-05
        %v2902 = vadd.f32 %v2894, 1e-05
        %v2903 = vadd.f32 %v2895, 1e-05
        %v2904 = vrsqrt.pop %v2896
        %v2905 = vrsqrt.pop %v2897
        %v2906 = vrsqrt.pop %v2898
        %v2907 = vrsqrt.pop %v2899
        %v2908 = vrsqrt.pop %v2900
        %v2909 = vrsqrt.pop %v2901
        %v2910 = vrsqrt.pop %v2902
        %v2911 = vrsqrt.pop %v2903
        %v2912 = vmul.f32 %v2856, %v2904
        %v2913 = vmul.f32 %v2857, %v2905
        %v2914 = vmul.f32 %v2858, %v2906
        %v2915 = vmul.f32 %v2859, %v2907
        %v2916 = vmul.f32 %v2860, %v2908
        %v2917 = vmul.f32 %v2861, %v2909
        %v2918 = vmul.f32 %v2862, %v2910
        %v2919 = vmul.f32 %v2863, %v2911
        %v2920 = vld [vmem:[%s7] sm:$0x1]
        %v2922 = vlaneseq
        %v2923 = vshrl.u32 %v2922, 7
        %v2924 = vsub.s32 0, %v2923
        %v2925 = vrot.slane %v2920, %v2924
        %v2927 = vmul.f32 %v2912, %v2925
        %v2928 = vmul.f32 %v2913, %v2925
        %v2929 = vmul.f32 %v2914, %v2925
        %v2930 = vmul.f32 %v2915, %v2925
        %v2931 = vmul.f32 %v2916, %v2925
        %v2932 = vmul.f32 %v2917, %v2925
        %v2933 = vmul.f32 %v2918, %v2925
        %v2934 = vmul.f32 %v2919, %v2925
        %v2935 = vld [vmem:[%s8] sm:$0x1]
        %v2937 = vlaneseq
        %v2938 = vshrl.u32 %v2937, 7
        %v2939 = vsub.s32 0, %v2938
        %v2940 = vrot.slane %v2935, %v2939
        %v2942 = vadd.f32 %v2927, %v2940
        %v2943 = vadd.f32 %v2928, %v2940
        %v2944 = vadd.f32 %v2929, %v2940
        %v2945 = vadd.f32 %v2930, %v2940
        %v2946 = vadd.f32 %v2931, %v2940
        %v2947 = vadd.f32 %v2932, %v2940
        %v2948 = vadd.f32 %v2933, %v2940
        %v2949 = vadd.f32 %v2934, %v2940
        %v2950 = vpack.c.bf16 %v2943, %v2942
        %v2951 = vpack.c.bf16 %v2945, %v2944
        %v2952 = vpack.c.bf16 %v2947, %v2946
        %v2953 = vpack.c.bf16 %v2949, %v2948
        %v2954 = vld [vmem:[#allocation11] sm:$0xff]
        %v2955 = vld [vmem:[#allocation11 + $0x8] sm:$0xff]
        %v2956 = vld [vmem:[#allocation11 + $0x10] sm:$0xff]
        %v2957 = vld [vmem:[#allocation11 + $0x18] sm:$0xff]
        %v2958 = vld [vmem:[#allocation11 + $0x20] sm:$0xff]
        %v2959 = vld [vmem:[#allocation11 + $0x28] sm:$0xff]
        %v2960 = vld [vmem:[#allocation11 + $0x30] sm:$0xff]
        %v2961 = vld [vmem:[#allocation11 + $0x38] sm:$0xff]
        %v2962 = vld [vmem:[#allocation11 + $0x40] sm:$0xff]
        %v2963 = vld [vmem:[#allocation11 + $0x48] sm:$0xff]
        %v2964 = vld [vmem:[#allocation11 + $0x50] sm:$0xff]
        %v2965 = vld [vmem:[#allocation11 + $0x58] sm:$0xff]
        %v2966 = vld [vmem:[#allocation11 + $0x60] sm:$0xff]
        %v2967 = vld [vmem:[#allocation11 + $0x68] sm:$0xff]
        %v2968 = vld [vmem:[#allocation11 + $0x70] sm:$0xff]
        %v2969 = vld [vmem:[#allocation11 + $0x78] sm:$0xff]
        %v2970 = vld [vmem:[%s10] sm:$0x3]
        %v2972 = vlaneseq
        %v2973 = vshrl.u32 %v2972, 7
        %v2974 = vsub.s32 0, %v2973
        %v2975 = vrot.slane %v2970, %v2974
        %v2976 = vlaneseq
        %v2977 = vshrl.u32 %v2976, 7
        %v2978 = vsub.s32 1, %v2977
        %v2979 = vrot.slane %v2970, %v2978
        %v2998 = vunpack.c.l.b16 %v2954
        %v2999 = vunpack.c.h.b16 %v2954
        %v3000 = vunpack.c.l.b16 %v2955
        %v3001 = vunpack.c.h.b16 %v2955
        %v3002 = vunpack.c.l.b16 %v2956
        %v3003 = vunpack.c.h.b16 %v2956
        %v3004 = vunpack.c.l.b16 %v2957
        %v3005 = vunpack.c.h.b16 %v2957
        %v3006 = vunpack.c.l.b16 %v2958
        %v3007 = vunpack.c.h.b16 %v2958
        %v3008 = vunpack.c.l.b16 %v2959
        %v3009 = vunpack.c.h.b16 %v2959
        %v3010 = vunpack.c.l.b16 %v2960
        %v3011 = vunpack.c.h.b16 %v2960
        %v3012 = vunpack.c.l.b16 %v2961
        %v3013 = vunpack.c.h.b16 %v2961
        %v3014 = vunpack.c.l.b16 %v2962
        %v3015 = vunpack.c.h.b16 %v2962
        %v3016 = vunpack.c.l.b16 %v2963
        %v3017 = vunpack.c.h.b16 %v2963
        %v3018 = vunpack.c.l.b16 %v2964
        %v3019 = vunpack.c.h.b16 %v2964
        %v3020 = vunpack.c.l.b16 %v2965
        %v3021 = vunpack.c.h.b16 %v2965
        %v3022 = vunpack.c.l.b16 %v2966
        %v3023 = vunpack.c.h.b16 %v2966
        %v3024 = vunpack.c.l.b16 %v2967
        %v3025 = vunpack.c.h.b16 %v2967
        %v3026 = vunpack.c.l.b16 %v2968
        %v3027 = vunpack.c.h.b16 %v2968
        %v3028 = vunpack.c.l.b16 %v2969
        %v3029 = vunpack.c.h.b16 %v2969
        %v3030 = vpack.c.b16 %v3000, %v2998
        %v3031 = vpack.c.b16 %v3001, %v2999
        %v3032 = vpack.c.b16 %v3004, %v3002
        %v3033 = vpack.c.b16 %v3005, %v3003
        %v3034 = vpack.c.b16 %v3008, %v3006
        %v3035 = vpack.c.b16 %v3009, %v3007
        %v3036 = vpack.c.b16 %v3012, %v3010
        %v3037 = vpack.c.b16 %v3013, %v3011
        %v3038 = vpack.c.b16 %v3016, %v3014
        %v3039 = vpack.c.b16 %v3017, %v3015
        %v3040 = vpack.c.b16 %v3020, %v3018
        %v3041 = vpack.c.b16 %v3021, %v3019
        %v3042 = vpack.c.b16 %v3024, %v3022
        %v3043 = vpack.c.b16 %v3025, %v3023
        %v3044 = vpack.c.b16 %v3028, %v3026
        %v3045 = vpack.c.b16 %v3029, %v3027
        %3062 = vmatprep.subr.bf16.mxu0 %v3045
        %3063 = vmatpush1.bf16.msra.mxu0 %v3044
        %3064 = vmatprep.subr.bf16.mxu0 %v3043
        %3065 = vmatpush1.bf16.msra.mxu0 %v3042
        %3066 = vmatprep.subr.bf16.mxu0 %v3041
        %3067 = vmatpush1.bf16.msra.mxu0 %v3040
        %3068 = vmatprep.subr.bf16.mxu0 %v3039
        %3069 = vmatpush1.bf16.msra.mxu0 %v3038
        %3070 = vmatprep.subr.bf16.mxu0 %v3037
        %3071 = vmatpush1.bf16.msra.mxu0 %v3036
        %3072 = vmatprep.subr.bf16.mxu0 %v3035
        %3073 = vmatpush1.bf16.msra.mxu0 %v3034
        %3074 = vmatprep.subr.bf16.mxu0 %v3033
        %3075 = vmatpush1.bf16.msra.mxu0 %v3032
        %3076 = vmatprep.subr.bf16.mxu0 %v3031
        %3077 = vmatpush1.bf16.msra.mxu0 %v3030
        %3078 = vmatprep.subr.bf16.mxu0 0
        %3079 = vmatpush2.bf16.msra.mxu0 0
        %3080 = vmatprep.subr.bf16.mxu0 0
        %3081 = vmatpush2.bf16.msra.mxu0 0
        %3082 = vmatprep.subr.bf16.mxu0 0
        %3083 = vmatpush2.bf16.msra.mxu0 0
        %3084 = vmatprep.subr.bf16.mxu0 0
        %3085 = vmatpush2.bf16.msra.mxu0 0
        %3086 = vmatprep.subr.bf16.mxu0 0
        %3087 = vmatpush2.bf16.msra.mxu0 0
        %3088 = vmatprep.subr.bf16.mxu0 0
        %3089 = vmatpush2.bf16.msra.mxu0 0
        %3090 = vmatprep.subr.bf16.mxu0 0
        %3091 = vmatpush2.bf16.msra.mxu0 0
        %3092 = vmatprep.subr.bf16.mxu0 0
        %3093 = vmatpush2.bf16.msra.mxu0 0
        %3094 = vmatprep.mubr.bf16.mxu0 0
        %3095 = vmatmul.mubr.bf16.gmra.mxu0 %v2950
        %v3096 = vpop.f32.mrf.mxu0
        %v3097 = vadd.f32 %v2975, %v3096
        %v3098 = vpop.f32.mrf.mxu0
        %v3099 = vadd.f32 %v2979, %v3098
        %v3100 = vpop.f32.mrf.mxu0
        %v3101 = vadd.f32 %v2975, %v3100
        %v3102 = vpop.f32.mrf.mxu0
        %v3103 = vadd.f32 %v2979, %v3102
        %3104 = vmatprep.mubr.bf16.mxu0 0
        %3105 = vmatmul.mubr.bf16.gmra.mxu0 %v2951
        %v3106 = vpop.f32.mrf.mxu0
        %v3107 = vadd.f32 %v2975, %v3106
        %v3108 = vpop.f32.mrf.mxu0
        %v3109 = vadd.f32 %v2979, %v3108
        %v3110 = vpop.f32.mrf.mxu0
        %v3111 = vadd.f32 %v2975, %v3110
        %v3112 = vpop.f32.mrf.mxu0
        %v3113 = vadd.f32 %v2979, %v3112
        %3114 = vmatprep.mubr.bf16.mxu0 0
        %3115 = vmatmul.mubr.bf16.gmra.mxu0 %v2952
        %v3116 = vpop.f32.mrf.mxu0
        %v3117 = vadd.f32 %v2975, %v3116
        %v3118 = vpop.f32.mrf.mxu0
        %v3119 = vadd.f32 %v2979, %v3118
        %v3120 = vpop.f32.mrf.mxu0
        %v3121 = vadd.f32 %v2975, %v3120
        %v3122 = vpop.f32.mrf.mxu0
        %v3123 = vadd.f32 %v2979, %v3122
        %3124 = vmatprep.mubr.bf16.mxu0 0
        %3125 = vmatmul.mubr.bf16.gmra.mxu0 %v2953
        %v3126 = vpop.f32.mrf.mxu0
        %v3127 = vadd.f32 %v2975, %v3126
        %v3128 = vpop.f32.mrf.mxu0
        %v3129 = vadd.f32 %v2979, %v3128
        %v3130 = vpop.f32.mrf.mxu0
        %v3131 = vadd.f32 %v2975, %v3130
        %v3132 = vpop.f32.mrf.mxu0
        %v3133 = vadd.f32 %v2979, %v3132
        %3134 = vdwg.mxu0
        %v3135 = vmul.f32 %v3097, 1.702
        %v3136 = vmul.f32 %v3099, 1.702
        %v3137 = vmul.f32 %v3101, 1.702
        %v3138 = vmul.f32 %v3103, 1.702
        %v3139 = vmul.f32 %v3107, 1.702
        %v3140 = vmul.f32 %v3109, 1.702
        %v3141 = vmul.f32 %v3111, 1.702
        %v3142 = vmul.f32 %v3113, 1.702
        %v3143 = vmul.f32 %v3117, 1.702
        %v3144 = vmul.f32 %v3119, 1.702
        %v3145 = vmul.f32 %v3121, 1.702
        %v3146 = vmul.f32 %v3123, 1.702
        %v3147 = vmul.f32 %v3127, 1.702
        %v3148 = vmul.f32 %v3129, 1.702
        %v3149 = vmul.f32 %v3131, 1.702
        %v3150 = vmul.f32 %v3133, 1.702
        %v3151 = vxor.u32 %v3135, 2147483648
        %v3152 = vxor.u32 %v3136, 2147483648
        %v3153 = vxor.u32 %v3137, 2147483648
        %v3154 = vxor.u32 %v3138, 2147483648
        %v3155 = vxor.u32 %v3139, 2147483648
        %v3156 = vxor.u32 %v3140, 2147483648
        %v3157 = vxor.u32 %v3141, 2147483648
        %v3158 = vxor.u32 %v3142, 2147483648
        %v3159 = vxor.u32 %v3143, 2147483648
        %v3160 = vxor.u32 %v3144, 2147483648
        %v3161 = vxor.u32 %v3145, 2147483648
        %v3162 = vxor.u32 %v3146, 2147483648
        %v3163 = vxor.u32 %v3147, 2147483648
        %v3164 = vxor.u32 %v3148, 2147483648
        %v3165 = vxor.u32 %v3149, 2147483648
        %v3166 = vxor.u32 %v3150, 2147483648
        %v3167 = vmul.f32 %v3151, 1.442695
        %v3168 = vpow.pop %v3167
        %v3169 = vmul.f32 %v3152, 1.442695
        %v3170 = vpow.pop %v3169
        %v3171 = vmul.f32 %v3153, 1.442695
        %v3172 = vpow.pop %v3171
        %v3173 = vmul.f32 %v3154, 1.442695
        %v3174 = vpow.pop %v3173
        %v3175 = vmul.f32 %v3155, 1.442695
        %v3176 = vpow.pop %v3175
        %v3177 = vmul.f32 %v3156, 1.442695
        %v3178 = vpow.pop %v3177
        %v3179 = vmul.f32 %v3157, 1.442695
        %v3180 = vpow.pop %v3179
        %v3181 = vmul.f32 %v3158, 1.442695
        %v3182 = vpow.pop %v3181
        %v3183 = vmul.f32 %v3159, 1.442695
        %v3184 = vpow.pop %v3183
        %v3185 = vmul.f32 %v3160, 1.442695
        %v3186 = vpow.pop %v3185
        %v3187 = vmul.f32 %v3161, 1.442695
        %v3188 = vpow.pop %v3187
        %v3189 = vmul.f32 %v3162, 1.442695
        %v3190 = vpow.pop %v3189
        %v3191 = vmul.f32 %v3163, 1.442695
        %v3192 = vpow.pop %v3191
        %v3193 = vmul.f32 %v3164, 1.442695
        %v3194 = vpow.pop %v3193
        %v3195 = vmul.f32 %v3165, 1.442695
        %v3196 = vpow.pop %v3195
        %v3197 = vmul.f32 %v3166, 1.442695
        %v3198 = vpow.pop %v3197
        %v3199 = vadd.f32 %v3168, 1.0
        %v3200 = vadd.f32 %v3170, 1.0
        %v3201 = vadd.f32 %v3172, 1.0
        %v3202 = vadd.f32 %v3174, 1.0
        %v3203 = vadd.f32 %v3176, 1.0
        %v3204 = vadd.f32 %v3178, 1.0
        %v3205 = vadd.f32 %v3180, 1.0
        %v3206 = vadd.f32 %v3182, 1.0
        %v3207 = vadd.f32 %v3184, 1.0
        %v3208 = vadd.f32 %v3186, 1.0
        %v3209 = vadd.f32 %v3188, 1.0
        %v3210 = vadd.f32 %v3190, 1.0
        %v3211 = vadd.f32 %v3192, 1.0
        %v3212 = vadd.f32 %v3194, 1.0
        %v3213 = vadd.f32 %v3196, 1.0
        %v3214 = vadd.f32 %v3198, 1.0
        %v3215 = vrcp.pop %v3199
        %v3216 = vmul.f32 1.0, %v3215
        %v3217 = vrcp.pop %v3200
        %v3218 = vmul.f32 1.0, %v3217
        %v3219 = vrcp.pop %v3201
        %v3220 = vmul.f32 1.0, %v3219
        %v3221 = vrcp.pop %v3202
        %v3222 = vmul.f32 1.0, %v3221
        %v3223 = vrcp.pop %v3203
        %v3224 = vmul.f32 1.0, %v3223
        %v3225 = vrcp.pop %v3204
        %v3226 = vmul.f32 1.0, %v3225
        %v3227 = vrcp.pop %v3205
        %v3228 = vmul.f32 1.0, %v3227
        %v3229 = vrcp.pop %v3206
        %v3230 = vmul.f32 1.0, %v3229
        %v3231 = vrcp.pop %v3207
        %v3232 = vmul.f32 1.0, %v3231
        %v3233 = vrcp.pop %v3208
        %v3234 = vmul.f32 1.0, %v3233
        %v3235 = vrcp.pop %v3209
        %v3236 = vmul.f32 1.0, %v3235
        %v3237 = vrcp.pop %v3210
        %v3238 = vmul.f32 1.0, %v3237
        %v3239 = vrcp.pop %v3211
        %v3240 = vmul.f32 1.0, %v3239
        %v3241 = vrcp.pop %v3212
        %v3242 = vmul.f32 1.0, %v3241
        %v3243 = vrcp.pop %v3213
        %v3244 = vmul.f32 1.0, %v3243
        %v3245 = vrcp.pop %v3214
        %v3246 = vmul.f32 1.0, %v3245
        %v3247 = vmul.f32 %v3097, %v3216
        %v3248 = vmul.f32 %v3099, %v3218
        %v3249 = vmul.f32 %v3101, %v3220
        %v3250 = vmul.f32 %v3103, %v3222
        %v3251 = vmul.f32 %v3107, %v3224
        %v3252 = vmul.f32 %v3109, %v3226
        %v3253 = vmul.f32 %v3111, %v3228
        %v3254 = vmul.f32 %v3113, %v3230
        %v3255 = vmul.f32 %v3117, %v3232
        %v3256 = vmul.f32 %v3119, %v3234
        %v3257 = vmul.f32 %v3121, %v3236
        %v3258 = vmul.f32 %v3123, %v3238
        %v3259 = vmul.f32 %v3127, %v3240
        %v3260 = vmul.f32 %v3129, %v3242
        %v3261 = vmul.f32 %v3131, %v3244
        %v3262 = vmul.f32 %v3133, %v3246
        %v3263 = vpack.c.bf16 %v3249, %v3247
        %v3264 = vpack.c.bf16 %v3250, %v3248
        %v3265 = vpack.c.bf16 %v3253, %v3251
        %v3266 = vpack.c.bf16 %v3254, %v3252
        %v3267 = vpack.c.bf16 %v3257, %v3255
        %v3268 = vpack.c.bf16 %v3258, %v3256
        %v3269 = vpack.c.bf16 %v3261, %v3259
        %v3270 = vpack.c.bf16 %v3262, %v3260
        %v3271 = vld [vmem:[#allocation13] sm:$0xf]
        %v3272 = vld [vmem:[#allocation13 + $0x4] sm:$0xf]
        %v3273 = vld [vmem:[#allocation13 + $0x8] sm:$0xf]
        %v3274 = vld [vmem:[#allocation13 + $0xc] sm:$0xf]
        %v3275 = vld [vmem:[#allocation13 + $0x10] sm:$0xf]
        %v3276 = vld [vmem:[#allocation13 + $0x14] sm:$0xf]
        %v3277 = vld [vmem:[#allocation13 + $0x18] sm:$0xf]
        %v3278 = vld [vmem:[#allocation13 + $0x1c] sm:$0xf]
        %v3279 = vld [vmem:[#allocation13 + $0x20] sm:$0xf]
        %v3280 = vld [vmem:[#allocation13 + $0x24] sm:$0xf]
        %v3281 = vld [vmem:[#allocation13 + $0x28] sm:$0xf]
        %v3282 = vld [vmem:[#allocation13 + $0x2c] sm:$0xf]
        %v3283 = vld [vmem:[#allocation13 + $0x30] sm:$0xf]
        %v3284 = vld [vmem:[#allocation13 + $0x34] sm:$0xf]
        %v3285 = vld [vmem:[#allocation13 + $0x38] sm:$0xf]
        %v3286 = vld [vmem:[#allocation13 + $0x3c] sm:$0xf]
        %v3287 = vld [vmem:[#allocation13 + $0x40] sm:$0xf]
        %v3288 = vld [vmem:[#allocation13 + $0x44] sm:$0xf]
        %v3289 = vld [vmem:[#allocation13 + $0x48] sm:$0xf]
        %v3290 = vld [vmem:[#allocation13 + $0x4c] sm:$0xf]
        %v3291 = vld [vmem:[#allocation13 + $0x50] sm:$0xf]
        %v3292 = vld [vmem:[#allocation13 + $0x54] sm:$0xf]
        %v3293 = vld [vmem:[#allocation13 + $0x58] sm:$0xf]
        %v3294 = vld [vmem:[#allocation13 + $0x5c] sm:$0xf]
        %v3295 = vld [vmem:[#allocation13 + $0x60] sm:$0xf]
        %v3296 = vld [vmem:[#allocation13 + $0x64] sm:$0xf]
        %v3297 = vld [vmem:[#allocation13 + $0x68] sm:$0xf]
        %v3298 = vld [vmem:[#allocation13 + $0x6c] sm:$0xf]
        %v3299 = vld [vmem:[#allocation13 + $0x70] sm:$0xf]
        %v3300 = vld [vmem:[#allocation13 + $0x74] sm:$0xf]
        %v3301 = vld [vmem:[#allocation13 + $0x78] sm:$0xf]
        %v3302 = vld [vmem:[#allocation13 + $0x7c] sm:$0xf]
        %v3303 = vld [vmem:[%s12] sm:$0x1]
        %v3305 = vlaneseq
        %v3306 = vshrl.u32 %v3305, 7
        %v3307 = vsub.s32 0, %v3306
        %v3308 = vrot.slane %v3303, %v3307
        %v3342 = vunpack.c.l.b16 %v3271
        %v3343 = vunpack.c.l.b16 %v3272
        %v3344 = vunpack.c.l.b16 %v3273
        %v3345 = vunpack.c.l.b16 %v3274
        %v3346 = vunpack.c.l.b16 %v3275
        %v3347 = vunpack.c.l.b16 %v3276
        %v3348 = vunpack.c.l.b16 %v3277
        %v3349 = vunpack.c.l.b16 %v3278
        %v3350 = vunpack.c.l.b16 %v3279
        %v3351 = vunpack.c.l.b16 %v3280
        %v3352 = vunpack.c.l.b16 %v3281
        %v3353 = vunpack.c.l.b16 %v3282
        %v3354 = vunpack.c.l.b16 %v3283
        %v3355 = vunpack.c.l.b16 %v3284
        %v3356 = vunpack.c.l.b16 %v3285
        %v3357 = vunpack.c.l.b16 %v3286
        %v3358 = vunpack.c.l.b16 %v3287
        %v3359 = vunpack.c.l.b16 %v3288
        %v3360 = vunpack.c.l.b16 %v3289
        %v3361 = vunpack.c.l.b16 %v3290
        %v3362 = vunpack.c.l.b16 %v3291
        %v3363 = vunpack.c.l.b16 %v3292
        %v3364 = vunpack.c.l.b16 %v3293
        %v3365 = vunpack.c.l.b16 %v3294
        %v3366 = vunpack.c.l.b16 %v3295
        %v3367 = vunpack.c.l.b16 %v3296
        %v3368 = vunpack.c.l.b16 %v3297
        %v3369 = vunpack.c.l.b16 %v3298
        %v3370 = vunpack.c.l.b16 %v3299
        %v3371 = vunpack.c.l.b16 %v3300
        %v3372 = vunpack.c.l.b16 %v3301
        %v3373 = vunpack.c.l.b16 %v3302
        %v3374 = vpack.c.b16 %v3343, %v3342
        %v3375 = vpack.c.b16 %v3345, %v3344
        %v3376 = vpack.c.b16 %v3347, %v3346
        %v3377 = vpack.c.b16 %v3349, %v3348
        %v3378 = vpack.c.b16 %v3351, %v3350
        %v3379 = vpack.c.b16 %v3353, %v3352
        %v3380 = vpack.c.b16 %v3355, %v3354
        %v3381 = vpack.c.b16 %v3357, %v3356
        %v3382 = vpack.c.b16 %v3359, %v3358
        %v3383 = vpack.c.b16 %v3361, %v3360
        %v3384 = vpack.c.b16 %v3363, %v3362
        %v3385 = vpack.c.b16 %v3365, %v3364
        %v3386 = vpack.c.b16 %v3367, %v3366
        %v3387 = vpack.c.b16 %v3369, %v3368
        %v3388 = vpack.c.b16 %v3371, %v3370
        %v3389 = vpack.c.b16 %v3373, %v3372
        %3406 = vmatprep.subr.bf16.mxu0 0
        %3407 = vmatpush1.bf16.msra.mxu0 %v3381
        %3408 = vmatprep.subr.bf16.mxu0 0
        %3409 = vmatpush1.bf16.msra.mxu0 %v3380
        %3410 = vmatprep.subr.bf16.mxu0 0
        %3411 = vmatpush1.bf16.msra.mxu0 %v3379
        %3412 = vmatprep.subr.bf16.mxu0 0
        %3413 = vmatpush1.bf16.msra.mxu0 %v3378
        %3414 = vmatprep.subr.bf16.mxu0 0
        %3415 = vmatpush1.bf16.msra.mxu0 %v3377
        %3416 = vmatprep.subr.bf16.mxu0 0
        %3417 = vmatpush1.bf16.msra.mxu0 %v3376
        %3418 = vmatprep.subr.bf16.mxu0 0
        %3419 = vmatpush1.bf16.msra.mxu0 %v3375
        %3420 = vmatprep.subr.bf16.mxu0 0
        %3421 = vmatpush1.bf16.msra.mxu0 %v3374
        %3422 = vmatprep.subr.bf16.mxu0 0
        %3423 = vmatpush2.bf16.msra.mxu0 %v3389
        %3424 = vmatprep.subr.bf16.mxu0 0
        %3425 = vmatpush2.bf16.msra.mxu0 %v3388
        %3426 = vmatprep.subr.bf16.mxu0 0
        %3427 = vmatpush2.bf16.msra.mxu0 %v3387
        %3428 = vmatprep.subr.bf16.mxu0 0
        %3429 = vmatpush2.bf16.msra.mxu0 %v3386
        %3430 = vmatprep.subr.bf16.mxu0 0
        %3431 = vmatpush2.bf16.msra.mxu0 %v3385
        %3432 = vmatprep.subr.bf16.mxu0 0
        %3433 = vmatpush2.bf16.msra.mxu0 %v3384
        %3434 = vmatprep.subr.bf16.mxu0 0
        %3435 = vmatpush2.bf16.msra.mxu0 %v3383
        %3436 = vmatprep.subr.bf16.mxu0 0
        %3437 = vmatpush2.bf16.msra.mxu0 %v3382
        %3438 = vmatprep.mubr.bf16.mxu0 %v3264
        %3439 = vmatmul.mubr.bf16.gmra.mxu0 %v3263
        %v3440 = vpop.f32.mrf.mxu0
        %v3441 = vadd.f32 %v3308, %v3440
        %v3442 = vpop.f32.mrf.mxu0
        %v3443 = vpop.f32.mrf.mxu0
        %v3444 = vadd.f32 %v3308, %v3443
        %v3445 = vpop.f32.mrf.mxu0
        %3446 = vmatprep.mubr.bf16.mxu0 %v3266
        %3447 = vmatmul.mubr.bf16.gmra.mxu0 %v3265
        %v3448 = vpop.f32.mrf.mxu0
        %v3449 = vadd.f32 %v3308, %v3448
        %v3450 = vpop.f32.mrf.mxu0
        %v3451 = vpop.f32.mrf.mxu0
        %v3452 = vadd.f32 %v3308, %v3451
        %v3453 = vpop.f32.mrf.mxu0
        %3454 = vmatprep.mubr.bf16.mxu0 %v3268
        %3455 = vmatmul.mubr.bf16.gmra.mxu0 %v3267
        %v3456 = vpop.f32.mrf.mxu0
        %v3457 = vadd.f32 %v3308, %v3456
        %v3458 = vpop.f32.mrf.mxu0
        %v3459 = vpop.f32.mrf.mxu0
        %v3460 = vadd.f32 %v3308, %v3459
        %v3461 = vpop.f32.mrf.mxu0
        %3462 = vmatprep.mubr.bf16.mxu0 %v3270
        %3463 = vmatmul.mubr.bf16.gmra.mxu0 %v3269
        %v3464 = vpop.f32.mrf.mxu0
        %v3465 = vadd.f32 %v3308, %v3464
        %v3466 = vpop.f32.mrf.mxu0
        %v3467 = vpop.f32.mrf.mxu0
        %v3468 = vadd.f32 %v3308, %v3467
        %v3469 = vpop.f32.mrf.mxu0
        %3470 = vdwg.mxu0
        %v3471 = vadd.f32 %v2824, %v3441
        %v3472 = vadd.f32 %v2825, %v3444
        %v3473 = vadd.f32 %v2826, %v3449
        %v3474 = vadd.f32 %v2827, %v3452
        %v3475 = vadd.f32 %v2828, %v3457
        %v3476 = vadd.f32 %v2829, %v3460
        %v3477 = vadd.f32 %v2830, %v3465
        %v3478 = vadd.f32 %v2831, %v3468
        %3479 = vst [vmem:[%s542] sm:$0xff] %v3471
        %3480 = vst [vmem:[%s542 + $0x8] sm:$0xff] %v3472
        %3481 = vst [vmem:[%s542 + $0x10] sm:$0xff] %v3473
        %3482 = vst [vmem:[%s542 + $0x18] sm:$0xff] %v3474
        %3483 = vst [vmem:[%s542 + $0x20] sm:$0xff] %v3475
        %3484 = vst [vmem:[%s542 + $0x28] sm:$0xff] %v3476
        %3485 = vst [vmem:[%s542 + $0x30] sm:$0xff] %v3477
        %3486 = vst [vmem:[%s542 + $0x38] sm:$0xff] %v3478
        %s3487 = sand.u32 %s319, 1
        %s3488 = scalar_lea.sflag [#allocation4], %s3487
        %s3489 = sand.u32 %s319, 1
        %s3490 = smul.addr %s3489, 64
        %s3491 = scalar_lea.vmem [#allocation14], %s3490
        // Predicated region
        $region101: #{tpu_custom_call.1} parent=71 // pred_check
          %p3492 = pneg %p329
        $region102: #{tpu_custom_call.1} parent=71 // pred_check_branch
          %3494 = sbr.rel (%p3492) target = $region104
        $region103: #{tpu_custom_call.1} parent=71 // pred_region
          %s3495 = smul.u32 2, %s33
          %s3497 = ssub.s32 1024, 1024
          %3498 = vsyncadd %s3488, %s3497
          %s3499 = smul.addr %s3495, 4
          %s3500 = smul.addr %s3499, 128
          %s3501 = scalar_lea.hbm %s13, %s3500
          %s3502 = sshll.u32 %s3491, 4
          %s3503 = int_to_ptr.vmem [resolvable:$true] %s3502
          %3508 = dma.vmem_to_hbm [thread:$0]  %s3503, 1024, %s3501, %s3488, 128, 128, 8
        $region104: #{tpu_custom_call.1} parent=71 // pred_fallthru
          _
      $region72: #{tpu_custom_call.1} parent=5 // pred_fallthru
        _
      %p3509 = scmp.le.s32.totalorder 2, %s28
      // Predicated region
      $region105: #{tpu_custom_call.1} parent=5 // pred_check
        %p3510 = pneg %p3509
      $region106: #{tpu_custom_call.1} parent=5 // pred_check_branch
        %3512 = sbr.rel (%p3510) target = $region108
      $region107: #{tpu_custom_call.1} parent=5 // pred_region
        %s3513 = ssub.s32 %s28, 2
        // Predicated region
        $region109: #{tpu_custom_call.1} parent=107 // pred_check
          %p3514 = pneg %p335
        $region110: #{tpu_custom_call.1} parent=107 // pred_check_branch
          %3516 = sbr.rel (%p3514) target = $region112
        $region111: #{tpu_custom_call.1} parent=107 // pred_region
          %s3517 = sand.u32 %s320, 1
          %s3518 = scalar_lea.sflag [#allocation4], %s3517
          %s3519 = sand.u32 %s320, 1
          %s3520 = smul.addr %s3519, 64
          %s3521 = scalar_lea.vmem [#allocation14], %s3520
          %3522 = dma.done %s3518, 1024
        $region112: #{tpu_custom_call.1} parent=107 // pred_fallthru
          _
      $region108: #{tpu_custom_call.1} parent=5 // pred_fallthru
        _
    $region6: #{tpu_custom_call.1} parent=1 // loop_footer
      %s32 = sadd.s32 1, %s28
    $region7: #{tpu_custom_call.1} parent=1 // loop_footer_branch
      %27 = sbr.rel target = $region3
    $region8: #{tpu_custom_call.1} parent=1 // loop_exit
      _
    %3523 = vsyncpa [#allocation3], 1
    %s3524 = scalar_lea.sflag [#allocation3], 1
    %3525 = vsyncpa %s3524, 1
    %3526 = vsyncpa [#allocation6], 1
    %3527 = vsyncpa [#allocation9], 1
    %3528 = vsyncpa [#allocation12], 1
    %3529 = vsyncpa [#allocation4], 1
    %s3530 = scalar_lea.sflag [#allocation4], 1
    %3531 = vsyncpa %s3530, 1

</llo_original>
